<compile_context>
chip_gen: v7x
topology: tpu7x:2x2x1
jax: 0.10.0
libtpu: 0.0.40
codegen_flags: <defaults>
</compile_context>

<pallas_src>
import jax
import jax.numpy as jnp
from jax import lax
from jax.experimental import pallas as pl
from jax.experimental.pallas import tpu as pltpu

H = W = 64                 # forward() hard-codes x.view(B, C, 64, 64)
K = 7                      # kernel_size
PAD = 3                    # padding
RC = 32                    # image rows computed per chunk (keeps live vregs < ~40)
SLAB = RC + K - 1 + 2      # padded rows loaded per chunk (38 -> 40, sublane aligned)
HPADT = H + 2 * PAD + 2    # row-padded plane height handed to the kernel (70 -> 72)


def _num_tensorcores() -> int:
    """Best-effort TensorCores per JAX device (generation-aware grid).

    v5e / v6e (and the per-core devices of v2/v3) expose one TensorCore per
    device, so a multi-step grid only adds per-step pipeline overhead;
    v4 / v5p / v7x are megacore (2 TCs) and benefit from a 2-step "parallel"
    grid.  Defaults to 2, which is correct (just slightly slower) everywhere.
    """
    try:
        kind = jax.devices()[0].device_kind.lower()
    except Exception:
        return 2
    if any(t in kind for t in ("lite", "v5e", "v6e", "v2", "v3")):
        return 1
    return 2


GRID = _num_tensorcores()          # 1 on single-TC chips, 2 on megacore chips
HB = H // GRID                     # image rows per grid step (64 or 32)


def _make_kernel(B, C, HB_rows):
    C2 = 2 * C
    PW = B * W                     # packed lane width: batches side by side (128)
    INV_C = 1.0 / C
    SQRT1_2 = 0.7071067811865476
    n_chunks = HB_rows // RC       # 1 chunk on megacore steps, 2 when GRID == 1

    def kernel(dw_ref, g_ref, beta_ref, w1_ref, w2_ref, x_ref, out_ref):
        # dw_ref   : (C, K*K)        SMEM  depthwise weights
        # g_ref    : (C,)            SMEM  LayerNorm weight
        # beta_ref : (C,)            SMEM  LayerNorm bias
        # w1_ref   : (2C, C)         SMEM  pwconv1 weight (out, in)
        # w2_ref   : (C, 2C)         SMEM  pwconv2 weight (out, in)
        # x_ref    : (C, HPADT, PW)  VMEM  row-padded, batch-lane-packed input
        # out_ref  : (C, HB, PW)     VMEM  this step's output rows (lane dense)
        base_row = pl.multiple_of(pl.program_id(0) * HB_rows, RC)

        # Lane-validity masks for the 7 horizontal taps (hoisted, one per dv).
        # Lane l = b*W + w; tap v reads column w + (v - PAD), valid iff it
        # stays inside the same batch's [0, W) range.
        lane_w = lax.broadcasted_iota(jnp.int32, (SLAB, PW), 1) % W
        lane_ok = [(lane_w + (v - PAD) >= 0) & (lane_w + (v - PAD) < W)
                   for v in range(K)]

        for chunk in range(n_chunks):
            off = chunk * RC                               # static offset in out block
            prow0 = pl.multiple_of(base_row + off, RC)     # first padded row of slab

            # -- 1. depthwise 7x7 conv (channels-first, scalar SMEM weights) --
            conv = []
            for c in range(C):
                slab = x_ref[c, pl.ds(prow0, SLAB), :].astype(jnp.float32)  # (40, PW)
                acc = jnp.zeros((RC, PW), jnp.float32)
                for v in range(K):                         # lane shift (hoisted per v)
                    dv = v - PAD
                    if dv == 0:
                        xv = slab
                    else:
                        xv = pltpu.roll(slab, shift=(-dv) % PW, axis=1)   # XLU vrot
                        xv = jnp.where(lane_ok[v], xv, 0.0)
                    for u in range(K):                     # sublane offset (cheap slice)
                        acc = acc + dw_ref[c, u * K + v] * xv[u:u + RC, :]
                conv.append(acc)

            # -- 2. LayerNorm over channels (eps=1e-6, biased variance) --
            mean = conv[0]
            for c in range(1, C):
                mean = mean + conv[c]
            mean = mean * INV_C
            var = (conv[0] - mean) * (conv[0] - mean)
            for c in range(1, C):
                d = conv[c] - mean
                var = var + d * d
            var = var * INV_C
            rstd = lax.rsqrt(var + 1e-6)
            xn = [(conv[c] - mean) * rstd * g_ref[c] + beta_ref[c] for c in range(C)]

            # -- 3. pwconv1 -> exact GELU -> pwconv2 (broadcast FMAs on the VPU) --
            ya = [jnp.zeros((RC, PW), jnp.float32) for _ in range(C)]
            for m in range(C2):
                h = w1_ref[m, 0] * xn[0]
                for c in range(1, C):
                    h = h + w1_ref[m, c] * xn[c]
                h = 0.5 * h * (1.0 + lax.erf(h * SQRT1_2))   # exact GELU (nn.GELU)
                for c in range(C):
                    ya[c] = ya[c] + w2_ref[c, m] * h

            # -- 4. lane-dense stores: full-width (RC, 128) tiles, no transposes --
            for c in range(C):
                out_ref[c, off:off + RC, :] = ya[c].astype(out_ref.dtype)

    return kernel


@jax.jit
def depthwise_conv_module(x, params):
    """x: (B, C, N) with N == 64*64  ->  (N, B, C), matching Depthwise_Conv.forward."""
    B, C, N = x.shape
    assert N == H * W, "forward() hard-codes a 64x64 spatial view"
    PW = B * W

    # Pack batches along lanes and zero-pad the row halo in the wrapper
    # (tiny XLA transpose/pad over ~140 KiB) so the kernel does no packing.
    x4 = x.reshape(B, C, H, W)
    xp = jnp.transpose(x4, (1, 2, 0, 3)).reshape(C, H, PW)
    xp = jnp.pad(xp, ((0, 0), (PAD, HPADT - H - PAD), (0, 0)))

    dw_flat = params["dw_w"].reshape(C, K * K)

    smem = pl.BlockSpec(memory_space=pltpu.MemorySpace.SMEM)
    y = pl.pallas_call(
        _make_kernel(B, C, HB),
        out_shape=jax.ShapeDtypeStruct((C, H, PW), x.dtype),
        grid=(GRID,),
        in_specs=[
            smem, smem, smem, smem, smem,                       # weights / norm params
            pl.BlockSpec((C, HPADT, PW), lambda i: (0, 0, 0)),  # constant block: 1 fetch
        ],
        out_specs=pl.BlockSpec((C, HB, PW), lambda i: (0, i, 0)),
        compiler_params=pltpu.CompilerParams(dimension_semantics=("parallel",)),
        # TODO(synk): if a v7x bundle shows the 2-step grid running serially on one
        # core, switch this axis to pltpu.CORE_PARALLEL (bundle-verify first).
    )(dw_flat, params["ln_g"], params["ln_b"], params["w1"], params["w2"], xp)

    # The module's permute(2,3,0,1).reshape(N,B,C): a ~128 KiB XLA transpose,
    # kept outside so the kernel's stores stay full-width and lane dense.
    return jnp.transpose(y.reshape(C, H, B, W), (1, 3, 2, 0)).reshape(N, B, C)


def _reference(x, params):
    """Pure-JAX reference of the PyTorch module (for a correctness assert)."""
    B, C, N = x.shape
    x4 = x.reshape(B, C, H, W)
    xp = jnp.pad(x4, ((0, 0), (0, 0), (PAD, PAD), (PAD, PAD)))
    wd = params["dw_w"]
    y = jnp.zeros_like(x4)
    for v in range(K):
        for u in range(K):
            y = y + wd[:, 0, u, v][None, :, None, None] * xp[:, :, u:u + H, v:v + W]
    t = jnp.transpose(y, (2, 3, 0, 1)).reshape(N, B, C)
    mu = jnp.mean(t, axis=-1, keepdims=True)
    var = jnp.mean((t - mu) ** 2, axis=-1, keepdims=True)
    tn = (t - mu) * lax.rsqrt(var + 1e-6) * params["ln_g"] + params["ln_b"]
    h = jnp.einsum("nbc,mc->nbm", tn, params["w1"], precision=lax.Precision.HIGHEST)
    h = 0.5 * h * (1.0 + lax.erf(h * 0.7071067811865476))
    return jnp.einsum("nbm,cm->nbc", h, params["w2"], precision=lax.Precision.HIGHEST)


if __name__ == "__main__":
    B, C = 2, 4                      # dim = 4 -> med_channels = 8
    N = H * W                        # 4096 (fixed by the hard-coded 64x64 view)
    key = jax.random.PRNGKey(0)
    k1, k2, k3, k4, k5, k6 = jax.random.split(key, 6)

    x = jax.random.normal(k1, (B, C, N), jnp.float32)

    # Deterministic synthetic parameters (shapes follow the nn.Module __init__;
    # conv/linear have bias=False, LayerNorm has affine weight+bias).
    params = {
        "dw_w": 0.1 * jax.random.normal(k2, (C, 1, K, K), jnp.float32),   # Conv2d weight
        "ln_g": 1.0 + 0.1 * jax.random.normal(k3, (C,), jnp.float32),     # LayerNorm weight
        "ln_b": 0.1 * jax.random.normal(k4, (C,), jnp.float32),           # LayerNorm bias
        "w1": 0.1 * jax.random.normal(k5, (2 * C, C), jnp.float32),       # Linear (out, in)
        "w2": 0.1 * jax.random.normal(k6, (C, 2 * C), jnp.float32),       # Linear (out, in)
    }

    out = depthwise_conv_module(x, params)
    jax.block_until_ready(out)
    assert out.shape == (N, B, C)

    ref = _reference(x, params)
    assert jnp.allclose(out, ref, atol=1e-4, rtol=1e-4), float(
        jnp.max(jnp.abs(out - ref)))
    print("KERNEL_OK")
</pallas_src>

<mosaic_0001>
module attributes {stable_mosaic.version = 11 : i64} {
  func.func @kernel(%arg0: i32, %arg1: memref<4x49xf32, #tpu.memory_space<smem>>, %arg2: memref<4xf32, #tpu.memory_space<smem>>, %arg3: memref<4xf32, #tpu.memory_space<smem>>, %arg4: memref<8x4xf32, #tpu.memory_space<smem>>, %arg5: memref<4x8xf32, #tpu.memory_space<smem>>, %arg6: memref<4x72x128xf32, #tpu.memory_space<vmem>>, %arg7: memref<4x32x128xf32, #tpu.memory_space<vmem>>) attributes {dimension_semantics = [#tpu.dimension_semantics<parallel>], iteration_bounds = array<i64: 2>, scalar_prefetch = 0 : i64, scratch_operands = 0 : i64, tpu.core_type = #tpu.core_type<tc>, window_params = [{transform_indices = @transform_0, window_bounds = array<i64: 4, 49>}, {transform_indices = @transform_1, window_bounds = array<i64: 4>}, {transform_indices = @transform_2, window_bounds = array<i64: 4>}, {transform_indices = @transform_3, window_bounds = array<i64: 8, 4>}, {transform_indices = @transform_4, window_bounds = array<i64: 4, 8>}, {pipeline_mode = #tpu.pipeline_mode<synchronous>, transform_indices = @transform_5, window_bounds = array<i64: 4, 72, 128>}, {transform_indices = @transform_6, window_bounds = array<i64: 4, 32, 128>}]} {
    %c32_i32 = arith.constant 32 : i32
    %0 = arith.muli %arg0, %c32_i32 : i32
    %1 = tpu.assume_multiple %0, 32 : i32
    %2 = tpu.iota {dimensions = array<i32: 1>} : vector<40x128xi32>
    %c64_i32 = arith.constant 64 : i32
    %c0_i32 = arith.constant 0 : i32
    %3 = arith.cmpi eq, %c64_i32, %c0_i32 : i32
    %c1_i32 = arith.constant 1 : i32
    %4 = arith.select %3, %c1_i32, %c64_i32 : i32
    %5 = vector.broadcast %4 : i32 to vector<40x128xi32>
    %6 = arith.remsi %2, %5 : vector<40x128xi32>
    %c0_i32_0 = arith.constant 0 : i32
    %7 = vector.broadcast %c0_i32_0 : i32 to vector<40x128xi32>
    %8 = arith.cmpi ne, %6, %7 : vector<40x128xi32>
    %c0_i32_1 = arith.constant 0 : i32
    %9 = vector.broadcast %c0_i32_1 : i32 to vector<40x128xi32>
    %10 = arith.cmpi slt, %6, %9 : vector<40x128xi32>
    %c0_i32_2 = arith.constant 0 : i32
    %11 = arith.cmpi slt, %4, %c0_i32_2 : i32
    %12 = vector.broadcast %11 : i1 to vector<40x128xi1>
    %13 = vector.broadcast %12 : vector<40x128xi1> to vector<40x128xi1>
    %14 = arith.xori %10, %13 : vector<40x128xi1>
    %15 = arith.andi %14, %8 : vector<40x128xi1>
    %16 = vector.broadcast %4 : i32 to vector<40x128xi32>
    %17 = arith.addi %6, %16 : vector<40x128xi32>
    %18 = arith.select %15, %17, %6 : vector<40x128xi1>, vector<40x128xi32>
    %c-3_i32 = arith.constant -3 : i32
    %19 = vector.broadcast %c-3_i32 : i32 to vector<40x128xi32>
    %20 = arith.addi %18, %19 : vector<40x128xi32>
    %c0_i32_3 = arith.constant 0 : i32
    %21 = vector.broadcast %c0_i32_3 : i32 to vector<40x128xi32>
    %22 = arith.cmpi sge, %20, %21 : vector<40x128xi32>
    %c-3_i32_4 = arith.constant -3 : i32
    %23 = vector.broadcast %c-3_i32_4 : i32 to vector<40x128xi32>
    %24 = arith.addi %18, %23 : vector<40x128xi32>
    %c64_i32_5 = arith.constant 64 : i32
    %25 = vector.broadcast %c64_i32_5 : i32 to vector<40x128xi32>
    %26 = arith.cmpi slt, %24, %25 : vector<40x128xi32>
    %27 = arith.andi %22, %26 : vector<40x128xi1>
    %c-2_i32 = arith.constant -2 : i32
    %28 = vector.broadcast %c-2_i32 : i32 to vector<40x128xi32>
    %29 = arith.addi %18, %28 : vector<40x128xi32>
    %c0_i32_6 = arith.constant 0 : i32
    %30 = vector.broadcast %c0_i32_6 : i32 to vector<40x128xi32>
    %31 = arith.cmpi sge, %29, %30 : vector<40x128xi32>
    %c-2_i32_7 = arith.constant -2 : i32
    %32 = vector.broadcast %c-2_i32_7 : i32 to vector<40x128xi32>
    %33 = arith.addi %18, %32 : vector<40x128xi32>
    %c64_i32_8 = arith.constant 64 : i32
    %34 = vector.broadcast %c64_i32_8 : i32 to vector<40x128xi32>
    %35 = arith.cmpi slt, %33, %34 : vector<40x128xi32>
    %36 = arith.andi %31, %35 : vector<40x128xi1>
    %c-1_i32 = arith.constant -1 : i32
    %37 = vector.broadcast %c-1_i32 : i32 to vector<40x128xi32>
    %38 = arith.addi %18, %37 : vector<40x128xi32>
    %c0_i32_9 = arith.constant 0 : i32
    %39 = vector.broadcast %c0_i32_9 : i32 to vector<40x128xi32>
    %40 = arith.cmpi sge, %38, %39 : vector<40x128xi32>
    %c-1_i32_10 = arith.constant -1 : i32
    %41 = vector.broadcast %c-1_i32_10 : i32 to vector<40x128xi32>
    %42 = arith.addi %18, %41 : vector<40x128xi32>
    %c64_i32_11 = arith.constant 64 : i32
    %43 = vector.broadcast %c64_i32_11 : i32 to vector<40x128xi32>
    %44 = arith.cmpi slt, %42, %43 : vector<40x128xi32>
    %45 = arith.andi %40, %44 : vector<40x128xi1>
    %c1_i32_12 = arith.constant 1 : i32
    %46 = vector.broadcast %c1_i32_12 : i32 to vector<40x128xi32>
    %47 = arith.addi %18, %46 : vector<40x128xi32>
    %c0_i32_13 = arith.constant 0 : i32
    %48 = vector.broadcast %c0_i32_13 : i32 to vector<40x128xi32>
    %49 = arith.cmpi sge, %47, %48 : vector<40x128xi32>
    %c1_i32_14 = arith.constant 1 : i32
    %50 = vector.broadcast %c1_i32_14 : i32 to vector<40x128xi32>
    %51 = arith.addi %18, %50 : vector<40x128xi32>
    %c64_i32_15 = arith.constant 64 : i32
    %52 = vector.broadcast %c64_i32_15 : i32 to vector<40x128xi32>
    %53 = arith.cmpi slt, %51, %52 : vector<40x128xi32>
    %54 = arith.andi %49, %53 : vector<40x128xi1>
    %c2_i32 = arith.constant 2 : i32
    %55 = vector.broadcast %c2_i32 : i32 to vector<40x128xi32>
    %56 = arith.addi %18, %55 : vector<40x128xi32>
    %c0_i32_16 = arith.constant 0 : i32
    %57 = vector.broadcast %c0_i32_16 : i32 to vector<40x128xi32>
    %58 = arith.cmpi sge, %56, %57 : vector<40x128xi32>
    %c2_i32_17 = arith.constant 2 : i32
    %59 = vector.broadcast %c2_i32_17 : i32 to vector<40x128xi32>
    %60 = arith.addi %18, %59 : vector<40x128xi32>
    %c64_i32_18 = arith.constant 64 : i32
    %61 = vector.broadcast %c64_i32_18 : i32 to vector<40x128xi32>
    %62 = arith.cmpi slt, %60, %61 : vector<40x128xi32>
    %63 = arith.andi %58, %62 : vector<40x128xi1>
    %c3_i32 = arith.constant 3 : i32
    %64 = vector.broadcast %c3_i32 : i32 to vector<40x128xi32>
    %65 = arith.addi %18, %64 : vector<40x128xi32>
    %c0_i32_19 = arith.constant 0 : i32
    %66 = vector.broadcast %c0_i32_19 : i32 to vector<40x128xi32>
    %67 = arith.cmpi sge, %65, %66 : vector<40x128xi32>
    %c3_i32_20 = arith.constant 3 : i32
    %68 = vector.broadcast %c3_i32_20 : i32 to vector<40x128xi32>
    %69 = arith.addi %18, %68 : vector<40x128xi32>
    %c64_i32_21 = arith.constant 64 : i32
    %70 = vector.broadcast %c64_i32_21 : i32 to vector<40x128xi32>
    %71 = arith.cmpi slt, %69, %70 : vector<40x128xi32>
    %72 = arith.andi %67, %71 : vector<40x128xi1>
    %c0_i32_22 = arith.constant 0 : i32
    %73 = arith.addi %1, %c0_i32_22 : i32
    %74 = tpu.assume_multiple %73, 32 : i32
    %c0 = arith.constant 0 : index
    %75 = arith.index_cast %74 : i32 to index
    %c0_23 = arith.constant 0 : index
    %76 = vector.load %arg6[%c0, %75, %c0_23] : memref<4x72x128xf32, #tpu.memory_space<vmem>>, vector<1x40x128xf32>
    %77 = vector.shape_cast %76 : vector<1x40x128xf32> to vector<40x128xf32>
    %cst = arith.constant 0.000000e+00 : f32
    %78 = vector.broadcast %cst : f32 to vector<32x128xf32>
    %c3_i32_24 = arith.constant 3 : i32
    %79 = tpu.dynamic_rotate %77 by %c3_i32_24 dim 1 : vector<40x128xf32>, i32 -> vector<40x128xf32>
    %cst_25 = arith.constant 0.000000e+00 : f32
    %80 = vector.broadcast %cst_25 : f32 to vector<40x128xf32>
    %81 = arith.select %27, %79, %80 : vector<40x128xi1>, vector<40x128xf32>
    %c0_26 = arith.constant 0 : index
    %c0_27 = arith.constant 0 : index
    %82 = memref.load %arg1[%c0_26, %c0_27] : memref<4x49xf32, #tpu.memory_space<smem>>
    %83 = vector.extract_strided_slice %81 {offsets = [0, 0], sizes = [32, 128], strides = [1, 1]} : vector<40x128xf32> to vector<32x128xf32>
    %84 = vector.broadcast %82 : f32 to vector<32x128xf32>
    %85 = arith.mulf %84, %83 : vector<32x128xf32>
    %86 = arith.addf %78, %85 : vector<32x128xf32>
    %c0_28 = arith.constant 0 : index
    %c7 = arith.constant 7 : index
    %87 = memref.load %arg1[%c0_28, %c7] : memref<4x49xf32, #tpu.memory_space<smem>>
    %88 = vector.extract_strided_slice %81 {offsets = [1, 0], sizes = [32, 128], strides = [1, 1]} : vector<40x128xf32> to vector<32x128xf32>
    %89 = vector.broadcast %87 : f32 to vector<32x128xf32>
    %90 = arith.mulf %89, %88 : vector<32x128xf32>
    %91 = arith.addf %86, %90 : vector<32x128xf32>
    %c0_29 = arith.constant 0 : index
    %c14 = arith.constant 14 : index
    %92 = memref.load %arg1[%c0_29, %c14] : memref<4x49xf32, #tpu.memory_space<smem>>
    %93 = vector.extract_strided_slice %81 {offsets = [2, 0], sizes = [32, 128], strides = [1, 1]} : vector<40x128xf32> to vector<32x128xf32>
    %94 = vector.broadcast %92 : f32 to vector<32x128xf32>
    %95 = arith.mulf %94, %93 : vector<32x128xf32>
    %96 = arith.addf %91, %95 : vector<32x128xf32>
    %c0_30 = arith.constant 0 : index
    %c21 = arith.constant 21 : index
    %97 = memref.load %arg1[%c0_30, %c21] : memref<4x49xf32, #tpu.memory_space<smem>>
    %98 = vector.extract_strided_slice %81 {offsets = [3, 0], sizes = [32, 128], strides = [1, 1]} : vector<40x128xf32> to vector<32x128xf32>
    %99 = vector.broadcast %97 : f32 to vector<32x128xf32>
    %100 = arith.mulf %99, %98 : vector<32x128xf32>
    %101 = arith.addf %96, %100 : vector<32x128xf32>
    %c0_31 = arith.constant 0 : index
    %c28 = arith.constant 28 : index
    %102 = memref.load %arg1[%c0_31, %c28] : memref<4x49xf32, #tpu.memory_space<smem>>
    %103 = vector.extract_strided_slice %81 {offsets = [4, 0], sizes = [32, 128], strides = [1, 1]} : vector<40x128xf32> to vector<32x128xf32>
    %104 = vector.broadcast %102 : f32 to vector<32x128xf32>
    %105 = arith.mulf %104, %103 : vector<32x128xf32>
    %106 = arith.addf %101, %105 : vector<32x128xf32>
    %c0_32 = arith.constant 0 : index
    %c35 = arith.constant 35 : index
    %107 = memref.load %arg1[%c0_32, %c35] : memref<4x49xf32, #tpu.memory_space<smem>>
    %108 = vector.extract_strided_slice %81 {offsets = [5, 0], sizes = [32, 128], strides = [1, 1]} : vector<40x128xf32> to vector<32x128xf32>
    %109 = vector.broadcast %107 : f32 to vector<32x128xf32>
    %110 = arith.mulf %109, %108 : vector<32x128xf32>
    %111 = arith.addf %106, %110 : vector<32x128xf32>
    %c0_33 = arith.constant 0 : index
    %c42 = arith.constant 42 : index
    %112 = memref.load %arg1[%c0_33, %c42] : memref<4x49xf32, #tpu.memory_space<smem>>
    %113 = vector.extract_strided_slice %81 {offsets = [6, 0], sizes = [32, 128], strides = [1, 1]} : vector<40x128xf32> to vector<32x128xf32>
    %114 = vector.broadcast %112 : f32 to vector<32x128xf32>
    %115 = arith.mulf %114, %113 : vector<32x128xf32>
    %116 = arith.addf %111, %115 : vector<32x128xf32>
    %c2_i32_34 = arith.constant 2 : i32
    %117 = tpu.dynamic_rotate %77 by %c2_i32_34 dim 1 : vector<40x128xf32>, i32 -> vector<40x128xf32>
    %cst_35 = arith.constant 0.000000e+00 : f32
    %118 = vector.broadcast %cst_35 : f32 to vector<40x128xf32>
    %119 = arith.select %36, %117, %118 : vector<40x128xi1>, vector<40x128xf32>
    %c0_36 = arith.constant 0 : index
    %c1 = arith.constant 1 : index
    %120 = memref.load %arg1[%c0_36, %c1] : memref<4x49xf32, #tpu.memory_space<smem>>
    %121 = vector.extract_strided_slice %119 {offsets = [0, 0], sizes = [32, 128], strides = [1, 1]} : vector<40x128xf32> to vector<32x128xf32>
    %122 = vector.broadcast %120 : f32 to vector<32x128xf32>
    %123 = arith.mulf %122, %121 : vector<32x128xf32>
    %124 = arith.addf %116, %123 : vector<32x128xf32>
    %c0_37 = arith.constant 0 : index
    %c8 = arith.constant 8 : index
    %125 = memref.load %arg1[%c0_37, %c8] : memref<4x49xf32, #tpu.memory_space<smem>>
    %126 = vector.extract_strided_slice %119 {offsets = [1, 0], sizes = [32, 128], strides = [1, 1]} : vector<40x128xf32> to vector<32x128xf32>
    %127 = vector.broadcast %125 : f32 to vector<32x128xf32>
    %128 = arith.mulf %127, %126 : vector<32x128xf32>
    %129 = arith.addf %124, %128 : vector<32x128xf32>
    %c0_38 = arith.constant 0 : index
    %c15 = arith.constant 15 : index
    %130 = memref.load %arg1[%c0_38, %c15] : memref<4x49xf32, #tpu.memory_space<smem>>
    %131 = vector.extract_strided_slice %119 {offsets = [2, 0], sizes = [32, 128], strides = [1, 1]} : vector<40x128xf32> to vector<32x128xf32>
    %132 = vector.broadcast %130 : f32 to vector<32x128xf32>
    %133 = arith.mulf %132, %131 : vector<32x128xf32>
    %134 = arith.addf %129, %133 : vector<32x128xf32>
    %c0_39 = arith.constant 0 : index
    %c22 = arith.constant 22 : index
    %135 = memref.load %arg1[%c0_39, %c22] : memref<4x49xf32, #tpu.memory_space<smem>>
    %136 = vector.extract_strided_slice %119 {offsets = [3, 0], sizes = [32, 128], strides = [1, 1]} : vector<40x128xf32> to vector<32x128xf32>
    %137 = vector.broadcast %135 : f32 to vector<32x128xf32>
    %138 = arith.mulf %137, %136 : vector<32x128xf32>
    %139 = arith.addf %134, %138 : vector<32x128xf32>
    %c0_40 = arith.constant 0 : index
    %c29 = arith.constant 29 : index
    %140 = memref.load %arg1[%c0_40, %c29] : memref<4x49xf32, #tpu.memory_space<smem>>
    %141 = vector.extract_strided_slice %119 {offsets = [4, 0], sizes = [32, 128], strides = [1, 1]} : vector<40x128xf32> to vector<32x128xf32>
    %142 = vector.broadcast %140 : f32 to vector<32x128xf32>
    %143 = arith.mulf %142, %141 : vector<32x128xf32>
    %144 = arith.addf %139, %143 : vector<32x128xf32>
    %c0_41 = arith.constant 0 : index
    %c36 = arith.constant 36 : index
    %145 = memref.load %arg1[%c0_41, %c36] : memref<4x49xf32, #tpu.memory_space<smem>>
    %146 = vector.extract_strided_slice %119 {offsets = [5, 0], sizes = [32, 128], strides = [1, 1]} : vector<40x128xf32> to vector<32x128xf32>
    %147 = vector.broadcast %145 : f32 to vector<32x128xf32>
    %148 = arith.mulf %147, %146 : vector<32x128xf32>
    %149 = arith.addf %144, %148 : vector<32x128xf32>
    %c0_42 = arith.constant 0 : index
    %c43 = arith.constant 43 : index
    %150 = memref.load %arg1[%c0_42, %c43] : memref<4x49xf32, #tpu.memory_space<smem>>
    %151 = vector.extract_strided_slice %119 {offsets = [6, 0], sizes = [32, 128], strides = [1, 1]} : vector<40x128xf32> to vector<32x128xf32>
    %152 = vector.broadcast %150 : f32 to vector<32x128xf32>
    %153 = arith.mulf %152, %151 : vector<32x128xf32>
    %154 = arith.addf %149, %153 : vector<32x128xf32>
    %c1_i32_43 = arith.constant 1 : i32
    %155 = tpu.dynamic_rotate %77 by %c1_i32_43 dim 1 : vector<40x128xf32>, i32 -> vector<40x128xf32>
    %cst_44 = arith.constant 0.000000e+00 : f32
    %156 = vector.broadcast %cst_44 : f32 to vector<40x128xf32>
    %157 = arith.select %45, %155, %156 : vector<40x128xi1>, vector<40x128xf32>
    %c0_45 = arith.constant 0 : index
    %c2 = arith.constant 2 : index
    %158 = memref.load %arg1[%c0_45, %c2] : memref<4x49xf32, #tpu.memory_space<smem>>
    %159 = vector.extract_strided_slice %157 {offsets = [0, 0], sizes = [32, 128], strides = [1, 1]} : vector<40x128xf32> to vector<32x128xf32>
    %160 = vector.broadcast %158 : f32 to vector<32x128xf32>
    %161 = arith.mulf %160, %159 : vector<32x128xf32>
    %162 = arith.addf %154, %161 : vector<32x128xf32>
    %c0_46 = arith.constant 0 : index
    %c9 = arith.constant 9 : index
    %163 = memref.load %arg1[%c0_46, %c9] : memref<4x49xf32, #tpu.memory_space<smem>>
    %164 = vector.extract_strided_slice %157 {offsets = [1, 0], sizes = [32, 128], strides = [1, 1]} : vector<40x128xf32> to vector<32x128xf32>
    %165 = vector.broadcast %163 : f32 to vector<32x128xf32>
    %166 = arith.mulf %165, %164 : vector<32x128xf32>
    %167 = arith.addf %162, %166 : vector<32x128xf32>
    %c0_47 = arith.constant 0 : index
    %c16 = arith.constant 16 : index
    %168 = memref.load %arg1[%c0_47, %c16] : memref<4x49xf32, #tpu.memory_space<smem>>
    %169 = vector.extract_strided_slice %157 {offsets = [2, 0], sizes = [32, 128], strides = [1, 1]} : vector<40x128xf32> to vector<32x128xf32>
    %170 = vector.broadcast %168 : f32 to vector<32x128xf32>
    %171 = arith.mulf %170, %169 : vector<32x128xf32>
    %172 = arith.addf %167, %171 : vector<32x128xf32>
    %c0_48 = arith.constant 0 : index
    %c23 = arith.constant 23 : index
    %173 = memref.load %arg1[%c0_48, %c23] : memref<4x49xf32, #tpu.memory_space<smem>>
    %174 = vector.extract_strided_slice %157 {offsets = [3, 0], sizes = [32, 128], strides = [1, 1]} : vector<40x128xf32> to vector<32x128xf32>
    %175 = vector.broadcast %173 : f32 to vector<32x128xf32>
    %176 = arith.mulf %175, %174 : vector<32x128xf32>
    %177 = arith.addf %172, %176 : vector<32x128xf32>
    %c0_49 = arith.constant 0 : index
    %c30 = arith.constant 30 : index
    %178 = memref.load %arg1[%c0_49, %c30] : memref<4x49xf32, #tpu.memory_space<smem>>
    %179 = vector.extract_strided_slice %157 {offsets = [4, 0], sizes = [32, 128], strides = [1, 1]} : vector<40x128xf32> to vector<32x128xf32>
    %180 = vector.broadcast %178 : f32 to vector<32x128xf32>
    %181 = arith.mulf %180, %179 : vector<32x128xf32>
    %182 = arith.addf %177, %181 : vector<32x128xf32>
    %c0_50 = arith.constant 0 : index
    %c37 = arith.constant 37 : index
    %183 = memref.load %arg1[%c0_50, %c37] : memref<4x49xf32, #tpu.memory_space<smem>>
    %184 = vector.extract_strided_slice %157 {offsets = [5, 0], sizes = [32, 128], strides = [1, 1]} : vector<40x128xf32> to vector<32x128xf32>
    %185 = vector.broadcast %183 : f32 to vector<32x128xf32>
    %186 = arith.mulf %185, %184 : vector<32x128xf32>
    %187 = arith.addf %182, %186 : vector<32x128xf32>
    %c0_51 = arith.constant 0 : index
    %c44 = arith.constant 44 : index
    %188 = memref.load %arg1[%c0_51, %c44] : memref<4x49xf32, #tpu.memory_space<smem>>
    %189 = vector.extract_strided_slice %157 {offsets = [6, 0], sizes = [32, 128], strides = [1, 1]} : vector<40x128xf32> to vector<32x128xf32>
    %190 = vector.broadcast %188 : f32 to vector<32x128xf32>
    %191 = arith.mulf %190, %189 : vector<32x128xf32>
    %192 = arith.addf %187, %191 : vector<32x128xf32>
    %c0_52 = arith.constant 0 : index
    %c3 = arith.constant 3 : index
    %193 = memref.load %arg1[%c0_52, %c3] : memref<4x49xf32, #tpu.memory_space<smem>>
    %194 = vector.extract_strided_slice %77 {offsets = [0, 0], sizes = [32, 128], strides = [1, 1]} : vector<40x128xf32> to vector<32x128xf32>
    %195 = vector.broadcast %193 : f32 to vector<32x128xf32>
    %196 = arith.mulf %195, %194 : vector<32x128xf32>
    %197 = arith.addf %192, %196 : vector<32x128xf32>
    %c0_53 = arith.constant 0 : index
    %c10 = arith.constant 10 : index
    %198 = memref.load %arg1[%c0_53, %c10] : memref<4x49xf32, #tpu.memory_space<smem>>
    %199 = vector.extract_strided_slice %77 {offsets = [1, 0], sizes = [32, 128], strides = [1, 1]} : vector<40x128xf32> to vector<32x128xf32>
    %200 = vector.broadcast %198 : f32 to vector<32x128xf32>
    %201 = arith.mulf %200, %199 : vector<32x128xf32>
    %202 = arith.addf %197, %201 : vector<32x128xf32>
    %c0_54 = arith.constant 0 : index
    %c17 = arith.constant 17 : index
    %203 = memref.load %arg1[%c0_54, %c17] : memref<4x49xf32, #tpu.memory_space<smem>>
    %204 = vector.extract_strided_slice %77 {offsets = [2, 0], sizes = [32, 128], strides = [1, 1]} : vector<40x128xf32> to vector<32x128xf32>
    %205 = vector.broadcast %203 : f32 to vector<32x128xf32>
    %206 = arith.mulf %205, %204 : vector<32x128xf32>
    %207 = arith.addf %202, %206 : vector<32x128xf32>
    %c0_55 = arith.constant 0 : index
    %c24 = arith.constant 24 : index
    %208 = memref.load %arg1[%c0_55, %c24] : memref<4x49xf32, #tpu.memory_space<smem>>
    %209 = vector.extract_strided_slice %77 {offsets = [3, 0], sizes = [32, 128], strides = [1, 1]} : vector<40x128xf32> to vector<32x128xf32>
    %210 = vector.broadcast %208 : f32 to vector<32x128xf32>
    %211 = arith.mulf %210, %209 : vector<32x128xf32>
    %212 = arith.addf %207, %211 : vector<32x128xf32>
    %c0_56 = arith.constant 0 : index
    %c31 = arith.constant 31 : index
    %213 = memref.load %arg1[%c0_56, %c31] : memref<4x49xf32, #tpu.memory_space<smem>>
    %214 = vector.extract_strided_slice %77 {offsets = [4, 0], sizes = [32, 128], strides = [1, 1]} : vector<40x128xf32> to vector<32x128xf32>
    %215 = vector.broadcast %213 : f32 to vector<32x128xf32>
    %216 = arith.mulf %215, %214 : vector<32x128xf32>
    %217 = arith.addf %212, %216 : vector<32x128xf32>
    %c0_57 = arith.constant 0 : index
    %c38 = arith.constant 38 : index
    %218 = memref.load %arg1[%c0_57, %c38] : memref<4x49xf32, #tpu.memory_space<smem>>
    %219 = vector.extract_strided_slice %77 {offsets = [5, 0], sizes = [32, 128], strides = [1, 1]} : vector<40x128xf32> to vector<32x128xf32>
    %220 = vector.broadcast %218 : f32 to vector<32x128xf32>
    %221 = arith.mulf %220, %219 : vector<32x128xf32>
    %222 = arith.addf %217, %221 : vector<32x128xf32>
    %c0_58 = arith.constant 0 : index
    %c45 = arith.constant 45 : index
    %223 = memref.load %arg1[%c0_58, %c45] : memref<4x49xf32, #tpu.memory_space<smem>>
    %224 = vector.extract_strided_slice %77 {offsets = [6, 0], sizes = [32, 128], strides = [1, 1]} : vector<40x128xf32> to vector<32x128xf32>
    %225 = vector.broadcast %223 : f32 to vector<32x128xf32>
    %226 = arith.mulf %225, %224 : vector<32x128xf32>
    %227 = arith.addf %222, %226 : vector<32x128xf32>
    %c127_i32 = arith.constant 127 : i32
    %228 = tpu.dynamic_rotate %77 by %c127_i32 dim 1 : vector<40x128xf32>, i32 -> vector<40x128xf32>
    %cst_59 = arith.constant 0.000000e+00 : f32
    %229 = vector.broadcast %cst_59 : f32 to vector<40x128xf32>
    %230 = arith.select %54, %228, %229 : vector<40x128xi1>, vector<40x128xf32>
    %c0_60 = arith.constant 0 : index
    %c4 = arith.constant 4 : index
    %231 = memref.load %arg1[%c0_60, %c4] : memref<4x49xf32, #tpu.memory_space<smem>>
    %232 = vector.extract_strided_slice %230 {offsets = [0, 0], sizes = [32, 128], strides = [1, 1]} : vector<40x128xf32> to vector<32x128xf32>
    %233 = vector.broadcast %231 : f32 to vector<32x128xf32>
    %234 = arith.mulf %233, %232 : vector<32x128xf32>
    %235 = arith.addf %227, %234 : vector<32x128xf32>
    %c0_61 = arith.constant 0 : index
    %c11 = arith.constant 11 : index
    %236 = memref.load %arg1[%c0_61, %c11] : memref<4x49xf32, #tpu.memory_space<smem>>
    %237 = vector.extract_strided_slice %230 {offsets = [1, 0], sizes = [32, 128], strides = [1, 1]} : vector<40x128xf32> to vector<32x128xf32>
    %238 = vector.broadcast %236 : f32 to vector<32x128xf32>
    %239 = arith.mulf %238, %237 : vector<32x128xf32>
    %240 = arith.addf %235, %239 : vector<32x128xf32>
    %c0_62 = arith.constant 0 : index
    %c18 = arith.constant 18 : index
    %241 = memref.load %arg1[%c0_62, %c18] : memref<4x49xf32, #tpu.memory_space<smem>>
    %242 = vector.extract_strided_slice %230 {offsets = [2, 0], sizes = [32, 128], strides = [1, 1]} : vector<40x128xf32> to vector<32x128xf32>
    %243 = vector.broadcast %241 : f32 to vector<32x128xf32>
    %244 = arith.mulf %243, %242 : vector<32x128xf32>
    %245 = arith.addf %240, %244 : vector<32x128xf32>
    %c0_63 = arith.constant 0 : index
    %c25 = arith.constant 25 : index
    %246 = memref.load %arg1[%c0_63, %c25] : memref<4x49xf32, #tpu.memory_space<smem>>
    %247 = vector.extract_strided_slice %230 {offsets = [3, 0], sizes = [32, 128], strides = [1, 1]} : vector<40x128xf32> to vector<32x128xf32>
    %248 = vector.broadcast %246 : f32 to vector<32x128xf32>
    %249 = arith.mulf %248, %247 : vector<32x128xf32>
    %250 = arith.addf %245, %249 : vector<32x128xf32>
    %c0_64 = arith.constant 0 : index
    %c32 = arith.constant 32 : index
    %251 = memref.load %arg1[%c0_64, %c32] : memref<4x49xf32, #tpu.memory_space<smem>>
    %252 = vector.extract_strided_slice %230 {offsets = [4, 0], sizes = [32, 128], strides = [1, 1]} : vector<40x128xf32> to vector<32x128xf32>
    %253 = vector.broadcast %251 : f32 to vector<32x128xf32>
    %254 = arith.mulf %253, %252 : vector<32x128xf32>
    %255 = arith.addf %250, %254 : vector<32x128xf32>
    %c0_65 = arith.constant 0 : index
    %c39 = arith.constant 39 : index
    %256 = memref.load %arg1[%c0_65, %c39] : memref<4x49xf32, #tpu.memory_space<smem>>
    %257 = vector.extract_strided_slice %230 {offsets = [5, 0], sizes = [32, 128], strides = [1, 1]} : vector<40x128xf32> to vector<32x128xf32>
    %258 = vector.broadcast %256 : f32 to vector<32x128xf32>
    %259 = arith.mulf %258, %257 : vector<32x128xf32>
    %260 = arith.addf %255, %259 : vector<32x128xf32>
    %c0_66 = arith.constant 0 : index
    %c46 = arith.constant 46 : index
    %261 = memref.load %arg1[%c0_66, %c46] : memref<4x49xf32, #tpu.memory_space<smem>>
    %262 = vector.extract_strided_slice %230 {offsets = [6, 0], sizes = [32, 128], strides = [1, 1]} : vector<40x128xf32> to vector<32x128xf32>
    %263 = vector.broadcast %261 : f32 to vector<32x128xf32>
    %264 = arith.mulf %263, %262 : vector<32x128xf32>
    %265 = arith.addf %260, %264 : vector<32x128xf32>
    %c126_i32 = arith.constant 126 : i32
    %266 = tpu.dynamic_rotate %77 by %c126_i32 dim 1 : vector<40x128xf32>, i32 -> vector<40x128xf32>
    %cst_67 = arith.constant 0.000000e+00 : f32
    %267 = vector.broadcast %cst_67 : f32 to vector<40x128xf32>
    %268 = arith.select %63, %266, %267 : vector<40x128xi1>, vector<40x128xf32>
    %c0_68 = arith.constant 0 : index
    %c5 = arith.constant 5 : index
    %269 = memref.load %arg1[%c0_68, %c5] : memref<4x49xf32, #tpu.memory_space<smem>>
    %270 = vector.extract_strided_slice %268 {offsets = [0, 0], sizes = [32, 128], strides = [1, 1]} : vector<40x128xf32> to vector<32x128xf32>
    %271 = vector.broadcast %269 : f32 to vector<32x128xf32>
    %272 = arith.mulf %271, %270 : vector<32x128xf32>
    %273 = arith.addf %265, %272 : vector<32x128xf32>
    %c0_69 = arith.constant 0 : index
    %c12 = arith.constant 12 : index
    %274 = memref.load %arg1[%c0_69, %c12] : memref<4x49xf32, #tpu.memory_space<smem>>
    %275 = vector.extract_strided_slice %268 {offsets = [1, 0], sizes = [32, 128], strides = [1, 1]} : vector<40x128xf32> to vector<32x128xf32>
    %276 = vector.broadcast %274 : f32 to vector<32x128xf32>
    %277 = arith.mulf %276, %275 : vector<32x128xf32>
    %278 = arith.addf %273, %277 : vector<32x128xf32>
    %c0_70 = arith.constant 0 : index
    %c19 = arith.constant 19 : index
    %279 = memref.load %arg1[%c0_70, %c19] : memref<4x49xf32, #tpu.memory_space<smem>>
    %280 = vector.extract_strided_slice %268 {offsets = [2, 0], sizes = [32, 128], strides = [1, 1]} : vector<40x128xf32> to vector<32x128xf32>
    %281 = vector.broadcast %279 : f32 to vector<32x128xf32>
    %282 = arith.mulf %281, %280 : vector<32x128xf32>
    %283 = arith.addf %278, %282 : vector<32x128xf32>
    %c0_71 = arith.constant 0 : index
    %c26 = arith.constant 26 : index
    %284 = memref.load %arg1[%c0_71, %c26] : memref<4x49xf32, #tpu.memory_space<smem>>
    %285 = vector.extract_strided_slice %268 {offsets = [3, 0], sizes = [32, 128], strides = [1, 1]} : vector<40x128xf32> to vector<32x128xf32>
    %286 = vector.broadcast %284 : f32 to vector<32x128xf32>
    %287 = arith.mulf %286, %285 : vector<32x128xf32>
    %288 = arith.addf %283, %287 : vector<32x128xf32>
    %c0_72 = arith.constant 0 : index
    %c33 = arith.constant 33 : index
    %289 = memref.load %arg1[%c0_72, %c33] : memref<4x49xf32, #tpu.memory_space<smem>>
    %290 = vector.extract_strided_slice %268 {offsets = [4, 0], sizes = [32, 128], strides = [1, 1]} : vector<40x128xf32> to vector<32x128xf32>
    %291 = vector.broadcast %289 : f32 to vector<32x128xf32>
    %292 = arith.mulf %291, %290 : vector<32x128xf32>
    %293 = arith.addf %288, %292 : vector<32x128xf32>
    %c0_73 = arith.constant 0 : index
    %c40 = arith.constant 40 : index
    %294 = memref.load %arg1[%c0_73, %c40] : memref<4x49xf32, #tpu.memory_space<smem>>
    %295 = vector.extract_strided_slice %268 {offsets = [5, 0], sizes = [32, 128], strides = [1, 1]} : vector<40x128xf32> to vector<32x128xf32>
    %296 = vector.broadcast %294 : f32 to vector<32x128xf32>
    %297 = arith.mulf %296, %295 : vector<32x128xf32>
    %298 = arith.addf %293, %297 : vector<32x128xf32>
    %c0_74 = arith.constant 0 : index
    %c47 = arith.constant 47 : index
    %299 = memref.load %arg1[%c0_74, %c47] : memref<4x49xf32, #tpu.memory_space<smem>>
    %300 = vector.extract_strided_slice %268 {offsets = [6, 0], sizes = [32, 128], strides = [1, 1]} : vector<40x128xf32> to vector<32x128xf32>
    %301 = vector.broadcast %299 : f32 to vector<32x128xf32>
    %302 = arith.mulf %301, %300 : vector<32x128xf32>
    %303 = arith.addf %298, %302 : vector<32x128xf32>
    %c125_i32 = arith.constant 125 : i32
    %304 = tpu.dynamic_rotate %77 by %c125_i32 dim 1 : vector<40x128xf32>, i32 -> vector<40x128xf32>
    %cst_75 = arith.constant 0.000000e+00 : f32
    %305 = vector.broadcast %cst_75 : f32 to vector<40x128xf32>
    %306 = arith.select %72, %304, %305 : vector<40x128xi1>, vector<40x128xf32>
    %c0_76 = arith.constant 0 : index
    %c6 = arith.constant 6 : index
    %307 = memref.load %arg1[%c0_76, %c6] : memref<4x49xf32, #tpu.memory_space<smem>>
    %308 = vector.extract_strided_slice %306 {offsets = [0, 0], sizes = [32, 128], strides = [1, 1]} : vector<40x128xf32> to vector<32x128xf32>
    %309 = vector.broadcast %307 : f32 to vector<32x128xf32>
    %310 = arith.mulf %309, %308 : vector<32x128xf32>
    %311 = arith.addf %303, %310 : vector<32x128xf32>
    %c0_77 = arith.constant 0 : index
    %c13 = arith.constant 13 : index
    %312 = memref.load %arg1[%c0_77, %c13] : memref<4x49xf32, #tpu.memory_space<smem>>
    %313 = vector.extract_strided_slice %306 {offsets = [1, 0], sizes = [32, 128], strides = [1, 1]} : vector<40x128xf32> to vector<32x128xf32>
    %314 = vector.broadcast %312 : f32 to vector<32x128xf32>
    %315 = arith.mulf %314, %313 : vector<32x128xf32>
    %316 = arith.addf %311, %315 : vector<32x128xf32>
    %c0_78 = arith.constant 0 : index
    %c20 = arith.constant 20 : index
    %317 = memref.load %arg1[%c0_78, %c20] : memref<4x49xf32, #tpu.memory_space<smem>>
    %318 = vector.extract_strided_slice %306 {offsets = [2, 0], sizes = [32, 128], strides = [1, 1]} : vector<40x128xf32> to vector<32x128xf32>
    %319 = vector.broadcast %317 : f32 to vector<32x128xf32>
    %320 = arith.mulf %319, %318 : vector<32x128xf32>
    %321 = arith.addf %316, %320 : vector<32x128xf32>
    %c0_79 = arith.constant 0 : index
    %c27 = arith.constant 27 : index
    %322 = memref.load %arg1[%c0_79, %c27] : memref<4x49xf32, #tpu.memory_space<smem>>
    %323 = vector.extract_strided_slice %306 {offsets = [3, 0], sizes = [32, 128], strides = [1, 1]} : vector<40x128xf32> to vector<32x128xf32>
    %324 = vector.broadcast %322 : f32 to vector<32x128xf32>
    %325 = arith.mulf %324, %323 : vector<32x128xf32>
    %326 = arith.addf %321, %325 : vector<32x128xf32>
    %c0_80 = arith.constant 0 : index
    %c34 = arith.constant 34 : index
    %327 = memref.load %arg1[%c0_80, %c34] : memref<4x49xf32, #tpu.memory_space<smem>>
    %328 = vector.extract_strided_slice %306 {offsets = [4, 0], sizes = [32, 128], strides = [1, 1]} : vector<40x128xf32> to vector<32x128xf32>
    %329 = vector.broadcast %327 : f32 to vector<32x128xf32>
    %330 = arith.mulf %329, %328 : vector<32x128xf32>
    %331 = arith.addf %326, %330 : vector<32x128xf32>
    %c0_81 = arith.constant 0 : index
    %c41 = arith.constant 41 : index
    %332 = memref.load %arg1[%c0_81, %c41] : memref<4x49xf32, #tpu.memory_space<smem>>
    %333 = vector.extract_strided_slice %306 {offsets = [5, 0], sizes = [32, 128], strides = [1, 1]} : vector<40x128xf32> to vector<32x128xf32>
    %334 = vector.broadcast %332 : f32 to vector<32x128xf32>
    %335 = arith.mulf %334, %333 : vector<32x128xf32>
    %336 = arith.addf %331, %335 : vector<32x128xf32>
    %c0_82 = arith.constant 0 : index
    %c48 = arith.constant 48 : index
    %337 = memref.load %arg1[%c0_82, %c48] : memref<4x49xf32, #tpu.memory_space<smem>>
    %338 = vector.extract_strided_slice %306 {offsets = [6, 0], sizes = [32, 128], strides = [1, 1]} : vector<40x128xf32> to vector<32x128xf32>
    %339 = vector.broadcast %337 : f32 to vector<32x128xf32>
    %340 = arith.mulf %339, %338 : vector<32x128xf32>
    %341 = arith.addf %336, %340 : vector<32x128xf32>
    %c1_83 = arith.constant 1 : index
    %342 = arith.index_cast %74 : i32 to index
    %c0_84 = arith.constant 0 : index
    %343 = vector.load %arg6[%c1_83, %342, %c0_84] : memref<4x72x128xf32, #tpu.memory_space<vmem>>, vector<1x40x128xf32>
    %344 = vector.shape_cast %343 : vector<1x40x128xf32> to vector<40x128xf32>
    %cst_85 = arith.constant 0.000000e+00 : f32
    %345 = vector.broadcast %cst_85 : f32 to vector<32x128xf32>
    %c3_i32_86 = arith.constant 3 : i32
    %346 = tpu.dynamic_rotate %344 by %c3_i32_86 dim 1 : vector<40x128xf32>, i32 -> vector<40x128xf32>
    %cst_87 = arith.constant 0.000000e+00 : f32
    %347 = vector.broadcast %cst_87 : f32 to vector<40x128xf32>
    %348 = arith.select %27, %346, %347 : vector<40x128xi1>, vector<40x128xf32>
    %c1_88 = arith.constant 1 : index
    %c0_89 = arith.constant 0 : index
    %349 = memref.load %arg1[%c1_88, %c0_89] : memref<4x49xf32, #tpu.memory_space<smem>>
    %350 = vector.extract_strided_slice %348 {offsets = [0, 0], sizes = [32, 128], strides = [1, 1]} : vector<40x128xf32> to vector<32x128xf32>
    %351 = vector.broadcast %349 : f32 to vector<32x128xf32>
    %352 = arith.mulf %351, %350 : vector<32x128xf32>
    %353 = arith.addf %345, %352 : vector<32x128xf32>
    %c1_90 = arith.constant 1 : index
    %c7_91 = arith.constant 7 : index
    %354 = memref.load %arg1[%c1_90, %c7_91] : memref<4x49xf32, #tpu.memory_space<smem>>
    %355 = vector.extract_strided_slice %348 {offsets = [1, 0], sizes = [32, 128], strides = [1, 1]} : vector<40x128xf32> to vector<32x128xf32>
    %356 = vector.broadcast %354 : f32 to vector<32x128xf32>
    %357 = arith.mulf %356, %355 : vector<32x128xf32>
    %358 = arith.addf %353, %357 : vector<32x128xf32>
    %c1_92 = arith.constant 1 : index
    %c14_93 = arith.constant 14 : index
    %359 = memref.load %arg1[%c1_92, %c14_93] : memref<4x49xf32, #tpu.memory_space<smem>>
    %360 = vector.extract_strided_slice %348 {offsets = [2, 0], sizes = [32, 128], strides = [1, 1]} : vector<40x128xf32> to vector<32x128xf32>
    %361 = vector.broadcast %359 : f32 to vector<32x128xf32>
    %362 = arith.mulf %361, %360 : vector<32x128xf32>
    %363 = arith.addf %358, %362 : vector<32x128xf32>
    %c1_94 = arith.constant 1 : index
    %c21_95 = arith.constant 21 : index
    %364 = memref.load %arg1[%c1_94, %c21_95] : memref<4x49xf32, #tpu.memory_space<smem>>
    %365 = vector.extract_strided_slice %348 {offsets = [3, 0], sizes = [32, 128], strides = [1, 1]} : vector<40x128xf32> to vector<32x128xf32>
    %366 = vector.broadcast %364 : f32 to vector<32x128xf32>
    %367 = arith.mulf %366, %365 : vector<32x128xf32>
    %368 = arith.addf %363, %367 : vector<32x128xf32>
    %c1_96 = arith.constant 1 : index
    %c28_97 = arith.constant 28 : index
    %369 = memref.load %arg1[%c1_96, %c28_97] : memref<4x49xf32, #tpu.memory_space<smem>>
    %370 = vector.extract_strided_slice %348 {offsets = [4, 0], sizes = [32, 128], strides = [1, 1]} : vector<40x128xf32> to vector<32x128xf32>
    %371 = vector.broadcast %369 : f32 to vector<32x128xf32>
    %372 = arith.mulf %371, %370 : vector<32x128xf32>
    %373 = arith.addf %368, %372 : vector<32x128xf32>
    %c1_98 = arith.constant 1 : index
    %c35_99 = arith.constant 35 : index
    %374 = memref.load %arg1[%c1_98, %c35_99] : memref<4x49xf32, #tpu.memory_space<smem>>
    %375 = vector.extract_strided_slice %348 {offsets = [5, 0], sizes = [32, 128], strides = [1, 1]} : vector<40x128xf32> to vector<32x128xf32>
    %376 = vector.broadcast %374 : f32 to vector<32x128xf32>
    %377 = arith.mulf %376, %375 : vector<32x128xf32>
    %378 = arith.addf %373, %377 : vector<32x128xf32>
    %c1_100 = arith.constant 1 : index
    %c42_101 = arith.constant 42 : index
    %379 = memref.load %arg1[%c1_100, %c42_101] : memref<4x49xf32, #tpu.memory_space<smem>>
    %380 = vector.extract_strided_slice %348 {offsets = [6, 0], sizes = [32, 128], strides = [1, 1]} : vector<40x128xf32> to vector<32x128xf32>
    %381 = vector.broadcast %379 : f32 to vector<32x128xf32>
    %382 = arith.mulf %381, %380 : vector<32x128xf32>
    %383 = arith.addf %378, %382 : vector<32x128xf32>
    %c2_i32_102 = arith.constant 2 : i32
    %384 = tpu.dynamic_rotate %344 by %c2_i32_102 dim 1 : vector<40x128xf32>, i32 -> vector<40x128xf32>
    %cst_103 = arith.constant 0.000000e+00 : f32
    %385 = vector.broadcast %cst_103 : f32 to vector<40x128xf32>
    %386 = arith.select %36, %384, %385 : vector<40x128xi1>, vector<40x128xf32>
    %c1_104 = arith.constant 1 : index
    %c1_105 = arith.constant 1 : index
    %387 = memref.load %arg1[%c1_104, %c1_105] : memref<4x49xf32, #tpu.memory_space<smem>>
    %388 = vector.extract_strided_slice %386 {offsets = [0, 0], sizes = [32, 128], strides = [1, 1]} : vector<40x128xf32> to vector<32x128xf32>
    %389 = vector.broadcast %387 : f32 to vector<32x128xf32>
    %390 = arith.mulf %389, %388 : vector<32x128xf32>
    %391 = arith.addf %383, %390 : vector<32x128xf32>
    %c1_106 = arith.constant 1 : index
    %c8_107 = arith.constant 8 : index
    %392 = memref.load %arg1[%c1_106, %c8_107] : memref<4x49xf32, #tpu.memory_space<smem>>
    %393 = vector.extract_strided_slice %386 {offsets = [1, 0], sizes = [32, 128], strides = [1, 1]} : vector<40x128xf32> to vector<32x128xf32>
    %394 = vector.broadcast %392 : f32 to vector<32x128xf32>
    %395 = arith.mulf %394, %393 : vector<32x128xf32>
    %396 = arith.addf %391, %395 : vector<32x128xf32>
    %c1_108 = arith.constant 1 : index
    %c15_109 = arith.constant 15 : index
    %397 = memref.load %arg1[%c1_108, %c15_109] : memref<4x49xf32, #tpu.memory_space<smem>>
    %398 = vector.extract_strided_slice %386 {offsets = [2, 0], sizes = [32, 128], strides = [1, 1]} : vector<40x128xf32> to vector<32x128xf32>
    %399 = vector.broadcast %397 : f32 to vector<32x128xf32>
    %400 = arith.mulf %399, %398 : vector<32x128xf32>
    %401 = arith.addf %396, %400 : vector<32x128xf32>
    %c1_110 = arith.constant 1 : index
    %c22_111 = arith.constant 22 : index
    %402 = memref.load %arg1[%c1_110, %c22_111] : memref<4x49xf32, #tpu.memory_space<smem>>
    %403 = vector.extract_strided_slice %386 {offsets = [3, 0], sizes = [32, 128], strides = [1, 1]} : vector<40x128xf32> to vector<32x128xf32>
    %404 = vector.broadcast %402 : f32 to vector<32x128xf32>
    %405 = arith.mulf %404, %403 : vector<32x128xf32>
    %406 = arith.addf %401, %405 : vector<32x128xf32>
    %c1_112 = arith.constant 1 : index
    %c29_113 = arith.constant 29 : index
    %407 = memref.load %arg1[%c1_112, %c29_113] : memref<4x49xf32, #tpu.memory_space<smem>>
    %408 = vector.extract_strided_slice %386 {offsets = [4, 0], sizes = [32, 128], strides = [1, 1]} : vector<40x128xf32> to vector<32x128xf32>
    %409 = vector.broadcast %407 : f32 to vector<32x128xf32>
    %410 = arith.mulf %409, %408 : vector<32x128xf32>
    %411 = arith.addf %406, %410 : vector<32x128xf32>
    %c1_114 = arith.constant 1 : index
    %c36_115 = arith.constant 36 : index
    %412 = memref.load %arg1[%c1_114, %c36_115] : memref<4x49xf32, #tpu.memory_space<smem>>
    %413 = vector.extract_strided_slice %386 {offsets = [5, 0], sizes = [32, 128], strides = [1, 1]} : vector<40x128xf32> to vector<32x128xf32>
    %414 = vector.broadcast %412 : f32 to vector<32x128xf32>
    %415 = arith.mulf %414, %413 : vector<32x128xf32>
    %416 = arith.addf %411, %415 : vector<32x128xf32>
    %c1_116 = arith.constant 1 : index
    %c43_117 = arith.constant 43 : index
    %417 = memref.load %arg1[%c1_116, %c43_117] : memref<4x49xf32, #tpu.memory_space<smem>>
    %418 = vector.extract_strided_slice %386 {offsets = [6, 0], sizes = [32, 128], strides = [1, 1]} : vector<40x128xf32> to vector<32x128xf32>
    %419 = vector.broadcast %417 : f32 to vector<32x128xf32>
    %420 = arith.mulf %419, %418 : vector<32x128xf32>
    %421 = arith.addf %416, %420 : vector<32x128xf32>
    %c1_i32_118 = arith.constant 1 : i32
    %422 = tpu.dynamic_rotate %344 by %c1_i32_118 dim 1 : vector<40x128xf32>, i32 -> vector<40x128xf32>
    %cst_119 = arith.constant 0.000000e+00 : f32
    %423 = vector.broadcast %cst_119 : f32 to vector<40x128xf32>
    %424 = arith.select %45, %422, %423 : vector<40x128xi1>, vector<40x128xf32>
    %c1_120 = arith.constant 1 : index
    %c2_121 = arith.constant 2 : index
    %425 = memref.load %arg1[%c1_120, %c2_121] : memref<4x49xf32, #tpu.memory_space<smem>>
    %426 = vector.extract_strided_slice %424 {offsets = [0, 0], sizes = [32, 128], strides = [1, 1]} : vector<40x128xf32> to vector<32x128xf32>
    %427 = vector.broadcast %425 : f32 to vector<32x128xf32>
    %428 = arith.mulf %427, %426 : vector<32x128xf32>
    %429 = arith.addf %421, %428 : vector<32x128xf32>
    %c1_122 = arith.constant 1 : index
    %c9_123 = arith.constant 9 : index
    %430 = memref.load %arg1[%c1_122, %c9_123] : memref<4x49xf32, #tpu.memory_space<smem>>
    %431 = vector.extract_strided_slice %424 {offsets = [1, 0], sizes = [32, 128], strides = [1, 1]} : vector<40x128xf32> to vector<32x128xf32>
    %432 = vector.broadcast %430 : f32 to vector<32x128xf32>
    %433 = arith.mulf %432, %431 : vector<32x128xf32>
    %434 = arith.addf %429, %433 : vector<32x128xf32>
    %c1_124 = arith.constant 1 : index
    %c16_125 = arith.constant 16 : index
    %435 = memref.load %arg1[%c1_124, %c16_125] : memref<4x49xf32, #tpu.memory_space<smem>>
    %436 = vector.extract_strided_slice %424 {offsets = [2, 0], sizes = [32, 128], strides = [1, 1]} : vector<40x128xf32> to vector<32x128xf32>
    %437 = vector.broadcast %435 : f32 to vector<32x128xf32>
    %438 = arith.mulf %437, %436 : vector<32x128xf32>
    %439 = arith.addf %434, %438 : vector<32x128xf32>
    %c1_126 = arith.constant 1 : index
    %c23_127 = arith.constant 23 : index
    %440 = memref.load %arg1[%c1_126, %c23_127] : memref<4x49xf32, #tpu.memory_space<smem>>
    %441 = vector.extract_strided_slice %424 {offsets = [3, 0], sizes = [32, 128], strides = [1, 1]} : vector<40x128xf32> to vector<32x128xf32>
    %442 = vector.broadcast %440 : f32 to vector<32x128xf32>
    %443 = arith.mulf %442, %441 : vector<32x128xf32>
    %444 = arith.addf %439, %443 : vector<32x128xf32>
    %c1_128 = arith.constant 1 : index
    %c30_129 = arith.constant 30 : index
    %445 = memref.load %arg1[%c1_128, %c30_129] : memref<4x49xf32, #tpu.memory_space<smem>>
    %446 = vector.extract_strided_slice %424 {offsets = [4, 0], sizes = [32, 128], strides = [1, 1]} : vector<40x128xf32> to vector<32x128xf32>
    %447 = vector.broadcast %445 : f32 to vector<32x128xf32>
    %448 = arith.mulf %447, %446 : vector<32x128xf32>
    %449 = arith.addf %444, %448 : vector<32x128xf32>
    %c1_130 = arith.constant 1 : index
    %c37_131 = arith.constant 37 : index
    %450 = memref.load %arg1[%c1_130, %c37_131] : memref<4x49xf32, #tpu.memory_space<smem>>
    %451 = vector.extract_strided_slice %424 {offsets = [5, 0], sizes = [32, 128], strides = [1, 1]} : vector<40x128xf32> to vector<32x128xf32>
    %452 = vector.broadcast %450 : f32 to vector<32x128xf32>
    %453 = arith.mulf %452, %451 : vector<32x128xf32>
    %454 = arith.addf %449, %453 : vector<32x128xf32>
    %c1_132 = arith.constant 1 : index
    %c44_133 = arith.constant 44 : index
    %455 = memref.load %arg1[%c1_132, %c44_133] : memref<4x49xf32, #tpu.memory_space<smem>>
    %456 = vector.extract_strided_slice %424 {offsets = [6, 0], sizes = [32, 128], strides = [1, 1]} : vector<40x128xf32> to vector<32x128xf32>
    %457 = vector.broadcast %455 : f32 to vector<32x128xf32>
    %458 = arith.mulf %457, %456 : vector<32x128xf32>
    %459 = arith.addf %454, %458 : vector<32x128xf32>
    %c1_134 = arith.constant 1 : index
    %c3_135 = arith.constant 3 : index
    %460 = memref.load %arg1[%c1_134, %c3_135] : memref<4x49xf32, #tpu.memory_space<smem>>
    %461 = vector.extract_strided_slice %344 {offsets = [0, 0], sizes = [32, 128], strides = [1, 1]} : vector<40x128xf32> to vector<32x128xf32>
    %462 = vector.broadcast %460 : f32 to vector<32x128xf32>
    %463 = arith.mulf %462, %461 : vector<32x128xf32>
    %464 = arith.addf %459, %463 : vector<32x128xf32>
    %c1_136 = arith.constant 1 : index
    %c10_137 = arith.constant 10 : index
    %465 = memref.load %arg1[%c1_136, %c10_137] : memref<4x49xf32, #tpu.memory_space<smem>>
    %466 = vector.extract_strided_slice %344 {offsets = [1, 0], sizes = [32, 128], strides = [1, 1]} : vector<40x128xf32> to vector<32x128xf32>
    %467 = vector.broadcast %465 : f32 to vector<32x128xf32>
    %468 = arith.mulf %467, %466 : vector<32x128xf32>
    %469 = arith.addf %464, %468 : vector<32x128xf32>
    %c1_138 = arith.constant 1 : index
    %c17_139 = arith.constant 17 : index
    %470 = memref.load %arg1[%c1_138, %c17_139] : memref<4x49xf32, #tpu.memory_space<smem>>
    %471 = vector.extract_strided_slice %344 {offsets = [2, 0], sizes = [32, 128], strides = [1, 1]} : vector<40x128xf32> to vector<32x128xf32>
    %472 = vector.broadcast %470 : f32 to vector<32x128xf32>
    %473 = arith.mulf %472, %471 : vector<32x128xf32>
    %474 = arith.addf %469, %473 : vector<32x128xf32>
    %c1_140 = arith.constant 1 : index
    %c24_141 = arith.constant 24 : index
    %475 = memref.load %arg1[%c1_140, %c24_141] : memref<4x49xf32, #tpu.memory_space<smem>>
    %476 = vector.extract_strided_slice %344 {offsets = [3, 0], sizes = [32, 128], strides = [1, 1]} : vector<40x128xf32> to vector<32x128xf32>
    %477 = vector.broadcast %475 : f32 to vector<32x128xf32>
    %478 = arith.mulf %477, %476 : vector<32x128xf32>
    %479 = arith.addf %474, %478 : vector<32x128xf32>
    %c1_142 = arith.constant 1 : index
    %c31_143 = arith.constant 31 : index
    %480 = memref.load %arg1[%c1_142, %c31_143] : memref<4x49xf32, #tpu.memory_space<smem>>
    %481 = vector.extract_strided_slice %344 {offsets = [4, 0], sizes = [32, 128], strides = [1, 1]} : vector<40x128xf32> to vector<32x128xf32>
    %482 = vector.broadcast %480 : f32 to vector<32x128xf32>
    %483 = arith.mulf %482, %481 : vector<32x128xf32>
    %484 = arith.addf %479, %483 : vector<32x128xf32>
    %c1_144 = arith.constant 1 : index
    %c38_145 = arith.constant 38 : index
    %485 = memref.load %arg1[%c1_144, %c38_145] : memref<4x49xf32, #tpu.memory_space<smem>>
    %486 = vector.extract_strided_slice %344 {offsets = [5, 0], sizes = [32, 128], strides = [1, 1]} : vector<40x128xf32> to vector<32x128xf32>
    %487 = vector.broadcast %485 : f32 to vector<32x128xf32>
    %488 = arith.mulf %487, %486 : vector<32x128xf32>
    %489 = arith.addf %484, %488 : vector<32x128xf32>
    %c1_146 = arith.constant 1 : index
    %c45_147 = arith.constant 45 : index
    %490 = memref.load %arg1[%c1_146, %c45_147] : memref<4x49xf32, #tpu.memory_space<smem>>
    %491 = vector.extract_strided_slice %344 {offsets = [6, 0], sizes = [32, 128], strides = [1, 1]} : vector<40x128xf32> to vector<32x128xf32>
    %492 = vector.broadcast %490 : f32 to vector<32x128xf32>
    %493 = arith.mulf %492, %491 : vector<32x128xf32>
    %494 = arith.addf %489, %493 : vector<32x128xf32>
    %c127_i32_148 = arith.constant 127 : i32
    %495 = tpu.dynamic_rotate %344 by %c127_i32_148 dim 1 : vector<40x128xf32>, i32 -> vector<40x128xf32>
    %cst_149 = arith.constant 0.000000e+00 : f32
    %496 = vector.broadcast %cst_149 : f32 to vector<40x128xf32>
    %497 = arith.select %54, %495, %496 : vector<40x128xi1>, vector<40x128xf32>
    %c1_150 = arith.constant 1 : index
    %c4_151 = arith.constant 4 : index
    %498 = memref.load %arg1[%c1_150, %c4_151] : memref<4x49xf32, #tpu.memory_space<smem>>
    %499 = vector.extract_strided_slice %497 {offsets = [0, 0], sizes = [32, 128], strides = [1, 1]} : vector<40x128xf32> to vector<32x128xf32>
    %500 = vector.broadcast %498 : f32 to vector<32x128xf32>
    %501 = arith.mulf %500, %499 : vector<32x128xf32>
    %502 = arith.addf %494, %501 : vector<32x128xf32>
    %c1_152 = arith.constant 1 : index
    %c11_153 = arith.constant 11 : index
    %503 = memref.load %arg1[%c1_152, %c11_153] : memref<4x49xf32, #tpu.memory_space<smem>>
    %504 = vector.extract_strided_slice %497 {offsets = [1, 0], sizes = [32, 128], strides = [1, 1]} : vector<40x128xf32> to vector<32x128xf32>
    %505 = vector.broadcast %503 : f32 to vector<32x128xf32>
    %506 = arith.mulf %505, %504 : vector<32x128xf32>
    %507 = arith.addf %502, %506 : vector<32x128xf32>
    %c1_154 = arith.constant 1 : index
    %c18_155 = arith.constant 18 : index
    %508 = memref.load %arg1[%c1_154, %c18_155] : memref<4x49xf32, #tpu.memory_space<smem>>
    %509 = vector.extract_strided_slice %497 {offsets = [2, 0], sizes = [32, 128], strides = [1, 1]} : vector<40x128xf32> to vector<32x128xf32>
    %510 = vector.broadcast %508 : f32 to vector<32x128xf32>
    %511 = arith.mulf %510, %509 : vector<32x128xf32>
    %512 = arith.addf %507, %511 : vector<32x128xf32>
    %c1_156 = arith.constant 1 : index
    %c25_157 = arith.constant 25 : index
    %513 = memref.load %arg1[%c1_156, %c25_157] : memref<4x49xf32, #tpu.memory_space<smem>>
    %514 = vector.extract_strided_slice %497 {offsets = [3, 0], sizes = [32, 128], strides = [1, 1]} : vector<40x128xf32> to vector<32x128xf32>
    %515 = vector.broadcast %513 : f32 to vector<32x128xf32>
    %516 = arith.mulf %515, %514 : vector<32x128xf32>
    %517 = arith.addf %512, %516 : vector<32x128xf32>
    %c1_158 = arith.constant 1 : index
    %c32_159 = arith.constant 32 : index
    %518 = memref.load %arg1[%c1_158, %c32_159] : memref<4x49xf32, #tpu.memory_space<smem>>
    %519 = vector.extract_strided_slice %497 {offsets = [4, 0], sizes = [32, 128], strides = [1, 1]} : vector<40x128xf32> to vector<32x128xf32>
    %520 = vector.broadcast %518 : f32 to vector<32x128xf32>
    %521 = arith.mulf %520, %519 : vector<32x128xf32>
    %522 = arith.addf %517, %521 : vector<32x128xf32>
    %c1_160 = arith.constant 1 : index
    %c39_161 = arith.constant 39 : index
    %523 = memref.load %arg1[%c1_160, %c39_161] : memref<4x49xf32, #tpu.memory_space<smem>>
    %524 = vector.extract_strided_slice %497 {offsets = [5, 0], sizes = [32, 128], strides = [1, 1]} : vector<40x128xf32> to vector<32x128xf32>
    %525 = vector.broadcast %523 : f32 to vector<32x128xf32>
    %526 = arith.mulf %525, %524 : vector<32x128xf32>
    %527 = arith.addf %522, %526 : vector<32x128xf32>
    %c1_162 = arith.constant 1 : index
    %c46_163 = arith.constant 46 : index
    %528 = memref.load %arg1[%c1_162, %c46_163] : memref<4x49xf32, #tpu.memory_space<smem>>
    %529 = vector.extract_strided_slice %497 {offsets = [6, 0], sizes = [32, 128], strides = [1, 1]} : vector<40x128xf32> to vector<32x128xf32>
    %530 = vector.broadcast %528 : f32 to vector<32x128xf32>
    %531 = arith.mulf %530, %529 : vector<32x128xf32>
    %532 = arith.addf %527, %531 : vector<32x128xf32>
    %c126_i32_164 = arith.constant 126 : i32
    %533 = tpu.dynamic_rotate %344 by %c126_i32_164 dim 1 : vector<40x128xf32>, i32 -> vector<40x128xf32>
    %cst_165 = arith.constant 0.000000e+00 : f32
    %534 = vector.broadcast %cst_165 : f32 to vector<40x128xf32>
    %535 = arith.select %63, %533, %534 : vector<40x128xi1>, vector<40x128xf32>
    %c1_166 = arith.constant 1 : index
    %c5_167 = arith.constant 5 : index
    %536 = memref.load %arg1[%c1_166, %c5_167] : memref<4x49xf32, #tpu.memory_space<smem>>
    %537 = vector.extract_strided_slice %535 {offsets = [0, 0], sizes = [32, 128], strides = [1, 1]} : vector<40x128xf32> to vector<32x128xf32>
    %538 = vector.broadcast %536 : f32 to vector<32x128xf32>
    %539 = arith.mulf %538, %537 : vector<32x128xf32>
    %540 = arith.addf %532, %539 : vector<32x128xf32>
    %c1_168 = arith.constant 1 : index
    %c12_169 = arith.constant 12 : index
    %541 = memref.load %arg1[%c1_168, %c12_169] : memref<4x49xf32, #tpu.memory_space<smem>>
    %542 = vector.extract_strided_slice %535 {offsets = [1, 0], sizes = [32, 128], strides = [1, 1]} : vector<40x128xf32> to vector<32x128xf32>
    %543 = vector.broadcast %541 : f32 to vector<32x128xf32>
    %544 = arith.mulf %543, %542 : vector<32x128xf32>
    %545 = arith.addf %540, %544 : vector<32x128xf32>
    %c1_170 = arith.constant 1 : index
    %c19_171 = arith.constant 19 : index
    %546 = memref.load %arg1[%c1_170, %c19_171] : memref<4x49xf32, #tpu.memory_space<smem>>
    %547 = vector.extract_strided_slice %535 {offsets = [2, 0], sizes = [32, 128], strides = [1, 1]} : vector<40x128xf32> to vector<32x128xf32>
    %548 = vector.broadcast %546 : f32 to vector<32x128xf32>
    %549 = arith.mulf %548, %547 : vector<32x128xf32>
    %550 = arith.addf %545, %549 : vector<32x128xf32>
    %c1_172 = arith.constant 1 : index
    %c26_173 = arith.constant 26 : index
    %551 = memref.load %arg1[%c1_172, %c26_173] : memref<4x49xf32, #tpu.memory_space<smem>>
    %552 = vector.extract_strided_slice %535 {offsets = [3, 0], sizes = [32, 128], strides = [1, 1]} : vector<40x128xf32> to vector<32x128xf32>
    %553 = vector.broadcast %551 : f32 to vector<32x128xf32>
    %554 = arith.mulf %553, %552 : vector<32x128xf32>
    %555 = arith.addf %550, %554 : vector<32x128xf32>
    %c1_174 = arith.constant 1 : index
    %c33_175 = arith.constant 33 : index
    %556 = memref.load %arg1[%c1_174, %c33_175] : memref<4x49xf32, #tpu.memory_space<smem>>
    %557 = vector.extract_strided_slice %535 {offsets = [4, 0], sizes = [32, 128], strides = [1, 1]} : vector<40x128xf32> to vector<32x128xf32>
    %558 = vector.broadcast %556 : f32 to vector<32x128xf32>
    %559 = arith.mulf %558, %557 : vector<32x128xf32>
    %560 = arith.addf %555, %559 : vector<32x128xf32>
    %c1_176 = arith.constant 1 : index
    %c40_177 = arith.constant 40 : index
    %561 = memref.load %arg1[%c1_176, %c40_177] : memref<4x49xf32, #tpu.memory_space<smem>>
    %562 = vector.extract_strided_slice %535 {offsets = [5, 0], sizes = [32, 128], strides = [1, 1]} : vector<40x128xf32> to vector<32x128xf32>
    %563 = vector.broadcast %561 : f32 to vector<32x128xf32>
    %564 = arith.mulf %563, %562 : vector<32x128xf32>
    %565 = arith.addf %560, %564 : vector<32x128xf32>
    %c1_178 = arith.constant 1 : index
    %c47_179 = arith.constant 47 : index
    %566 = memref.load %arg1[%c1_178, %c47_179] : memref<4x49xf32, #tpu.memory_space<smem>>
    %567 = vector.extract_strided_slice %535 {offsets = [6, 0], sizes = [32, 128], strides = [1, 1]} : vector<40x128xf32> to vector<32x128xf32>
    %568 = vector.broadcast %566 : f32 to vector<32x128xf32>
    %569 = arith.mulf %568, %567 : vector<32x128xf32>
    %570 = arith.addf %565, %569 : vector<32x128xf32>
    %c125_i32_180 = arith.constant 125 : i32
    %571 = tpu.dynamic_rotate %344 by %c125_i32_180 dim 1 : vector<40x128xf32>, i32 -> vector<40x128xf32>
    %cst_181 = arith.constant 0.000000e+00 : f32
    %572 = vector.broadcast %cst_181 : f32 to vector<40x128xf32>
    %573 = arith.select %72, %571, %572 : vector<40x128xi1>, vector<40x128xf32>
    %c1_182 = arith.constant 1 : index
    %c6_183 = arith.constant 6 : index
    %574 = memref.load %arg1[%c1_182, %c6_183] : memref<4x49xf32, #tpu.memory_space<smem>>
    %575 = vector.extract_strided_slice %573 {offsets = [0, 0], sizes = [32, 128], strides = [1, 1]} : vector<40x128xf32> to vector<32x128xf32>
    %576 = vector.broadcast %574 : f32 to vector<32x128xf32>
    %577 = arith.mulf %576, %575 : vector<32x128xf32>
    %578 = arith.addf %570, %577 : vector<32x128xf32>
    %c1_184 = arith.constant 1 : index
    %c13_185 = arith.constant 13 : index
    %579 = memref.load %arg1[%c1_184, %c13_185] : memref<4x49xf32, #tpu.memory_space<smem>>
    %580 = vector.extract_strided_slice %573 {offsets = [1, 0], sizes = [32, 128], strides = [1, 1]} : vector<40x128xf32> to vector<32x128xf32>
    %581 = vector.broadcast %579 : f32 to vector<32x128xf32>
    %582 = arith.mulf %581, %580 : vector<32x128xf32>
    %583 = arith.addf %578, %582 : vector<32x128xf32>
    %c1_186 = arith.constant 1 : index
    %c20_187 = arith.constant 20 : index
    %584 = memref.load %arg1[%c1_186, %c20_187] : memref<4x49xf32, #tpu.memory_space<smem>>
    %585 = vector.extract_strided_slice %573 {offsets = [2, 0], sizes = [32, 128], strides = [1, 1]} : vector<40x128xf32> to vector<32x128xf32>
    %586 = vector.broadcast %584 : f32 to vector<32x128xf32>
    %587 = arith.mulf %586, %585 : vector<32x128xf32>
    %588 = arith.addf %583, %587 : vector<32x128xf32>
    %c1_188 = arith.constant 1 : index
    %c27_189 = arith.constant 27 : index
    %589 = memref.load %arg1[%c1_188, %c27_189] : memref<4x49xf32, #tpu.memory_space<smem>>
    %590 = vector.extract_strided_slice %573 {offsets = [3, 0], sizes = [32, 128], strides = [1, 1]} : vector<40x128xf32> to vector<32x128xf32>
    %591 = vector.broadcast %589 : f32 to vector<32x128xf32>
    %592 = arith.mulf %591, %590 : vector<32x128xf32>
    %593 = arith.addf %588, %592 : vector<32x128xf32>
    %c1_190 = arith.constant 1 : index
    %c34_191 = arith.constant 34 : index
    %594 = memref.load %arg1[%c1_190, %c34_191] : memref<4x49xf32, #tpu.memory_space<smem>>
    %595 = vector.extract_strided_slice %573 {offsets = [4, 0], sizes = [32, 128], strides = [1, 1]} : vector<40x128xf32> to vector<32x128xf32>
    %596 = vector.broadcast %594 : f32 to vector<32x128xf32>
    %597 = arith.mulf %596, %595 : vector<32x128xf32>
    %598 = arith.addf %593, %597 : vector<32x128xf32>
    %c1_192 = arith.constant 1 : index
    %c41_193 = arith.constant 41 : index
    %599 = memref.load %arg1[%c1_192, %c41_193] : memref<4x49xf32, #tpu.memory_space<smem>>
    %600 = vector.extract_strided_slice %573 {offsets = [5, 0], sizes = [32, 128], strides = [1, 1]} : vector<40x128xf32> to vector<32x128xf32>
    %601 = vector.broadcast %599 : f32 to vector<32x128xf32>
    %602 = arith.mulf %601, %600 : vector<32x128xf32>
    %603 = arith.addf %598, %602 : vector<32x128xf32>
    %c1_194 = arith.constant 1 : index
    %c48_195 = arith.constant 48 : index
    %604 = memref.load %arg1[%c1_194, %c48_195] : memref<4x49xf32, #tpu.memory_space<smem>>
    %605 = vector.extract_strided_slice %573 {offsets = [6, 0], sizes = [32, 128], strides = [1, 1]} : vector<40x128xf32> to vector<32x128xf32>
    %606 = vector.broadcast %604 : f32 to vector<32x128xf32>
    %607 = arith.mulf %606, %605 : vector<32x128xf32>
    %608 = arith.addf %603, %607 : vector<32x128xf32>
    %c2_196 = arith.constant 2 : index
    %609 = arith.index_cast %74 : i32 to index
    %c0_197 = arith.constant 0 : index
    %610 = vector.load %arg6[%c2_196, %609, %c0_197] : memref<4x72x128xf32, #tpu.memory_space<vmem>>, vector<1x40x128xf32>
    %611 = vector.shape_cast %610 : vector<1x40x128xf32> to vector<40x128xf32>
    %cst_198 = arith.constant 0.000000e+00 : f32
    %612 = vector.broadcast %cst_198 : f32 to vector<32x128xf32>
    %c3_i32_199 = arith.constant 3 : i32
    %613 = tpu.dynamic_rotate %611 by %c3_i32_199 dim 1 : vector<40x128xf32>, i32 -> vector<40x128xf32>
    %cst_200 = arith.constant 0.000000e+00 : f32
    %614 = vector.broadcast %cst_200 : f32 to vector<40x128xf32>
    %615 = arith.select %27, %613, %614 : vector<40x128xi1>, vector<40x128xf32>
    %c2_201 = arith.constant 2 : index
    %c0_202 = arith.constant 0 : index
    %616 = memref.load %arg1[%c2_201, %c0_202] : memref<4x49xf32, #tpu.memory_space<smem>>
    %617 = vector.extract_strided_slice %615 {offsets = [0, 0], sizes = [32, 128], strides = [1, 1]} : vector<40x128xf32> to vector<32x128xf32>
    %618 = vector.broadcast %616 : f32 to vector<32x128xf32>
    %619 = arith.mulf %618, %617 : vector<32x128xf32>
    %620 = arith.addf %612, %619 : vector<32x128xf32>
    %c2_203 = arith.constant 2 : index
    %c7_204 = arith.constant 7 : index
    %621 = memref.load %arg1[%c2_203, %c7_204] : memref<4x49xf32, #tpu.memory_space<smem>>
    %622 = vector.extract_strided_slice %615 {offsets = [1, 0], sizes = [32, 128], strides = [1, 1]} : vector<40x128xf32> to vector<32x128xf32>
    %623 = vector.broadcast %621 : f32 to vector<32x128xf32>
    %624 = arith.mulf %623, %622 : vector<32x128xf32>
    %625 = arith.addf %620, %624 : vector<32x128xf32>
    %c2_205 = arith.constant 2 : index
    %c14_206 = arith.constant 14 : index
    %626 = memref.load %arg1[%c2_205, %c14_206] : memref<4x49xf32, #tpu.memory_space<smem>>
    %627 = vector.extract_strided_slice %615 {offsets = [2, 0], sizes = [32, 128], strides = [1, 1]} : vector<40x128xf32> to vector<32x128xf32>
    %628 = vector.broadcast %626 : f32 to vector<32x128xf32>
    %629 = arith.mulf %628, %627 : vector<32x128xf32>
    %630 = arith.addf %625, %629 : vector<32x128xf32>
    %c2_207 = arith.constant 2 : index
    %c21_208 = arith.constant 21 : index
    %631 = memref.load %arg1[%c2_207, %c21_208] : memref<4x49xf32, #tpu.memory_space<smem>>
    %632 = vector.extract_strided_slice %615 {offsets = [3, 0], sizes = [32, 128], strides = [1, 1]} : vector<40x128xf32> to vector<32x128xf32>
    %633 = vector.broadcast %631 : f32 to vector<32x128xf32>
    %634 = arith.mulf %633, %632 : vector<32x128xf32>
    %635 = arith.addf %630, %634 : vector<32x128xf32>
    %c2_209 = arith.constant 2 : index
    %c28_210 = arith.constant 28 : index
    %636 = memref.load %arg1[%c2_209, %c28_210] : memref<4x49xf32, #tpu.memory_space<smem>>
    %637 = vector.extract_strided_slice %615 {offsets = [4, 0], sizes = [32, 128], strides = [1, 1]} : vector<40x128xf32> to vector<32x128xf32>
    %638 = vector.broadcast %636 : f32 to vector<32x128xf32>
    %639 = arith.mulf %638, %637 : vector<32x128xf32>
    %640 = arith.addf %635, %639 : vector<32x128xf32>
    %c2_211 = arith.constant 2 : index
    %c35_212 = arith.constant 35 : index
    %641 = memref.load %arg1[%c2_211, %c35_212] : memref<4x49xf32, #tpu.memory_space<smem>>
    %642 = vector.extract_strided_slice %615 {offsets = [5, 0], sizes = [32, 128], strides = [1, 1]} : vector<40x128xf32> to vector<32x128xf32>
    %643 = vector.broadcast %641 : f32 to vector<32x128xf32>
    %644 = arith.mulf %643, %642 : vector<32x128xf32>
    %645 = arith.addf %640, %644 : vector<32x128xf32>
    %c2_213 = arith.constant 2 : index
    %c42_214 = arith.constant 42 : index
    %646 = memref.load %arg1[%c2_213, %c42_214] : memref<4x49xf32, #tpu.memory_space<smem>>
    %647 = vector.extract_strided_slice %615 {offsets = [6, 0], sizes = [32, 128], strides = [1, 1]} : vector<40x128xf32> to vector<32x128xf32>
    %648 = vector.broadcast %646 : f32 to vector<32x128xf32>
    %649 = arith.mulf %648, %647 : vector<32x128xf32>
    %650 = arith.addf %645, %649 : vector<32x128xf32>
    %c2_i32_215 = arith.constant 2 : i32
    %651 = tpu.dynamic_rotate %611 by %c2_i32_215 dim 1 : vector<40x128xf32>, i32 -> vector<40x128xf32>
    %cst_216 = arith.constant 0.000000e+00 : f32
    %652 = vector.broadcast %cst_216 : f32 to vector<40x128xf32>
    %653 = arith.select %36, %651, %652 : vector<40x128xi1>, vector<40x128xf32>
    %c2_217 = arith.constant 2 : index
    %c1_218 = arith.constant 1 : index
    %654 = memref.load %arg1[%c2_217, %c1_218] : memref<4x49xf32, #tpu.memory_space<smem>>
    %655 = vector.extract_strided_slice %653 {offsets = [0, 0], sizes = [32, 128], strides = [1, 1]} : vector<40x128xf32> to vector<32x128xf32>
    %656 = vector.broadcast %654 : f32 to vector<32x128xf32>
    %657 = arith.mulf %656, %655 : vector<32x128xf32>
    %658 = arith.addf %650, %657 : vector<32x128xf32>
    %c2_219 = arith.constant 2 : index
    %c8_220 = arith.constant 8 : index
    %659 = memref.load %arg1[%c2_219, %c8_220] : memref<4x49xf32, #tpu.memory_space<smem>>
    %660 = vector.extract_strided_slice %653 {offsets = [1, 0], sizes = [32, 128], strides = [1, 1]} : vector<40x128xf32> to vector<32x128xf32>
    %661 = vector.broadcast %659 : f32 to vector<32x128xf32>
    %662 = arith.mulf %661, %660 : vector<32x128xf32>
    %663 = arith.addf %658, %662 : vector<32x128xf32>
    %c2_221 = arith.constant 2 : index
    %c15_222 = arith.constant 15 : index
    %664 = memref.load %arg1[%c2_221, %c15_222] : memref<4x49xf32, #tpu.memory_space<smem>>
    %665 = vector.extract_strided_slice %653 {offsets = [2, 0], sizes = [32, 128], strides = [1, 1]} : vector<40x128xf32> to vector<32x128xf32>
    %666 = vector.broadcast %664 : f32 to vector<32x128xf32>
    %667 = arith.mulf %666, %665 : vector<32x128xf32>
    %668 = arith.addf %663, %667 : vector<32x128xf32>
    %c2_223 = arith.constant 2 : index
    %c22_224 = arith.constant 22 : index
    %669 = memref.load %arg1[%c2_223, %c22_224] : memref<4x49xf32, #tpu.memory_space<smem>>
    %670 = vector.extract_strided_slice %653 {offsets = [3, 0], sizes = [32, 128], strides = [1, 1]} : vector<40x128xf32> to vector<32x128xf32>
    %671 = vector.broadcast %669 : f32 to vector<32x128xf32>
    %672 = arith.mulf %671, %670 : vector<32x128xf32>
    %673 = arith.addf %668, %672 : vector<32x128xf32>
    %c2_225 = arith.constant 2 : index
    %c29_226 = arith.constant 29 : index
    %674 = memref.load %arg1[%c2_225, %c29_226] : memref<4x49xf32, #tpu.memory_space<smem>>
    %675 = vector.extract_strided_slice %653 {offsets = [4, 0], sizes = [32, 128], strides = [1, 1]} : vector<40x128xf32> to vector<32x128xf32>
    %676 = vector.broadcast %674 : f32 to vector<32x128xf32>
    %677 = arith.mulf %676, %675 : vector<32x128xf32>
    %678 = arith.addf %673, %677 : vector<32x128xf32>
    %c2_227 = arith.constant 2 : index
    %c36_228 = arith.constant 36 : index
    %679 = memref.load %arg1[%c2_227, %c36_228] : memref<4x49xf32, #tpu.memory_space<smem>>
    %680 = vector.extract_strided_slice %653 {offsets = [5, 0], sizes = [32, 128], strides = [1, 1]} : vector<40x128xf32> to vector<32x128xf32>
    %681 = vector.broadcast %679 : f32 to vector<32x128xf32>
    %682 = arith.mulf %681, %680 : vector<32x128xf32>
    %683 = arith.addf %678, %682 : vector<32x128xf32>
    %c2_229 = arith.constant 2 : index
    %c43_230 = arith.constant 43 : index
    %684 = memref.load %arg1[%c2_229, %c43_230] : memref<4x49xf32, #tpu.memory_space<smem>>
    %685 = vector.extract_strided_slice %653 {offsets = [6, 0], sizes = [32, 128], strides = [1, 1]} : vector<40x128xf32> to vector<32x128xf32>
    %686 = vector.broadcast %684 : f32 to vector<32x128xf32>
    %687 = arith.mulf %686, %685 : vector<32x128xf32>
    %688 = arith.addf %683, %687 : vector<32x128xf32>
    %c1_i32_231 = arith.constant 1 : i32
    %689 = tpu.dynamic_rotate %611 by %c1_i32_231 dim 1 : vector<40x128xf32>, i32 -> vector<40x128xf32>
    %cst_232 = arith.constant 0.000000e+00 : f32
    %690 = vector.broadcast %cst_232 : f32 to vector<40x128xf32>
    %691 = arith.select %45, %689, %690 : vector<40x128xi1>, vector<40x128xf32>
    %c2_233 = arith.constant 2 : index
    %c2_234 = arith.constant 2 : index
    %692 = memref.load %arg1[%c2_233, %c2_234] : memref<4x49xf32, #tpu.memory_space<smem>>
    %693 = vector.extract_strided_slice %691 {offsets = [0, 0], sizes = [32, 128], strides = [1, 1]} : vector<40x128xf32> to vector<32x128xf32>
    %694 = vector.broadcast %692 : f32 to vector<32x128xf32>
    %695 = arith.mulf %694, %693 : vector<32x128xf32>
    %696 = arith.addf %688, %695 : vector<32x128xf32>
    %c2_235 = arith.constant 2 : index
    %c9_236 = arith.constant 9 : index
    %697 = memref.load %arg1[%c2_235, %c9_236] : memref<4x49xf32, #tpu.memory_space<smem>>
    %698 = vector.extract_strided_slice %691 {offsets = [1, 0], sizes = [32, 128], strides = [1, 1]} : vector<40x128xf32> to vector<32x128xf32>
    %699 = vector.broadcast %697 : f32 to vector<32x128xf32>
    %700 = arith.mulf %699, %698 : vector<32x128xf32>
    %701 = arith.addf %696, %700 : vector<32x128xf32>
    %c2_237 = arith.constant 2 : index
    %c16_238 = arith.constant 16 : index
    %702 = memref.load %arg1[%c2_237, %c16_238] : memref<4x49xf32, #tpu.memory_space<smem>>
    %703 = vector.extract_strided_slice %691 {offsets = [2, 0], sizes = [32, 128], strides = [1, 1]} : vector<40x128xf32> to vector<32x128xf32>
    %704 = vector.broadcast %702 : f32 to vector<32x128xf32>
    %705 = arith.mulf %704, %703 : vector<32x128xf32>
    %706 = arith.addf %701, %705 : vector<32x128xf32>
    %c2_239 = arith.constant 2 : index
    %c23_240 = arith.constant 23 : index
    %707 = memref.load %arg1[%c2_239, %c23_240] : memref<4x49xf32, #tpu.memory_space<smem>>
    %708 = vector.extract_strided_slice %691 {offsets = [3, 0], sizes = [32, 128], strides = [1, 1]} : vector<40x128xf32> to vector<32x128xf32>
    %709 = vector.broadcast %707 : f32 to vector<32x128xf32>
    %710 = arith.mulf %709, %708 : vector<32x128xf32>
    %711 = arith.addf %706, %710 : vector<32x128xf32>
    %c2_241 = arith.constant 2 : index
    %c30_242 = arith.constant 30 : index
    %712 = memref.load %arg1[%c2_241, %c30_242] : memref<4x49xf32, #tpu.memory_space<smem>>
    %713 = vector.extract_strided_slice %691 {offsets = [4, 0], sizes = [32, 128], strides = [1, 1]} : vector<40x128xf32> to vector<32x128xf32>
    %714 = vector.broadcast %712 : f32 to vector<32x128xf32>
    %715 = arith.mulf %714, %713 : vector<32x128xf32>
    %716 = arith.addf %711, %715 : vector<32x128xf32>
    %c2_243 = arith.constant 2 : index
    %c37_244 = arith.constant 37 : index
    %717 = memref.load %arg1[%c2_243, %c37_244] : memref<4x49xf32, #tpu.memory_space<smem>>
    %718 = vector.extract_strided_slice %691 {offsets = [5, 0], sizes = [32, 128], strides = [1, 1]} : vector<40x128xf32> to vector<32x128xf32>
    %719 = vector.broadcast %717 : f32 to vector<32x128xf32>
    %720 = arith.mulf %719, %718 : vector<32x128xf32>
    %721 = arith.addf %716, %720 : vector<32x128xf32>
    %c2_245 = arith.constant 2 : index
    %c44_246 = arith.constant 44 : index
    %722 = memref.load %arg1[%c2_245, %c44_246] : memref<4x49xf32, #tpu.memory_space<smem>>
    %723 = vector.extract_strided_slice %691 {offsets = [6, 0], sizes = [32, 128], strides = [1, 1]} : vector<40x128xf32> to vector<32x128xf32>
    %724 = vector.broadcast %722 : f32 to vector<32x128xf32>
    %725 = arith.mulf %724, %723 : vector<32x128xf32>
    %726 = arith.addf %721, %725 : vector<32x128xf32>
    %c2_247 = arith.constant 2 : index
    %c3_248 = arith.constant 3 : index
    %727 = memref.load %arg1[%c2_247, %c3_248] : memref<4x49xf32, #tpu.memory_space<smem>>
    %728 = vector.extract_strided_slice %611 {offsets = [0, 0], sizes = [32, 128], strides = [1, 1]} : vector<40x128xf32> to vector<32x128xf32>
    %729 = vector.broadcast %727 : f32 to vector<32x128xf32>
    %730 = arith.mulf %729, %728 : vector<32x128xf32>
    %731 = arith.addf %726, %730 : vector<32x128xf32>
    %c2_249 = arith.constant 2 : index
    %c10_250 = arith.constant 10 : index
    %732 = memref.load %arg1[%c2_249, %c10_250] : memref<4x49xf32, #tpu.memory_space<smem>>
    %733 = vector.extract_strided_slice %611 {offsets = [1, 0], sizes = [32, 128], strides = [1, 1]} : vector<40x128xf32> to vector<32x128xf32>
    %734 = vector.broadcast %732 : f32 to vector<32x128xf32>
    %735 = arith.mulf %734, %733 : vector<32x128xf32>
    %736 = arith.addf %731, %735 : vector<32x128xf32>
    %c2_251 = arith.constant 2 : index
    %c17_252 = arith.constant 17 : index
    %737 = memref.load %arg1[%c2_251, %c17_252] : memref<4x49xf32, #tpu.memory_space<smem>>
    %738 = vector.extract_strided_slice %611 {offsets = [2, 0], sizes = [32, 128], strides = [1, 1]} : vector<40x128xf32> to vector<32x128xf32>
    %739 = vector.broadcast %737 : f32 to vector<32x128xf32>
    %740 = arith.mulf %739, %738 : vector<32x128xf32>
    %741 = arith.addf %736, %740 : vector<32x128xf32>
    %c2_253 = arith.constant 2 : index
    %c24_254 = arith.constant 24 : index
    %742 = memref.load %arg1[%c2_253, %c24_254] : memref<4x49xf32, #tpu.memory_space<smem>>
    %743 = vector.extract_strided_slice %611 {offsets = [3, 0], sizes = [32, 128], strides = [1, 1]} : vector<40x128xf32> to vector<32x128xf32>
    %744 = vector.broadcast %742 : f32 to vector<32x128xf32>
    %745 = arith.mulf %744, %743 : vector<32x128xf32>
    %746 = arith.addf %741, %745 : vector<32x128xf32>
    %c2_255 = arith.constant 2 : index
    %c31_256 = arith.constant 31 : index
    %747 = memref.load %arg1[%c2_255, %c31_256] : memref<4x49xf32, #tpu.memory_space<smem>>
    %748 = vector.extract_strided_slice %611 {offsets = [4, 0], sizes = [32, 128], strides = [1, 1]} : vector<40x128xf32> to vector<32x128xf32>
    %749 = vector.broadcast %747 : f32 to vector<32x128xf32>
    %750 = arith.mulf %749, %748 : vector<32x128xf32>
    %751 = arith.addf %746, %750 : vector<32x128xf32>
    %c2_257 = arith.constant 2 : index
    %c38_258 = arith.constant 38 : index
    %752 = memref.load %arg1[%c2_257, %c38_258] : memref<4x49xf32, #tpu.memory_space<smem>>
    %753 = vector.extract_strided_slice %611 {offsets = [5, 0], sizes = [32, 128], strides = [1, 1]} : vector<40x128xf32> to vector<32x128xf32>
    %754 = vector.broadcast %752 : f32 to vector<32x128xf32>
    %755 = arith.mulf %754, %753 : vector<32x128xf32>
    %756 = arith.addf %751, %755 : vector<32x128xf32>
    %c2_259 = arith.constant 2 : index
    %c45_260 = arith.constant 45 : index
    %757 = memref.load %arg1[%c2_259, %c45_260] : memref<4x49xf32, #tpu.memory_space<smem>>
    %758 = vector.extract_strided_slice %611 {offsets = [6, 0], sizes = [32, 128], strides = [1, 1]} : vector<40x128xf32> to vector<32x128xf32>
    %759 = vector.broadcast %757 : f32 to vector<32x128xf32>
    %760 = arith.mulf %759, %758 : vector<32x128xf32>
    %761 = arith.addf %756, %760 : vector<32x128xf32>
    %c127_i32_261 = arith.constant 127 : i32
    %762 = tpu.dynamic_rotate %611 by %c127_i32_261 dim 1 : vector<40x128xf32>, i32 -> vector<40x128xf32>
    %cst_262 = arith.constant 0.000000e+00 : f32
    %763 = vector.broadcast %cst_262 : f32 to vector<40x128xf32>
    %764 = arith.select %54, %762, %763 : vector<40x128xi1>, vector<40x128xf32>
    %c2_263 = arith.constant 2 : index
    %c4_264 = arith.constant 4 : index
    %765 = memref.load %arg1[%c2_263, %c4_264] : memref<4x49xf32, #tpu.memory_space<smem>>
    %766 = vector.extract_strided_slice %764 {offsets = [0, 0], sizes = [32, 128], strides = [1, 1]} : vector<40x128xf32> to vector<32x128xf32>
    %767 = vector.broadcast %765 : f32 to vector<32x128xf32>
    %768 = arith.mulf %767, %766 : vector<32x128xf32>
    %769 = arith.addf %761, %768 : vector<32x128xf32>
    %c2_265 = arith.constant 2 : index
    %c11_266 = arith.constant 11 : index
    %770 = memref.load %arg1[%c2_265, %c11_266] : memref<4x49xf32, #tpu.memory_space<smem>>
    %771 = vector.extract_strided_slice %764 {offsets = [1, 0], sizes = [32, 128], strides = [1, 1]} : vector<40x128xf32> to vector<32x128xf32>
    %772 = vector.broadcast %770 : f32 to vector<32x128xf32>
    %773 = arith.mulf %772, %771 : vector<32x128xf32>
    %774 = arith.addf %769, %773 : vector<32x128xf32>
    %c2_267 = arith.constant 2 : index
    %c18_268 = arith.constant 18 : index
    %775 = memref.load %arg1[%c2_267, %c18_268] : memref<4x49xf32, #tpu.memory_space<smem>>
    %776 = vector.extract_strided_slice %764 {offsets = [2, 0], sizes = [32, 128], strides = [1, 1]} : vector<40x128xf32> to vector<32x128xf32>
    %777 = vector.broadcast %775 : f32 to vector<32x128xf32>
    %778 = arith.mulf %777, %776 : vector<32x128xf32>
    %779 = arith.addf %774, %778 : vector<32x128xf32>
    %c2_269 = arith.constant 2 : index
    %c25_270 = arith.constant 25 : index
    %780 = memref.load %arg1[%c2_269, %c25_270] : memref<4x49xf32, #tpu.memory_space<smem>>
    %781 = vector.extract_strided_slice %764 {offsets = [3, 0], sizes = [32, 128], strides = [1, 1]} : vector<40x128xf32> to vector<32x128xf32>
    %782 = vector.broadcast %780 : f32 to vector<32x128xf32>
    %783 = arith.mulf %782, %781 : vector<32x128xf32>
    %784 = arith.addf %779, %783 : vector<32x128xf32>
    %c2_271 = arith.constant 2 : index
    %c32_272 = arith.constant 32 : index
    %785 = memref.load %arg1[%c2_271, %c32_272] : memref<4x49xf32, #tpu.memory_space<smem>>
    %786 = vector.extract_strided_slice %764 {offsets = [4, 0], sizes = [32, 128], strides = [1, 1]} : vector<40x128xf32> to vector<32x128xf32>
    %787 = vector.broadcast %785 : f32 to vector<32x128xf32>
    %788 = arith.mulf %787, %786 : vector<32x128xf32>
    %789 = arith.addf %784, %788 : vector<32x128xf32>
    %c2_273 = arith.constant 2 : index
    %c39_274 = arith.constant 39 : index
    %790 = memref.load %arg1[%c2_273, %c39_274] : memref<4x49xf32, #tpu.memory_space<smem>>
    %791 = vector.extract_strided_slice %764 {offsets = [5, 0], sizes = [32, 128], strides = [1, 1]} : vector<40x128xf32> to vector<32x128xf32>
    %792 = vector.broadcast %790 : f32 to vector<32x128xf32>
    %793 = arith.mulf %792, %791 : vector<32x128xf32>
    %794 = arith.addf %789, %793 : vector<32x128xf32>
    %c2_275 = arith.constant 2 : index
    %c46_276 = arith.constant 46 : index
    %795 = memref.load %arg1[%c2_275, %c46_276] : memref<4x49xf32, #tpu.memory_space<smem>>
    %796 = vector.extract_strided_slice %764 {offsets = [6, 0], sizes = [32, 128], strides = [1, 1]} : vector<40x128xf32> to vector<32x128xf32>
    %797 = vector.broadcast %795 : f32 to vector<32x128xf32>
    %798 = arith.mulf %797, %796 : vector<32x128xf32>
    %799 = arith.addf %794, %798 : vector<32x128xf32>
    %c126_i32_277 = arith.constant 126 : i32
    %800 = tpu.dynamic_rotate %611 by %c126_i32_277 dim 1 : vector<40x128xf32>, i32 -> vector<40x128xf32>
    %cst_278 = arith.constant 0.000000e+00 : f32
    %801 = vector.broadcast %cst_278 : f32 to vector<40x128xf32>
    %802 = arith.select %63, %800, %801 : vector<40x128xi1>, vector<40x128xf32>
    %c2_279 = arith.constant 2 : index
    %c5_280 = arith.constant 5 : index
    %803 = memref.load %arg1[%c2_279, %c5_280] : memref<4x49xf32, #tpu.memory_space<smem>>
    %804 = vector.extract_strided_slice %802 {offsets = [0, 0], sizes = [32, 128], strides = [1, 1]} : vector<40x128xf32> to vector<32x128xf32>
    %805 = vector.broadcast %803 : f32 to vector<32x128xf32>
    %806 = arith.mulf %805, %804 : vector<32x128xf32>
    %807 = arith.addf %799, %806 : vector<32x128xf32>
    %c2_281 = arith.constant 2 : index
    %c12_282 = arith.constant 12 : index
    %808 = memref.load %arg1[%c2_281, %c12_282] : memref<4x49xf32, #tpu.memory_space<smem>>
    %809 = vector.extract_strided_slice %802 {offsets = [1, 0], sizes = [32, 128], strides = [1, 1]} : vector<40x128xf32> to vector<32x128xf32>
    %810 = vector.broadcast %808 : f32 to vector<32x128xf32>
    %811 = arith.mulf %810, %809 : vector<32x128xf32>
    %812 = arith.addf %807, %811 : vector<32x128xf32>
    %c2_283 = arith.constant 2 : index
    %c19_284 = arith.constant 19 : index
    %813 = memref.load %arg1[%c2_283, %c19_284] : memref<4x49xf32, #tpu.memory_space<smem>>
    %814 = vector.extract_strided_slice %802 {offsets = [2, 0], sizes = [32, 128], strides = [1, 1]} : vector<40x128xf32> to vector<32x128xf32>
    %815 = vector.broadcast %813 : f32 to vector<32x128xf32>
    %816 = arith.mulf %815, %814 : vector<32x128xf32>
    %817 = arith.addf %812, %816 : vector<32x128xf32>
    %c2_285 = arith.constant 2 : index
    %c26_286 = arith.constant 26 : index
    %818 = memref.load %arg1[%c2_285, %c26_286] : memref<4x49xf32, #tpu.memory_space<smem>>
    %819 = vector.extract_strided_slice %802 {offsets = [3, 0], sizes = [32, 128], strides = [1, 1]} : vector<40x128xf32> to vector<32x128xf32>
    %820 = vector.broadcast %818 : f32 to vector<32x128xf32>
    %821 = arith.mulf %820, %819 : vector<32x128xf32>
    %822 = arith.addf %817, %821 : vector<32x128xf32>
    %c2_287 = arith.constant 2 : index
    %c33_288 = arith.constant 33 : index
    %823 = memref.load %arg1[%c2_287, %c33_288] : memref<4x49xf32, #tpu.memory_space<smem>>
    %824 = vector.extract_strided_slice %802 {offsets = [4, 0], sizes = [32, 128], strides = [1, 1]} : vector<40x128xf32> to vector<32x128xf32>
    %825 = vector.broadcast %823 : f32 to vector<32x128xf32>
    %826 = arith.mulf %825, %824 : vector<32x128xf32>
    %827 = arith.addf %822, %826 : vector<32x128xf32>
    %c2_289 = arith.constant 2 : index
    %c40_290 = arith.constant 40 : index
    %828 = memref.load %arg1[%c2_289, %c40_290] : memref<4x49xf32, #tpu.memory_space<smem>>
    %829 = vector.extract_strided_slice %802 {offsets = [5, 0], sizes = [32, 128], strides = [1, 1]} : vector<40x128xf32> to vector<32x128xf32>
    %830 = vector.broadcast %828 : f32 to vector<32x128xf32>
    %831 = arith.mulf %830, %829 : vector<32x128xf32>
    %832 = arith.addf %827, %831 : vector<32x128xf32>
    %c2_291 = arith.constant 2 : index
    %c47_292 = arith.constant 47 : index
    %833 = memref.load %arg1[%c2_291, %c47_292] : memref<4x49xf32, #tpu.memory_space<smem>>
    %834 = vector.extract_strided_slice %802 {offsets = [6, 0], sizes = [32, 128], strides = [1, 1]} : vector<40x128xf32> to vector<32x128xf32>
    %835 = vector.broadcast %833 : f32 to vector<32x128xf32>
    %836 = arith.mulf %835, %834 : vector<32x128xf32>
    %837 = arith.addf %832, %836 : vector<32x128xf32>
    %c125_i32_293 = arith.constant 125 : i32
    %838 = tpu.dynamic_rotate %611 by %c125_i32_293 dim 1 : vector<40x128xf32>, i32 -> vector<40x128xf32>
    %cst_294 = arith.constant 0.000000e+00 : f32
    %839 = vector.broadcast %cst_294 : f32 to vector<40x128xf32>
    %840 = arith.select %72, %838, %839 : vector<40x128xi1>, vector<40x128xf32>
    %c2_295 = arith.constant 2 : index
    %c6_296 = arith.constant 6 : index
    %841 = memref.load %arg1[%c2_295, %c6_296] : memref<4x49xf32, #tpu.memory_space<smem>>
    %842 = vector.extract_strided_slice %840 {offsets = [0, 0], sizes = [32, 128], strides = [1, 1]} : vector<40x128xf32> to vector<32x128xf32>
    %843 = vector.broadcast %841 : f32 to vector<32x128xf32>
    %844 = arith.mulf %843, %842 : vector<32x128xf32>
    %845 = arith.addf %837, %844 : vector<32x128xf32>
    %c2_297 = arith.constant 2 : index
    %c13_298 = arith.constant 13 : index
    %846 = memref.load %arg1[%c2_297, %c13_298] : memref<4x49xf32, #tpu.memory_space<smem>>
    %847 = vector.extract_strided_slice %840 {offsets = [1, 0], sizes = [32, 128], strides = [1, 1]} : vector<40x128xf32> to vector<32x128xf32>
    %848 = vector.broadcast %846 : f32 to vector<32x128xf32>
    %849 = arith.mulf %848, %847 : vector<32x128xf32>
    %850 = arith.addf %845, %849 : vector<32x128xf32>
    %c2_299 = arith.constant 2 : index
    %c20_300 = arith.constant 20 : index
    %851 = memref.load %arg1[%c2_299, %c20_300] : memref<4x49xf32, #tpu.memory_space<smem>>
    %852 = vector.extract_strided_slice %840 {offsets = [2, 0], sizes = [32, 128], strides = [1, 1]} : vector<40x128xf32> to vector<32x128xf32>
    %853 = vector.broadcast %851 : f32 to vector<32x128xf32>
    %854 = arith.mulf %853, %852 : vector<32x128xf32>
    %855 = arith.addf %850, %854 : vector<32x128xf32>
    %c2_301 = arith.constant 2 : index
    %c27_302 = arith.constant 27 : index
    %856 = memref.load %arg1[%c2_301, %c27_302] : memref<4x49xf32, #tpu.memory_space<smem>>
    %857 = vector.extract_strided_slice %840 {offsets = [3, 0], sizes = [32, 128], strides = [1, 1]} : vector<40x128xf32> to vector<32x128xf32>
    %858 = vector.broadcast %856 : f32 to vector<32x128xf32>
    %859 = arith.mulf %858, %857 : vector<32x128xf32>
    %860 = arith.addf %855, %859 : vector<32x128xf32>
    %c2_303 = arith.constant 2 : index
    %c34_304 = arith.constant 34 : index
    %861 = memref.load %arg1[%c2_303, %c34_304] : memref<4x49xf32, #tpu.memory_space<smem>>
    %862 = vector.extract_strided_slice %840 {offsets = [4, 0], sizes = [32, 128], strides = [1, 1]} : vector<40x128xf32> to vector<32x128xf32>
    %863 = vector.broadcast %861 : f32 to vector<32x128xf32>
    %864 = arith.mulf %863, %862 : vector<32x128xf32>
    %865 = arith.addf %860, %864 : vector<32x128xf32>
    %c2_305 = arith.constant 2 : index
    %c41_306 = arith.constant 41 : index
    %866 = memref.load %arg1[%c2_305, %c41_306] : memref<4x49xf32, #tpu.memory_space<smem>>
    %867 = vector.extract_strided_slice %840 {offsets = [5, 0], sizes = [32, 128], strides = [1, 1]} : vector<40x128xf32> to vector<32x128xf32>
    %868 = vector.broadcast %866 : f32 to vector<32x128xf32>
    %869 = arith.mulf %868, %867 : vector<32x128xf32>
    %870 = arith.addf %865, %869 : vector<32x128xf32>
    %c2_307 = arith.constant 2 : index
    %c48_308 = arith.constant 48 : index
    %871 = memref.load %arg1[%c2_307, %c48_308] : memref<4x49xf32, #tpu.memory_space<smem>>
    %872 = vector.extract_strided_slice %840 {offsets = [6, 0], sizes = [32, 128], strides = [1, 1]} : vector<40x128xf32> to vector<32x128xf32>
    %873 = vector.broadcast %871 : f32 to vector<32x128xf32>
    %874 = arith.mulf %873, %872 : vector<32x128xf32>
    %875 = arith.addf %870, %874 : vector<32x128xf32>
    %c3_309 = arith.constant 3 : index
    %876 = arith.index_cast %74 : i32 to index
    %c0_310 = arith.constant 0 : index
    %877 = vector.load %arg6[%c3_309, %876, %c0_310] : memref<4x72x128xf32, #tpu.memory_space<vmem>>, vector<1x40x128xf32>
    %878 = vector.shape_cast %877 : vector<1x40x128xf32> to vector<40x128xf32>
    %cst_311 = arith.constant 0.000000e+00 : f32
    %879 = vector.broadcast %cst_311 : f32 to vector<32x128xf32>
    %c3_i32_312 = arith.constant 3 : i32
    %880 = tpu.dynamic_rotate %878 by %c3_i32_312 dim 1 : vector<40x128xf32>, i32 -> vector<40x128xf32>
    %cst_313 = arith.constant 0.000000e+00 : f32
    %881 = vector.broadcast %cst_313 : f32 to vector<40x128xf32>
    %882 = arith.select %27, %880, %881 : vector<40x128xi1>, vector<40x128xf32>
    %c3_314 = arith.constant 3 : index
    %c0_315 = arith.constant 0 : index
    %883 = memref.load %arg1[%c3_314, %c0_315] : memref<4x49xf32, #tpu.memory_space<smem>>
    %884 = vector.extract_strided_slice %882 {offsets = [0, 0], sizes = [32, 128], strides = [1, 1]} : vector<40x128xf32> to vector<32x128xf32>
    %885 = vector.broadcast %883 : f32 to vector<32x128xf32>
    %886 = arith.mulf %885, %884 : vector<32x128xf32>
    %887 = arith.addf %879, %886 : vector<32x128xf32>
    %c3_316 = arith.constant 3 : index
    %c7_317 = arith.constant 7 : index
    %888 = memref.load %arg1[%c3_316, %c7_317] : memref<4x49xf32, #tpu.memory_space<smem>>
    %889 = vector.extract_strided_slice %882 {offsets = [1, 0], sizes = [32, 128], strides = [1, 1]} : vector<40x128xf32> to vector<32x128xf32>
    %890 = vector.broadcast %888 : f32 to vector<32x128xf32>
    %891 = arith.mulf %890, %889 : vector<32x128xf32>
    %892 = arith.addf %887, %891 : vector<32x128xf32>
    %c3_318 = arith.constant 3 : index
    %c14_319 = arith.constant 14 : index
    %893 = memref.load %arg1[%c3_318, %c14_319] : memref<4x49xf32, #tpu.memory_space<smem>>
    %894 = vector.extract_strided_slice %882 {offsets = [2, 0], sizes = [32, 128], strides = [1, 1]} : vector<40x128xf32> to vector<32x128xf32>
    %895 = vector.broadcast %893 : f32 to vector<32x128xf32>
    %896 = arith.mulf %895, %894 : vector<32x128xf32>
    %897 = arith.addf %892, %896 : vector<32x128xf32>
    %c3_320 = arith.constant 3 : index
    %c21_321 = arith.constant 21 : index
    %898 = memref.load %arg1[%c3_320, %c21_321] : memref<4x49xf32, #tpu.memory_space<smem>>
    %899 = vector.extract_strided_slice %882 {offsets = [3, 0], sizes = [32, 128], strides = [1, 1]} : vector<40x128xf32> to vector<32x128xf32>
    %900 = vector.broadcast %898 : f32 to vector<32x128xf32>
    %901 = arith.mulf %900, %899 : vector<32x128xf32>
    %902 = arith.addf %897, %901 : vector<32x128xf32>
    %c3_322 = arith.constant 3 : index
    %c28_323 = arith.constant 28 : index
    %903 = memref.load %arg1[%c3_322, %c28_323] : memref<4x49xf32, #tpu.memory_space<smem>>
    %904 = vector.extract_strided_slice %882 {offsets = [4, 0], sizes = [32, 128], strides = [1, 1]} : vector<40x128xf32> to vector<32x128xf32>
    %905 = vector.broadcast %903 : f32 to vector<32x128xf32>
    %906 = arith.mulf %905, %904 : vector<32x128xf32>
    %907 = arith.addf %902, %906 : vector<32x128xf32>
    %c3_324 = arith.constant 3 : index
    %c35_325 = arith.constant 35 : index
    %908 = memref.load %arg1[%c3_324, %c35_325] : memref<4x49xf32, #tpu.memory_space<smem>>
    %909 = vector.extract_strided_slice %882 {offsets = [5, 0], sizes = [32, 128], strides = [1, 1]} : vector<40x128xf32> to vector<32x128xf32>
    %910 = vector.broadcast %908 : f32 to vector<32x128xf32>
    %911 = arith.mulf %910, %909 : vector<32x128xf32>
    %912 = arith.addf %907, %911 : vector<32x128xf32>
    %c3_326 = arith.constant 3 : index
    %c42_327 = arith.constant 42 : index
    %913 = memref.load %arg1[%c3_326, %c42_327] : memref<4x49xf32, #tpu.memory_space<smem>>
    %914 = vector.extract_strided_slice %882 {offsets = [6, 0], sizes = [32, 128], strides = [1, 1]} : vector<40x128xf32> to vector<32x128xf32>
    %915 = vector.broadcast %913 : f32 to vector<32x128xf32>
    %916 = arith.mulf %915, %914 : vector<32x128xf32>
    %917 = arith.addf %912, %916 : vector<32x128xf32>
    %c2_i32_328 = arith.constant 2 : i32
    %918 = tpu.dynamic_rotate %878 by %c2_i32_328 dim 1 : vector<40x128xf32>, i32 -> vector<40x128xf32>
    %cst_329 = arith.constant 0.000000e+00 : f32
    %919 = vector.broadcast %cst_329 : f32 to vector<40x128xf32>
    %920 = arith.select %36, %918, %919 : vector<40x128xi1>, vector<40x128xf32>
    %c3_330 = arith.constant 3 : index
    %c1_331 = arith.constant 1 : index
    %921 = memref.load %arg1[%c3_330, %c1_331] : memref<4x49xf32, #tpu.memory_space<smem>>
    %922 = vector.extract_strided_slice %920 {offsets = [0, 0], sizes = [32, 128], strides = [1, 1]} : vector<40x128xf32> to vector<32x128xf32>
    %923 = vector.broadcast %921 : f32 to vector<32x128xf32>
    %924 = arith.mulf %923, %922 : vector<32x128xf32>
    %925 = arith.addf %917, %924 : vector<32x128xf32>
    %c3_332 = arith.constant 3 : index
    %c8_333 = arith.constant 8 : index
    %926 = memref.load %arg1[%c3_332, %c8_333] : memref<4x49xf32, #tpu.memory_space<smem>>
    %927 = vector.extract_strided_slice %920 {offsets = [1, 0], sizes = [32, 128], strides = [1, 1]} : vector<40x128xf32> to vector<32x128xf32>
    %928 = vector.broadcast %926 : f32 to vector<32x128xf32>
    %929 = arith.mulf %928, %927 : vector<32x128xf32>
    %930 = arith.addf %925, %929 : vector<32x128xf32>
    %c3_334 = arith.constant 3 : index
    %c15_335 = arith.constant 15 : index
    %931 = memref.load %arg1[%c3_334, %c15_335] : memref<4x49xf32, #tpu.memory_space<smem>>
    %932 = vector.extract_strided_slice %920 {offsets = [2, 0], sizes = [32, 128], strides = [1, 1]} : vector<40x128xf32> to vector<32x128xf32>
    %933 = vector.broadcast %931 : f32 to vector<32x128xf32>
    %934 = arith.mulf %933, %932 : vector<32x128xf32>
    %935 = arith.addf %930, %934 : vector<32x128xf32>
    %c3_336 = arith.constant 3 : index
    %c22_337 = arith.constant 22 : index
    %936 = memref.load %arg1[%c3_336, %c22_337] : memref<4x49xf32, #tpu.memory_space<smem>>
    %937 = vector.extract_strided_slice %920 {offsets = [3, 0], sizes = [32, 128], strides = [1, 1]} : vector<40x128xf32> to vector<32x128xf32>
    %938 = vector.broadcast %936 : f32 to vector<32x128xf32>
    %939 = arith.mulf %938, %937 : vector<32x128xf32>
    %940 = arith.addf %935, %939 : vector<32x128xf32>
    %c3_338 = arith.constant 3 : index
    %c29_339 = arith.constant 29 : index
    %941 = memref.load %arg1[%c3_338, %c29_339] : memref<4x49xf32, #tpu.memory_space<smem>>
    %942 = vector.extract_strided_slice %920 {offsets = [4, 0], sizes = [32, 128], strides = [1, 1]} : vector<40x128xf32> to vector<32x128xf32>
    %943 = vector.broadcast %941 : f32 to vector<32x128xf32>
    %944 = arith.mulf %943, %942 : vector<32x128xf32>
    %945 = arith.addf %940, %944 : vector<32x128xf32>
    %c3_340 = arith.constant 3 : index
    %c36_341 = arith.constant 36 : index
    %946 = memref.load %arg1[%c3_340, %c36_341] : memref<4x49xf32, #tpu.memory_space<smem>>
    %947 = vector.extract_strided_slice %920 {offsets = [5, 0], sizes = [32, 128], strides = [1, 1]} : vector<40x128xf32> to vector<32x128xf32>
    %948 = vector.broadcast %946 : f32 to vector<32x128xf32>
    %949 = arith.mulf %948, %947 : vector<32x128xf32>
    %950 = arith.addf %945, %949 : vector<32x128xf32>
    %c3_342 = arith.constant 3 : index
    %c43_343 = arith.constant 43 : index
    %951 = memref.load %arg1[%c3_342, %c43_343] : memref<4x49xf32, #tpu.memory_space<smem>>
    %952 = vector.extract_strided_slice %920 {offsets = [6, 0], sizes = [32, 128], strides = [1, 1]} : vector<40x128xf32> to vector<32x128xf32>
    %953 = vector.broadcast %951 : f32 to vector<32x128xf32>
    %954 = arith.mulf %953, %952 : vector<32x128xf32>
    %955 = arith.addf %950, %954 : vector<32x128xf32>
    %c1_i32_344 = arith.constant 1 : i32
    %956 = tpu.dynamic_rotate %878 by %c1_i32_344 dim 1 : vector<40x128xf32>, i32 -> vector<40x128xf32>
    %cst_345 = arith.constant 0.000000e+00 : f32
    %957 = vector.broadcast %cst_345 : f32 to vector<40x128xf32>
    %958 = arith.select %45, %956, %957 : vector<40x128xi1>, vector<40x128xf32>
    %c3_346 = arith.constant 3 : index
    %c2_347 = arith.constant 2 : index
    %959 = memref.load %arg1[%c3_346, %c2_347] : memref<4x49xf32, #tpu.memory_space<smem>>
    %960 = vector.extract_strided_slice %958 {offsets = [0, 0], sizes = [32, 128], strides = [1, 1]} : vector<40x128xf32> to vector<32x128xf32>
    %961 = vector.broadcast %959 : f32 to vector<32x128xf32>
    %962 = arith.mulf %961, %960 : vector<32x128xf32>
    %963 = arith.addf %955, %962 : vector<32x128xf32>
    %c3_348 = arith.constant 3 : index
    %c9_349 = arith.constant 9 : index
    %964 = memref.load %arg1[%c3_348, %c9_349] : memref<4x49xf32, #tpu.memory_space<smem>>
    %965 = vector.extract_strided_slice %958 {offsets = [1, 0], sizes = [32, 128], strides = [1, 1]} : vector<40x128xf32> to vector<32x128xf32>
    %966 = vector.broadcast %964 : f32 to vector<32x128xf32>
    %967 = arith.mulf %966, %965 : vector<32x128xf32>
    %968 = arith.addf %963, %967 : vector<32x128xf32>
    %c3_350 = arith.constant 3 : index
    %c16_351 = arith.constant 16 : index
    %969 = memref.load %arg1[%c3_350, %c16_351] : memref<4x49xf32, #tpu.memory_space<smem>>
    %970 = vector.extract_strided_slice %958 {offsets = [2, 0], sizes = [32, 128], strides = [1, 1]} : vector<40x128xf32> to vector<32x128xf32>
    %971 = vector.broadcast %969 : f32 to vector<32x128xf32>
    %972 = arith.mulf %971, %970 : vector<32x128xf32>
    %973 = arith.addf %968, %972 : vector<32x128xf32>
    %c3_352 = arith.constant 3 : index
    %c23_353 = arith.constant 23 : index
    %974 = memref.load %arg1[%c3_352, %c23_353] : memref<4x49xf32, #tpu.memory_space<smem>>
    %975 = vector.extract_strided_slice %958 {offsets = [3, 0], sizes = [32, 128], strides = [1, 1]} : vector<40x128xf32> to vector<32x128xf32>
    %976 = vector.broadcast %974 : f32 to vector<32x128xf32>
    %977 = arith.mulf %976, %975 : vector<32x128xf32>
    %978 = arith.addf %973, %977 : vector<32x128xf32>
    %c3_354 = arith.constant 3 : index
    %c30_355 = arith.constant 30 : index
    %979 = memref.load %arg1[%c3_354, %c30_355] : memref<4x49xf32, #tpu.memory_space<smem>>
    %980 = vector.extract_strided_slice %958 {offsets = [4, 0], sizes = [32, 128], strides = [1, 1]} : vector<40x128xf32> to vector<32x128xf32>
    %981 = vector.broadcast %979 : f32 to vector<32x128xf32>
    %982 = arith.mulf %981, %980 : vector<32x128xf32>
    %983 = arith.addf %978, %982 : vector<32x128xf32>
    %c3_356 = arith.constant 3 : index
    %c37_357 = arith.constant 37 : index
    %984 = memref.load %arg1[%c3_356, %c37_357] : memref<4x49xf32, #tpu.memory_space<smem>>
    %985 = vector.extract_strided_slice %958 {offsets = [5, 0], sizes = [32, 128], strides = [1, 1]} : vector<40x128xf32> to vector<32x128xf32>
    %986 = vector.broadcast %984 : f32 to vector<32x128xf32>
    %987 = arith.mulf %986, %985 : vector<32x128xf32>
    %988 = arith.addf %983, %987 : vector<32x128xf32>
    %c3_358 = arith.constant 3 : index
    %c44_359 = arith.constant 44 : index
    %989 = memref.load %arg1[%c3_358, %c44_359] : memref<4x49xf32, #tpu.memory_space<smem>>
    %990 = vector.extract_strided_slice %958 {offsets = [6, 0], sizes = [32, 128], strides = [1, 1]} : vector<40x128xf32> to vector<32x128xf32>
    %991 = vector.broadcast %989 : f32 to vector<32x128xf32>
    %992 = arith.mulf %991, %990 : vector<32x128xf32>
    %993 = arith.addf %988, %992 : vector<32x128xf32>
    %c3_360 = arith.constant 3 : index
    %c3_361 = arith.constant 3 : index
    %994 = memref.load %arg1[%c3_360, %c3_361] : memref<4x49xf32, #tpu.memory_space<smem>>
    %995 = vector.extract_strided_slice %878 {offsets = [0, 0], sizes = [32, 128], strides = [1, 1]} : vector<40x128xf32> to vector<32x128xf32>
    %996 = vector.broadcast %994 : f32 to vector<32x128xf32>
    %997 = arith.mulf %996, %995 : vector<32x128xf32>
    %998 = arith.addf %993, %997 : vector<32x128xf32>
    %c3_362 = arith.constant 3 : index
    %c10_363 = arith.constant 10 : index
    %999 = memref.load %arg1[%c3_362, %c10_363] : memref<4x49xf32, #tpu.memory_space<smem>>
    %1000 = vector.extract_strided_slice %878 {offsets = [1, 0], sizes = [32, 128], strides = [1, 1]} : vector<40x128xf32> to vector<32x128xf32>
    %1001 = vector.broadcast %999 : f32 to vector<32x128xf32>
    %1002 = arith.mulf %1001, %1000 : vector<32x128xf32>
    %1003 = arith.addf %998, %1002 : vector<32x128xf32>
    %c3_364 = arith.constant 3 : index
    %c17_365 = arith.constant 17 : index
    %1004 = memref.load %arg1[%c3_364, %c17_365] : memref<4x49xf32, #tpu.memory_space<smem>>
    %1005 = vector.extract_strided_slice %878 {offsets = [2, 0], sizes = [32, 128], strides = [1, 1]} : vector<40x128xf32> to vector<32x128xf32>
    %1006 = vector.broadcast %1004 : f32 to vector<32x128xf32>
    %1007 = arith.mulf %1006, %1005 : vector<32x128xf32>
    %1008 = arith.addf %1003, %1007 : vector<32x128xf32>
    %c3_366 = arith.constant 3 : index
    %c24_367 = arith.constant 24 : index
    %1009 = memref.load %arg1[%c3_366, %c24_367] : memref<4x49xf32, #tpu.memory_space<smem>>
    %1010 = vector.extract_strided_slice %878 {offsets = [3, 0], sizes = [32, 128], strides = [1, 1]} : vector<40x128xf32> to vector<32x128xf32>
    %1011 = vector.broadcast %1009 : f32 to vector<32x128xf32>
    %1012 = arith.mulf %1011, %1010 : vector<32x128xf32>
    %1013 = arith.addf %1008, %1012 : vector<32x128xf32>
    %c3_368 = arith.constant 3 : index
    %c31_369 = arith.constant 31 : index
    %1014 = memref.load %arg1[%c3_368, %c31_369] : memref<4x49xf32, #tpu.memory_space<smem>>
    %1015 = vector.extract_strided_slice %878 {offsets = [4, 0], sizes = [32, 128], strides = [1, 1]} : vector<40x128xf32> to vector<32x128xf32>
    %1016 = vector.broadcast %1014 : f32 to vector<32x128xf32>
    %1017 = arith.mulf %1016, %1015 : vector<32x128xf32>
    %1018 = arith.addf %1013, %1017 : vector<32x128xf32>
    %c3_370 = arith.constant 3 : index
    %c38_371 = arith.constant 38 : index
    %1019 = memref.load %arg1[%c3_370, %c38_371] : memref<4x49xf32, #tpu.memory_space<smem>>
    %1020 = vector.extract_strided_slice %878 {offsets = [5, 0], sizes = [32, 128], strides = [1, 1]} : vector<40x128xf32> to vector<32x128xf32>
    %1021 = vector.broadcast %1019 : f32 to vector<32x128xf32>
    %1022 = arith.mulf %1021, %1020 : vector<32x128xf32>
    %1023 = arith.addf %1018, %1022 : vector<32x128xf32>
    %c3_372 = arith.constant 3 : index
    %c45_373 = arith.constant 45 : index
    %1024 = memref.load %arg1[%c3_372, %c45_373] : memref<4x49xf32, #tpu.memory_space<smem>>
    %1025 = vector.extract_strided_slice %878 {offsets = [6, 0], sizes = [32, 128], strides = [1, 1]} : vector<40x128xf32> to vector<32x128xf32>
    %1026 = vector.broadcast %1024 : f32 to vector<32x128xf32>
    %1027 = arith.mulf %1026, %1025 : vector<32x128xf32>
    %1028 = arith.addf %1023, %1027 : vector<32x128xf32>
    %c127_i32_374 = arith.constant 127 : i32
    %1029 = tpu.dynamic_rotate %878 by %c127_i32_374 dim 1 : vector<40x128xf32>, i32 -> vector<40x128xf32>
    %cst_375 = arith.constant 0.000000e+00 : f32
    %1030 = vector.broadcast %cst_375 : f32 to vector<40x128xf32>
    %1031 = arith.select %54, %1029, %1030 : vector<40x128xi1>, vector<40x128xf32>
    %c3_376 = arith.constant 3 : index
    %c4_377 = arith.constant 4 : index
    %1032 = memref.load %arg1[%c3_376, %c4_377] : memref<4x49xf32, #tpu.memory_space<smem>>
    %1033 = vector.extract_strided_slice %1031 {offsets = [0, 0], sizes = [32, 128], strides = [1, 1]} : vector<40x128xf32> to vector<32x128xf32>
    %1034 = vector.broadcast %1032 : f32 to vector<32x128xf32>
    %1035 = arith.mulf %1034, %1033 : vector<32x128xf32>
    %1036 = arith.addf %1028, %1035 : vector<32x128xf32>
    %c3_378 = arith.constant 3 : index
    %c11_379 = arith.constant 11 : index
    %1037 = memref.load %arg1[%c3_378, %c11_379] : memref<4x49xf32, #tpu.memory_space<smem>>
    %1038 = vector.extract_strided_slice %1031 {offsets = [1, 0], sizes = [32, 128], strides = [1, 1]} : vector<40x128xf32> to vector<32x128xf32>
    %1039 = vector.broadcast %1037 : f32 to vector<32x128xf32>
    %1040 = arith.mulf %1039, %1038 : vector<32x128xf32>
    %1041 = arith.addf %1036, %1040 : vector<32x128xf32>
    %c3_380 = arith.constant 3 : index
    %c18_381 = arith.constant 18 : index
    %1042 = memref.load %arg1[%c3_380, %c18_381] : memref<4x49xf32, #tpu.memory_space<smem>>
    %1043 = vector.extract_strided_slice %1031 {offsets = [2, 0], sizes = [32, 128], strides = [1, 1]} : vector<40x128xf32> to vector<32x128xf32>
    %1044 = vector.broadcast %1042 : f32 to vector<32x128xf32>
    %1045 = arith.mulf %1044, %1043 : vector<32x128xf32>
    %1046 = arith.addf %1041, %1045 : vector<32x128xf32>
    %c3_382 = arith.constant 3 : index
    %c25_383 = arith.constant 25 : index
    %1047 = memref.load %arg1[%c3_382, %c25_383] : memref<4x49xf32, #tpu.memory_space<smem>>
    %1048 = vector.extract_strided_slice %1031 {offsets = [3, 0], sizes = [32, 128], strides = [1, 1]} : vector<40x128xf32> to vector<32x128xf32>
    %1049 = vector.broadcast %1047 : f32 to vector<32x128xf32>
    %1050 = arith.mulf %1049, %1048 : vector<32x128xf32>
    %1051 = arith.addf %1046, %1050 : vector<32x128xf32>
    %c3_384 = arith.constant 3 : index
    %c32_385 = arith.constant 32 : index
    %1052 = memref.load %arg1[%c3_384, %c32_385] : memref<4x49xf32, #tpu.memory_space<smem>>
    %1053 = vector.extract_strided_slice %1031 {offsets = [4, 0], sizes = [32, 128], strides = [1, 1]} : vector<40x128xf32> to vector<32x128xf32>
    %1054 = vector.broadcast %1052 : f32 to vector<32x128xf32>
    %1055 = arith.mulf %1054, %1053 : vector<32x128xf32>
    %1056 = arith.addf %1051, %1055 : vector<32x128xf32>
    %c3_386 = arith.constant 3 : index
    %c39_387 = arith.constant 39 : index
    %1057 = memref.load %arg1[%c3_386, %c39_387] : memref<4x49xf32, #tpu.memory_space<smem>>
    %1058 = vector.extract_strided_slice %1031 {offsets = [5, 0], sizes = [32, 128], strides = [1, 1]} : vector<40x128xf32> to vector<32x128xf32>
    %1059 = vector.broadcast %1057 : f32 to vector<32x128xf32>
    %1060 = arith.mulf %1059, %1058 : vector<32x128xf32>
    %1061 = arith.addf %1056, %1060 : vector<32x128xf32>
    %c3_388 = arith.constant 3 : index
    %c46_389 = arith.constant 46 : index
    %1062 = memref.load %arg1[%c3_388, %c46_389] : memref<4x49xf32, #tpu.memory_space<smem>>
    %1063 = vector.extract_strided_slice %1031 {offsets = [6, 0], sizes = [32, 128], strides = [1, 1]} : vector<40x128xf32> to vector<32x128xf32>
    %1064 = vector.broadcast %1062 : f32 to vector<32x128xf32>
    %1065 = arith.mulf %1064, %1063 : vector<32x128xf32>
    %1066 = arith.addf %1061, %1065 : vector<32x128xf32>
    %c126_i32_390 = arith.constant 126 : i32
    %1067 = tpu.dynamic_rotate %878 by %c126_i32_390 dim 1 : vector<40x128xf32>, i32 -> vector<40x128xf32>
    %cst_391 = arith.constant 0.000000e+00 : f32
    %1068 = vector.broadcast %cst_391 : f32 to vector<40x128xf32>
    %1069 = arith.select %63, %1067, %1068 : vector<40x128xi1>, vector<40x128xf32>
    %c3_392 = arith.constant 3 : index
    %c5_393 = arith.constant 5 : index
    %1070 = memref.load %arg1[%c3_392, %c5_393] : memref<4x49xf32, #tpu.memory_space<smem>>
    %1071 = vector.extract_strided_slice %1069 {offsets = [0, 0], sizes = [32, 128], strides = [1, 1]} : vector<40x128xf32> to vector<32x128xf32>
    %1072 = vector.broadcast %1070 : f32 to vector<32x128xf32>
    %1073 = arith.mulf %1072, %1071 : vector<32x128xf32>
    %1074 = arith.addf %1066, %1073 : vector<32x128xf32>
    %c3_394 = arith.constant 3 : index
    %c12_395 = arith.constant 12 : index
    %1075 = memref.load %arg1[%c3_394, %c12_395] : memref<4x49xf32, #tpu.memory_space<smem>>
    %1076 = vector.extract_strided_slice %1069 {offsets = [1, 0], sizes = [32, 128], strides = [1, 1]} : vector<40x128xf32> to vector<32x128xf32>
    %1077 = vector.broadcast %1075 : f32 to vector<32x128xf32>
    %1078 = arith.mulf %1077, %1076 : vector<32x128xf32>
    %1079 = arith.addf %1074, %1078 : vector<32x128xf32>
    %c3_396 = arith.constant 3 : index
    %c19_397 = arith.constant 19 : index
    %1080 = memref.load %arg1[%c3_396, %c19_397] : memref<4x49xf32, #tpu.memory_space<smem>>
    %1081 = vector.extract_strided_slice %1069 {offsets = [2, 0], sizes = [32, 128], strides = [1, 1]} : vector<40x128xf32> to vector<32x128xf32>
    %1082 = vector.broadcast %1080 : f32 to vector<32x128xf32>
    %1083 = arith.mulf %1082, %1081 : vector<32x128xf32>
    %1084 = arith.addf %1079, %1083 : vector<32x128xf32>
    %c3_398 = arith.constant 3 : index
    %c26_399 = arith.constant 26 : index
    %1085 = memref.load %arg1[%c3_398, %c26_399] : memref<4x49xf32, #tpu.memory_space<smem>>
    %1086 = vector.extract_strided_slice %1069 {offsets = [3, 0], sizes = [32, 128], strides = [1, 1]} : vector<40x128xf32> to vector<32x128xf32>
    %1087 = vector.broadcast %1085 : f32 to vector<32x128xf32>
    %1088 = arith.mulf %1087, %1086 : vector<32x128xf32>
    %1089 = arith.addf %1084, %1088 : vector<32x128xf32>
    %c3_400 = arith.constant 3 : index
    %c33_401 = arith.constant 33 : index
    %1090 = memref.load %arg1[%c3_400, %c33_401] : memref<4x49xf32, #tpu.memory_space<smem>>
    %1091 = vector.extract_strided_slice %1069 {offsets = [4, 0], sizes = [32, 128], strides = [1, 1]} : vector<40x128xf32> to vector<32x128xf32>
    %1092 = vector.broadcast %1090 : f32 to vector<32x128xf32>
    %1093 = arith.mulf %1092, %1091 : vector<32x128xf32>
    %1094 = arith.addf %1089, %1093 : vector<32x128xf32>
    %c3_402 = arith.constant 3 : index
    %c40_403 = arith.constant 40 : index
    %1095 = memref.load %arg1[%c3_402, %c40_403] : memref<4x49xf32, #tpu.memory_space<smem>>
    %1096 = vector.extract_strided_slice %1069 {offsets = [5, 0], sizes = [32, 128], strides = [1, 1]} : vector<40x128xf32> to vector<32x128xf32>
    %1097 = vector.broadcast %1095 : f32 to vector<32x128xf32>
    %1098 = arith.mulf %1097, %1096 : vector<32x128xf32>
    %1099 = arith.addf %1094, %1098 : vector<32x128xf32>
    %c3_404 = arith.constant 3 : index
    %c47_405 = arith.constant 47 : index
    %1100 = memref.load %arg1[%c3_404, %c47_405] : memref<4x49xf32, #tpu.memory_space<smem>>
    %1101 = vector.extract_strided_slice %1069 {offsets = [6, 0], sizes = [32, 128], strides = [1, 1]} : vector<40x128xf32> to vector<32x128xf32>
    %1102 = vector.broadcast %1100 : f32 to vector<32x128xf32>
    %1103 = arith.mulf %1102, %1101 : vector<32x128xf32>
    %1104 = arith.addf %1099, %1103 : vector<32x128xf32>
    %c125_i32_406 = arith.constant 125 : i32
    %1105 = tpu.dynamic_rotate %878 by %c125_i32_406 dim 1 : vector<40x128xf32>, i32 -> vector<40x128xf32>
    %cst_407 = arith.constant 0.000000e+00 : f32
    %1106 = vector.broadcast %cst_407 : f32 to vector<40x128xf32>
    %1107 = arith.select %72, %1105, %1106 : vector<40x128xi1>, vector<40x128xf32>
    %c3_408 = arith.constant 3 : index
    %c6_409 = arith.constant 6 : index
    %1108 = memref.load %arg1[%c3_408, %c6_409] : memref<4x49xf32, #tpu.memory_space<smem>>
    %1109 = vector.extract_strided_slice %1107 {offsets = [0, 0], sizes = [32, 128], strides = [1, 1]} : vector<40x128xf32> to vector<32x128xf32>
    %1110 = vector.broadcast %1108 : f32 to vector<32x128xf32>
    %1111 = arith.mulf %1110, %1109 : vector<32x128xf32>
    %1112 = arith.addf %1104, %1111 : vector<32x128xf32>
    %c3_410 = arith.constant 3 : index
    %c13_411 = arith.constant 13 : index
    %1113 = memref.load %arg1[%c3_410, %c13_411] : memref<4x49xf32, #tpu.memory_space<smem>>
    %1114 = vector.extract_strided_slice %1107 {offsets = [1, 0], sizes = [32, 128], strides = [1, 1]} : vector<40x128xf32> to vector<32x128xf32>
    %1115 = vector.broadcast %1113 : f32 to vector<32x128xf32>
    %1116 = arith.mulf %1115, %1114 : vector<32x128xf32>
    %1117 = arith.addf %1112, %1116 : vector<32x128xf32>
    %c3_412 = arith.constant 3 : index
    %c20_413 = arith.constant 20 : index
    %1118 = memref.load %arg1[%c3_412, %c20_413] : memref<4x49xf32, #tpu.memory_space<smem>>
    %1119 = vector.extract_strided_slice %1107 {offsets = [2, 0], sizes = [32, 128], strides = [1, 1]} : vector<40x128xf32> to vector<32x128xf32>
    %1120 = vector.broadcast %1118 : f32 to vector<32x128xf32>
    %1121 = arith.mulf %1120, %1119 : vector<32x128xf32>
    %1122 = arith.addf %1117, %1121 : vector<32x128xf32>
    %c3_414 = arith.constant 3 : index
    %c27_415 = arith.constant 27 : index
    %1123 = memref.load %arg1[%c3_414, %c27_415] : memref<4x49xf32, #tpu.memory_space<smem>>
    %1124 = vector.extract_strided_slice %1107 {offsets = [3, 0], sizes = [32, 128], strides = [1, 1]} : vector<40x128xf32> to vector<32x128xf32>
    %1125 = vector.broadcast %1123 : f32 to vector<32x128xf32>
    %1126 = arith.mulf %1125, %1124 : vector<32x128xf32>
    %1127 = arith.addf %1122, %1126 : vector<32x128xf32>
    %c3_416 = arith.constant 3 : index
    %c34_417 = arith.constant 34 : index
    %1128 = memref.load %arg1[%c3_416, %c34_417] : memref<4x49xf32, #tpu.memory_space<smem>>
    %1129 = vector.extract_strided_slice %1107 {offsets = [4, 0], sizes = [32, 128], strides = [1, 1]} : vector<40x128xf32> to vector<32x128xf32>
    %1130 = vector.broadcast %1128 : f32 to vector<32x128xf32>
    %1131 = arith.mulf %1130, %1129 : vector<32x128xf32>
    %1132 = arith.addf %1127, %1131 : vector<32x128xf32>
    %c3_418 = arith.constant 3 : index
    %c41_419 = arith.constant 41 : index
    %1133 = memref.load %arg1[%c3_418, %c41_419] : memref<4x49xf32, #tpu.memory_space<smem>>
    %1134 = vector.extract_strided_slice %1107 {offsets = [5, 0], sizes = [32, 128], strides = [1, 1]} : vector<40x128xf32> to vector<32x128xf32>
    %1135 = vector.broadcast %1133 : f32 to vector<32x128xf32>
    %1136 = arith.mulf %1135, %1134 : vector<32x128xf32>
    %1137 = arith.addf %1132, %1136 : vector<32x128xf32>
    %c3_420 = arith.constant 3 : index
    %c48_421 = arith.constant 48 : index
    %1138 = memref.load %arg1[%c3_420, %c48_421] : memref<4x49xf32, #tpu.memory_space<smem>>
    %1139 = vector.extract_strided_slice %1107 {offsets = [6, 0], sizes = [32, 128], strides = [1, 1]} : vector<40x128xf32> to vector<32x128xf32>
    %1140 = vector.broadcast %1138 : f32 to vector<32x128xf32>
    %1141 = arith.mulf %1140, %1139 : vector<32x128xf32>
    %1142 = arith.addf %1137, %1141 : vector<32x128xf32>
    %1143 = arith.addf %341, %608 : vector<32x128xf32>
    %1144 = arith.addf %1143, %875 : vector<32x128xf32>
    %1145 = arith.addf %1144, %1142 : vector<32x128xf32>
    %cst_422 = arith.constant 2.500000e-01 : f32
    %1146 = vector.broadcast %cst_422 : f32 to vector<32x128xf32>
    %1147 = arith.mulf %1145, %1146 : vector<32x128xf32>
    %1148 = arith.subf %341, %1147 : vector<32x128xf32>
    %1149 = arith.subf %341, %1147 : vector<32x128xf32>
    %1150 = arith.mulf %1148, %1149 : vector<32x128xf32>
    %1151 = arith.subf %608, %1147 : vector<32x128xf32>
    %1152 = arith.mulf %1151, %1151 : vector<32x128xf32>
    %1153 = arith.addf %1150, %1152 : vector<32x128xf32>
    %1154 = arith.subf %875, %1147 : vector<32x128xf32>
    %1155 = arith.mulf %1154, %1154 : vector<32x128xf32>
    %1156 = arith.addf %1153, %1155 : vector<32x128xf32>
    %1157 = arith.subf %1142, %1147 : vector<32x128xf32>
    %1158 = arith.mulf %1157, %1157 : vector<32x128xf32>
    %1159 = arith.addf %1156, %1158 : vector<32x128xf32>
    %cst_423 = arith.constant 2.500000e-01 : f32
    %1160 = vector.broadcast %cst_423 : f32 to vector<32x128xf32>
    %1161 = arith.mulf %1159, %1160 : vector<32x128xf32>
    %cst_424 = arith.constant 9.99999997E-7 : f32
    %1162 = vector.broadcast %cst_424 : f32 to vector<32x128xf32>
    %1163 = arith.addf %1161, %1162 : vector<32x128xf32>
    %1164 = math.rsqrt %1163 : vector<32x128xf32>
    %1165 = arith.subf %341, %1147 : vector<32x128xf32>
    %1166 = arith.mulf %1165, %1164 : vector<32x128xf32>
    %c0_425 = arith.constant 0 : index
    %1167 = memref.load %arg2[%c0_425] : memref<4xf32, #tpu.memory_space<smem>>
    %1168 = vector.broadcast %1167 : f32 to vector<32x128xf32>
    %1169 = arith.mulf %1166, %1168 : vector<32x128xf32>
    %c0_426 = arith.constant 0 : index
    %1170 = memref.load %arg3[%c0_426] : memref<4xf32, #tpu.memory_space<smem>>
    %1171 = vector.broadcast %1170 : f32 to vector<32x128xf32>
    %1172 = arith.addf %1169, %1171 : vector<32x128xf32>
    %1173 = arith.subf %608, %1147 : vector<32x128xf32>
    %1174 = arith.mulf %1173, %1164 : vector<32x128xf32>
    %c1_427 = arith.constant 1 : index
    %1175 = memref.load %arg2[%c1_427] : memref<4xf32, #tpu.memory_space<smem>>
    %1176 = vector.broadcast %1175 : f32 to vector<32x128xf32>
    %1177 = arith.mulf %1174, %1176 : vector<32x128xf32>
    %c1_428 = arith.constant 1 : index
    %1178 = memref.load %arg3[%c1_428] : memref<4xf32, #tpu.memory_space<smem>>
    %1179 = vector.broadcast %1178 : f32 to vector<32x128xf32>
    %1180 = arith.addf %1177, %1179 : vector<32x128xf32>
    %1181 = arith.subf %875, %1147 : vector<32x128xf32>
    %1182 = arith.mulf %1181, %1164 : vector<32x128xf32>
    %c2_429 = arith.constant 2 : index
    %1183 = memref.load %arg2[%c2_429] : memref<4xf32, #tpu.memory_space<smem>>
    %1184 = vector.broadcast %1183 : f32 to vector<32x128xf32>
    %1185 = arith.mulf %1182, %1184 : vector<32x128xf32>
    %c2_430 = arith.constant 2 : index
    %1186 = memref.load %arg3[%c2_430] : memref<4xf32, #tpu.memory_space<smem>>
    %1187 = vector.broadcast %1186 : f32 to vector<32x128xf32>
    %1188 = arith.addf %1185, %1187 : vector<32x128xf32>
    %1189 = arith.subf %1142, %1147 : vector<32x128xf32>
    %1190 = arith.mulf %1189, %1164 : vector<32x128xf32>
    %c3_431 = arith.constant 3 : index
    %1191 = memref.load %arg2[%c3_431] : memref<4xf32, #tpu.memory_space<smem>>
    %1192 = vector.broadcast %1191 : f32 to vector<32x128xf32>
    %1193 = arith.mulf %1190, %1192 : vector<32x128xf32>
    %c3_432 = arith.constant 3 : index
    %1194 = memref.load %arg3[%c3_432] : memref<4xf32, #tpu.memory_space<smem>>
    %1195 = vector.broadcast %1194 : f32 to vector<32x128xf32>
    %1196 = arith.addf %1193, %1195 : vector<32x128xf32>
    %cst_433 = arith.constant 0.000000e+00 : f32
    %1197 = vector.broadcast %cst_433 : f32 to vector<32x128xf32>
    %cst_434 = arith.constant 0.000000e+00 : f32
    %1198 = vector.broadcast %cst_434 : f32 to vector<32x128xf32>
    %cst_435 = arith.constant 0.000000e+00 : f32
    %1199 = vector.broadcast %cst_435 : f32 to vector<32x128xf32>
    %cst_436 = arith.constant 0.000000e+00 : f32
    %1200 = vector.broadcast %cst_436 : f32 to vector<32x128xf32>
    %c0_437 = arith.constant 0 : index
    %c0_438 = arith.constant 0 : index
    %1201 = memref.load %arg4[%c0_437, %c0_438] : memref<8x4xf32, #tpu.memory_space<smem>>
    %1202 = vector.broadcast %1201 : f32 to vector<32x128xf32>
    %1203 = arith.mulf %1202, %1172 : vector<32x128xf32>
    %c0_439 = arith.constant 0 : index
    %c1_440 = arith.constant 1 : index
    %1204 = memref.load %arg4[%c0_439, %c1_440] : memref<8x4xf32, #tpu.memory_space<smem>>
    %1205 = vector.broadcast %1204 : f32 to vector<32x128xf32>
    %1206 = arith.mulf %1205, %1180 : vector<32x128xf32>
    %1207 = arith.addf %1203, %1206 : vector<32x128xf32>
    %c0_441 = arith.constant 0 : index
    %c2_442 = arith.constant 2 : index
    %1208 = memref.load %arg4[%c0_441, %c2_442] : memref<8x4xf32, #tpu.memory_space<smem>>
    %1209 = vector.broadcast %1208 : f32 to vector<32x128xf32>
    %1210 = arith.mulf %1209, %1188 : vector<32x128xf32>
    %1211 = arith.addf %1207, %1210 : vector<32x128xf32>
    %c0_443 = arith.constant 0 : index
    %c3_444 = arith.constant 3 : index
    %1212 = memref.load %arg4[%c0_443, %c3_444] : memref<8x4xf32, #tpu.memory_space<smem>>
    %1213 = vector.broadcast %1212 : f32 to vector<32x128xf32>
    %1214 = arith.mulf %1213, %1196 : vector<32x128xf32>
    %1215 = arith.addf %1211, %1214 : vector<32x128xf32>
    %cst_445 = arith.constant 5.000000e-01 : f32
    %1216 = vector.broadcast %cst_445 : f32 to vector<32x128xf32>
    %1217 = arith.mulf %1216, %1215 : vector<32x128xf32>
    %cst_446 = arith.constant 0.707106769 : f32
    %1218 = vector.broadcast %cst_446 : f32 to vector<32x128xf32>
    %1219 = arith.mulf %1215, %1218 : vector<32x128xf32>
    %1220 = math.erf %1219 : vector<32x128xf32>
    %cst_447 = arith.constant 1.000000e+00 : f32
    %1221 = vector.broadcast %cst_447 : f32 to vector<32x128xf32>
    %1222 = arith.addf %1221, %1220 : vector<32x128xf32>
    %1223 = arith.mulf %1217, %1222 : vector<32x128xf32>
    %c0_448 = arith.constant 0 : index
    %c0_449 = arith.constant 0 : index
    %1224 = memref.load %arg5[%c0_448, %c0_449] : memref<4x8xf32, #tpu.memory_space<smem>>
    %1225 = vector.broadcast %1224 : f32 to vector<32x128xf32>
    %1226 = arith.mulf %1225, %1223 : vector<32x128xf32>
    %1227 = arith.addf %1197, %1226 : vector<32x128xf32>
    %c1_450 = arith.constant 1 : index
    %c0_451 = arith.constant 0 : index
    %1228 = memref.load %arg5[%c1_450, %c0_451] : memref<4x8xf32, #tpu.memory_space<smem>>
    %1229 = vector.broadcast %1228 : f32 to vector<32x128xf32>
    %1230 = arith.mulf %1229, %1223 : vector<32x128xf32>
    %1231 = arith.addf %1198, %1230 : vector<32x128xf32>
    %c2_452 = arith.constant 2 : index
    %c0_453 = arith.constant 0 : index
    %1232 = memref.load %arg5[%c2_452, %c0_453] : memref<4x8xf32, #tpu.memory_space<smem>>
    %1233 = vector.broadcast %1232 : f32 to vector<32x128xf32>
    %1234 = arith.mulf %1233, %1223 : vector<32x128xf32>
    %1235 = arith.addf %1199, %1234 : vector<32x128xf32>
    %c3_454 = arith.constant 3 : index
    %c0_455 = arith.constant 0 : index
    %1236 = memref.load %arg5[%c3_454, %c0_455] : memref<4x8xf32, #tpu.memory_space<smem>>
    %1237 = vector.broadcast %1236 : f32 to vector<32x128xf32>
    %1238 = arith.mulf %1237, %1223 : vector<32x128xf32>
    %1239 = arith.addf %1200, %1238 : vector<32x128xf32>
    %c1_456 = arith.constant 1 : index
    %c0_457 = arith.constant 0 : index
    %1240 = memref.load %arg4[%c1_456, %c0_457] : memref<8x4xf32, #tpu.memory_space<smem>>
    %1241 = vector.broadcast %1240 : f32 to vector<32x128xf32>
    %1242 = arith.mulf %1241, %1172 : vector<32x128xf32>
    %c1_458 = arith.constant 1 : index
    %c1_459 = arith.constant 1 : index
    %1243 = memref.load %arg4[%c1_458, %c1_459] : memref<8x4xf32, #tpu.memory_space<smem>>
    %1244 = vector.broadcast %1243 : f32 to vector<32x128xf32>
    %1245 = arith.mulf %1244, %1180 : vector<32x128xf32>
    %1246 = arith.addf %1242, %1245 : vector<32x128xf32>
    %c1_460 = arith.constant 1 : index
    %c2_461 = arith.constant 2 : index
    %1247 = memref.load %arg4[%c1_460, %c2_461] : memref<8x4xf32, #tpu.memory_space<smem>>
    %1248 = vector.broadcast %1247 : f32 to vector<32x128xf32>
    %1249 = arith.mulf %1248, %1188 : vector<32x128xf32>
    %1250 = arith.addf %1246, %1249 : vector<32x128xf32>
    %c1_462 = arith.constant 1 : index
    %c3_463 = arith.constant 3 : index
    %1251 = memref.load %arg4[%c1_462, %c3_463] : memref<8x4xf32, #tpu.memory_space<smem>>
    %1252 = vector.broadcast %1251 : f32 to vector<32x128xf32>
    %1253 = arith.mulf %1252, %1196 : vector<32x128xf32>
    %1254 = arith.addf %1250, %1253 : vector<32x128xf32>
    %cst_464 = arith.constant 5.000000e-01 : f32
    %1255 = vector.broadcast %cst_464 : f32 to vector<32x128xf32>
    %1256 = arith.mulf %1255, %1254 : vector<32x128xf32>
    %cst_465 = arith.constant 0.707106769 : f32
    %1257 = vector.broadcast %cst_465 : f32 to vector<32x128xf32>
    %1258 = arith.mulf %1254, %1257 : vector<32x128xf32>
    %1259 = math.erf %1258 : vector<32x128xf32>
    %cst_466 = arith.constant 1.000000e+00 : f32
    %1260 = vector.broadcast %cst_466 : f32 to vector<32x128xf32>
    %1261 = arith.addf %1260, %1259 : vector<32x128xf32>
    %1262 = arith.mulf %1256, %1261 : vector<32x128xf32>
    %c0_467 = arith.constant 0 : index
    %c1_468 = arith.constant 1 : index
    %1263 = memref.load %arg5[%c0_467, %c1_468] : memref<4x8xf32, #tpu.memory_space<smem>>
    %1264 = vector.broadcast %1263 : f32 to vector<32x128xf32>
    %1265 = arith.mulf %1264, %1262 : vector<32x128xf32>
    %1266 = arith.addf %1227, %1265 : vector<32x128xf32>
    %c1_469 = arith.constant 1 : index
    %c1_470 = arith.constant 1 : index
    %1267 = memref.load %arg5[%c1_469, %c1_470] : memref<4x8xf32, #tpu.memory_space<smem>>
    %1268 = vector.broadcast %1267 : f32 to vector<32x128xf32>
    %1269 = arith.mulf %1268, %1262 : vector<32x128xf32>
    %1270 = arith.addf %1231, %1269 : vector<32x128xf32>
    %c2_471 = arith.constant 2 : index
    %c1_472 = arith.constant 1 : index
    %1271 = memref.load %arg5[%c2_471, %c1_472] : memref<4x8xf32, #tpu.memory_space<smem>>
    %1272 = vector.broadcast %1271 : f32 to vector<32x128xf32>
    %1273 = arith.mulf %1272, %1262 : vector<32x128xf32>
    %1274 = arith.addf %1235, %1273 : vector<32x128xf32>
    %c3_473 = arith.constant 3 : index
    %c1_474 = arith.constant 1 : index
    %1275 = memref.load %arg5[%c3_473, %c1_474] : memref<4x8xf32, #tpu.memory_space<smem>>
    %1276 = vector.broadcast %1275 : f32 to vector<32x128xf32>
    %1277 = arith.mulf %1276, %1262 : vector<32x128xf32>
    %1278 = arith.addf %1239, %1277 : vector<32x128xf32>
    %c2_475 = arith.constant 2 : index
    %c0_476 = arith.constant 0 : index
    %1279 = memref.load %arg4[%c2_475, %c0_476] : memref<8x4xf32, #tpu.memory_space<smem>>
    %1280 = vector.broadcast %1279 : f32 to vector<32x128xf32>
    %1281 = arith.mulf %1280, %1172 : vector<32x128xf32>
    %c2_477 = arith.constant 2 : index
    %c1_478 = arith.constant 1 : index
    %1282 = memref.load %arg4[%c2_477, %c1_478] : memref<8x4xf32, #tpu.memory_space<smem>>
    %1283 = vector.broadcast %1282 : f32 to vector<32x128xf32>
    %1284 = arith.mulf %1283, %1180 : vector<32x128xf32>
    %1285 = arith.addf %1281, %1284 : vector<32x128xf32>
    %c2_479 = arith.constant 2 : index
    %c2_480 = arith.constant 2 : index
    %1286 = memref.load %arg4[%c2_479, %c2_480] : memref<8x4xf32, #tpu.memory_space<smem>>
    %1287 = vector.broadcast %1286 : f32 to vector<32x128xf32>
    %1288 = arith.mulf %1287, %1188 : vector<32x128xf32>
    %1289 = arith.addf %1285, %1288 : vector<32x128xf32>
    %c2_481 = arith.constant 2 : index
    %c3_482 = arith.constant 3 : index
    %1290 = memref.load %arg4[%c2_481, %c3_482] : memref<8x4xf32, #tpu.memory_space<smem>>
    %1291 = vector.broadcast %1290 : f32 to vector<32x128xf32>
    %1292 = arith.mulf %1291, %1196 : vector<32x128xf32>
    %1293 = arith.addf %1289, %1292 : vector<32x128xf32>
    %cst_483 = arith.constant 5.000000e-01 : f32
    %1294 = vector.broadcast %cst_483 : f32 to vector<32x128xf32>
    %1295 = arith.mulf %1294, %1293 : vector<32x128xf32>
    %cst_484 = arith.constant 0.707106769 : f32
    %1296 = vector.broadcast %cst_484 : f32 to vector<32x128xf32>
    %1297 = arith.mulf %1293, %1296 : vector<32x128xf32>
    %1298 = math.erf %1297 : vector<32x128xf32>
    %cst_485 = arith.constant 1.000000e+00 : f32
    %1299 = vector.broadcast %cst_485 : f32 to vector<32x128xf32>
    %1300 = arith.addf %1299, %1298 : vector<32x128xf32>
    %1301 = arith.mulf %1295, %1300 : vector<32x128xf32>
    %c0_486 = arith.constant 0 : index
    %c2_487 = arith.constant 2 : index
    %1302 = memref.load %arg5[%c0_486, %c2_487] : memref<4x8xf32, #tpu.memory_space<smem>>
    %1303 = vector.broadcast %1302 : f32 to vector<32x128xf32>
    %1304 = arith.mulf %1303, %1301 : vector<32x128xf32>
    %1305 = arith.addf %1266, %1304 : vector<32x128xf32>
    %c1_488 = arith.constant 1 : index
    %c2_489 = arith.constant 2 : index
    %1306 = memref.load %arg5[%c1_488, %c2_489] : memref<4x8xf32, #tpu.memory_space<smem>>
    %1307 = vector.broadcast %1306 : f32 to vector<32x128xf32>
    %1308 = arith.mulf %1307, %1301 : vector<32x128xf32>
    %1309 = arith.addf %1270, %1308 : vector<32x128xf32>
    %c2_490 = arith.constant 2 : index
    %c2_491 = arith.constant 2 : index
    %1310 = memref.load %arg5[%c2_490, %c2_491] : memref<4x8xf32, #tpu.memory_space<smem>>
    %1311 = vector.broadcast %1310 : f32 to vector<32x128xf32>
    %1312 = arith.mulf %1311, %1301 : vector<32x128xf32>
    %1313 = arith.addf %1274, %1312 : vector<32x128xf32>
    %c3_492 = arith.constant 3 : index
    %c2_493 = arith.constant 2 : index
    %1314 = memref.load %arg5[%c3_492, %c2_493] : memref<4x8xf32, #tpu.memory_space<smem>>
    %1315 = vector.broadcast %1314 : f32 to vector<32x128xf32>
    %1316 = arith.mulf %1315, %1301 : vector<32x128xf32>
    %1317 = arith.addf %1278, %1316 : vector<32x128xf32>
    %c3_494 = arith.constant 3 : index
    %c0_495 = arith.constant 0 : index
    %1318 = memref.load %arg4[%c3_494, %c0_495] : memref<8x4xf32, #tpu.memory_space<smem>>
    %1319 = vector.broadcast %1318 : f32 to vector<32x128xf32>
    %1320 = arith.mulf %1319, %1172 : vector<32x128xf32>
    %c3_496 = arith.constant 3 : index
    %c1_497 = arith.constant 1 : index
    %1321 = memref.load %arg4[%c3_496, %c1_497] : memref<8x4xf32, #tpu.memory_space<smem>>
    %1322 = vector.broadcast %1321 : f32 to vector<32x128xf32>
    %1323 = arith.mulf %1322, %1180 : vector<32x128xf32>
    %1324 = arith.addf %1320, %1323 : vector<32x128xf32>
    %c3_498 = arith.constant 3 : index
    %c2_499 = arith.constant 2 : index
    %1325 = memref.load %arg4[%c3_498, %c2_499] : memref<8x4xf32, #tpu.memory_space<smem>>
    %1326 = vector.broadcast %1325 : f32 to vector<32x128xf32>
    %1327 = arith.mulf %1326, %1188 : vector<32x128xf32>
    %1328 = arith.addf %1324, %1327 : vector<32x128xf32>
    %c3_500 = arith.constant 3 : index
    %c3_501 = arith.constant 3 : index
    %1329 = memref.load %arg4[%c3_500, %c3_501] : memref<8x4xf32, #tpu.memory_space<smem>>
    %1330 = vector.broadcast %1329 : f32 to vector<32x128xf32>
    %1331 = arith.mulf %1330, %1196 : vector<32x128xf32>
    %1332 = arith.addf %1328, %1331 : vector<32x128xf32>
    %cst_502 = arith.constant 5.000000e-01 : f32
    %1333 = vector.broadcast %cst_502 : f32 to vector<32x128xf32>
    %1334 = arith.mulf %1333, %1332 : vector<32x128xf32>
    %cst_503 = arith.constant 0.707106769 : f32
    %1335 = vector.broadcast %cst_503 : f32 to vector<32x128xf32>
    %1336 = arith.mulf %1332, %1335 : vector<32x128xf32>
    %1337 = math.erf %1336 : vector<32x128xf32>
    %cst_504 = arith.constant 1.000000e+00 : f32
    %1338 = vector.broadcast %cst_504 : f32 to vector<32x128xf32>
    %1339 = arith.addf %1338, %1337 : vector<32x128xf32>
    %1340 = arith.mulf %1334, %1339 : vector<32x128xf32>
    %c0_505 = arith.constant 0 : index
    %c3_506 = arith.constant 3 : index
    %1341 = memref.load %arg5[%c0_505, %c3_506] : memref<4x8xf32, #tpu.memory_space<smem>>
    %1342 = vector.broadcast %1341 : f32 to vector<32x128xf32>
    %1343 = arith.mulf %1342, %1340 : vector<32x128xf32>
    %1344 = arith.addf %1305, %1343 : vector<32x128xf32>
    %c1_507 = arith.constant 1 : index
    %c3_508 = arith.constant 3 : index
    %1345 = memref.load %arg5[%c1_507, %c3_508] : memref<4x8xf32, #tpu.memory_space<smem>>
    %1346 = vector.broadcast %1345 : f32 to vector<32x128xf32>
    %1347 = arith.mulf %1346, %1340 : vector<32x128xf32>
    %1348 = arith.addf %1309, %1347 : vector<32x128xf32>
    %c2_509 = arith.constant 2 : index
    %c3_510 = arith.constant 3 : index
    %1349 = memref.load %arg5[%c2_509, %c3_510] : memref<4x8xf32, #tpu.memory_space<smem>>
    %1350 = vector.broadcast %1349 : f32 to vector<32x128xf32>
    %1351 = arith.mulf %1350, %1340 : vector<32x128xf32>
    %1352 = arith.addf %1313, %1351 : vector<32x128xf32>
    %c3_511 = arith.constant 3 : index
    %c3_512 = arith.constant 3 : index
    %1353 = memref.load %arg5[%c3_511, %c3_512] : memref<4x8xf32, #tpu.memory_space<smem>>
    %1354 = vector.broadcast %1353 : f32 to vector<32x128xf32>
    %1355 = arith.mulf %1354, %1340 : vector<32x128xf32>
    %1356 = arith.addf %1317, %1355 : vector<32x128xf32>
    %c4_513 = arith.constant 4 : index
    %c0_514 = arith.constant 0 : index
    %1357 = memref.load %arg4[%c4_513, %c0_514] : memref<8x4xf32, #tpu.memory_space<smem>>
    %1358 = vector.broadcast %1357 : f32 to vector<32x128xf32>
    %1359 = arith.mulf %1358, %1172 : vector<32x128xf32>
    %c4_515 = arith.constant 4 : index
    %c1_516 = arith.constant 1 : index
    %1360 = memref.load %arg4[%c4_515, %c1_516] : memref<8x4xf32, #tpu.memory_space<smem>>
    %1361 = vector.broadcast %1360 : f32 to vector<32x128xf32>
    %1362 = arith.mulf %1361, %1180 : vector<32x128xf32>
    %1363 = arith.addf %1359, %1362 : vector<32x128xf32>
    %c4_517 = arith.constant 4 : index
    %c2_518 = arith.constant 2 : index
    %1364 = memref.load %arg4[%c4_517, %c2_518] : memref<8x4xf32, #tpu.memory_space<smem>>
    %1365 = vector.broadcast %1364 : f32 to vector<32x128xf32>
    %1366 = arith.mulf %1365, %1188 : vector<32x128xf32>
    %1367 = arith.addf %1363, %1366 : vector<32x128xf32>
    %c4_519 = arith.constant 4 : index
    %c3_520 = arith.constant 3 : index
    %1368 = memref.load %arg4[%c4_519, %c3_520] : memref<8x4xf32, #tpu.memory_space<smem>>
    %1369 = vector.broadcast %1368 : f32 to vector<32x128xf32>
    %1370 = arith.mulf %1369, %1196 : vector<32x128xf32>
    %1371 = arith.addf %1367, %1370 : vector<32x128xf32>
    %cst_521 = arith.constant 5.000000e-01 : f32
    %1372 = vector.broadcast %cst_521 : f32 to vector<32x128xf32>
    %1373 = arith.mulf %1372, %1371 : vector<32x128xf32>
    %cst_522 = arith.constant 0.707106769 : f32
    %1374 = vector.broadcast %cst_522 : f32 to vector<32x128xf32>
    %1375 = arith.mulf %1371, %1374 : vector<32x128xf32>
    %1376 = math.erf %1375 : vector<32x128xf32>
    %cst_523 = arith.constant 1.000000e+00 : f32
    %1377 = vector.broadcast %cst_523 : f32 to vector<32x128xf32>
    %1378 = arith.addf %1377, %1376 : vector<32x128xf32>
    %1379 = arith.mulf %1373, %1378 : vector<32x128xf32>
    %c0_524 = arith.constant 0 : index
    %c4_525 = arith.constant 4 : index
    %1380 = memref.load %arg5[%c0_524, %c4_525] : memref<4x8xf32, #tpu.memory_space<smem>>
    %1381 = vector.broadcast %1380 : f32 to vector<32x128xf32>
    %1382 = arith.mulf %1381, %1379 : vector<32x128xf32>
    %1383 = arith.addf %1344, %1382 : vector<32x128xf32>
    %c1_526 = arith.constant 1 : index
    %c4_527 = arith.constant 4 : index
    %1384 = memref.load %arg5[%c1_526, %c4_527] : memref<4x8xf32, #tpu.memory_space<smem>>
    %1385 = vector.broadcast %1384 : f32 to vector<32x128xf32>
    %1386 = arith.mulf %1385, %1379 : vector<32x128xf32>
    %1387 = arith.addf %1348, %1386 : vector<32x128xf32>
    %c2_528 = arith.constant 2 : index
    %c4_529 = arith.constant 4 : index
    %1388 = memref.load %arg5[%c2_528, %c4_529] : memref<4x8xf32, #tpu.memory_space<smem>>
    %1389 = vector.broadcast %1388 : f32 to vector<32x128xf32>
    %1390 = arith.mulf %1389, %1379 : vector<32x128xf32>
    %1391 = arith.addf %1352, %1390 : vector<32x128xf32>
    %c3_530 = arith.constant 3 : index
    %c4_531 = arith.constant 4 : index
    %1392 = memref.load %arg5[%c3_530, %c4_531] : memref<4x8xf32, #tpu.memory_space<smem>>
    %1393 = vector.broadcast %1392 : f32 to vector<32x128xf32>
    %1394 = arith.mulf %1393, %1379 : vector<32x128xf32>
    %1395 = arith.addf %1356, %1394 : vector<32x128xf32>
    %c5_532 = arith.constant 5 : index
    %c0_533 = arith.constant 0 : index
    %1396 = memref.load %arg4[%c5_532, %c0_533] : memref<8x4xf32, #tpu.memory_space<smem>>
    %1397 = vector.broadcast %1396 : f32 to vector<32x128xf32>
    %1398 = arith.mulf %1397, %1172 : vector<32x128xf32>
    %c5_534 = arith.constant 5 : index
    %c1_535 = arith.constant 1 : index
    %1399 = memref.load %arg4[%c5_534, %c1_535] : memref<8x4xf32, #tpu.memory_space<smem>>
    %1400 = vector.broadcast %1399 : f32 to vector<32x128xf32>
    %1401 = arith.mulf %1400, %1180 : vector<32x128xf32>
    %1402 = arith.addf %1398, %1401 : vector<32x128xf32>
    %c5_536 = arith.constant 5 : index
    %c2_537 = arith.constant 2 : index
    %1403 = memref.load %arg4[%c5_536, %c2_537] : memref<8x4xf32, #tpu.memory_space<smem>>
    %1404 = vector.broadcast %1403 : f32 to vector<32x128xf32>
    %1405 = arith.mulf %1404, %1188 : vector<32x128xf32>
    %1406 = arith.addf %1402, %1405 : vector<32x128xf32>
    %c5_538 = arith.constant 5 : index
    %c3_539 = arith.constant 3 : index
    %1407 = memref.load %arg4[%c5_538, %c3_539] : memref<8x4xf32, #tpu.memory_space<smem>>
    %1408 = vector.broadcast %1407 : f32 to vector<32x128xf32>
    %1409 = arith.mulf %1408, %1196 : vector<32x128xf32>
    %1410 = arith.addf %1406, %1409 : vector<32x128xf32>
    %cst_540 = arith.constant 5.000000e-01 : f32
    %1411 = vector.broadcast %cst_540 : f32 to vector<32x128xf32>
    %1412 = arith.mulf %1411, %1410 : vector<32x128xf32>
    %cst_541 = arith.constant 0.707106769 : f32
    %1413 = vector.broadcast %cst_541 : f32 to vector<32x128xf32>
    %1414 = arith.mulf %1410, %1413 : vector<32x128xf32>
    %1415 = math.erf %1414 : vector<32x128xf32>
    %cst_542 = arith.constant 1.000000e+00 : f32
    %1416 = vector.broadcast %cst_542 : f32 to vector<32x128xf32>
    %1417 = arith.addf %1416, %1415 : vector<32x128xf32>
    %1418 = arith.mulf %1412, %1417 : vector<32x128xf32>
    %c0_543 = arith.constant 0 : index
    %c5_544 = arith.constant 5 : index
    %1419 = memref.load %arg5[%c0_543, %c5_544] : memref<4x8xf32, #tpu.memory_space<smem>>
    %1420 = vector.broadcast %1419 : f32 to vector<32x128xf32>
    %1421 = arith.mulf %1420, %1418 : vector<32x128xf32>
    %1422 = arith.addf %1383, %1421 : vector<32x128xf32>
    %c1_545 = arith.constant 1 : index
    %c5_546 = arith.constant 5 : index
    %1423 = memref.load %arg5[%c1_545, %c5_546] : memref<4x8xf32, #tpu.memory_space<smem>>
    %1424 = vector.broadcast %1423 : f32 to vector<32x128xf32>
    %1425 = arith.mulf %1424, %1418 : vector<32x128xf32>
    %1426 = arith.addf %1387, %1425 : vector<32x128xf32>
    %c2_547 = arith.constant 2 : index
    %c5_548 = arith.constant 5 : index
    %1427 = memref.load %arg5[%c2_547, %c5_548] : memref<4x8xf32, #tpu.memory_space<smem>>
    %1428 = vector.broadcast %1427 : f32 to vector<32x128xf32>
    %1429 = arith.mulf %1428, %1418 : vector<32x128xf32>
    %1430 = arith.addf %1391, %1429 : vector<32x128xf32>
    %c3_549 = arith.constant 3 : index
    %c5_550 = arith.constant 5 : index
    %1431 = memref.load %arg5[%c3_549, %c5_550] : memref<4x8xf32, #tpu.memory_space<smem>>
    %1432 = vector.broadcast %1431 : f32 to vector<32x128xf32>
    %1433 = arith.mulf %1432, %1418 : vector<32x128xf32>
    %1434 = arith.addf %1395, %1433 : vector<32x128xf32>
    %c6_551 = arith.constant 6 : index
    %c0_552 = arith.constant 0 : index
    %1435 = memref.load %arg4[%c6_551, %c0_552] : memref<8x4xf32, #tpu.memory_space<smem>>
    %1436 = vector.broadcast %1435 : f32 to vector<32x128xf32>
    %1437 = arith.mulf %1436, %1172 : vector<32x128xf32>
    %c6_553 = arith.constant 6 : index
    %c1_554 = arith.constant 1 : index
    %1438 = memref.load %arg4[%c6_553, %c1_554] : memref<8x4xf32, #tpu.memory_space<smem>>
    %1439 = vector.broadcast %1438 : f32 to vector<32x128xf32>
    %1440 = arith.mulf %1439, %1180 : vector<32x128xf32>
    %1441 = arith.addf %1437, %1440 : vector<32x128xf32>
    %c6_555 = arith.constant 6 : index
    %c2_556 = arith.constant 2 : index
    %1442 = memref.load %arg4[%c6_555, %c2_556] : memref<8x4xf32, #tpu.memory_space<smem>>
    %1443 = vector.broadcast %1442 : f32 to vector<32x128xf32>
    %1444 = arith.mulf %1443, %1188 : vector<32x128xf32>
    %1445 = arith.addf %1441, %1444 : vector<32x128xf32>
    %c6_557 = arith.constant 6 : index
    %c3_558 = arith.constant 3 : index
    %1446 = memref.load %arg4[%c6_557, %c3_558] : memref<8x4xf32, #tpu.memory_space<smem>>
    %1447 = vector.broadcast %1446 : f32 to vector<32x128xf32>
    %1448 = arith.mulf %1447, %1196 : vector<32x128xf32>
    %1449 = arith.addf %1445, %1448 : vector<32x128xf32>
    %cst_559 = arith.constant 5.000000e-01 : f32
    %1450 = vector.broadcast %cst_559 : f32 to vector<32x128xf32>
    %1451 = arith.mulf %1450, %1449 : vector<32x128xf32>
    %cst_560 = arith.constant 0.707106769 : f32
    %1452 = vector.broadcast %cst_560 : f32 to vector<32x128xf32>
    %1453 = arith.mulf %1449, %1452 : vector<32x128xf32>
    %1454 = math.erf %1453 : vector<32x128xf32>
    %cst_561 = arith.constant 1.000000e+00 : f32
    %1455 = vector.broadcast %cst_561 : f32 to vector<32x128xf32>
    %1456 = arith.addf %1455, %1454 : vector<32x128xf32>
    %1457 = arith.mulf %1451, %1456 : vector<32x128xf32>
    %c0_562 = arith.constant 0 : index
    %c6_563 = arith.constant 6 : index
    %1458 = memref.load %arg5[%c0_562, %c6_563] : memref<4x8xf32, #tpu.memory_space<smem>>
    %1459 = vector.broadcast %1458 : f32 to vector<32x128xf32>
    %1460 = arith.mulf %1459, %1457 : vector<32x128xf32>
    %1461 = arith.addf %1422, %1460 : vector<32x128xf32>
    %c1_564 = arith.constant 1 : index
    %c6_565 = arith.constant 6 : index
    %1462 = memref.load %arg5[%c1_564, %c6_565] : memref<4x8xf32, #tpu.memory_space<smem>>
    %1463 = vector.broadcast %1462 : f32 to vector<32x128xf32>
    %1464 = arith.mulf %1463, %1457 : vector<32x128xf32>
    %1465 = arith.addf %1426, %1464 : vector<32x128xf32>
    %c2_566 = arith.constant 2 : index
    %c6_567 = arith.constant 6 : index
    %1466 = memref.load %arg5[%c2_566, %c6_567] : memref<4x8xf32, #tpu.memory_space<smem>>
    %1467 = vector.broadcast %1466 : f32 to vector<32x128xf32>
    %1468 = arith.mulf %1467, %1457 : vector<32x128xf32>
    %1469 = arith.addf %1430, %1468 : vector<32x128xf32>
    %c3_568 = arith.constant 3 : index
    %c6_569 = arith.constant 6 : index
    %1470 = memref.load %arg5[%c3_568, %c6_569] : memref<4x8xf32, #tpu.memory_space<smem>>
    %1471 = vector.broadcast %1470 : f32 to vector<32x128xf32>
    %1472 = arith.mulf %1471, %1457 : vector<32x128xf32>
    %1473 = arith.addf %1434, %1472 : vector<32x128xf32>
    %c7_570 = arith.constant 7 : index
    %c0_571 = arith.constant 0 : index
    %1474 = memref.load %arg4[%c7_570, %c0_571] : memref<8x4xf32, #tpu.memory_space<smem>>
    %1475 = vector.broadcast %1474 : f32 to vector<32x128xf32>
    %1476 = arith.mulf %1475, %1172 : vector<32x128xf32>
    %c7_572 = arith.constant 7 : index
    %c1_573 = arith.constant 1 : index
    %1477 = memref.load %arg4[%c7_572, %c1_573] : memref<8x4xf32, #tpu.memory_space<smem>>
    %1478 = vector.broadcast %1477 : f32 to vector<32x128xf32>
    %1479 = arith.mulf %1478, %1180 : vector<32x128xf32>
    %1480 = arith.addf %1476, %1479 : vector<32x128xf32>
    %c7_574 = arith.constant 7 : index
    %c2_575 = arith.constant 2 : index
    %1481 = memref.load %arg4[%c7_574, %c2_575] : memref<8x4xf32, #tpu.memory_space<smem>>
    %1482 = vector.broadcast %1481 : f32 to vector<32x128xf32>
    %1483 = arith.mulf %1482, %1188 : vector<32x128xf32>
    %1484 = arith.addf %1480, %1483 : vector<32x128xf32>
    %c7_576 = arith.constant 7 : index
    %c3_577 = arith.constant 3 : index
    %1485 = memref.load %arg4[%c7_576, %c3_577] : memref<8x4xf32, #tpu.memory_space<smem>>
    %1486 = vector.broadcast %1485 : f32 to vector<32x128xf32>
    %1487 = arith.mulf %1486, %1196 : vector<32x128xf32>
    %1488 = arith.addf %1484, %1487 : vector<32x128xf32>
    %cst_578 = arith.constant 5.000000e-01 : f32
    %1489 = vector.broadcast %cst_578 : f32 to vector<32x128xf32>
    %1490 = arith.mulf %1489, %1488 : vector<32x128xf32>
    %cst_579 = arith.constant 0.707106769 : f32
    %1491 = vector.broadcast %cst_579 : f32 to vector<32x128xf32>
    %1492 = arith.mulf %1488, %1491 : vector<32x128xf32>
    %1493 = math.erf %1492 : vector<32x128xf32>
    %cst_580 = arith.constant 1.000000e+00 : f32
    %1494 = vector.broadcast %cst_580 : f32 to vector<32x128xf32>
    %1495 = arith.addf %1494, %1493 : vector<32x128xf32>
    %1496 = arith.mulf %1490, %1495 : vector<32x128xf32>
    %c0_581 = arith.constant 0 : index
    %c7_582 = arith.constant 7 : index
    %1497 = memref.load %arg5[%c0_581, %c7_582] : memref<4x8xf32, #tpu.memory_space<smem>>
    %1498 = vector.broadcast %1497 : f32 to vector<32x128xf32>
    %1499 = arith.mulf %1498, %1496 : vector<32x128xf32>
    %1500 = arith.addf %1461, %1499 : vector<32x128xf32>
    %c1_583 = arith.constant 1 : index
    %c7_584 = arith.constant 7 : index
    %1501 = memref.load %arg5[%c1_583, %c7_584] : memref<4x8xf32, #tpu.memory_space<smem>>
    %1502 = vector.broadcast %1501 : f32 to vector<32x128xf32>
    %1503 = arith.mulf %1502, %1496 : vector<32x128xf32>
    %1504 = arith.addf %1465, %1503 : vector<32x128xf32>
    %c2_585 = arith.constant 2 : index
    %c7_586 = arith.constant 7 : index
    %1505 = memref.load %arg5[%c2_585, %c7_586] : memref<4x8xf32, #tpu.memory_space<smem>>
    %1506 = vector.broadcast %1505 : f32 to vector<32x128xf32>
    %1507 = arith.mulf %1506, %1496 : vector<32x128xf32>
    %1508 = arith.addf %1469, %1507 : vector<32x128xf32>
    %c3_587 = arith.constant 3 : index
    %c7_588 = arith.constant 7 : index
    %1509 = memref.load %arg5[%c3_587, %c7_588] : memref<4x8xf32, #tpu.memory_space<smem>>
    %1510 = vector.broadcast %1509 : f32 to vector<32x128xf32>
    %1511 = arith.mulf %1510, %1496 : vector<32x128xf32>
    %1512 = arith.addf %1473, %1511 : vector<32x128xf32>
    %c0_589 = arith.constant 0 : index
    %c0_590 = arith.constant 0 : index
    %c0_591 = arith.constant 0 : index
    %1513 = vector.load %arg7[%c0_589, %c0_590, %c0_591] : memref<4x32x128xf32, #tpu.memory_space<vmem>>, vector<1x32x128xf32>
    %1514 = vector.shape_cast %1513 : vector<1x32x128xf32> to vector<32x128xf32>
    %1515 = vector.shape_cast %1500 : vector<32x128xf32> to vector<1x32x128xf32>
    tpu.vector_store %arg7[%c0_589, %c0_590, %c0_591], %1515 {strides = array<i32>} : memref<4x32x128xf32, #tpu.memory_space<vmem>>, vector<1x32x128xf32>,
    %c1_592 = arith.constant 1 : index
    %c0_593 = arith.constant 0 : index
    %c0_594 = arith.constant 0 : index
    %1516 = vector.load %arg7[%c1_592, %c0_593, %c0_594] : memref<4x32x128xf32, #tpu.memory_space<vmem>>, vector<1x32x128xf32>
    %1517 = vector.shape_cast %1516 : vector<1x32x128xf32> to vector<32x128xf32>
    %1518 = vector.shape_cast %1504 : vector<32x128xf32> to vector<1x32x128xf32>
    tpu.vector_store %arg7[%c1_592, %c0_593, %c0_594], %1518 {strides = array<i32>} : memref<4x32x128xf32, #tpu.memory_space<vmem>>, vector<1x32x128xf32>,
    %c2_595 = arith.constant 2 : index
    %c0_596 = arith.constant 0 : index
    %c0_597 = arith.constant 0 : index
    %1519 = vector.load %arg7[%c2_595, %c0_596, %c0_597] : memref<4x32x128xf32, #tpu.memory_space<vmem>>, vector<1x32x128xf32>
    %1520 = vector.shape_cast %1519 : vector<1x32x128xf32> to vector<32x128xf32>
    %1521 = vector.shape_cast %1508 : vector<32x128xf32> to vector<1x32x128xf32>
    tpu.vector_store %arg7[%c2_595, %c0_596, %c0_597], %1521 {strides = array<i32>} : memref<4x32x128xf32, #tpu.memory_space<vmem>>, vector<1x32x128xf32>,
    %c3_598 = arith.constant 3 : index
    %c0_599 = arith.constant 0 : index
    %c0_600 = arith.constant 0 : index
    %1522 = vector.load %arg7[%c3_598, %c0_599, %c0_600] : memref<4x32x128xf32, #tpu.memory_space<vmem>>, vector<1x32x128xf32>
    %1523 = vector.shape_cast %1522 : vector<1x32x128xf32> to vector<32x128xf32>
    %1524 = vector.shape_cast %1512 : vector<32x128xf32> to vector<1x32x128xf32>
    tpu.vector_store %arg7[%c3_598, %c0_599, %c0_600], %1524 {strides = array<i32>} : memref<4x32x128xf32, #tpu.memory_space<vmem>>, vector<1x32x128xf32>,
    return
  }
  func.func @transform_0(%arg0: i32) -> (i32, i32) {
    %c0_i32 = arith.constant 0 : i32
    %c0_i32_0 = arith.constant 0 : i32
    %c0_i32_1 = arith.constant 0 : i32
    return %c0_i32, %c0_i32_0 : i32, i32
  }
  func.func @transform_1(%arg0: i32) -> i32 {
    %c0_i32 = arith.constant 0 : i32
    %c0_i32_0 = arith.constant 0 : i32
    return %c0_i32 : i32
  }
  func.func @transform_2(%arg0: i32) -> i32 {
    %c0_i32 = arith.constant 0 : i32
    %c0_i32_0 = arith.constant 0 : i32
    return %c0_i32 : i32
  }
  func.func @transform_3(%arg0: i32) -> (i32, i32) {
    %c0_i32 = arith.constant 0 : i32
    %c0_i32_0 = arith.constant 0 : i32
    %c0_i32_1 = arith.constant 0 : i32
    return %c0_i32, %c0_i32_0 : i32, i32
  }
  func.func @transform_4(%arg0: i32) -> (i32, i32) {
    %c0_i32 = arith.constant 0 : i32
    %c0_i32_0 = arith.constant 0 : i32
    %c0_i32_1 = arith.constant 0 : i32
    return %c0_i32, %c0_i32_0 : i32, i32
  }
  func.func @transform_5(%arg0: i32) -> (i32, i32, i32) {
    %c0_i32 = arith.constant 0 : i32
    %c0_i32_0 = arith.constant 0 : i32
    %c0_i32_1 = arith.constant 0 : i32
    %c0_i32_2 = arith.constant 0 : i32
    return %c0_i32, %c0_i32_0, %c0_i32_1 : i32, i32, i32
  }
  func.func @transform_6(%arg0: i32) -> (i32, i32, i32) {
    %c0_i32 = arith.constant 0 : i32
    %c0_i32_0 = arith.constant 0 : i32
    %c0_i32_1 = arith.constant 0 : i32
    return %c0_i32, %arg0, %c0_i32_0 : i32, i32, i32
  }
}

</mosaic_0001>

<llo_original>
// kernel: depthwise_conv_module.1
$region0: #{depthwise_conv_module.1}
  #allocation0 [shape = 'u32[]', space=smem, size = 0x4, offset = 0x4, fixed_abs, tag = 'smem constant byte address 0x4 - core index']
  #allocation1 [shape = 'u32[144,128]{1,0:T(1,128)}', space=vmem, size = 0x12000, scoped, tag = 'internal scratch']
  %s0 = inlined_call_operand.vmem [shape: f32[4,49], index: 0, kind: input, shape index: {}]
  %s1 = inlined_call_operand.vmem [shape: f32[4], index: 1, kind: input, shape index: {}]
  %s2 = inlined_call_operand.vmem [shape: f32[4], index: 2, kind: input, shape index: {}]
  %s3 = inlined_call_operand.vmem [shape: f32[8,4], index: 3, kind: input, shape index: {}]
  %s4 = inlined_call_operand.vmem [shape: f32[4,8], index: 4, kind: input, shape index: {}]
  %s5 = inlined_call_operand.vmem [shape: f32[4,72,128], index: 5, kind: input, shape index: {}]
  %s6 = inlined_call_operand.vmem [shape: f32[4,64,128], index: 6, kind: output, shape index: {}]
  %s7 = sld [smem:[#allocation0]]
  $region111: #{depthwise_conv_module.1} parent=0
    _
  %s9 = ssub.s32 1, %s7
  %s10 = scalar_select 0, %s9, %s7
  $region1: #{depthwise_conv_module.1} parent=0
    #allocation2 [shape = 'u8[2048]{0}', space=smem, size = 0x800, scoped, tag = 'input window, operand 0, single buffered']
    #allocation3 [shape = 's32[2]{0}', space=sflag, size = 0x8, scoped, tag = 'scoped memory for depthwise_conv_module.1']
    #allocation4 [shape = 'u8[512]{0}', space=smem, size = 0x200, scoped, tag = 'input window, operand 1, single buffered']
    #allocation5 [shape = 's32[1]{0}', space=sflag, size = 0x4, scoped, tag = 'scoped memory for depthwise_conv_module.1']
    #allocation6 [shape = 'u8[512]{0}', space=smem, size = 0x200, scoped, tag = 'input window, operand 2, single buffered']
    #allocation7 [shape = 'u8[4096]{0}', space=smem, size = 0x1000, scoped, tag = 'input window, operand 3, single buffered']
    #allocation8 [shape = 's32[1]{0}', space=sflag, size = 0x4, scoped, tag = 'scoped memory for depthwise_conv_module.1']
    #allocation9 [shape = 'u8[2048]{0}', space=smem, size = 0x800, scoped, tag = 'input window, operand 4, single buffered']
    #allocation10 [shape = 'u8[131072]{0}', space=vmem, size = 0x20000, scoped, tag = 'output window, operand 0']
    %11 = vsyncpa [#allocation3], 0
    %12 = vsyncpa [#allocation5], 0
    %13 = vsyncpa [#allocation8], 0
    loop: start=0, step=1, limit=4
    $region2: #{depthwise_conv_module.1} parent=1 // loop_pre_header
      _
    $region3: #{depthwise_conv_module.1} parent=1 // loop_header
      %s15 = sphi 0, %s19
      %p16 = scmp.ge.s32.totalorder %s15, 4
      %s23 = sphi 0, %s23
      %s25 = sphi 0, %s23
      %s26 = sphi 0, %s25
      %s40 = sphi 0, %s26
      %s44 = sphi 0, %s44
      %s46 = sphi 0, %s44
      %s47 = sphi 0, %s46
      %s61 = sphi 0, %s47
      %s65 = sphi 0, %s65
      %s67 = sphi 0, %s65
      %s68 = sphi 0, %s67
      %s82 = sphi 0, %s68
      %s86 = sphi 0, %s86
      %s88 = sphi 0, %s86
      %s89 = sphi 0, %s88
      %s103 = sphi 0, %s89
      %s107 = sphi 0, %s107
      %s109 = sphi 0, %s107
      %s110 = sphi 0, %s109
      %s124 = sphi 0, %s110
      %s128 = sphi 0, %s128
      %s130 = sphi 0, %s128
      %s131 = sphi 0, %s130
      %s145 = sphi 0, %s131
      %s151 = sphi 0, %s153
      %s154 = sphi 0, %s151
      %s155 = sphi 0, %s154
      %s171 = sphi 0, %s155
    $region4: #{depthwise_conv_module.1} parent=1 // loop_header_branch
      %18 = sbr.rel (%p16) target = $region8
    $region5: #{depthwise_conv_module.1} parent=1 // loop_body
      %s20 = ssub.s32 %s15, 1
      %s21 = ssub.s32 %s15, 2
      %s22 = sadd.s32 %s15, 1
      %s24 = sadd.s32 %s23, 1
      %p27 = scmp.eq.s32.totalorder %s15, 1
      %p28 = scmp.ne.s32.totalorder %s23, %s25
      %p29 = scmp.eq.s32.totalorder %s15, 0
      %p30 = por %p28, %p29
      %p31 = scmp.ne.s32.totalorder %s23, %s25
      %p32 = scmp.eq.s32.totalorder %s20, 1
      %p33 = por %p31, %p32
      %p34 = scmp.ne.s32.totalorder %s25, %s26
      %p35 = scmp.eq.s32.totalorder %s20, 0
      %p36 = por %p34, %p35
      %p37 = scmp.ne.s32.totalorder %s25, %s26
      %p38 = scmp.eq.s32.totalorder %s21, 1
      %p39 = por %p37, %p38
      %p41 = scmp.ne.s32.totalorder %s26, %s40
      %p42 = scmp.eq.s32.totalorder %s21, 0
      %p43 = por %p41, %p42
      %s45 = sadd.s32 %s44, 1
      %p48 = scmp.eq.s32.totalorder %s15, 1
      %p49 = scmp.ne.s32.totalorder %s44, %s46
      %p50 = scmp.eq.s32.totalorder %s15, 0
      %p51 = por %p49, %p50
      %p52 = scmp.ne.s32.totalorder %s44, %s46
      %p53 = scmp.eq.s32.totalorder %s20, 1
      %p54 = por %p52, %p53
      %p55 = scmp.ne.s32.totalorder %s46, %s47
      %p56 = scmp.eq.s32.totalorder %s20, 0
      %p57 = por %p55, %p56
      %p58 = scmp.ne.s32.totalorder %s46, %s47
      %p59 = scmp.eq.s32.totalorder %s21, 1
      %p60 = por %p58, %p59
      %p62 = scmp.ne.s32.totalorder %s47, %s61
      %p63 = scmp.eq.s32.totalorder %s21, 0
      %p64 = por %p62, %p63
      %s66 = sadd.s32 %s65, 1
      %p69 = scmp.eq.s32.totalorder %s15, 1
      %p70 = scmp.ne.s32.totalorder %s65, %s67
      %p71 = scmp.eq.s32.totalorder %s15, 0
      %p72 = por %p70, %p71
      %p73 = scmp.ne.s32.totalorder %s65, %s67
      %p74 = scmp.eq.s32.totalorder %s20, 1
      %p75 = por %p73, %p74
      %p76 = scmp.ne.s32.totalorder %s67, %s68
      %p77 = scmp.eq.s32.totalorder %s20, 0
      %p78 = por %p76, %p77
      %p79 = scmp.ne.s32.totalorder %s67, %s68
      %p80 = scmp.eq.s32.totalorder %s21, 1
      %p81 = por %p79, %p80
      %p83 = scmp.ne.s32.totalorder %s68, %s82
      %p84 = scmp.eq.s32.totalorder %s21, 0
      %p85 = por %p83, %p84
      %s87 = sadd.s32 %s86, 1
      %p90 = scmp.eq.s32.totalorder %s15, 1
      %p91 = scmp.ne.s32.totalorder %s86, %s88
      %p92 = scmp.eq.s32.totalorder %s15, 0
      %p93 = por %p91, %p92
      %p94 = scmp.ne.s32.totalorder %s86, %s88
      %p95 = scmp.eq.s32.totalorder %s20, 1
      %p96 = por %p94, %p95
      %p97 = scmp.ne.s32.totalorder %s88, %s89
      %p98 = scmp.eq.s32.totalorder %s20, 0
      %p99 = por %p97, %p98
      %p100 = scmp.ne.s32.totalorder %s88, %s89
      %p101 = scmp.eq.s32.totalorder %s21, 1
      %p102 = por %p100, %p101
      %p104 = scmp.ne.s32.totalorder %s89, %s103
      %p105 = scmp.eq.s32.totalorder %s21, 0
      %p106 = por %p104, %p105
      %s108 = sadd.s32 %s107, 1
      %p111 = scmp.eq.s32.totalorder %s15, 1
      %p112 = scmp.ne.s32.totalorder %s107, %s109
      %p113 = scmp.eq.s32.totalorder %s15, 0
      %p114 = por %p112, %p113
      %p115 = scmp.ne.s32.totalorder %s107, %s109
      %p116 = scmp.eq.s32.totalorder %s20, 1
      %p117 = por %p115, %p116
      %p118 = scmp.ne.s32.totalorder %s109, %s110
      %p119 = scmp.eq.s32.totalorder %s20, 0
      %p120 = por %p118, %p119
      %p121 = scmp.ne.s32.totalorder %s109, %s110
      %p122 = scmp.eq.s32.totalorder %s21, 1
      %p123 = por %p121, %p122
      %p125 = scmp.ne.s32.totalorder %s110, %s124
      %p126 = scmp.eq.s32.totalorder %s21, 0
      %p127 = por %p125, %p126
      %s129 = sadd.s32 %s128, 1
      %p132 = scmp.eq.s32.totalorder %s15, 1
      %p133 = scmp.ne.s32.totalorder %s128, %s130
      %p134 = scmp.eq.s32.totalorder %s15, 0
      %p135 = por %p133, %p134
      %p136 = scmp.ne.s32.totalorder %s128, %s130
      %p137 = scmp.eq.s32.totalorder %s20, 1
      %p138 = por %p136, %p137
      %p139 = scmp.ne.s32.totalorder %s130, %s131
      %p140 = scmp.eq.s32.totalorder %s20, 0
      %p141 = por %p139, %p140
      %p142 = scmp.ne.s32.totalorder %s130, %s131
      %p143 = scmp.eq.s32.totalorder %s21, 1
      %p144 = por %p142, %p143
      %p146 = scmp.ne.s32.totalorder %s131, %s145
      %p147 = scmp.eq.s32.totalorder %s21, 0
      %p148 = por %p146, %p147
      %s149 = ssub.s32 %s15, %s22
      %p150 = scmp.eq.s32.totalorder %s149, 0
      %s152 = sadd.s32 %s151, 1
      %s153 = scalar_select %p150, %s151, %s152
      %p156 = pneg %p150
      %p157 = scmp.eq.s32.totalorder %s15, 1
      %p158 = por %p156, %p157
      %p159 = scmp.ne.s32.totalorder %s151, %s154
      %p160 = scmp.eq.s32.totalorder %s15, 0
      %p161 = por %p159, %p160
      %p162 = scmp.ne.s32.totalorder %s151, %s154
      %p163 = scmp.eq.s32.totalorder %s20, 1
      %p164 = por %p162, %p163
      %p165 = scmp.ne.s32.totalorder %s154, %s155
      %p166 = scmp.eq.s32.totalorder %s20, 0
      %p167 = por %p165, %p166
      %p168 = scmp.ne.s32.totalorder %s154, %s155
      %p169 = scmp.eq.s32.totalorder %s21, 1
      %p170 = por %p168, %p169
      %p172 = scmp.ne.s32.totalorder %s155, %s171
      %p173 = scmp.eq.s32.totalorder %s21, 0
      %p174 = por %p172, %p173
      %p175 = scmp.le.s32.totalorder 1, %s15
      %p176 = scmp.lt.s32.totalorder %s15, 3
      %p177 = pnand %p175, %p176
      %p178 = pneg %p177
      // Predicated region
      $region9: #{depthwise_conv_module.1} parent=5 // pred_check
        _
      $region10: #{depthwise_conv_module.1} parent=5 // pred_check_branch
        %180 = sbr.rel (%p177) target = $region12
      $region11: #{depthwise_conv_module.1} parent=5 // pred_region
        %s181 = ssub.s32 %s15, 1
        // Predicated region
        $region13: #{depthwise_conv_module.1} parent=11 // pred_check
          %p182 = pneg %p36
        $region14: #{depthwise_conv_module.1} parent=11 // pred_check_branch
          %184 = sbr.rel (%p182) target = $region16
        $region15: #{depthwise_conv_module.1} parent=11 // pred_region
          %s186 = ssub.s32 64, 64
          %187 = vsyncadd [#allocation3], %s186
          %s189 = sshll.u32 %s0, 4
          %s190 = int_to_ptr.vmem [resolvable:$true] %s189
          %192 = dma.vmem_to_smem %s190, 64, [#allocation2], [#allocation3]
        $region16: #{depthwise_conv_module.1} parent=11 // pred_fallthru
          _
        // Predicated region
        $region17: #{depthwise_conv_module.1} parent=11 // pred_check
          %p193 = pneg %p57
        $region18: #{depthwise_conv_module.1} parent=11 // pred_check_branch
          %195 = sbr.rel (%p193) target = $region20
        $region19: #{depthwise_conv_module.1} parent=11 // pred_region
          %s197 = ssub.s32 16, 16
          %198 = vsyncadd [#allocation5], %s197
          %s200 = sshll.u32 %s1, 4
          %s201 = int_to_ptr.vmem [resolvable:$true] %s200
          %203 = dma.vmem_to_smem %s201, 16, [#allocation4], [#allocation5]
        $region20: #{depthwise_conv_module.1} parent=11 // pred_fallthru
          _
        // Predicated region
        $region21: #{depthwise_conv_module.1} parent=11 // pred_check
          %p204 = pneg %p78
        $region22: #{depthwise_conv_module.1} parent=11 // pred_check_branch
          %206 = sbr.rel (%p204) target = $region24
        $region23: #{depthwise_conv_module.1} parent=11 // pred_region
          %s208 = ssub.s32 16, 16
          %209 = vsyncadd [#allocation5], %s208
          %s211 = sshll.u32 %s2, 4
          %s212 = int_to_ptr.vmem [resolvable:$true] %s211
          %214 = dma.vmem_to_smem %s212, 16, [#allocation6], [#allocation5]
        $region24: #{depthwise_conv_module.1} parent=11 // pred_fallthru
          _
        // Predicated region
        $region25: #{depthwise_conv_module.1} parent=11 // pred_check
          %p215 = pneg %p99
        $region26: #{depthwise_conv_module.1} parent=11 // pred_check_branch
          %217 = sbr.rel (%p215) target = $region28
        $region27: #{depthwise_conv_module.1} parent=11 // pred_region
          %s219 = ssub.s32 128, 128
          %220 = vsyncadd [#allocation8], %s219
          %s222 = sshll.u32 %s3, 4
          %s223 = int_to_ptr.vmem [resolvable:$true] %s222
          %225 = dma.vmem_to_smem %s223, 128, [#allocation7], [#allocation8]
        $region28: #{depthwise_conv_module.1} parent=11 // pred_fallthru
          _
        // Predicated region
        $region29: #{depthwise_conv_module.1} parent=11 // pred_check
          %p226 = pneg %p120
        $region30: #{depthwise_conv_module.1} parent=11 // pred_check_branch
          %228 = sbr.rel (%p226) target = $region32
        $region31: #{depthwise_conv_module.1} parent=11 // pred_region
          %s230 = ssub.s32 64, 64
          %231 = vsyncadd [#allocation8], %s230
          %s233 = sshll.u32 %s4, 4
          %s234 = int_to_ptr.vmem [resolvable:$true] %s233
          %236 = dma.vmem_to_smem %s234, 64, [#allocation9], [#allocation8]
        $region32: #{depthwise_conv_module.1} parent=11 // pred_fallthru
          _
        // Predicated region
        $region33: #{depthwise_conv_module.1} parent=11 // pred_check
          %p237 = pneg %p141
        $region34: #{depthwise_conv_module.1} parent=11 // pred_check_branch
          %239 = sbr.rel (%p237) target = $region36
        $region35: #{depthwise_conv_module.1} parent=11 // pred_region
          _
        $region36: #{depthwise_conv_module.1} parent=11 // pred_fallthru
          _
      $region12: #{depthwise_conv_module.1} parent=5 // pred_fallthru
        _
      %p240 = scmp.lt.s32.totalorder %s15, 2
      // Predicated region
      $region37: #{depthwise_conv_module.1} parent=5 // pred_check
        %p241 = pneg %p240
      $region38: #{depthwise_conv_module.1} parent=5 // pred_check_branch
        %243 = sbr.rel (%p241) target = $region40
      $region39: #{depthwise_conv_module.1} parent=5 // pred_region
        _
      $region40: #{depthwise_conv_module.1} parent=5 // pred_fallthru
        _
      %p244 = scmp.le.s32.totalorder 1, %s15
      %p245 = scmp.lt.s32.totalorder %s15, 3
      %p246 = pnand %p244, %p245
      %p247 = pneg %p246
      // Predicated region
      $region41: #{depthwise_conv_module.1} parent=5 // pred_check
        _
      $region42: #{depthwise_conv_module.1} parent=5 // pred_check_branch
        %249 = sbr.rel (%p246) target = $region44
      $region43: #{depthwise_conv_module.1} parent=5 // pred_region
        %s250 = ssub.s32 %s15, 1
        // Predicated region
        $region45: #{depthwise_conv_module.1} parent=43 // pred_check
          %p251 = pneg %p36
        $region46: #{depthwise_conv_module.1} parent=43 // pred_check_branch
          %253 = sbr.rel (%p251) target = $region48
        $region47: #{depthwise_conv_module.1} parent=43 // pred_region
          %254 = dma.done [#allocation3], 64
        $region48: #{depthwise_conv_module.1} parent=43 // pred_fallthru
          _
        // Predicated region
        $region49: #{depthwise_conv_module.1} parent=43 // pred_check
          %p255 = pneg %p57
        $region50: #{depthwise_conv_module.1} parent=43 // pred_check_branch
          %257 = sbr.rel (%p255) target = $region52
        $region51: #{depthwise_conv_module.1} parent=43 // pred_region
          %258 = dma.done [#allocation5], 16
        $region52: #{depthwise_conv_module.1} parent=43 // pred_fallthru
          _
        // Predicated region
        $region53: #{depthwise_conv_module.1} parent=43 // pred_check
          %p259 = pneg %p78
        $region54: #{depthwise_conv_module.1} parent=43 // pred_check_branch
          %261 = sbr.rel (%p259) target = $region56
        $region55: #{depthwise_conv_module.1} parent=43 // pred_region
          %262 = dma.done [#allocation5], 16
        $region56: #{depthwise_conv_module.1} parent=43 // pred_fallthru
          _
        // Predicated region
        $region57: #{depthwise_conv_module.1} parent=43 // pred_check
          %p263 = pneg %p99
        $region58: #{depthwise_conv_module.1} parent=43 // pred_check_branch
          %265 = sbr.rel (%p263) target = $region60
        $region59: #{depthwise_conv_module.1} parent=43 // pred_region
          %266 = dma.done [#allocation8], 128
        $region60: #{depthwise_conv_module.1} parent=43 // pred_fallthru
          _
        // Predicated region
        $region61: #{depthwise_conv_module.1} parent=43 // pred_check
          %p267 = pneg %p120
        $region62: #{depthwise_conv_module.1} parent=43 // pred_check_branch
          %269 = sbr.rel (%p267) target = $region64
        $region63: #{depthwise_conv_module.1} parent=43 // pred_region
          %270 = dma.done [#allocation8], 64
        $region64: #{depthwise_conv_module.1} parent=43 // pred_fallthru
          _
        %271 = sfence
        %p272 = pneg %p36
        %p273 = pneg %p33
        %p274 = pneg %p57
        %p275 = pneg %p54
        %p276 = pneg %p78
        %p277 = pneg %p75
        %p278 = pneg %p99
        %p279 = pneg %p96
        %p280 = pneg %p120
        %p281 = pneg %p117
        %p282 = pneg %p141
        %p283 = pneg %p138
        %p284 = pneg %p167
        %p285 = pneg %p164
        %s286 = sand.u32 %s154, 1
        %s287 = sand.u32 %s154, 1
        %s288 = smul.addr %s287, 128
        %s289 = scalar_lea.vmem [#allocation10], %s288
        %s290 = smul.u32 4, %s20
        %s291 = smul.u32 %s20, 32
        %v292 = vlaneseq
        %v293 = vand.u32 %v292, 127
        %vm294 = vcmp.lt.s32.totalorder %v293, 0
        %v295 = vsub.s32 0, %v293
        %v296 = vsel %vm294, %v295, %v293
        %v297 = vshrl.u32 %v296, 6
        %v298 = vand.u32 %v296, 63
        %v299 = vsub.s32 0, %v298
        %v300 = vsel %vm294, %v299, %v298
        %vm301 = vcmp.ne.s32.totalorder %v300, 0
        %vm302 = vcmp.lt.s32.totalorder %v300, 0
        %vm303 = vmand %vm302, %vm301
        %v304 = vadd.s32 %v300, 64
        %v305 = vsel %vm303, %v304, %v300
        %v306 = vadd.s32 %v305, 4294967293
        %vm307 = vcmp.ge.s32.totalorder %v306, 0
        %vm308 = vcmp.lt.s32.totalorder %v306, 64
        %vm309 = vmand %vm307, %vm308
        %v310 = vadd.s32 %v305, 4294967294
        %vm311 = vcmp.ge.s32.totalorder %v310, 0
        %vm312 = vcmp.lt.s32.totalorder %v310, 64
        %vm313 = vmand %vm311, %vm312
        %v314 = vadd.s32 %v305, 4294967295
        %vm315 = vcmp.ge.s32.totalorder %v314, 0
        %vm316 = vcmp.lt.s32.totalorder %v314, 64
        %vm317 = vmand %vm315, %vm316
        %v318 = vadd.s32 %v305, 1
        %vm319 = vcmp.ge.s32.totalorder %v318, 0
        %vm320 = vcmp.lt.s32.totalorder %v318, 64
        %vm321 = vmand %vm319, %vm320
        %v322 = vadd.s32 %v305, 2
        %vm323 = vcmp.ge.s32.totalorder %v322, 0
        %vm324 = vcmp.lt.s32.totalorder %v322, 64
        %vm325 = vmand %vm323, %vm324
        %v326 = vadd.s32 %v305, 3
        %vm327 = vcmp.ge.s32.totalorder %v326, 0
        %vm328 = vcmp.lt.s32.totalorder %v326, 64
        %vm329 = vmand %vm327, %vm328
        %s330 = scalar_lea.vmem %s5, %s291
        %v331 = vld [vmem:[%s330] sm:$0xff]
        %v332 = vld [vmem:[%s330 + $0x8] sm:$0xff]
        %v333 = vld [vmem:[%s330 + $0x10] sm:$0xff]
        %v334 = vld [vmem:[%s330 + $0x18] sm:$0xff]
        %v335 = vld [vmem:[%s330 + $0x20] sm:$0xff]
        %336 = vrot.lane.b32.xlu0 %v331, 3
        %v337 = vpop.permute.xlu0 %336
        %338 = vrot.lane.b32.xlu0 %v332, 3
        %v339 = vpop.permute.xlu0 %338
        %340 = vrot.lane.b32.xlu0 %v333, 3
        %v341 = vpop.permute.xlu0 %340
        %342 = vrot.lane.b32.xlu0 %v334, 3
        %v343 = vpop.permute.xlu0 %342
        %344 = vrot.lane.b32.xlu0 %v335, 3
        %v345 = vpop.permute.xlu0 %344
        %v346 = vsel %vm309, %v337, 0.0
        %v347 = vsel %vm309, %v339, 0.0
        %v348 = vsel %vm309, %v341, 0.0
        %v349 = vsel %vm309, %v343, 0.0
        %v350 = vsel %vm309, %v345, 0.0
        %s351 = sld [smem:[#allocation2]]
        %v352 = vstv %s351
        %v353 = vmul.f32 %v352, %v346
        %v354 = vmul.f32 %v352, %v347
        %v355 = vmul.f32 %v352, %v348
        %v356 = vmul.f32 %v352, %v349
        %v357 = vadd.f32 %v353, 0.0
        %v358 = vadd.f32 %v354, 0.0
        %v359 = vadd.f32 %v355, 0.0
        %v360 = vadd.f32 %v356, 0.0
        %s361 = sld [smem:[#allocation2 + $0x7]]
        %v362 = vstv %s361
        %v363 = vmul.f32 %v362, %v346
        %v364 = vmul.f32 %v362, %v347
        %v365 = vmul.f32 %v362, %v348
        %v366 = vmul.f32 %v362, %v349
        %v367 = vmul.f32 %v362, %v350
        %vm373 = vcmask 1046528
        %v374 = vrot.slane %v363, 1
        %v375 = vrot.slane %v364, 1
        %v376 = vsel %vm373, %v374, %v375
        %v377 = vrot.slane %v365, 1
        %v378 = vsel %vm373, %v375, %v377
        %v379 = vrot.slane %v366, 1
        %v380 = vsel %vm373, %v377, %v379
        %v381 = vrot.slane %v367, 1
        %v382 = vsel %vm373, %v379, %v381
        %v387 = vadd.f32 %v357, %v376
        %v388 = vadd.f32 %v358, %v378
        %v389 = vadd.f32 %v359, %v380
        %v390 = vadd.f32 %v360, %v382
        %s391 = sld [smem:[#allocation2 + $0xe]]
        %v392 = vstv %s391
        %v393 = vmul.f32 %v392, %v346
        %v394 = vmul.f32 %v392, %v347
        %v395 = vmul.f32 %v392, %v348
        %v396 = vmul.f32 %v392, %v349
        %v397 = vmul.f32 %v392, %v350
        %vm403 = vcmask 1045504
        %v404 = vrot.slane %v393, 2
        %v405 = vrot.slane %v394, 2
        %v406 = vsel %vm403, %v404, %v405
        %v407 = vrot.slane %v395, 2
        %v408 = vsel %vm403, %v405, %v407
        %v409 = vrot.slane %v396, 2
        %v410 = vsel %vm403, %v407, %v409
        %v411 = vrot.slane %v397, 2
        %v412 = vsel %vm403, %v409, %v411
        %v417 = vadd.f32 %v387, %v406
        %v418 = vadd.f32 %v388, %v408
        %v419 = vadd.f32 %v389, %v410
        %v420 = vadd.f32 %v390, %v412
        %s421 = sld [smem:[#allocation2 + $0x15]]
        %v422 = vstv %s421
        %v423 = vmul.f32 %v422, %v346
        %v424 = vmul.f32 %v422, %v347
        %v425 = vmul.f32 %v422, %v348
        %v426 = vmul.f32 %v422, %v349
        %v427 = vmul.f32 %v422, %v350
        %vm433 = vcmask 1044480
        %v434 = vrot.slane %v423, 3
        %v435 = vrot.slane %v424, 3
        %v436 = vsel %vm433, %v434, %v435
        %v437 = vrot.slane %v425, 3
        %v438 = vsel %vm433, %v435, %v437
        %v439 = vrot.slane %v426, 3
        %v440 = vsel %vm433, %v437, %v439
        %v441 = vrot.slane %v427, 3
        %v442 = vsel %vm433, %v439, %v441
        %v447 = vadd.f32 %v417, %v436
        %v448 = vadd.f32 %v418, %v438
        %v449 = vadd.f32 %v419, %v440
        %v450 = vadd.f32 %v420, %v442
        %s451 = sld [smem:[#allocation2 + $0x1c]]
        %v452 = vstv %s451
        %v453 = vmul.f32 %v452, %v346
        %v454 = vmul.f32 %v452, %v347
        %v455 = vmul.f32 %v452, %v348
        %v456 = vmul.f32 %v452, %v349
        %v457 = vmul.f32 %v452, %v350
        %vm463 = vcmask 1043456
        %v464 = vrot.slane %v453, 4
        %v465 = vrot.slane %v454, 4
        %v466 = vsel %vm463, %v464, %v465
        %v467 = vrot.slane %v455, 4
        %v468 = vsel %vm463, %v465, %v467
        %v469 = vrot.slane %v456, 4
        %v470 = vsel %vm463, %v467, %v469
        %v471 = vrot.slane %v457, 4
        %v472 = vsel %vm463, %v469, %v471
        %v477 = vadd.f32 %v447, %v466
        %v478 = vadd.f32 %v448, %v468
        %v479 = vadd.f32 %v449, %v470
        %v480 = vadd.f32 %v450, %v472
        %s481 = sld [smem:[#allocation2 + $0x23]]
        %v482 = vstv %s481
        %v483 = vmul.f32 %v482, %v346
        %v484 = vmul.f32 %v482, %v347
        %v485 = vmul.f32 %v482, %v348
        %v486 = vmul.f32 %v482, %v349
        %v487 = vmul.f32 %v482, %v350
        %vm493 = vcmask 1042432
        %v494 = vrot.slane %v483, 5
        %v495 = vrot.slane %v484, 5
        %v496 = vsel %vm493, %v494, %v495
        %v497 = vrot.slane %v485, 5
        %v498 = vsel %vm493, %v495, %v497
        %v499 = vrot.slane %v486, 5
        %v500 = vsel %vm493, %v497, %v499
        %v501 = vrot.slane %v487, 5
        %v502 = vsel %vm493, %v499, %v501
        %v507 = vadd.f32 %v477, %v496
        %v508 = vadd.f32 %v478, %v498
        %v509 = vadd.f32 %v479, %v500
        %v510 = vadd.f32 %v480, %v502
        %s511 = sld [smem:[#allocation2 + $0x2a]]
        %v512 = vstv %s511
        %v513 = vmul.f32 %v512, %v346
        %v514 = vmul.f32 %v512, %v347
        %v515 = vmul.f32 %v512, %v348
        %v516 = vmul.f32 %v512, %v349
        %v517 = vmul.f32 %v512, %v350
        %vm523 = vcmask 1041408
        %v524 = vrot.slane %v513, 6
        %v525 = vrot.slane %v514, 6
        %v526 = vsel %vm523, %v524, %v525
        %v527 = vrot.slane %v515, 6
        %v528 = vsel %vm523, %v525, %v527
        %v529 = vrot.slane %v516, 6
        %v530 = vsel %vm523, %v527, %v529
        %v531 = vrot.slane %v517, 6
        %v532 = vsel %vm523, %v529, %v531
        %v537 = vadd.f32 %v507, %v526
        %v538 = vadd.f32 %v508, %v528
        %v539 = vadd.f32 %v509, %v530
        %v540 = vadd.f32 %v510, %v532
        %541 = vrot.lane.b32.xlu0 %v331, 2
        %v542 = vpop.permute.xlu0 %541
        %543 = vrot.lane.b32.xlu0 %v332, 2
        %v544 = vpop.permute.xlu0 %543
        %545 = vrot.lane.b32.xlu0 %v333, 2
        %v546 = vpop.permute.xlu0 %545
        %547 = vrot.lane.b32.xlu0 %v334, 2
        %v548 = vpop.permute.xlu0 %547
        %549 = vrot.lane.b32.xlu0 %v335, 2
        %v550 = vpop.permute.xlu0 %549
        %v551 = vsel %vm313, %v542, 0.0
        %v552 = vsel %vm313, %v544, 0.0
        %v553 = vsel %vm313, %v546, 0.0
        %v554 = vsel %vm313, %v548, 0.0
        %v555 = vsel %vm313, %v550, 0.0
        %s556 = sld [smem:[#allocation2 + $0x1]]
        %v557 = vstv %s556
        %v558 = vmul.f32 %v557, %v551
        %v559 = vmul.f32 %v557, %v552
        %v560 = vmul.f32 %v557, %v553
        %v561 = vmul.f32 %v557, %v554
        %v562 = vadd.f32 %v537, %v558
        %v563 = vadd.f32 %v538, %v559
        %v564 = vadd.f32 %v539, %v560
        %v565 = vadd.f32 %v540, %v561
        %s566 = sld [smem:[#allocation2 + $0x8]]
        %v567 = vstv %s566
        %v568 = vmul.f32 %v567, %v551
        %v569 = vmul.f32 %v567, %v552
        %v570 = vmul.f32 %v567, %v553
        %v571 = vmul.f32 %v567, %v554
        %v572 = vmul.f32 %v567, %v555
        %v578 = vrot.slane %v568, 1
        %v579 = vrot.slane %v569, 1
        %v580 = vsel %vm373, %v578, %v579
        %v581 = vrot.slane %v570, 1
        %v582 = vsel %vm373, %v579, %v581
        %v583 = vrot.slane %v571, 1
        %v584 = vsel %vm373, %v581, %v583
        %v585 = vrot.slane %v572, 1
        %v586 = vsel %vm373, %v583, %v585
        %v591 = vadd.f32 %v562, %v580
        %v592 = vadd.f32 %v563, %v582
        %v593 = vadd.f32 %v564, %v584
        %v594 = vadd.f32 %v565, %v586
        %s595 = sld [smem:[#allocation2 + $0xf]]
        %v596 = vstv %s595
        %v597 = vmul.f32 %v596, %v551
        %v598 = vmul.f32 %v596, %v552
        %v599 = vmul.f32 %v596, %v553
        %v600 = vmul.f32 %v596, %v554
        %v601 = vmul.f32 %v596, %v555
        %v607 = vrot.slane %v597, 2
        %v608 = vrot.slane %v598, 2
        %v609 = vsel %vm403, %v607, %v608
        %v610 = vrot.slane %v599, 2
        %v611 = vsel %vm403, %v608, %v610
        %v612 = vrot.slane %v600, 2
        %v613 = vsel %vm403, %v610, %v612
        %v614 = vrot.slane %v601, 2
        %v615 = vsel %vm403, %v612, %v614
        %v620 = vadd.f32 %v591, %v609
        %v621 = vadd.f32 %v592, %v611
        %v622 = vadd.f32 %v593, %v613
        %v623 = vadd.f32 %v594, %v615
        %s624 = sld [smem:[#allocation2 + $0x16]]
        %v625 = vstv %s624
        %v626 = vmul.f32 %v625, %v551
        %v627 = vmul.f32 %v625, %v552
        %v628 = vmul.f32 %v625, %v553
        %v629 = vmul.f32 %v625, %v554
        %v630 = vmul.f32 %v625, %v555
        %v636 = vrot.slane %v626, 3
        %v637 = vrot.slane %v627, 3
        %v638 = vsel %vm433, %v636, %v637
        %v639 = vrot.slane %v628, 3
        %v640 = vsel %vm433, %v637, %v639
        %v641 = vrot.slane %v629, 3
        %v642 = vsel %vm433, %v639, %v641
        %v643 = vrot.slane %v630, 3
        %v644 = vsel %vm433, %v641, %v643
        %v649 = vadd.f32 %v620, %v638
        %v650 = vadd.f32 %v621, %v640
        %v651 = vadd.f32 %v622, %v642
        %v652 = vadd.f32 %v623, %v644
        %s653 = sld [smem:[#allocation2 + $0x1d]]
        %v654 = vstv %s653
        %v655 = vmul.f32 %v654, %v551
        %v656 = vmul.f32 %v654, %v552
        %v657 = vmul.f32 %v654, %v553
        %v658 = vmul.f32 %v654, %v554
        %v659 = vmul.f32 %v654, %v555
        %v665 = vrot.slane %v655, 4
        %v666 = vrot.slane %v656, 4
        %v667 = vsel %vm463, %v665, %v666
        %v668 = vrot.slane %v657, 4
        %v669 = vsel %vm463, %v666, %v668
        %v670 = vrot.slane %v658, 4
        %v671 = vsel %vm463, %v668, %v670
        %v672 = vrot.slane %v659, 4
        %v673 = vsel %vm463, %v670, %v672
        %v678 = vadd.f32 %v649, %v667
        %v679 = vadd.f32 %v650, %v669
        %v680 = vadd.f32 %v651, %v671
        %v681 = vadd.f32 %v652, %v673
        %s682 = sld [smem:[#allocation2 + $0x24]]
        %v683 = vstv %s682
        %v684 = vmul.f32 %v683, %v551
        %v685 = vmul.f32 %v683, %v552
        %v686 = vmul.f32 %v683, %v553
        %v687 = vmul.f32 %v683, %v554
        %v688 = vmul.f32 %v683, %v555
        %v694 = vrot.slane %v684, 5
        %v695 = vrot.slane %v685, 5
        %v696 = vsel %vm493, %v694, %v695
        %v697 = vrot.slane %v686, 5
        %v698 = vsel %vm493, %v695, %v697
        %v699 = vrot.slane %v687, 5
        %v700 = vsel %vm493, %v697, %v699
        %v701 = vrot.slane %v688, 5
        %v702 = vsel %vm493, %v699, %v701
        %v707 = vadd.f32 %v678, %v696
        %v708 = vadd.f32 %v679, %v698
        %v709 = vadd.f32 %v680, %v700
        %v710 = vadd.f32 %v681, %v702
        %s711 = sld [smem:[#allocation2 + $0x2b]]
        %v712 = vstv %s711
        %v713 = vmul.f32 %v712, %v551
        %v714 = vmul.f32 %v712, %v552
        %v715 = vmul.f32 %v712, %v553
        %v716 = vmul.f32 %v712, %v554
        %v717 = vmul.f32 %v712, %v555
        %v723 = vrot.slane %v713, 6
        %v724 = vrot.slane %v714, 6
        %v725 = vsel %vm523, %v723, %v724
        %v726 = vrot.slane %v715, 6
        %v727 = vsel %vm523, %v724, %v726
        %v728 = vrot.slane %v716, 6
        %v729 = vsel %vm523, %v726, %v728
        %v730 = vrot.slane %v717, 6
        %v731 = vsel %vm523, %v728, %v730
        %v736 = vadd.f32 %v707, %v725
        %v737 = vadd.f32 %v708, %v727
        %v738 = vadd.f32 %v709, %v729
        %v739 = vadd.f32 %v710, %v731
        %740 = vrot.lane.b32.xlu0 %v331, 1
        %v741 = vpop.permute.xlu0 %740
        %742 = vrot.lane.b32.xlu0 %v332, 1
        %v743 = vpop.permute.xlu0 %742
        %744 = vrot.lane.b32.xlu0 %v333, 1
        %v745 = vpop.permute.xlu0 %744
        %746 = vrot.lane.b32.xlu0 %v334, 1
        %v747 = vpop.permute.xlu0 %746
        %748 = vrot.lane.b32.xlu0 %v335, 1
        %v749 = vpop.permute.xlu0 %748
        %v750 = vsel %vm317, %v741, 0.0
        %v751 = vsel %vm317, %v743, 0.0
        %v752 = vsel %vm317, %v745, 0.0
        %v753 = vsel %vm317, %v747, 0.0
        %v754 = vsel %vm317, %v749, 0.0
        %s755 = sld [smem:[#allocation2 + $0x2]]
        %v756 = vstv %s755
        %v757 = vmul.f32 %v756, %v750
        %v758 = vmul.f32 %v756, %v751
        %v759 = vmul.f32 %v756, %v752
        %v760 = vmul.f32 %v756, %v753
        %v761 = vadd.f32 %v736, %v757
        %v762 = vadd.f32 %v737, %v758
        %v763 = vadd.f32 %v738, %v759
        %v764 = vadd.f32 %v739, %v760
        %s765 = sld [smem:[#allocation2 + $0x9]]
        %v766 = vstv %s765
        %v767 = vmul.f32 %v766, %v750
        %v768 = vmul.f32 %v766, %v751
        %v769 = vmul.f32 %v766, %v752
        %v770 = vmul.f32 %v766, %v753
        %v771 = vmul.f32 %v766, %v754
        %v777 = vrot.slane %v767, 1
        %v778 = vrot.slane %v768, 1
        %v779 = vsel %vm373, %v777, %v778
        %v780 = vrot.slane %v769, 1
        %v781 = vsel %vm373, %v778, %v780
        %v782 = vrot.slane %v770, 1
        %v783 = vsel %vm373, %v780, %v782
        %v784 = vrot.slane %v771, 1
        %v785 = vsel %vm373, %v782, %v784
        %v790 = vadd.f32 %v761, %v779
        %v791 = vadd.f32 %v762, %v781
        %v792 = vadd.f32 %v763, %v783
        %v793 = vadd.f32 %v764, %v785
        %s794 = sld [smem:[#allocation2 + $0x10]]
        %v795 = vstv %s794
        %v796 = vmul.f32 %v795, %v750
        %v797 = vmul.f32 %v795, %v751
        %v798 = vmul.f32 %v795, %v752
        %v799 = vmul.f32 %v795, %v753
        %v800 = vmul.f32 %v795, %v754
        %v806 = vrot.slane %v796, 2
        %v807 = vrot.slane %v797, 2
        %v808 = vsel %vm403, %v806, %v807
        %v809 = vrot.slane %v798, 2
        %v810 = vsel %vm403, %v807, %v809
        %v811 = vrot.slane %v799, 2
        %v812 = vsel %vm403, %v809, %v811
        %v813 = vrot.slane %v800, 2
        %v814 = vsel %vm403, %v811, %v813
        %v819 = vadd.f32 %v790, %v808
        %v820 = vadd.f32 %v791, %v810
        %v821 = vadd.f32 %v792, %v812
        %v822 = vadd.f32 %v793, %v814
        %s823 = sld [smem:[#allocation2 + $0x17]]
        %v824 = vstv %s823
        %v825 = vmul.f32 %v824, %v750
        %v826 = vmul.f32 %v824, %v751
        %v827 = vmul.f32 %v824, %v752
        %v828 = vmul.f32 %v824, %v753
        %v829 = vmul.f32 %v824, %v754
        %v835 = vrot.slane %v825, 3
        %v836 = vrot.slane %v826, 3
        %v837 = vsel %vm433, %v835, %v836
        %v838 = vrot.slane %v827, 3
        %v839 = vsel %vm433, %v836, %v838
        %v840 = vrot.slane %v828, 3
        %v841 = vsel %vm433, %v838, %v840
        %v842 = vrot.slane %v829, 3
        %v843 = vsel %vm433, %v840, %v842
        %v848 = vadd.f32 %v819, %v837
        %v849 = vadd.f32 %v820, %v839
        %v850 = vadd.f32 %v821, %v841
        %v851 = vadd.f32 %v822, %v843
        %s852 = sld [smem:[#allocation2 + $0x1e]]
        %v853 = vstv %s852
        %v854 = vmul.f32 %v853, %v750
        %v855 = vmul.f32 %v853, %v751
        %v856 = vmul.f32 %v853, %v752
        %v857 = vmul.f32 %v853, %v753
        %v858 = vmul.f32 %v853, %v754
        %v864 = vrot.slane %v854, 4
        %v865 = vrot.slane %v855, 4
        %v866 = vsel %vm463, %v864, %v865
        %v867 = vrot.slane %v856, 4
        %v868 = vsel %vm463, %v865, %v867
        %v869 = vrot.slane %v857, 4
        %v870 = vsel %vm463, %v867, %v869
        %v871 = vrot.slane %v858, 4
        %v872 = vsel %vm463, %v869, %v871
        %v877 = vadd.f32 %v848, %v866
        %v878 = vadd.f32 %v849, %v868
        %v879 = vadd.f32 %v850, %v870
        %v880 = vadd.f32 %v851, %v872
        %s881 = sld [smem:[#allocation2 + $0x25]]
        %v882 = vstv %s881
        %v883 = vmul.f32 %v882, %v750
        %v884 = vmul.f32 %v882, %v751
        %v885 = vmul.f32 %v882, %v752
        %v886 = vmul.f32 %v882, %v753
        %v887 = vmul.f32 %v882, %v754
        %v893 = vrot.slane %v883, 5
        %v894 = vrot.slane %v884, 5
        %v895 = vsel %vm493, %v893, %v894
        %v896 = vrot.slane %v885, 5
        %v897 = vsel %vm493, %v894, %v896
        %v898 = vrot.slane %v886, 5
        %v899 = vsel %vm493, %v896, %v898
        %v900 = vrot.slane %v887, 5
        %v901 = vsel %vm493, %v898, %v900
        %v906 = vadd.f32 %v877, %v895
        %v907 = vadd.f32 %v878, %v897
        %v908 = vadd.f32 %v879, %v899
        %v909 = vadd.f32 %v880, %v901
        %s910 = sld [smem:[#allocation2 + $0x2c]]
        %v911 = vstv %s910
        %v912 = vmul.f32 %v911, %v750
        %v913 = vmul.f32 %v911, %v751
        %v914 = vmul.f32 %v911, %v752
        %v915 = vmul.f32 %v911, %v753
        %v916 = vmul.f32 %v911, %v754
        %v922 = vrot.slane %v912, 6
        %v923 = vrot.slane %v913, 6
        %v924 = vsel %vm523, %v922, %v923
        %v925 = vrot.slane %v914, 6
        %v926 = vsel %vm523, %v923, %v925
        %v927 = vrot.slane %v915, 6
        %v928 = vsel %vm523, %v925, %v927
        %v929 = vrot.slane %v916, 6
        %v930 = vsel %vm523, %v927, %v929
        %v935 = vadd.f32 %v906, %v924
        %v936 = vadd.f32 %v907, %v926
        %v937 = vadd.f32 %v908, %v928
        %v938 = vadd.f32 %v909, %v930
        %s939 = sld [smem:[#allocation2 + $0x3]]
        %v940 = vstv %s939
        %v941 = vmul.f32 %v940, %v331
        %v942 = vmul.f32 %v940, %v332
        %v943 = vmul.f32 %v940, %v333
        %v944 = vmul.f32 %v940, %v334
        %v945 = vadd.f32 %v935, %v941
        %v946 = vadd.f32 %v936, %v942
        %v947 = vadd.f32 %v937, %v943
        %v948 = vadd.f32 %v938, %v944
        %s949 = sld [smem:[#allocation2 + $0xa]]
        %v950 = vstv %s949
        %v951 = vmul.f32 %v950, %v331
        %v952 = vmul.f32 %v950, %v332
        %v953 = vmul.f32 %v950, %v333
        %v954 = vmul.f32 %v950, %v334
        %v955 = vmul.f32 %v950, %v335
        %v961 = vrot.slane %v951, 1
        %v962 = vrot.slane %v952, 1
        %v963 = vsel %vm373, %v961, %v962
        %v964 = vrot.slane %v953, 1
        %v965 = vsel %vm373, %v962, %v964
        %v966 = vrot.slane %v954, 1
        %v967 = vsel %vm373, %v964, %v966
        %v968 = vrot.slane %v955, 1
        %v969 = vsel %vm373, %v966, %v968
        %v974 = vadd.f32 %v945, %v963
        %v975 = vadd.f32 %v946, %v965
        %v976 = vadd.f32 %v947, %v967
        %v977 = vadd.f32 %v948, %v969
        %s978 = sld [smem:[#allocation2 + $0x11]]
        %v979 = vstv %s978
        %v980 = vmul.f32 %v979, %v331
        %v981 = vmul.f32 %v979, %v332
        %v982 = vmul.f32 %v979, %v333
        %v983 = vmul.f32 %v979, %v334
        %v984 = vmul.f32 %v979, %v335
        %v990 = vrot.slane %v980, 2
        %v991 = vrot.slane %v981, 2
        %v992 = vsel %vm403, %v990, %v991
        %v993 = vrot.slane %v982, 2
        %v994 = vsel %vm403, %v991, %v993
        %v995 = vrot.slane %v983, 2
        %v996 = vsel %vm403, %v993, %v995
        %v997 = vrot.slane %v984, 2
        %v998 = vsel %vm403, %v995, %v997
        %v1003 = vadd.f32 %v974, %v992
        %v1004 = vadd.f32 %v975, %v994
        %v1005 = vadd.f32 %v976, %v996
        %v1006 = vadd.f32 %v977, %v998
        %s1007 = sld [smem:[#allocation2 + $0x18]]
        %v1008 = vstv %s1007
        %v1009 = vmul.f32 %v1008, %v331
        %v1010 = vmul.f32 %v1008, %v332
        %v1011 = vmul.f32 %v1008, %v333
        %v1012 = vmul.f32 %v1008, %v334
        %v1013 = vmul.f32 %v1008, %v335
        %v1019 = vrot.slane %v1009, 3
        %v1020 = vrot.slane %v1010, 3
        %v1021 = vsel %vm433, %v1019, %v1020
        %v1022 = vrot.slane %v1011, 3
        %v1023 = vsel %vm433, %v1020, %v1022
        %v1024 = vrot.slane %v1012, 3
        %v1025 = vsel %vm433, %v1022, %v1024
        %v1026 = vrot.slane %v1013, 3
        %v1027 = vsel %vm433, %v1024, %v1026
        %v1032 = vadd.f32 %v1003, %v1021
        %v1033 = vadd.f32 %v1004, %v1023
        %v1034 = vadd.f32 %v1005, %v1025
        %v1035 = vadd.f32 %v1006, %v1027
        %s1036 = sld [smem:[#allocation2 + $0x1f]]
        %v1037 = vstv %s1036
        %v1038 = vmul.f32 %v1037, %v331
        %v1039 = vmul.f32 %v1037, %v332
        %v1040 = vmul.f32 %v1037, %v333
        %v1041 = vmul.f32 %v1037, %v334
        %v1042 = vmul.f32 %v1037, %v335
        %v1048 = vrot.slane %v1038, 4
        %v1049 = vrot.slane %v1039, 4
        %v1050 = vsel %vm463, %v1048, %v1049
        %v1051 = vrot.slane %v1040, 4
        %v1052 = vsel %vm463, %v1049, %v1051
        %v1053 = vrot.slane %v1041, 4
        %v1054 = vsel %vm463, %v1051, %v1053
        %v1055 = vrot.slane %v1042, 4
        %v1056 = vsel %vm463, %v1053, %v1055
        %v1061 = vadd.f32 %v1032, %v1050
        %v1062 = vadd.f32 %v1033, %v1052
        %v1063 = vadd.f32 %v1034, %v1054
        %v1064 = vadd.f32 %v1035, %v1056
        %s1065 = sld [smem:[#allocation2 + $0x26]]
        %v1066 = vstv %s1065
        %v1067 = vmul.f32 %v1066, %v331
        %v1068 = vmul.f32 %v1066, %v332
        %v1069 = vmul.f32 %v1066, %v333
        %v1070 = vmul.f32 %v1066, %v334
        %v1071 = vmul.f32 %v1066, %v335
        %v1077 = vrot.slane %v1067, 5
        %v1078 = vrot.slane %v1068, 5
        %v1079 = vsel %vm493, %v1077, %v1078
        %v1080 = vrot.slane %v1069, 5
        %v1081 = vsel %vm493, %v1078, %v1080
        %v1082 = vrot.slane %v1070, 5
        %v1083 = vsel %vm493, %v1080, %v1082
        %v1084 = vrot.slane %v1071, 5
        %v1085 = vsel %vm493, %v1082, %v1084
        %v1090 = vadd.f32 %v1061, %v1079
        %v1091 = vadd.f32 %v1062, %v1081
        %v1092 = vadd.f32 %v1063, %v1083
        %v1093 = vadd.f32 %v1064, %v1085
        %s1094 = sld [smem:[#allocation2 + $0x2d]]
        %v1095 = vstv %s1094
        %v1096 = vmul.f32 %v1095, %v331
        %v1097 = vmul.f32 %v1095, %v332
        %v1098 = vmul.f32 %v1095, %v333
        %v1099 = vmul.f32 %v1095, %v334
        %v1100 = vmul.f32 %v1095, %v335
        %v1106 = vrot.slane %v1096, 6
        %v1107 = vrot.slane %v1097, 6
        %v1108 = vsel %vm523, %v1106, %v1107
        %v1109 = vrot.slane %v1098, 6
        %v1110 = vsel %vm523, %v1107, %v1109
        %v1111 = vrot.slane %v1099, 6
        %v1112 = vsel %vm523, %v1109, %v1111
        %v1113 = vrot.slane %v1100, 6
        %v1114 = vsel %vm523, %v1111, %v1113
        %v1119 = vadd.f32 %v1090, %v1108
        %v1120 = vadd.f32 %v1091, %v1110
        %v1121 = vadd.f32 %v1092, %v1112
        %v1122 = vadd.f32 %v1093, %v1114
        %1123 = vrot.lane.b32.xlu0 %v331, 127
        %v1124 = vpop.permute.xlu0 %1123
        %1125 = vrot.lane.b32.xlu0 %v332, 127
        %v1126 = vpop.permute.xlu0 %1125
        %1127 = vrot.lane.b32.xlu0 %v333, 127
        %v1128 = vpop.permute.xlu0 %1127
        %1129 = vrot.lane.b32.xlu0 %v334, 127
        %v1130 = vpop.permute.xlu0 %1129
        %1131 = vrot.lane.b32.xlu0 %v335, 127
        %v1132 = vpop.permute.xlu0 %1131
        %v1133 = vsel %vm321, %v1124, 0.0
        %v1134 = vsel %vm321, %v1126, 0.0
        %v1135 = vsel %vm321, %v1128, 0.0
        %v1136 = vsel %vm321, %v1130, 0.0
        %v1137 = vsel %vm321, %v1132, 0.0
        %s1138 = sld [smem:[#allocation2 + $0x4]]
        %v1139 = vstv %s1138
        %v1140 = vmul.f32 %v1139, %v1133
        %v1141 = vmul.f32 %v1139, %v1134
        %v1142 = vmul.f32 %v1139, %v1135
        %v1143 = vmul.f32 %v1139, %v1136
        %v1144 = vadd.f32 %v1119, %v1140
        %v1145 = vadd.f32 %v1120, %v1141
        %v1146 = vadd.f32 %v1121, %v1142
        %v1147 = vadd.f32 %v1122, %v1143
        %s1148 = sld [smem:[#allocation2 + $0xb]]
        %v1149 = vstv %s1148
        %v1150 = vmul.f32 %v1149, %v1133
        %v1151 = vmul.f32 %v1149, %v1134
        %v1152 = vmul.f32 %v1149, %v1135
        %v1153 = vmul.f32 %v1149, %v1136
        %v1154 = vmul.f32 %v1149, %v1137
        %v1160 = vrot.slane %v1150, 1
        %v1161 = vrot.slane %v1151, 1
        %v1162 = vsel %vm373, %v1160, %v1161
        %v1163 = vrot.slane %v1152, 1
        %v1164 = vsel %vm373, %v1161, %v1163
        %v1165 = vrot.slane %v1153, 1
        %v1166 = vsel %vm373, %v1163, %v1165
        %v1167 = vrot.slane %v1154, 1
        %v1168 = vsel %vm373, %v1165, %v1167
        %v1173 = vadd.f32 %v1144, %v1162
        %v1174 = vadd.f32 %v1145, %v1164
        %v1175 = vadd.f32 %v1146, %v1166
        %v1176 = vadd.f32 %v1147, %v1168
        %s1177 = sld [smem:[#allocation2 + $0x12]]
        %v1178 = vstv %s1177
        %v1179 = vmul.f32 %v1178, %v1133
        %v1180 = vmul.f32 %v1178, %v1134
        %v1181 = vmul.f32 %v1178, %v1135
        %v1182 = vmul.f32 %v1178, %v1136
        %v1183 = vmul.f32 %v1178, %v1137
        %v1189 = vrot.slane %v1179, 2
        %v1190 = vrot.slane %v1180, 2
        %v1191 = vsel %vm403, %v1189, %v1190
        %v1192 = vrot.slane %v1181, 2
        %v1193 = vsel %vm403, %v1190, %v1192
        %v1194 = vrot.slane %v1182, 2
        %v1195 = vsel %vm403, %v1192, %v1194
        %v1196 = vrot.slane %v1183, 2
        %v1197 = vsel %vm403, %v1194, %v1196
        %v1202 = vadd.f32 %v1173, %v1191
        %v1203 = vadd.f32 %v1174, %v1193
        %v1204 = vadd.f32 %v1175, %v1195
        %v1205 = vadd.f32 %v1176, %v1197
        %s1206 = sld [smem:[#allocation2 + $0x19]]
        %v1207 = vstv %s1206
        %v1208 = vmul.f32 %v1207, %v1133
        %v1209 = vmul.f32 %v1207, %v1134
        %v1210 = vmul.f32 %v1207, %v1135
        %v1211 = vmul.f32 %v1207, %v1136
        %v1212 = vmul.f32 %v1207, %v1137
        %v1218 = vrot.slane %v1208, 3
        %v1219 = vrot.slane %v1209, 3
        %v1220 = vsel %vm433, %v1218, %v1219
        %v1221 = vrot.slane %v1210, 3
        %v1222 = vsel %vm433, %v1219, %v1221
        %v1223 = vrot.slane %v1211, 3
        %v1224 = vsel %vm433, %v1221, %v1223
        %v1225 = vrot.slane %v1212, 3
        %v1226 = vsel %vm433, %v1223, %v1225
        %v1231 = vadd.f32 %v1202, %v1220
        %v1232 = vadd.f32 %v1203, %v1222
        %v1233 = vadd.f32 %v1204, %v1224
        %v1234 = vadd.f32 %v1205, %v1226
        %s1235 = sld [smem:[#allocation2 + $0x20]]
        %v1236 = vstv %s1235
        %v1237 = vmul.f32 %v1236, %v1133
        %v1238 = vmul.f32 %v1236, %v1134
        %v1239 = vmul.f32 %v1236, %v1135
        %v1240 = vmul.f32 %v1236, %v1136
        %v1241 = vmul.f32 %v1236, %v1137
        %v1247 = vrot.slane %v1237, 4
        %v1248 = vrot.slane %v1238, 4
        %v1249 = vsel %vm463, %v1247, %v1248
        %v1250 = vrot.slane %v1239, 4
        %v1251 = vsel %vm463, %v1248, %v1250
        %v1252 = vrot.slane %v1240, 4
        %v1253 = vsel %vm463, %v1250, %v1252
        %v1254 = vrot.slane %v1241, 4
        %v1255 = vsel %vm463, %v1252, %v1254
        %v1260 = vadd.f32 %v1231, %v1249
        %v1261 = vadd.f32 %v1232, %v1251
        %v1262 = vadd.f32 %v1233, %v1253
        %v1263 = vadd.f32 %v1234, %v1255
        %s1264 = sld [smem:[#allocation2 + $0x27]]
        %v1265 = vstv %s1264
        %v1266 = vmul.f32 %v1265, %v1133
        %v1267 = vmul.f32 %v1265, %v1134
        %v1268 = vmul.f32 %v1265, %v1135
        %v1269 = vmul.f32 %v1265, %v1136
        %v1270 = vmul.f32 %v1265, %v1137
        %v1276 = vrot.slane %v1266, 5
        %v1277 = vrot.slane %v1267, 5
        %v1278 = vsel %vm493, %v1276, %v1277
        %v1279 = vrot.slane %v1268, 5
        %v1280 = vsel %vm493, %v1277, %v1279
        %v1281 = vrot.slane %v1269, 5
        %v1282 = vsel %vm493, %v1279, %v1281
        %v1283 = vrot.slane %v1270, 5
        %v1284 = vsel %vm493, %v1281, %v1283
        %v1289 = vadd.f32 %v1260, %v1278
        %v1290 = vadd.f32 %v1261, %v1280
        %v1291 = vadd.f32 %v1262, %v1282
        %v1292 = vadd.f32 %v1263, %v1284
        %s1293 = sld [smem:[#allocation2 + $0x2e]]
        %v1294 = vstv %s1293
        %v1295 = vmul.f32 %v1294, %v1133
        %v1296 = vmul.f32 %v1294, %v1134
        %v1297 = vmul.f32 %v1294, %v1135
        %v1298 = vmul.f32 %v1294, %v1136
        %v1299 = vmul.f32 %v1294, %v1137
        %v1305 = vrot.slane %v1295, 6
        %v1306 = vrot.slane %v1296, 6
        %v1307 = vsel %vm523, %v1305, %v1306
        %v1308 = vrot.slane %v1297, 6
        %v1309 = vsel %vm523, %v1306, %v1308
        %v1310 = vrot.slane %v1298, 6
        %v1311 = vsel %vm523, %v1308, %v1310
        %v1312 = vrot.slane %v1299, 6
        %v1313 = vsel %vm523, %v1310, %v1312
        %v1318 = vadd.f32 %v1289, %v1307
        %v1319 = vadd.f32 %v1290, %v1309
        %v1320 = vadd.f32 %v1291, %v1311
        %v1321 = vadd.f32 %v1292, %v1313
        %1322 = vrot.lane.b32.xlu0 %v331, 126
        %v1323 = vpop.permute.xlu0 %1322
        %1324 = vrot.lane.b32.xlu0 %v332, 126
        %v1325 = vpop.permute.xlu0 %1324
        %1326 = vrot.lane.b32.xlu0 %v333, 126
        %v1327 = vpop.permute.xlu0 %1326
        %1328 = vrot.lane.b32.xlu0 %v334, 126
        %v1329 = vpop.permute.xlu0 %1328
        %1330 = vrot.lane.b32.xlu0 %v335, 126
        %v1331 = vpop.permute.xlu0 %1330
        %v1332 = vsel %vm325, %v1323, 0.0
        %v1333 = vsel %vm325, %v1325, 0.0
        %v1334 = vsel %vm325, %v1327, 0.0
        %v1335 = vsel %vm325, %v1329, 0.0
        %v1336 = vsel %vm325, %v1331, 0.0
        %s1337 = sld [smem:[#allocation2 + $0x5]]
        %v1338 = vstv %s1337
        %v1339 = vmul.f32 %v1338, %v1332
        %v1340 = vmul.f32 %v1338, %v1333
        %v1341 = vmul.f32 %v1338, %v1334
        %v1342 = vmul.f32 %v1338, %v1335
        %v1343 = vadd.f32 %v1318, %v1339
        %v1344 = vadd.f32 %v1319, %v1340
        %v1345 = vadd.f32 %v1320, %v1341
        %v1346 = vadd.f32 %v1321, %v1342
        %s1347 = sld [smem:[#allocation2 + $0xc]]
        %v1348 = vstv %s1347
        %v1349 = vmul.f32 %v1348, %v1332
        %v1350 = vmul.f32 %v1348, %v1333
        %v1351 = vmul.f32 %v1348, %v1334
        %v1352 = vmul.f32 %v1348, %v1335
        %v1353 = vmul.f32 %v1348, %v1336
        %v1359 = vrot.slane %v1349, 1
        %v1360 = vrot.slane %v1350, 1
        %v1361 = vsel %vm373, %v1359, %v1360
        %v1362 = vrot.slane %v1351, 1
        %v1363 = vsel %vm373, %v1360, %v1362
        %v1364 = vrot.slane %v1352, 1
        %v1365 = vsel %vm373, %v1362, %v1364
        %v1366 = vrot.slane %v1353, 1
        %v1367 = vsel %vm373, %v1364, %v1366
        %v1372 = vadd.f32 %v1343, %v1361
        %v1373 = vadd.f32 %v1344, %v1363
        %v1374 = vadd.f32 %v1345, %v1365
        %v1375 = vadd.f32 %v1346, %v1367
        %s1376 = sld [smem:[#allocation2 + $0x13]]
        %v1377 = vstv %s1376
        %v1378 = vmul.f32 %v1377, %v1332
        %v1379 = vmul.f32 %v1377, %v1333
        %v1380 = vmul.f32 %v1377, %v1334
        %v1381 = vmul.f32 %v1377, %v1335
        %v1382 = vmul.f32 %v1377, %v1336
        %v1388 = vrot.slane %v1378, 2
        %v1389 = vrot.slane %v1379, 2
        %v1390 = vsel %vm403, %v1388, %v1389
        %v1391 = vrot.slane %v1380, 2
        %v1392 = vsel %vm403, %v1389, %v1391
        %v1393 = vrot.slane %v1381, 2
        %v1394 = vsel %vm403, %v1391, %v1393
        %v1395 = vrot.slane %v1382, 2
        %v1396 = vsel %vm403, %v1393, %v1395
        %v1401 = vadd.f32 %v1372, %v1390
        %v1402 = vadd.f32 %v1373, %v1392
        %v1403 = vadd.f32 %v1374, %v1394
        %v1404 = vadd.f32 %v1375, %v1396
        %s1405 = sld [smem:[#allocation2 + $0x1a]]
        %v1406 = vstv %s1405
        %v1407 = vmul.f32 %v1406, %v1332
        %v1408 = vmul.f32 %v1406, %v1333
        %v1409 = vmul.f32 %v1406, %v1334
        %v1410 = vmul.f32 %v1406, %v1335
        %v1411 = vmul.f32 %v1406, %v1336
        %v1417 = vrot.slane %v1407, 3
        %v1418 = vrot.slane %v1408, 3
        %v1419 = vsel %vm433, %v1417, %v1418
        %v1420 = vrot.slane %v1409, 3
        %v1421 = vsel %vm433, %v1418, %v1420
        %v1422 = vrot.slane %v1410, 3
        %v1423 = vsel %vm433, %v1420, %v1422
        %v1424 = vrot.slane %v1411, 3
        %v1425 = vsel %vm433, %v1422, %v1424
        %v1430 = vadd.f32 %v1401, %v1419
        %v1431 = vadd.f32 %v1402, %v1421
        %v1432 = vadd.f32 %v1403, %v1423
        %v1433 = vadd.f32 %v1404, %v1425
        %s1434 = sld [smem:[#allocation2 + $0x21]]
        %v1435 = vstv %s1434
        %v1436 = vmul.f32 %v1435, %v1332
        %v1437 = vmul.f32 %v1435, %v1333
        %v1438 = vmul.f32 %v1435, %v1334
        %v1439 = vmul.f32 %v1435, %v1335
        %v1440 = vmul.f32 %v1435, %v1336
        %v1446 = vrot.slane %v1436, 4
        %v1447 = vrot.slane %v1437, 4
        %v1448 = vsel %vm463, %v1446, %v1447
        %v1449 = vrot.slane %v1438, 4
        %v1450 = vsel %vm463, %v1447, %v1449
        %v1451 = vrot.slane %v1439, 4
        %v1452 = vsel %vm463, %v1449, %v1451
        %v1453 = vrot.slane %v1440, 4
        %v1454 = vsel %vm463, %v1451, %v1453
        %v1459 = vadd.f32 %v1430, %v1448
        %v1460 = vadd.f32 %v1431, %v1450
        %v1461 = vadd.f32 %v1432, %v1452
        %v1462 = vadd.f32 %v1433, %v1454
        %s1463 = sld [smem:[#allocation2 + $0x28]]
        %v1464 = vstv %s1463
        %v1465 = vmul.f32 %v1464, %v1332
        %v1466 = vmul.f32 %v1464, %v1333
        %v1467 = vmul.f32 %v1464, %v1334
        %v1468 = vmul.f32 %v1464, %v1335
        %v1469 = vmul.f32 %v1464, %v1336
        %v1475 = vrot.slane %v1465, 5
        %v1476 = vrot.slane %v1466, 5
        %v1477 = vsel %vm493, %v1475, %v1476
        %v1478 = vrot.slane %v1467, 5
        %v1479 = vsel %vm493, %v1476, %v1478
        %v1480 = vrot.slane %v1468, 5
        %v1481 = vsel %vm493, %v1478, %v1480
        %v1482 = vrot.slane %v1469, 5
        %v1483 = vsel %vm493, %v1480, %v1482
        %v1488 = vadd.f32 %v1459, %v1477
        %v1489 = vadd.f32 %v1460, %v1479
        %v1490 = vadd.f32 %v1461, %v1481
        %v1491 = vadd.f32 %v1462, %v1483
        %s1492 = sld [smem:[#allocation2 + $0x2f]]
        %v1493 = vstv %s1492
        %v1494 = vmul.f32 %v1493, %v1332
        %v1495 = vmul.f32 %v1493, %v1333
        %v1496 = vmul.f32 %v1493, %v1334
        %v1497 = vmul.f32 %v1493, %v1335
        %v1498 = vmul.f32 %v1493, %v1336
        %v1504 = vrot.slane %v1494, 6
        %v1505 = vrot.slane %v1495, 6
        %v1506 = vsel %vm523, %v1504, %v1505
        %v1507 = vrot.slane %v1496, 6
        %v1508 = vsel %vm523, %v1505, %v1507
        %v1509 = vrot.slane %v1497, 6
        %v1510 = vsel %vm523, %v1507, %v1509
        %v1511 = vrot.slane %v1498, 6
        %v1512 = vsel %vm523, %v1509, %v1511
        %v1517 = vadd.f32 %v1488, %v1506
        %v1518 = vadd.f32 %v1489, %v1508
        %v1519 = vadd.f32 %v1490, %v1510
        %v1520 = vadd.f32 %v1491, %v1512
        %1521 = vrot.lane.b32.xlu0 %v331, 125
        %v1522 = vpop.permute.xlu0 %1521
        %1523 = vrot.lane.b32.xlu0 %v332, 125
        %v1524 = vpop.permute.xlu0 %1523
        %1525 = vrot.lane.b32.xlu0 %v333, 125
        %v1526 = vpop.permute.xlu0 %1525
        %1527 = vrot.lane.b32.xlu0 %v334, 125
        %v1528 = vpop.permute.xlu0 %1527
        %1529 = vrot.lane.b32.xlu0 %v335, 125
        %v1530 = vpop.permute.xlu0 %1529
        %v1531 = vsel %vm329, %v1522, 0.0
        %v1532 = vsel %vm329, %v1524, 0.0
        %v1533 = vsel %vm329, %v1526, 0.0
        %v1534 = vsel %vm329, %v1528, 0.0
        %v1535 = vsel %vm329, %v1530, 0.0
        %s1536 = sld [smem:[#allocation2 + $0x6]]
        %v1537 = vstv %s1536
        %v1538 = vmul.f32 %v1537, %v1531
        %v1539 = vmul.f32 %v1537, %v1532
        %v1540 = vmul.f32 %v1537, %v1533
        %v1541 = vmul.f32 %v1537, %v1534
        %v1542 = vadd.f32 %v1517, %v1538
        %v1543 = vadd.f32 %v1518, %v1539
        %v1544 = vadd.f32 %v1519, %v1540
        %v1545 = vadd.f32 %v1520, %v1541
        %s1546 = sld [smem:[#allocation2 + $0xd]]
        %v1547 = vstv %s1546
        %v1548 = vmul.f32 %v1547, %v1531
        %v1549 = vmul.f32 %v1547, %v1532
        %v1550 = vmul.f32 %v1547, %v1533
        %v1551 = vmul.f32 %v1547, %v1534
        %v1552 = vmul.f32 %v1547, %v1535
        %v1558 = vrot.slane %v1548, 1
        %v1559 = vrot.slane %v1549, 1
        %v1560 = vsel %vm373, %v1558, %v1559
        %v1561 = vrot.slane %v1550, 1
        %v1562 = vsel %vm373, %v1559, %v1561
        %v1563 = vrot.slane %v1551, 1
        %v1564 = vsel %vm373, %v1561, %v1563
        %v1565 = vrot.slane %v1552, 1
        %v1566 = vsel %vm373, %v1563, %v1565
        %v1571 = vadd.f32 %v1542, %v1560
        %v1572 = vadd.f32 %v1543, %v1562
        %v1573 = vadd.f32 %v1544, %v1564
        %v1574 = vadd.f32 %v1545, %v1566
        %s1575 = sld [smem:[#allocation2 + $0x14]]
        %v1576 = vstv %s1575
        %v1577 = vmul.f32 %v1576, %v1531
        %v1578 = vmul.f32 %v1576, %v1532
        %v1579 = vmul.f32 %v1576, %v1533
        %v1580 = vmul.f32 %v1576, %v1534
        %v1581 = vmul.f32 %v1576, %v1535
        %v1587 = vrot.slane %v1577, 2
        %v1588 = vrot.slane %v1578, 2
        %v1589 = vsel %vm403, %v1587, %v1588
        %v1590 = vrot.slane %v1579, 2
        %v1591 = vsel %vm403, %v1588, %v1590
        %v1592 = vrot.slane %v1580, 2
        %v1593 = vsel %vm403, %v1590, %v1592
        %v1594 = vrot.slane %v1581, 2
        %v1595 = vsel %vm403, %v1592, %v1594
        %v1600 = vadd.f32 %v1571, %v1589
        %v1601 = vadd.f32 %v1572, %v1591
        %v1602 = vadd.f32 %v1573, %v1593
        %v1603 = vadd.f32 %v1574, %v1595
        %s1604 = sld [smem:[#allocation2 + $0x1b]]
        %v1605 = vstv %s1604
        %v1606 = vmul.f32 %v1605, %v1531
        %v1607 = vmul.f32 %v1605, %v1532
        %v1608 = vmul.f32 %v1605, %v1533
        %v1609 = vmul.f32 %v1605, %v1534
        %v1610 = vmul.f32 %v1605, %v1535
        %v1616 = vrot.slane %v1606, 3
        %v1617 = vrot.slane %v1607, 3
        %v1618 = vsel %vm433, %v1616, %v1617
        %v1619 = vrot.slane %v1608, 3
        %v1620 = vsel %vm433, %v1617, %v1619
        %v1621 = vrot.slane %v1609, 3
        %v1622 = vsel %vm433, %v1619, %v1621
        %v1623 = vrot.slane %v1610, 3
        %v1624 = vsel %vm433, %v1621, %v1623
        %v1629 = vadd.f32 %v1600, %v1618
        %v1630 = vadd.f32 %v1601, %v1620
        %v1631 = vadd.f32 %v1602, %v1622
        %v1632 = vadd.f32 %v1603, %v1624
        %s1633 = sld [smem:[#allocation2 + $0x22]]
        %v1634 = vstv %s1633
        %v1635 = vmul.f32 %v1634, %v1531
        %v1636 = vmul.f32 %v1634, %v1532
        %v1637 = vmul.f32 %v1634, %v1533
        %v1638 = vmul.f32 %v1634, %v1534
        %v1639 = vmul.f32 %v1634, %v1535
        %v1645 = vrot.slane %v1635, 4
        %v1646 = vrot.slane %v1636, 4
        %v1647 = vsel %vm463, %v1645, %v1646
        %v1648 = vrot.slane %v1637, 4
        %v1649 = vsel %vm463, %v1646, %v1648
        %v1650 = vrot.slane %v1638, 4
        %v1651 = vsel %vm463, %v1648, %v1650
        %v1652 = vrot.slane %v1639, 4
        %v1653 = vsel %vm463, %v1650, %v1652
        %v1658 = vadd.f32 %v1629, %v1647
        %v1659 = vadd.f32 %v1630, %v1649
        %v1660 = vadd.f32 %v1631, %v1651
        %v1661 = vadd.f32 %v1632, %v1653
        %s1662 = sld [smem:[#allocation2 + $0x29]]
        %v1663 = vstv %s1662
        %v1664 = vmul.f32 %v1663, %v1531
        %v1665 = vmul.f32 %v1663, %v1532
        %v1666 = vmul.f32 %v1663, %v1533
        %v1667 = vmul.f32 %v1663, %v1534
        %v1668 = vmul.f32 %v1663, %v1535
        %v1674 = vrot.slane %v1664, 5
        %v1675 = vrot.slane %v1665, 5
        %v1676 = vsel %vm493, %v1674, %v1675
        %v1677 = vrot.slane %v1666, 5
        %v1678 = vsel %vm493, %v1675, %v1677
        %v1679 = vrot.slane %v1667, 5
        %v1680 = vsel %vm493, %v1677, %v1679
        %v1681 = vrot.slane %v1668, 5
        %v1682 = vsel %vm493, %v1679, %v1681
        %v1687 = vadd.f32 %v1658, %v1676
        %v1688 = vadd.f32 %v1659, %v1678
        %v1689 = vadd.f32 %v1660, %v1680
        %v1690 = vadd.f32 %v1661, %v1682
        %s1691 = sld [smem:[#allocation2 + $0x30]]
        %v1692 = vstv %s1691
        %v1693 = vmul.f32 %v1692, %v1531
        %v1694 = vmul.f32 %v1692, %v1532
        %v1695 = vmul.f32 %v1692, %v1533
        %v1696 = vmul.f32 %v1692, %v1534
        %v1697 = vmul.f32 %v1692, %v1535
        %v1703 = vrot.slane %v1693, 6
        %v1704 = vrot.slane %v1694, 6
        %v1705 = vsel %vm523, %v1703, %v1704
        %v1706 = vrot.slane %v1695, 6
        %v1707 = vsel %vm523, %v1704, %v1706
        %v1708 = vrot.slane %v1696, 6
        %v1709 = vsel %vm523, %v1706, %v1708
        %v1710 = vrot.slane %v1697, 6
        %v1711 = vsel %vm523, %v1708, %v1710
        %v1716 = vadd.f32 %v1687, %v1705
        %v1717 = vadd.f32 %v1688, %v1707
        %v1718 = vadd.f32 %v1689, %v1709
        %v1719 = vadd.f32 %v1690, %v1711
        %s1720 = sadd.s32 %s291, 72
        %s1721 = scalar_lea.vmem %s5, %s1720
        %v1722 = vld [vmem:[%s1721] sm:$0xff]
        %v1723 = vld [vmem:[%s1721 + $0x8] sm:$0xff]
        %v1724 = vld [vmem:[%s1721 + $0x10] sm:$0xff]
        %v1725 = vld [vmem:[%s1721 + $0x18] sm:$0xff]
        %v1726 = vld [vmem:[%s1721 + $0x20] sm:$0xff]
        %1727 = vrot.lane.b32.xlu0 %v1722, 3
        %v1728 = vpop.permute.xlu0 %1727
        %1729 = vrot.lane.b32.xlu0 %v1723, 3
        %v1730 = vpop.permute.xlu0 %1729
        %1731 = vrot.lane.b32.xlu0 %v1724, 3
        %v1732 = vpop.permute.xlu0 %1731
        %1733 = vrot.lane.b32.xlu0 %v1725, 3
        %v1734 = vpop.permute.xlu0 %1733
        %1735 = vrot.lane.b32.xlu0 %v1726, 3
        %v1736 = vpop.permute.xlu0 %1735
        %v1737 = vsel %vm309, %v1728, 0.0
        %v1738 = vsel %vm309, %v1730, 0.0
        %v1739 = vsel %vm309, %v1732, 0.0
        %v1740 = vsel %vm309, %v1734, 0.0
        %v1741 = vsel %vm309, %v1736, 0.0
        %s1742 = sld [smem:[#allocation2 + $0x80]]
        %v1743 = vstv %s1742
        %v1744 = vmul.f32 %v1743, %v1737
        %v1745 = vmul.f32 %v1743, %v1738
        %v1746 = vmul.f32 %v1743, %v1739
        %v1747 = vmul.f32 %v1743, %v1740
        %v1748 = vadd.f32 %v1744, 0.0
        %v1749 = vadd.f32 %v1745, 0.0
        %v1750 = vadd.f32 %v1746, 0.0
        %v1751 = vadd.f32 %v1747, 0.0
        %s1752 = sld [smem:[#allocation2 + $0x87]]
        %v1753 = vstv %s1752
        %v1754 = vmul.f32 %v1753, %v1737
        %v1755 = vmul.f32 %v1753, %v1738
        %v1756 = vmul.f32 %v1753, %v1739
        %v1757 = vmul.f32 %v1753, %v1740
        %v1758 = vmul.f32 %v1753, %v1741
        %v1764 = vrot.slane %v1754, 1
        %v1765 = vrot.slane %v1755, 1
        %v1766 = vsel %vm373, %v1764, %v1765
        %v1767 = vrot.slane %v1756, 1
        %v1768 = vsel %vm373, %v1765, %v1767
        %v1769 = vrot.slane %v1757, 1
        %v1770 = vsel %vm373, %v1767, %v1769
        %v1771 = vrot.slane %v1758, 1
        %v1772 = vsel %vm373, %v1769, %v1771
        %v1777 = vadd.f32 %v1748, %v1766
        %v1778 = vadd.f32 %v1749, %v1768
        %v1779 = vadd.f32 %v1750, %v1770
        %v1780 = vadd.f32 %v1751, %v1772
        %s1781 = sld [smem:[#allocation2 + $0x8e]]
        %v1782 = vstv %s1781
        %v1783 = vmul.f32 %v1782, %v1737
        %v1784 = vmul.f32 %v1782, %v1738
        %v1785 = vmul.f32 %v1782, %v1739
        %v1786 = vmul.f32 %v1782, %v1740
        %v1787 = vmul.f32 %v1782, %v1741
        %v1793 = vrot.slane %v1783, 2
        %v1794 = vrot.slane %v1784, 2
        %v1795 = vsel %vm403, %v1793, %v1794
        %v1796 = vrot.slane %v1785, 2
        %v1797 = vsel %vm403, %v1794, %v1796
        %v1798 = vrot.slane %v1786, 2
        %v1799 = vsel %vm403, %v1796, %v1798
        %v1800 = vrot.slane %v1787, 2
        %v1801 = vsel %vm403, %v1798, %v1800
        %v1806 = vadd.f32 %v1777, %v1795
        %v1807 = vadd.f32 %v1778, %v1797
        %v1808 = vadd.f32 %v1779, %v1799
        %v1809 = vadd.f32 %v1780, %v1801
        %s1810 = sld [smem:[#allocation2 + $0x95]]
        %v1811 = vstv %s1810
        %v1812 = vmul.f32 %v1811, %v1737
        %v1813 = vmul.f32 %v1811, %v1738
        %v1814 = vmul.f32 %v1811, %v1739
        %v1815 = vmul.f32 %v1811, %v1740
        %v1816 = vmul.f32 %v1811, %v1741
        %v1822 = vrot.slane %v1812, 3
        %v1823 = vrot.slane %v1813, 3
        %v1824 = vsel %vm433, %v1822, %v1823
        %v1825 = vrot.slane %v1814, 3
        %v1826 = vsel %vm433, %v1823, %v1825
        %v1827 = vrot.slane %v1815, 3
        %v1828 = vsel %vm433, %v1825, %v1827
        %v1829 = vrot.slane %v1816, 3
        %v1830 = vsel %vm433, %v1827, %v1829
        %v1835 = vadd.f32 %v1806, %v1824
        %v1836 = vadd.f32 %v1807, %v1826
        %v1837 = vadd.f32 %v1808, %v1828
        %v1838 = vadd.f32 %v1809, %v1830
        %s1839 = sld [smem:[#allocation2 + $0x9c]]
        %v1840 = vstv %s1839
        %v1841 = vmul.f32 %v1840, %v1737
        %v1842 = vmul.f32 %v1840, %v1738
        %v1843 = vmul.f32 %v1840, %v1739
        %v1844 = vmul.f32 %v1840, %v1740
        %v1845 = vmul.f32 %v1840, %v1741
        %v1851 = vrot.slane %v1841, 4
        %v1852 = vrot.slane %v1842, 4
        %v1853 = vsel %vm463, %v1851, %v1852
        %v1854 = vrot.slane %v1843, 4
        %v1855 = vsel %vm463, %v1852, %v1854
        %v1856 = vrot.slane %v1844, 4
        %v1857 = vsel %vm463, %v1854, %v1856
        %v1858 = vrot.slane %v1845, 4
        %v1859 = vsel %vm463, %v1856, %v1858
        %v1864 = vadd.f32 %v1835, %v1853
        %v1865 = vadd.f32 %v1836, %v1855
        %v1866 = vadd.f32 %v1837, %v1857
        %v1867 = vadd.f32 %v1838, %v1859
        %s1868 = sld [smem:[#allocation2 + $0xa3]]
        %v1869 = vstv %s1868
        %v1870 = vmul.f32 %v1869, %v1737
        %v1871 = vmul.f32 %v1869, %v1738
        %v1872 = vmul.f32 %v1869, %v1739
        %v1873 = vmul.f32 %v1869, %v1740
        %v1874 = vmul.f32 %v1869, %v1741
        %v1880 = vrot.slane %v1870, 5
        %v1881 = vrot.slane %v1871, 5
        %v1882 = vsel %vm493, %v1880, %v1881
        %v1883 = vrot.slane %v1872, 5
        %v1884 = vsel %vm493, %v1881, %v1883
        %v1885 = vrot.slane %v1873, 5
        %v1886 = vsel %vm493, %v1883, %v1885
        %v1887 = vrot.slane %v1874, 5
        %v1888 = vsel %vm493, %v1885, %v1887
        %v1893 = vadd.f32 %v1864, %v1882
        %v1894 = vadd.f32 %v1865, %v1884
        %v1895 = vadd.f32 %v1866, %v1886
        %v1896 = vadd.f32 %v1867, %v1888
        %s1897 = sld [smem:[#allocation2 + $0xaa]]
        %v1898 = vstv %s1897
        %v1899 = vmul.f32 %v1898, %v1737
        %v1900 = vmul.f32 %v1898, %v1738
        %v1901 = vmul.f32 %v1898, %v1739
        %v1902 = vmul.f32 %v1898, %v1740
        %v1903 = vmul.f32 %v1898, %v1741
        %v1909 = vrot.slane %v1899, 6
        %v1910 = vrot.slane %v1900, 6
        %v1911 = vsel %vm523, %v1909, %v1910
        %v1912 = vrot.slane %v1901, 6
        %v1913 = vsel %vm523, %v1910, %v1912
        %v1914 = vrot.slane %v1902, 6
        %v1915 = vsel %vm523, %v1912, %v1914
        %v1916 = vrot.slane %v1903, 6
        %v1917 = vsel %vm523, %v1914, %v1916
        %v1922 = vadd.f32 %v1893, %v1911
        %v1923 = vadd.f32 %v1894, %v1913
        %v1924 = vadd.f32 %v1895, %v1915
        %v1925 = vadd.f32 %v1896, %v1917
        %1926 = vrot.lane.b32.xlu0 %v1722, 2
        %v1927 = vpop.permute.xlu0 %1926
        %1928 = vrot.lane.b32.xlu0 %v1723, 2
        %v1929 = vpop.permute.xlu0 %1928
        %1930 = vrot.lane.b32.xlu0 %v1724, 2
        %v1931 = vpop.permute.xlu0 %1930
        %1932 = vrot.lane.b32.xlu0 %v1725, 2
        %v1933 = vpop.permute.xlu0 %1932
        %1934 = vrot.lane.b32.xlu0 %v1726, 2
        %v1935 = vpop.permute.xlu0 %1934
        %v1936 = vsel %vm313, %v1927, 0.0
        %v1937 = vsel %vm313, %v1929, 0.0
        %v1938 = vsel %vm313, %v1931, 0.0
        %v1939 = vsel %vm313, %v1933, 0.0
        %v1940 = vsel %vm313, %v1935, 0.0
        %s1941 = sld [smem:[#allocation2 + $0x81]]
        %v1942 = vstv %s1941
        %v1943 = vmul.f32 %v1942, %v1936
        %v1944 = vmul.f32 %v1942, %v1937
        %v1945 = vmul.f32 %v1942, %v1938
        %v1946 = vmul.f32 %v1942, %v1939
        %v1947 = vadd.f32 %v1922, %v1943
        %v1948 = vadd.f32 %v1923, %v1944
        %v1949 = vadd.f32 %v1924, %v1945
        %v1950 = vadd.f32 %v1925, %v1946
        %s1951 = sld [smem:[#allocation2 + $0x88]]
        %v1952 = vstv %s1951
        %v1953 = vmul.f32 %v1952, %v1936
        %v1954 = vmul.f32 %v1952, %v1937
        %v1955 = vmul.f32 %v1952, %v1938
        %v1956 = vmul.f32 %v1952, %v1939
        %v1957 = vmul.f32 %v1952, %v1940
        %v1963 = vrot.slane %v1953, 1
        %v1964 = vrot.slane %v1954, 1
        %v1965 = vsel %vm373, %v1963, %v1964
        %v1966 = vrot.slane %v1955, 1
        %v1967 = vsel %vm373, %v1964, %v1966
        %v1968 = vrot.slane %v1956, 1
        %v1969 = vsel %vm373, %v1966, %v1968
        %v1970 = vrot.slane %v1957, 1
        %v1971 = vsel %vm373, %v1968, %v1970
        %v1976 = vadd.f32 %v1947, %v1965
        %v1977 = vadd.f32 %v1948, %v1967
        %v1978 = vadd.f32 %v1949, %v1969
        %v1979 = vadd.f32 %v1950, %v1971
        %s1980 = sld [smem:[#allocation2 + $0x8f]]
        %v1981 = vstv %s1980
        %v1982 = vmul.f32 %v1981, %v1936
        %v1983 = vmul.f32 %v1981, %v1937
        %v1984 = vmul.f32 %v1981, %v1938
        %v1985 = vmul.f32 %v1981, %v1939
        %v1986 = vmul.f32 %v1981, %v1940
        %v1992 = vrot.slane %v1982, 2
        %v1993 = vrot.slane %v1983, 2
        %v1994 = vsel %vm403, %v1992, %v1993
        %v1995 = vrot.slane %v1984, 2
        %v1996 = vsel %vm403, %v1993, %v1995
        %v1997 = vrot.slane %v1985, 2
        %v1998 = vsel %vm403, %v1995, %v1997
        %v1999 = vrot.slane %v1986, 2
        %v2000 = vsel %vm403, %v1997, %v1999
        %v2005 = vadd.f32 %v1976, %v1994
        %v2006 = vadd.f32 %v1977, %v1996
        %v2007 = vadd.f32 %v1978, %v1998
        %v2008 = vadd.f32 %v1979, %v2000
        %s2009 = sld [smem:[#allocation2 + $0x96]]
        %v2010 = vstv %s2009
        %v2011 = vmul.f32 %v2010, %v1936
        %v2012 = vmul.f32 %v2010, %v1937
        %v2013 = vmul.f32 %v2010, %v1938
        %v2014 = vmul.f32 %v2010, %v1939
        %v2015 = vmul.f32 %v2010, %v1940
        %v2021 = vrot.slane %v2011, 3
        %v2022 = vrot.slane %v2012, 3
        %v2023 = vsel %vm433, %v2021, %v2022
        %v2024 = vrot.slane %v2013, 3
        %v2025 = vsel %vm433, %v2022, %v2024
        %v2026 = vrot.slane %v2014, 3
        %v2027 = vsel %vm433, %v2024, %v2026
        %v2028 = vrot.slane %v2015, 3
        %v2029 = vsel %vm433, %v2026, %v2028
        %v2034 = vadd.f32 %v2005, %v2023
        %v2035 = vadd.f32 %v2006, %v2025
        %v2036 = vadd.f32 %v2007, %v2027
        %v2037 = vadd.f32 %v2008, %v2029
        %s2038 = sld [smem:[#allocation2 + $0x9d]]
        %v2039 = vstv %s2038
        %v2040 = vmul.f32 %v2039, %v1936
        %v2041 = vmul.f32 %v2039, %v1937
        %v2042 = vmul.f32 %v2039, %v1938
        %v2043 = vmul.f32 %v2039, %v1939
        %v2044 = vmul.f32 %v2039, %v1940
        %v2050 = vrot.slane %v2040, 4
        %v2051 = vrot.slane %v2041, 4
        %v2052 = vsel %vm463, %v2050, %v2051
        %v2053 = vrot.slane %v2042, 4
        %v2054 = vsel %vm463, %v2051, %v2053
        %v2055 = vrot.slane %v2043, 4
        %v2056 = vsel %vm463, %v2053, %v2055
        %v2057 = vrot.slane %v2044, 4
        %v2058 = vsel %vm463, %v2055, %v2057
        %v2063 = vadd.f32 %v2034, %v2052
        %v2064 = vadd.f32 %v2035, %v2054
        %v2065 = vadd.f32 %v2036, %v2056
        %v2066 = vadd.f32 %v2037, %v2058
        %s2067 = sld [smem:[#allocation2 + $0xa4]]
        %v2068 = vstv %s2067
        %v2069 = vmul.f32 %v2068, %v1936
        %v2070 = vmul.f32 %v2068, %v1937
        %v2071 = vmul.f32 %v2068, %v1938
        %v2072 = vmul.f32 %v2068, %v1939
        %v2073 = vmul.f32 %v2068, %v1940
        %v2079 = vrot.slane %v2069, 5
        %v2080 = vrot.slane %v2070, 5
        %v2081 = vsel %vm493, %v2079, %v2080
        %v2082 = vrot.slane %v2071, 5
        %v2083 = vsel %vm493, %v2080, %v2082
        %v2084 = vrot.slane %v2072, 5
        %v2085 = vsel %vm493, %v2082, %v2084
        %v2086 = vrot.slane %v2073, 5
        %v2087 = vsel %vm493, %v2084, %v2086
        %v2092 = vadd.f32 %v2063, %v2081
        %v2093 = vadd.f32 %v2064, %v2083
        %v2094 = vadd.f32 %v2065, %v2085
        %v2095 = vadd.f32 %v2066, %v2087
        %s2096 = sld [smem:[#allocation2 + $0xab]]
        %v2097 = vstv %s2096
        %v2098 = vmul.f32 %v2097, %v1936
        %v2099 = vmul.f32 %v2097, %v1937
        %v2100 = vmul.f32 %v2097, %v1938
        %v2101 = vmul.f32 %v2097, %v1939
        %v2102 = vmul.f32 %v2097, %v1940
        %v2108 = vrot.slane %v2098, 6
        %v2109 = vrot.slane %v2099, 6
        %v2110 = vsel %vm523, %v2108, %v2109
        %v2111 = vrot.slane %v2100, 6
        %v2112 = vsel %vm523, %v2109, %v2111
        %v2113 = vrot.slane %v2101, 6
        %v2114 = vsel %vm523, %v2111, %v2113
        %v2115 = vrot.slane %v2102, 6
        %v2116 = vsel %vm523, %v2113, %v2115
        %v2121 = vadd.f32 %v2092, %v2110
        %v2122 = vadd.f32 %v2093, %v2112
        %v2123 = vadd.f32 %v2094, %v2114
        %v2124 = vadd.f32 %v2095, %v2116
        %2125 = vrot.lane.b32.xlu0 %v1722, 1
        %v2126 = vpop.permute.xlu0 %2125
        %2127 = vrot.lane.b32.xlu0 %v1723, 1
        %v2128 = vpop.permute.xlu0 %2127
        %2129 = vrot.lane.b32.xlu0 %v1724, 1
        %v2130 = vpop.permute.xlu0 %2129
        %2131 = vrot.lane.b32.xlu0 %v1725, 1
        %v2132 = vpop.permute.xlu0 %2131
        %2133 = vrot.lane.b32.xlu0 %v1726, 1
        %v2134 = vpop.permute.xlu0 %2133
        %v2135 = vsel %vm317, %v2126, 0.0
        %v2136 = vsel %vm317, %v2128, 0.0
        %v2137 = vsel %vm317, %v2130, 0.0
        %v2138 = vsel %vm317, %v2132, 0.0
        %v2139 = vsel %vm317, %v2134, 0.0
        %s2140 = sld [smem:[#allocation2 + $0x82]]
        %v2141 = vstv %s2140
        %v2142 = vmul.f32 %v2141, %v2135
        %v2143 = vmul.f32 %v2141, %v2136
        %v2144 = vmul.f32 %v2141, %v2137
        %v2145 = vmul.f32 %v2141, %v2138
        %v2146 = vadd.f32 %v2121, %v2142
        %v2147 = vadd.f32 %v2122, %v2143
        %v2148 = vadd.f32 %v2123, %v2144
        %v2149 = vadd.f32 %v2124, %v2145
        %s2150 = sld [smem:[#allocation2 + $0x89]]
        %v2151 = vstv %s2150
        %v2152 = vmul.f32 %v2151, %v2135
        %v2153 = vmul.f32 %v2151, %v2136
        %v2154 = vmul.f32 %v2151, %v2137
        %v2155 = vmul.f32 %v2151, %v2138
        %v2156 = vmul.f32 %v2151, %v2139
        %v2162 = vrot.slane %v2152, 1
        %v2163 = vrot.slane %v2153, 1
        %v2164 = vsel %vm373, %v2162, %v2163
        %v2165 = vrot.slane %v2154, 1
        %v2166 = vsel %vm373, %v2163, %v2165
        %v2167 = vrot.slane %v2155, 1
        %v2168 = vsel %vm373, %v2165, %v2167
        %v2169 = vrot.slane %v2156, 1
        %v2170 = vsel %vm373, %v2167, %v2169
        %v2175 = vadd.f32 %v2146, %v2164
        %v2176 = vadd.f32 %v2147, %v2166
        %v2177 = vadd.f32 %v2148, %v2168
        %v2178 = vadd.f32 %v2149, %v2170
        %s2179 = sld [smem:[#allocation2 + $0x90]]
        %v2180 = vstv %s2179
        %v2181 = vmul.f32 %v2180, %v2135
        %v2182 = vmul.f32 %v2180, %v2136
        %v2183 = vmul.f32 %v2180, %v2137
        %v2184 = vmul.f32 %v2180, %v2138
        %v2185 = vmul.f32 %v2180, %v2139
        %v2191 = vrot.slane %v2181, 2
        %v2192 = vrot.slane %v2182, 2
        %v2193 = vsel %vm403, %v2191, %v2192
        %v2194 = vrot.slane %v2183, 2
        %v2195 = vsel %vm403, %v2192, %v2194
        %v2196 = vrot.slane %v2184, 2
        %v2197 = vsel %vm403, %v2194, %v2196
        %v2198 = vrot.slane %v2185, 2
        %v2199 = vsel %vm403, %v2196, %v2198
        %v2204 = vadd.f32 %v2175, %v2193
        %v2205 = vadd.f32 %v2176, %v2195
        %v2206 = vadd.f32 %v2177, %v2197
        %v2207 = vadd.f32 %v2178, %v2199
        %s2208 = sld [smem:[#allocation2 + $0x97]]
        %v2209 = vstv %s2208
        %v2210 = vmul.f32 %v2209, %v2135
        %v2211 = vmul.f32 %v2209, %v2136
        %v2212 = vmul.f32 %v2209, %v2137
        %v2213 = vmul.f32 %v2209, %v2138
        %v2214 = vmul.f32 %v2209, %v2139
        %v2220 = vrot.slane %v2210, 3
        %v2221 = vrot.slane %v2211, 3
        %v2222 = vsel %vm433, %v2220, %v2221
        %v2223 = vrot.slane %v2212, 3
        %v2224 = vsel %vm433, %v2221, %v2223
        %v2225 = vrot.slane %v2213, 3
        %v2226 = vsel %vm433, %v2223, %v2225
        %v2227 = vrot.slane %v2214, 3
        %v2228 = vsel %vm433, %v2225, %v2227
        %v2233 = vadd.f32 %v2204, %v2222
        %v2234 = vadd.f32 %v2205, %v2224
        %v2235 = vadd.f32 %v2206, %v2226
        %v2236 = vadd.f32 %v2207, %v2228
        %s2237 = sld [smem:[#allocation2 + $0x9e]]
        %v2238 = vstv %s2237
        %v2239 = vmul.f32 %v2238, %v2135
        %v2240 = vmul.f32 %v2238, %v2136
        %v2241 = vmul.f32 %v2238, %v2137
        %v2242 = vmul.f32 %v2238, %v2138
        %v2243 = vmul.f32 %v2238, %v2139
        %v2249 = vrot.slane %v2239, 4
        %v2250 = vrot.slane %v2240, 4
        %v2251 = vsel %vm463, %v2249, %v2250
        %v2252 = vrot.slane %v2241, 4
        %v2253 = vsel %vm463, %v2250, %v2252
        %v2254 = vrot.slane %v2242, 4
        %v2255 = vsel %vm463, %v2252, %v2254
        %v2256 = vrot.slane %v2243, 4
        %v2257 = vsel %vm463, %v2254, %v2256
        %v2262 = vadd.f32 %v2233, %v2251
        %v2263 = vadd.f32 %v2234, %v2253
        %v2264 = vadd.f32 %v2235, %v2255
        %v2265 = vadd.f32 %v2236, %v2257
        %s2266 = sld [smem:[#allocation2 + $0xa5]]
        %v2267 = vstv %s2266
        %v2268 = vmul.f32 %v2267, %v2135
        %v2269 = vmul.f32 %v2267, %v2136
        %v2270 = vmul.f32 %v2267, %v2137
        %v2271 = vmul.f32 %v2267, %v2138
        %v2272 = vmul.f32 %v2267, %v2139
        %v2278 = vrot.slane %v2268, 5
        %v2279 = vrot.slane %v2269, 5
        %v2280 = vsel %vm493, %v2278, %v2279
        %v2281 = vrot.slane %v2270, 5
        %v2282 = vsel %vm493, %v2279, %v2281
        %v2283 = vrot.slane %v2271, 5
        %v2284 = vsel %vm493, %v2281, %v2283
        %v2285 = vrot.slane %v2272, 5
        %v2286 = vsel %vm493, %v2283, %v2285
        %v2291 = vadd.f32 %v2262, %v2280
        %v2292 = vadd.f32 %v2263, %v2282
        %v2293 = vadd.f32 %v2264, %v2284
        %v2294 = vadd.f32 %v2265, %v2286
        %s2295 = sld [smem:[#allocation2 + $0xac]]
        %v2296 = vstv %s2295
        %v2297 = vmul.f32 %v2296, %v2135
        %v2298 = vmul.f32 %v2296, %v2136
        %v2299 = vmul.f32 %v2296, %v2137
        %v2300 = vmul.f32 %v2296, %v2138
        %v2301 = vmul.f32 %v2296, %v2139
        %v2307 = vrot.slane %v2297, 6
        %v2308 = vrot.slane %v2298, 6
        %v2309 = vsel %vm523, %v2307, %v2308
        %v2310 = vrot.slane %v2299, 6
        %v2311 = vsel %vm523, %v2308, %v2310
        %v2312 = vrot.slane %v2300, 6
        %v2313 = vsel %vm523, %v2310, %v2312
        %v2314 = vrot.slane %v2301, 6
        %v2315 = vsel %vm523, %v2312, %v2314
        %v2320 = vadd.f32 %v2291, %v2309
        %v2321 = vadd.f32 %v2292, %v2311
        %v2322 = vadd.f32 %v2293, %v2313
        %v2323 = vadd.f32 %v2294, %v2315
        %s2324 = sld [smem:[#allocation2 + $0x83]]
        %v2325 = vstv %s2324
        %v2326 = vmul.f32 %v2325, %v1722
        %v2327 = vmul.f32 %v2325, %v1723
        %v2328 = vmul.f32 %v2325, %v1724
        %v2329 = vmul.f32 %v2325, %v1725
        %v2330 = vadd.f32 %v2320, %v2326
        %v2331 = vadd.f32 %v2321, %v2327
        %v2332 = vadd.f32 %v2322, %v2328
        %v2333 = vadd.f32 %v2323, %v2329
        %s2334 = sld [smem:[#allocation2 + $0x8a]]
        %v2335 = vstv %s2334
        %v2336 = vmul.f32 %v2335, %v1722
        %v2337 = vmul.f32 %v2335, %v1723
        %v2338 = vmul.f32 %v2335, %v1724
        %v2339 = vmul.f32 %v2335, %v1725
        %v2340 = vmul.f32 %v2335, %v1726
        %v2346 = vrot.slane %v2336, 1
        %v2347 = vrot.slane %v2337, 1
        %v2348 = vsel %vm373, %v2346, %v2347
        %v2349 = vrot.slane %v2338, 1
        %v2350 = vsel %vm373, %v2347, %v2349
        %v2351 = vrot.slane %v2339, 1
        %v2352 = vsel %vm373, %v2349, %v2351
        %v2353 = vrot.slane %v2340, 1
        %v2354 = vsel %vm373, %v2351, %v2353
        %v2359 = vadd.f32 %v2330, %v2348
        %v2360 = vadd.f32 %v2331, %v2350
        %v2361 = vadd.f32 %v2332, %v2352
        %v2362 = vadd.f32 %v2333, %v2354
        %s2363 = sld [smem:[#allocation2 + $0x91]]
        %v2364 = vstv %s2363
        %v2365 = vmul.f32 %v2364, %v1722
        %v2366 = vmul.f32 %v2364, %v1723
        %v2367 = vmul.f32 %v2364, %v1724
        %v2368 = vmul.f32 %v2364, %v1725
        %v2369 = vmul.f32 %v2364, %v1726
        %v2375 = vrot.slane %v2365, 2
        %v2376 = vrot.slane %v2366, 2
        %v2377 = vsel %vm403, %v2375, %v2376
        %v2378 = vrot.slane %v2367, 2
        %v2379 = vsel %vm403, %v2376, %v2378
        %v2380 = vrot.slane %v2368, 2
        %v2381 = vsel %vm403, %v2378, %v2380
        %v2382 = vrot.slane %v2369, 2
        %v2383 = vsel %vm403, %v2380, %v2382
        %v2388 = vadd.f32 %v2359, %v2377
        %v2389 = vadd.f32 %v2360, %v2379
        %v2390 = vadd.f32 %v2361, %v2381
        %v2391 = vadd.f32 %v2362, %v2383
        %s2392 = sld [smem:[#allocation2 + $0x98]]
        %v2393 = vstv %s2392
        %v2394 = vmul.f32 %v2393, %v1722
        %v2395 = vmul.f32 %v2393, %v1723
        %v2396 = vmul.f32 %v2393, %v1724
        %v2397 = vmul.f32 %v2393, %v1725
        %v2398 = vmul.f32 %v2393, %v1726
        %v2404 = vrot.slane %v2394, 3
        %v2405 = vrot.slane %v2395, 3
        %v2406 = vsel %vm433, %v2404, %v2405
        %v2407 = vrot.slane %v2396, 3
        %v2408 = vsel %vm433, %v2405, %v2407
        %v2409 = vrot.slane %v2397, 3
        %v2410 = vsel %vm433, %v2407, %v2409
        %v2411 = vrot.slane %v2398, 3
        %v2412 = vsel %vm433, %v2409, %v2411
        %v2417 = vadd.f32 %v2388, %v2406
        %v2418 = vadd.f32 %v2389, %v2408
        %v2419 = vadd.f32 %v2390, %v2410
        %v2420 = vadd.f32 %v2391, %v2412
        %s2421 = sld [smem:[#allocation2 + $0x9f]]
        %v2422 = vstv %s2421
        %v2423 = vmul.f32 %v2422, %v1722
        %v2424 = vmul.f32 %v2422, %v1723
        %v2425 = vmul.f32 %v2422, %v1724
        %v2426 = vmul.f32 %v2422, %v1725
        %v2427 = vmul.f32 %v2422, %v1726
        %v2433 = vrot.slane %v2423, 4
        %v2434 = vrot.slane %v2424, 4
        %v2435 = vsel %vm463, %v2433, %v2434
        %v2436 = vrot.slane %v2425, 4
        %v2437 = vsel %vm463, %v2434, %v2436
        %v2438 = vrot.slane %v2426, 4
        %v2439 = vsel %vm463, %v2436, %v2438
        %v2440 = vrot.slane %v2427, 4
        %v2441 = vsel %vm463, %v2438, %v2440
        %v2446 = vadd.f32 %v2417, %v2435
        %v2447 = vadd.f32 %v2418, %v2437
        %v2448 = vadd.f32 %v2419, %v2439
        %v2449 = vadd.f32 %v2420, %v2441
        %s2450 = sld [smem:[#allocation2 + $0xa6]]
        %v2451 = vstv %s2450
        %v2452 = vmul.f32 %v2451, %v1722
        %v2453 = vmul.f32 %v2451, %v1723
        %v2454 = vmul.f32 %v2451, %v1724
        %v2455 = vmul.f32 %v2451, %v1725
        %v2456 = vmul.f32 %v2451, %v1726
        %v2462 = vrot.slane %v2452, 5
        %v2463 = vrot.slane %v2453, 5
        %v2464 = vsel %vm493, %v2462, %v2463
        %v2465 = vrot.slane %v2454, 5
        %v2466 = vsel %vm493, %v2463, %v2465
        %v2467 = vrot.slane %v2455, 5
        %v2468 = vsel %vm493, %v2465, %v2467
        %v2469 = vrot.slane %v2456, 5
        %v2470 = vsel %vm493, %v2467, %v2469
        %v2475 = vadd.f32 %v2446, %v2464
        %v2476 = vadd.f32 %v2447, %v2466
        %v2477 = vadd.f32 %v2448, %v2468
        %v2478 = vadd.f32 %v2449, %v2470
        %s2479 = sld [smem:[#allocation2 + $0xad]]
        %v2480 = vstv %s2479
        %v2481 = vmul.f32 %v2480, %v1722
        %v2482 = vmul.f32 %v2480, %v1723
        %v2483 = vmul.f32 %v2480, %v1724
        %v2484 = vmul.f32 %v2480, %v1725
        %v2485 = vmul.f32 %v2480, %v1726
        %v2491 = vrot.slane %v2481, 6
        %v2492 = vrot.slane %v2482, 6
        %v2493 = vsel %vm523, %v2491, %v2492
        %v2494 = vrot.slane %v2483, 6
        %v2495 = vsel %vm523, %v2492, %v2494
        %v2496 = vrot.slane %v2484, 6
        %v2497 = vsel %vm523, %v2494, %v2496
        %v2498 = vrot.slane %v2485, 6
        %v2499 = vsel %vm523, %v2496, %v2498
        %v2504 = vadd.f32 %v2475, %v2493
        %v2505 = vadd.f32 %v2476, %v2495
        %v2506 = vadd.f32 %v2477, %v2497
        %v2507 = vadd.f32 %v2478, %v2499
        %2508 = vrot.lane.b32.xlu0 %v1722, 127
        %v2509 = vpop.permute.xlu0 %2508
        %2510 = vrot.lane.b32.xlu0 %v1723, 127
        %v2511 = vpop.permute.xlu0 %2510
        %2512 = vrot.lane.b32.xlu0 %v1724, 127
        %v2513 = vpop.permute.xlu0 %2512
        %2514 = vrot.lane.b32.xlu0 %v1725, 127
        %v2515 = vpop.permute.xlu0 %2514
        %2516 = vrot.lane.b32.xlu0 %v1726, 127
        %v2517 = vpop.permute.xlu0 %2516
        %v2518 = vsel %vm321, %v2509, 0.0
        %v2519 = vsel %vm321, %v2511, 0.0
        %v2520 = vsel %vm321, %v2513, 0.0
        %v2521 = vsel %vm321, %v2515, 0.0
        %v2522 = vsel %vm321, %v2517, 0.0
        %s2523 = sld [smem:[#allocation2 + $0x84]]
        %v2524 = vstv %s2523
        %v2525 = vmul.f32 %v2524, %v2518
        %v2526 = vmul.f32 %v2524, %v2519
        %v2527 = vmul.f32 %v2524, %v2520
        %v2528 = vmul.f32 %v2524, %v2521
        %v2529 = vadd.f32 %v2504, %v2525
        %v2530 = vadd.f32 %v2505, %v2526
        %v2531 = vadd.f32 %v2506, %v2527
        %v2532 = vadd.f32 %v2507, %v2528
        %s2533 = sld [smem:[#allocation2 + $0x8b]]
        %v2534 = vstv %s2533
        %v2535 = vmul.f32 %v2534, %v2518
        %v2536 = vmul.f32 %v2534, %v2519
        %v2537 = vmul.f32 %v2534, %v2520
        %v2538 = vmul.f32 %v2534, %v2521
        %v2539 = vmul.f32 %v2534, %v2522
        %v2545 = vrot.slane %v2535, 1
        %v2546 = vrot.slane %v2536, 1
        %v2547 = vsel %vm373, %v2545, %v2546
        %v2548 = vrot.slane %v2537, 1
        %v2549 = vsel %vm373, %v2546, %v2548
        %v2550 = vrot.slane %v2538, 1
        %v2551 = vsel %vm373, %v2548, %v2550
        %v2552 = vrot.slane %v2539, 1
        %v2553 = vsel %vm373, %v2550, %v2552
        %v2558 = vadd.f32 %v2529, %v2547
        %v2559 = vadd.f32 %v2530, %v2549
        %v2560 = vadd.f32 %v2531, %v2551
        %v2561 = vadd.f32 %v2532, %v2553
        %s2562 = sld [smem:[#allocation2 + $0x92]]
        %v2563 = vstv %s2562
        %v2564 = vmul.f32 %v2563, %v2518
        %v2565 = vmul.f32 %v2563, %v2519
        %v2566 = vmul.f32 %v2563, %v2520
        %v2567 = vmul.f32 %v2563, %v2521
        %v2568 = vmul.f32 %v2563, %v2522
        %v2574 = vrot.slane %v2564, 2
        %v2575 = vrot.slane %v2565, 2
        %v2576 = vsel %vm403, %v2574, %v2575
        %v2577 = vrot.slane %v2566, 2
        %v2578 = vsel %vm403, %v2575, %v2577
        %v2579 = vrot.slane %v2567, 2
        %v2580 = vsel %vm403, %v2577, %v2579
        %v2581 = vrot.slane %v2568, 2
        %v2582 = vsel %vm403, %v2579, %v2581
        %v2587 = vadd.f32 %v2558, %v2576
        %v2588 = vadd.f32 %v2559, %v2578
        %v2589 = vadd.f32 %v2560, %v2580
        %v2590 = vadd.f32 %v2561, %v2582
        %s2591 = sld [smem:[#allocation2 + $0x99]]
        %v2592 = vstv %s2591
        %v2593 = vmul.f32 %v2592, %v2518
        %v2594 = vmul.f32 %v2592, %v2519
        %v2595 = vmul.f32 %v2592, %v2520
        %v2596 = vmul.f32 %v2592, %v2521
        %v2597 = vmul.f32 %v2592, %v2522
        %v2603 = vrot.slane %v2593, 3
        %v2604 = vrot.slane %v2594, 3
        %v2605 = vsel %vm433, %v2603, %v2604
        %v2606 = vrot.slane %v2595, 3
        %v2607 = vsel %vm433, %v2604, %v2606
        %v2608 = vrot.slane %v2596, 3
        %v2609 = vsel %vm433, %v2606, %v2608
        %v2610 = vrot.slane %v2597, 3
        %v2611 = vsel %vm433, %v2608, %v2610
        %v2616 = vadd.f32 %v2587, %v2605
        %v2617 = vadd.f32 %v2588, %v2607
        %v2618 = vadd.f32 %v2589, %v2609
        %v2619 = vadd.f32 %v2590, %v2611
        %s2620 = sld [smem:[#allocation2 + $0xa0]]
        %v2621 = vstv %s2620
        %v2622 = vmul.f32 %v2621, %v2518
        %v2623 = vmul.f32 %v2621, %v2519
        %v2624 = vmul.f32 %v2621, %v2520
        %v2625 = vmul.f32 %v2621, %v2521
        %v2626 = vmul.f32 %v2621, %v2522
        %v2632 = vrot.slane %v2622, 4
        %v2633 = vrot.slane %v2623, 4
        %v2634 = vsel %vm463, %v2632, %v2633
        %v2635 = vrot.slane %v2624, 4
        %v2636 = vsel %vm463, %v2633, %v2635
        %v2637 = vrot.slane %v2625, 4
        %v2638 = vsel %vm463, %v2635, %v2637
        %v2639 = vrot.slane %v2626, 4
        %v2640 = vsel %vm463, %v2637, %v2639
        %v2645 = vadd.f32 %v2616, %v2634
        %v2646 = vadd.f32 %v2617, %v2636
        %v2647 = vadd.f32 %v2618, %v2638
        %v2648 = vadd.f32 %v2619, %v2640
        %s2649 = sld [smem:[#allocation2 + $0xa7]]
        %v2650 = vstv %s2649
        %v2651 = vmul.f32 %v2650, %v2518
        %v2652 = vmul.f32 %v2650, %v2519
        %v2653 = vmul.f32 %v2650, %v2520
        %v2654 = vmul.f32 %v2650, %v2521
        %v2655 = vmul.f32 %v2650, %v2522
        %v2661 = vrot.slane %v2651, 5
        %v2662 = vrot.slane %v2652, 5
        %v2663 = vsel %vm493, %v2661, %v2662
        %v2664 = vrot.slane %v2653, 5
        %v2665 = vsel %vm493, %v2662, %v2664
        %v2666 = vrot.slane %v2654, 5
        %v2667 = vsel %vm493, %v2664, %v2666
        %v2668 = vrot.slane %v2655, 5
        %v2669 = vsel %vm493, %v2666, %v2668
        %v2674 = vadd.f32 %v2645, %v2663
        %v2675 = vadd.f32 %v2646, %v2665
        %v2676 = vadd.f32 %v2647, %v2667
        %v2677 = vadd.f32 %v2648, %v2669
        %s2678 = sld [smem:[#allocation2 + $0xae]]
        %v2679 = vstv %s2678
        %v2680 = vmul.f32 %v2679, %v2518
        %v2681 = vmul.f32 %v2679, %v2519
        %v2682 = vmul.f32 %v2679, %v2520
        %v2683 = vmul.f32 %v2679, %v2521
        %v2684 = vmul.f32 %v2679, %v2522
        %v2690 = vrot.slane %v2680, 6
        %v2691 = vrot.slane %v2681, 6
        %v2692 = vsel %vm523, %v2690, %v2691
        %v2693 = vrot.slane %v2682, 6
        %v2694 = vsel %vm523, %v2691, %v2693
        %v2695 = vrot.slane %v2683, 6
        %v2696 = vsel %vm523, %v2693, %v2695
        %v2697 = vrot.slane %v2684, 6
        %v2698 = vsel %vm523, %v2695, %v2697
        %v2703 = vadd.f32 %v2674, %v2692
        %v2704 = vadd.f32 %v2675, %v2694
        %v2705 = vadd.f32 %v2676, %v2696
        %v2706 = vadd.f32 %v2677, %v2698
        %2707 = vrot.lane.b32.xlu0 %v1722, 126
        %v2708 = vpop.permute.xlu0 %2707
        %2709 = vrot.lane.b32.xlu0 %v1723, 126
        %v2710 = vpop.permute.xlu0 %2709
        %2711 = vrot.lane.b32.xlu0 %v1724, 126
        %v2712 = vpop.permute.xlu0 %2711
        %2713 = vrot.lane.b32.xlu0 %v1725, 126
        %v2714 = vpop.permute.xlu0 %2713
        %2715 = vrot.lane.b32.xlu0 %v1726, 126
        %v2716 = vpop.permute.xlu0 %2715
        %v2717 = vsel %vm325, %v2708, 0.0
        %v2718 = vsel %vm325, %v2710, 0.0
        %v2719 = vsel %vm325, %v2712, 0.0
        %v2720 = vsel %vm325, %v2714, 0.0
        %v2721 = vsel %vm325, %v2716, 0.0
        %s2722 = sld [smem:[#allocation2 + $0x85]]
        %v2723 = vstv %s2722
        %v2724 = vmul.f32 %v2723, %v2717
        %v2725 = vmul.f32 %v2723, %v2718
        %v2726 = vmul.f32 %v2723, %v2719
        %v2727 = vmul.f32 %v2723, %v2720
        %v2728 = vadd.f32 %v2703, %v2724
        %v2729 = vadd.f32 %v2704, %v2725
        %v2730 = vadd.f32 %v2705, %v2726
        %v2731 = vadd.f32 %v2706, %v2727
        %s2732 = sld [smem:[#allocation2 + $0x8c]]
        %v2733 = vstv %s2732
        %v2734 = vmul.f32 %v2733, %v2717
        %v2735 = vmul.f32 %v2733, %v2718
        %v2736 = vmul.f32 %v2733, %v2719
        %v2737 = vmul.f32 %v2733, %v2720
        %v2738 = vmul.f32 %v2733, %v2721
        %v2744 = vrot.slane %v2734, 1
        %v2745 = vrot.slane %v2735, 1
        %v2746 = vsel %vm373, %v2744, %v2745
        %v2747 = vrot.slane %v2736, 1
        %v2748 = vsel %vm373, %v2745, %v2747
        %v2749 = vrot.slane %v2737, 1
        %v2750 = vsel %vm373, %v2747, %v2749
        %v2751 = vrot.slane %v2738, 1
        %v2752 = vsel %vm373, %v2749, %v2751
        %v2757 = vadd.f32 %v2728, %v2746
        %v2758 = vadd.f32 %v2729, %v2748
        %v2759 = vadd.f32 %v2730, %v2750
        %v2760 = vadd.f32 %v2731, %v2752
        %s2761 = sld [smem:[#allocation2 + $0x93]]
        %v2762 = vstv %s2761
        %v2763 = vmul.f32 %v2762, %v2717
        %v2764 = vmul.f32 %v2762, %v2718
        %v2765 = vmul.f32 %v2762, %v2719
        %v2766 = vmul.f32 %v2762, %v2720
        %v2767 = vmul.f32 %v2762, %v2721
        %v2773 = vrot.slane %v2763, 2
        %v2774 = vrot.slane %v2764, 2
        %v2775 = vsel %vm403, %v2773, %v2774
        %v2776 = vrot.slane %v2765, 2
        %v2777 = vsel %vm403, %v2774, %v2776
        %v2778 = vrot.slane %v2766, 2
        %v2779 = vsel %vm403, %v2776, %v2778
        %v2780 = vrot.slane %v2767, 2
        %v2781 = vsel %vm403, %v2778, %v2780
        %v2786 = vadd.f32 %v2757, %v2775
        %v2787 = vadd.f32 %v2758, %v2777
        %v2788 = vadd.f32 %v2759, %v2779
        %v2789 = vadd.f32 %v2760, %v2781
        %s2790 = sld [smem:[#allocation2 + $0x9a]]
        %v2791 = vstv %s2790
        %v2792 = vmul.f32 %v2791, %v2717
        %v2793 = vmul.f32 %v2791, %v2718
        %v2794 = vmul.f32 %v2791, %v2719
        %v2795 = vmul.f32 %v2791, %v2720
        %v2796 = vmul.f32 %v2791, %v2721
        %v2802 = vrot.slane %v2792, 3
        %v2803 = vrot.slane %v2793, 3
        %v2804 = vsel %vm433, %v2802, %v2803
        %v2805 = vrot.slane %v2794, 3
        %v2806 = vsel %vm433, %v2803, %v2805
        %v2807 = vrot.slane %v2795, 3
        %v2808 = vsel %vm433, %v2805, %v2807
        %v2809 = vrot.slane %v2796, 3
        %v2810 = vsel %vm433, %v2807, %v2809
        %v2815 = vadd.f32 %v2786, %v2804
        %v2816 = vadd.f32 %v2787, %v2806
        %v2817 = vadd.f32 %v2788, %v2808
        %v2818 = vadd.f32 %v2789, %v2810
        %s2819 = sld [smem:[#allocation2 + $0xa1]]
        %v2820 = vstv %s2819
        %v2821 = vmul.f32 %v2820, %v2717
        %v2822 = vmul.f32 %v2820, %v2718
        %v2823 = vmul.f32 %v2820, %v2719
        %v2824 = vmul.f32 %v2820, %v2720
        %v2825 = vmul.f32 %v2820, %v2721
        %v2831 = vrot.slane %v2821, 4
        %v2832 = vrot.slane %v2822, 4
        %v2833 = vsel %vm463, %v2831, %v2832
        %v2834 = vrot.slane %v2823, 4
        %v2835 = vsel %vm463, %v2832, %v2834
        %v2836 = vrot.slane %v2824, 4
        %v2837 = vsel %vm463, %v2834, %v2836
        %v2838 = vrot.slane %v2825, 4
        %v2839 = vsel %vm463, %v2836, %v2838
        %v2844 = vadd.f32 %v2815, %v2833
        %v2845 = vadd.f32 %v2816, %v2835
        %v2846 = vadd.f32 %v2817, %v2837
        %v2847 = vadd.f32 %v2818, %v2839
        %s2848 = sld [smem:[#allocation2 + $0xa8]]
        %v2849 = vstv %s2848
        %v2850 = vmul.f32 %v2849, %v2717
        %v2851 = vmul.f32 %v2849, %v2718
        %v2852 = vmul.f32 %v2849, %v2719
        %v2853 = vmul.f32 %v2849, %v2720
        %v2854 = vmul.f32 %v2849, %v2721
        %v2860 = vrot.slane %v2850, 5
        %v2861 = vrot.slane %v2851, 5
        %v2862 = vsel %vm493, %v2860, %v2861
        %v2863 = vrot.slane %v2852, 5
        %v2864 = vsel %vm493, %v2861, %v2863
        %v2865 = vrot.slane %v2853, 5
        %v2866 = vsel %vm493, %v2863, %v2865
        %v2867 = vrot.slane %v2854, 5
        %v2868 = vsel %vm493, %v2865, %v2867
        %v2873 = vadd.f32 %v2844, %v2862
        %v2874 = vadd.f32 %v2845, %v2864
        %v2875 = vadd.f32 %v2846, %v2866
        %v2876 = vadd.f32 %v2847, %v2868
        %s2877 = sld [smem:[#allocation2 + $0xaf]]
        %v2878 = vstv %s2877
        %v2879 = vmul.f32 %v2878, %v2717
        %v2880 = vmul.f32 %v2878, %v2718
        %v2881 = vmul.f32 %v2878, %v2719
        %v2882 = vmul.f32 %v2878, %v2720
        %v2883 = vmul.f32 %v2878, %v2721
        %v2889 = vrot.slane %v2879, 6
        %v2890 = vrot.slane %v2880, 6
        %v2891 = vsel %vm523, %v2889, %v2890
        %v2892 = vrot.slane %v2881, 6
        %v2893 = vsel %vm523, %v2890, %v2892
        %v2894 = vrot.slane %v2882, 6
        %v2895 = vsel %vm523, %v2892, %v2894
        %v2896 = vrot.slane %v2883, 6
        %v2897 = vsel %vm523, %v2894, %v2896
        %v2902 = vadd.f32 %v2873, %v2891
        %v2903 = vadd.f32 %v2874, %v2893
        %v2904 = vadd.f32 %v2875, %v2895
        %v2905 = vadd.f32 %v2876, %v2897
        %2906 = vrot.lane.b32.xlu0 %v1722, 125
        %v2907 = vpop.permute.xlu0 %2906
        %2908 = vrot.lane.b32.xlu0 %v1723, 125
        %v2909 = vpop.permute.xlu0 %2908
        %2910 = vrot.lane.b32.xlu0 %v1724, 125
        %v2911 = vpop.permute.xlu0 %2910
        %2912 = vrot.lane.b32.xlu0 %v1725, 125
        %v2913 = vpop.permute.xlu0 %2912
        %2914 = vrot.lane.b32.xlu0 %v1726, 125
        %v2915 = vpop.permute.xlu0 %2914
        %v2916 = vsel %vm329, %v2907, 0.0
        %v2917 = vsel %vm329, %v2909, 0.0
        %v2918 = vsel %vm329, %v2911, 0.0
        %v2919 = vsel %vm329, %v2913, 0.0
        %v2920 = vsel %vm329, %v2915, 0.0
        %s2921 = sld [smem:[#allocation2 + $0x86]]
        %v2922 = vstv %s2921
        %v2923 = vmul.f32 %v2922, %v2916
        %v2924 = vmul.f32 %v2922, %v2917
        %v2925 = vmul.f32 %v2922, %v2918
        %v2926 = vmul.f32 %v2922, %v2919
        %v2927 = vadd.f32 %v2902, %v2923
        %v2928 = vadd.f32 %v2903, %v2924
        %v2929 = vadd.f32 %v2904, %v2925
        %v2930 = vadd.f32 %v2905, %v2926
        %s2931 = sld [smem:[#allocation2 + $0x8d]]
        %v2932 = vstv %s2931
        %v2933 = vmul.f32 %v2932, %v2916
        %v2934 = vmul.f32 %v2932, %v2917
        %v2935 = vmul.f32 %v2932, %v2918
        %v2936 = vmul.f32 %v2932, %v2919
        %v2937 = vmul.f32 %v2932, %v2920
        %v2943 = vrot.slane %v2933, 1
        %v2944 = vrot.slane %v2934, 1
        %v2945 = vsel %vm373, %v2943, %v2944
        %v2946 = vrot.slane %v2935, 1
        %v2947 = vsel %vm373, %v2944, %v2946
        %v2948 = vrot.slane %v2936, 1
        %v2949 = vsel %vm373, %v2946, %v2948
        %v2950 = vrot.slane %v2937, 1
        %v2951 = vsel %vm373, %v2948, %v2950
        %v2956 = vadd.f32 %v2927, %v2945
        %v2957 = vadd.f32 %v2928, %v2947
        %v2958 = vadd.f32 %v2929, %v2949
        %v2959 = vadd.f32 %v2930, %v2951
        %s2960 = sld [smem:[#allocation2 + $0x94]]
        %v2961 = vstv %s2960
        %v2962 = vmul.f32 %v2961, %v2916
        %v2963 = vmul.f32 %v2961, %v2917
        %v2964 = vmul.f32 %v2961, %v2918
        %v2965 = vmul.f32 %v2961, %v2919
        %v2966 = vmul.f32 %v2961, %v2920
        %v2972 = vrot.slane %v2962, 2
        %v2973 = vrot.slane %v2963, 2
        %v2974 = vsel %vm403, %v2972, %v2973
        %v2975 = vrot.slane %v2964, 2
        %v2976 = vsel %vm403, %v2973, %v2975
        %v2977 = vrot.slane %v2965, 2
        %v2978 = vsel %vm403, %v2975, %v2977
        %v2979 = vrot.slane %v2966, 2
        %v2980 = vsel %vm403, %v2977, %v2979
        %v2985 = vadd.f32 %v2956, %v2974
        %v2986 = vadd.f32 %v2957, %v2976
        %v2987 = vadd.f32 %v2958, %v2978
        %v2988 = vadd.f32 %v2959, %v2980
        %s2989 = sld [smem:[#allocation2 + $0x9b]]
        %v2990 = vstv %s2989
        %v2991 = vmul.f32 %v2990, %v2916
        %v2992 = vmul.f32 %v2990, %v2917
        %v2993 = vmul.f32 %v2990, %v2918
        %v2994 = vmul.f32 %v2990, %v2919
        %v2995 = vmul.f32 %v2990, %v2920
        %v3001 = vrot.slane %v2991, 3
        %v3002 = vrot.slane %v2992, 3
        %v3003 = vsel %vm433, %v3001, %v3002
        %v3004 = vrot.slane %v2993, 3
        %v3005 = vsel %vm433, %v3002, %v3004
        %v3006 = vrot.slane %v2994, 3
        %v3007 = vsel %vm433, %v3004, %v3006
        %v3008 = vrot.slane %v2995, 3
        %v3009 = vsel %vm433, %v3006, %v3008
        %v3014 = vadd.f32 %v2985, %v3003
        %v3015 = vadd.f32 %v2986, %v3005
        %v3016 = vadd.f32 %v2987, %v3007
        %v3017 = vadd.f32 %v2988, %v3009
        %s3018 = sld [smem:[#allocation2 + $0xa2]]
        %v3019 = vstv %s3018
        %v3020 = vmul.f32 %v3019, %v2916
        %v3021 = vmul.f32 %v3019, %v2917
        %v3022 = vmul.f32 %v3019, %v2918
        %v3023 = vmul.f32 %v3019, %v2919
        %v3024 = vmul.f32 %v3019, %v2920
        %v3030 = vrot.slane %v3020, 4
        %v3031 = vrot.slane %v3021, 4
        %v3032 = vsel %vm463, %v3030, %v3031
        %v3033 = vrot.slane %v3022, 4
        %v3034 = vsel %vm463, %v3031, %v3033
        %v3035 = vrot.slane %v3023, 4
        %v3036 = vsel %vm463, %v3033, %v3035
        %v3037 = vrot.slane %v3024, 4
        %v3038 = vsel %vm463, %v3035, %v3037
        %v3043 = vadd.f32 %v3014, %v3032
        %v3044 = vadd.f32 %v3015, %v3034
        %v3045 = vadd.f32 %v3016, %v3036
        %v3046 = vadd.f32 %v3017, %v3038
        %s3047 = sld [smem:[#allocation2 + $0xa9]]
        %v3048 = vstv %s3047
        %v3049 = vmul.f32 %v3048, %v2916
        %v3050 = vmul.f32 %v3048, %v2917
        %v3051 = vmul.f32 %v3048, %v2918
        %v3052 = vmul.f32 %v3048, %v2919
        %v3053 = vmul.f32 %v3048, %v2920
        %v3059 = vrot.slane %v3049, 5
        %v3060 = vrot.slane %v3050, 5
        %v3061 = vsel %vm493, %v3059, %v3060
        %v3062 = vrot.slane %v3051, 5
        %v3063 = vsel %vm493, %v3060, %v3062
        %v3064 = vrot.slane %v3052, 5
        %v3065 = vsel %vm493, %v3062, %v3064
        %v3066 = vrot.slane %v3053, 5
        %v3067 = vsel %vm493, %v3064, %v3066
        %v3072 = vadd.f32 %v3043, %v3061
        %v3073 = vadd.f32 %v3044, %v3063
        %v3074 = vadd.f32 %v3045, %v3065
        %v3075 = vadd.f32 %v3046, %v3067
        %s3076 = sld [smem:[#allocation2 + $0xb0]]
        %v3077 = vstv %s3076
        %v3078 = vmul.f32 %v3077, %v2916
        %v3079 = vmul.f32 %v3077, %v2917
        %v3080 = vmul.f32 %v3077, %v2918
        %v3081 = vmul.f32 %v3077, %v2919
        %v3082 = vmul.f32 %v3077, %v2920
        %v3088 = vrot.slane %v3078, 6
        %v3089 = vrot.slane %v3079, 6
        %v3090 = vsel %vm523, %v3088, %v3089
        %v3091 = vrot.slane %v3080, 6
        %v3092 = vsel %vm523, %v3089, %v3091
        %v3093 = vrot.slane %v3081, 6
        %v3094 = vsel %vm523, %v3091, %v3093
        %v3095 = vrot.slane %v3082, 6
        %v3096 = vsel %vm523, %v3093, %v3095
        %v3101 = vadd.f32 %v3072, %v3090
        %v3102 = vadd.f32 %v3073, %v3092
        %v3103 = vadd.f32 %v3074, %v3094
        %v3104 = vadd.f32 %v3075, %v3096
        %s3105 = sadd.s32 %s291, 144
        %s3106 = scalar_lea.vmem %s5, %s3105
        %v3107 = vld [vmem:[%s3106] sm:$0xff]
        %v3108 = vld [vmem:[%s3106 + $0x8] sm:$0xff]
        %v3109 = vld [vmem:[%s3106 + $0x10] sm:$0xff]
        %v3110 = vld [vmem:[%s3106 + $0x18] sm:$0xff]
        %v3111 = vld [vmem:[%s3106 + $0x20] sm:$0xff]
        %3112 = vrot.lane.b32.xlu0 %v3107, 3
        %v3113 = vpop.permute.xlu0 %3112
        %3114 = vrot.lane.b32.xlu0 %v3108, 3
        %v3115 = vpop.permute.xlu0 %3114
        %3116 = vrot.lane.b32.xlu0 %v3109, 3
        %v3117 = vpop.permute.xlu0 %3116
        %3118 = vrot.lane.b32.xlu0 %v3110, 3
        %v3119 = vpop.permute.xlu0 %3118
        %3120 = vrot.lane.b32.xlu0 %v3111, 3
        %v3121 = vpop.permute.xlu0 %3120
        %v3122 = vsel %vm309, %v3113, 0.0
        %v3123 = vsel %vm309, %v3115, 0.0
        %v3124 = vsel %vm309, %v3117, 0.0
        %v3125 = vsel %vm309, %v3119, 0.0
        %v3126 = vsel %vm309, %v3121, 0.0
        %s3127 = sld [smem:[#allocation2 + $0x100]]
        %v3128 = vstv %s3127
        %v3129 = vmul.f32 %v3128, %v3122
        %v3130 = vmul.f32 %v3128, %v3123
        %v3131 = vmul.f32 %v3128, %v3124
        %v3132 = vmul.f32 %v3128, %v3125
        %v3133 = vadd.f32 %v3129, 0.0
        %v3134 = vadd.f32 %v3130, 0.0
        %v3135 = vadd.f32 %v3131, 0.0
        %v3136 = vadd.f32 %v3132, 0.0
        %s3137 = sld [smem:[#allocation2 + $0x107]]
        %v3138 = vstv %s3137
        %v3139 = vmul.f32 %v3138, %v3122
        %v3140 = vmul.f32 %v3138, %v3123
        %v3141 = vmul.f32 %v3138, %v3124
        %v3142 = vmul.f32 %v3138, %v3125
        %v3143 = vmul.f32 %v3138, %v3126
        %v3149 = vrot.slane %v3139, 1
        %v3150 = vrot.slane %v3140, 1
        %v3151 = vsel %vm373, %v3149, %v3150
        %v3152 = vrot.slane %v3141, 1
        %v3153 = vsel %vm373, %v3150, %v3152
        %v3154 = vrot.slane %v3142, 1
        %v3155 = vsel %vm373, %v3152, %v3154
        %v3156 = vrot.slane %v3143, 1
        %v3157 = vsel %vm373, %v3154, %v3156
        %v3162 = vadd.f32 %v3133, %v3151
        %v3163 = vadd.f32 %v3134, %v3153
        %v3164 = vadd.f32 %v3135, %v3155
        %v3165 = vadd.f32 %v3136, %v3157
        %s3166 = sld [smem:[#allocation2 + $0x10e]]
        %v3167 = vstv %s3166
        %v3168 = vmul.f32 %v3167, %v3122
        %v3169 = vmul.f32 %v3167, %v3123
        %v3170 = vmul.f32 %v3167, %v3124
        %v3171 = vmul.f32 %v3167, %v3125
        %v3172 = vmul.f32 %v3167, %v3126
        %v3178 = vrot.slane %v3168, 2
        %v3179 = vrot.slane %v3169, 2
        %v3180 = vsel %vm403, %v3178, %v3179
        %v3181 = vrot.slane %v3170, 2
        %v3182 = vsel %vm403, %v3179, %v3181
        %v3183 = vrot.slane %v3171, 2
        %v3184 = vsel %vm403, %v3181, %v3183
        %v3185 = vrot.slane %v3172, 2
        %v3186 = vsel %vm403, %v3183, %v3185
        %v3191 = vadd.f32 %v3162, %v3180
        %v3192 = vadd.f32 %v3163, %v3182
        %v3193 = vadd.f32 %v3164, %v3184
        %v3194 = vadd.f32 %v3165, %v3186
        %s3195 = sld [smem:[#allocation2 + $0x115]]
        %v3196 = vstv %s3195
        %v3197 = vmul.f32 %v3196, %v3122
        %v3198 = vmul.f32 %v3196, %v3123
        %v3199 = vmul.f32 %v3196, %v3124
        %v3200 = vmul.f32 %v3196, %v3125
        %v3201 = vmul.f32 %v3196, %v3126
        %v3207 = vrot.slane %v3197, 3
        %v3208 = vrot.slane %v3198, 3
        %v3209 = vsel %vm433, %v3207, %v3208
        %v3210 = vrot.slane %v3199, 3
        %v3211 = vsel %vm433, %v3208, %v3210
        %v3212 = vrot.slane %v3200, 3
        %v3213 = vsel %vm433, %v3210, %v3212
        %v3214 = vrot.slane %v3201, 3
        %v3215 = vsel %vm433, %v3212, %v3214
        %v3220 = vadd.f32 %v3191, %v3209
        %v3221 = vadd.f32 %v3192, %v3211
        %v3222 = vadd.f32 %v3193, %v3213
        %v3223 = vadd.f32 %v3194, %v3215
        %s3224 = sld [smem:[#allocation2 + $0x11c]]
        %v3225 = vstv %s3224
        %v3226 = vmul.f32 %v3225, %v3122
        %v3227 = vmul.f32 %v3225, %v3123
        %v3228 = vmul.f32 %v3225, %v3124
        %v3229 = vmul.f32 %v3225, %v3125
        %v3230 = vmul.f32 %v3225, %v3126
        %v3236 = vrot.slane %v3226, 4
        %v3237 = vrot.slane %v3227, 4
        %v3238 = vsel %vm463, %v3236, %v3237
        %v3239 = vrot.slane %v3228, 4
        %v3240 = vsel %vm463, %v3237, %v3239
        %v3241 = vrot.slane %v3229, 4
        %v3242 = vsel %vm463, %v3239, %v3241
        %v3243 = vrot.slane %v3230, 4
        %v3244 = vsel %vm463, %v3241, %v3243
        %v3249 = vadd.f32 %v3220, %v3238
        %v3250 = vadd.f32 %v3221, %v3240
        %v3251 = vadd.f32 %v3222, %v3242
        %v3252 = vadd.f32 %v3223, %v3244
        %s3253 = sld [smem:[#allocation2 + $0x123]]
        %v3254 = vstv %s3253
        %v3255 = vmul.f32 %v3254, %v3122
        %v3256 = vmul.f32 %v3254, %v3123
        %v3257 = vmul.f32 %v3254, %v3124
        %v3258 = vmul.f32 %v3254, %v3125
        %v3259 = vmul.f32 %v3254, %v3126
        %v3265 = vrot.slane %v3255, 5
        %v3266 = vrot.slane %v3256, 5
        %v3267 = vsel %vm493, %v3265, %v3266
        %v3268 = vrot.slane %v3257, 5
        %v3269 = vsel %vm493, %v3266, %v3268
        %v3270 = vrot.slane %v3258, 5
        %v3271 = vsel %vm493, %v3268, %v3270
        %v3272 = vrot.slane %v3259, 5
        %v3273 = vsel %vm493, %v3270, %v3272
        %v3278 = vadd.f32 %v3249, %v3267
        %v3279 = vadd.f32 %v3250, %v3269
        %v3280 = vadd.f32 %v3251, %v3271
        %v3281 = vadd.f32 %v3252, %v3273
        %s3282 = sld [smem:[#allocation2 + $0x12a]]
        %v3283 = vstv %s3282
        %v3284 = vmul.f32 %v3283, %v3122
        %v3285 = vmul.f32 %v3283, %v3123
        %v3286 = vmul.f32 %v3283, %v3124
        %v3287 = vmul.f32 %v3283, %v3125
        %v3288 = vmul.f32 %v3283, %v3126
        %v3294 = vrot.slane %v3284, 6
        %v3295 = vrot.slane %v3285, 6
        %v3296 = vsel %vm523, %v3294, %v3295
        %v3297 = vrot.slane %v3286, 6
        %v3298 = vsel %vm523, %v3295, %v3297
        %v3299 = vrot.slane %v3287, 6
        %v3300 = vsel %vm523, %v3297, %v3299
        %v3301 = vrot.slane %v3288, 6
        %v3302 = vsel %vm523, %v3299, %v3301
        %v3307 = vadd.f32 %v3278, %v3296
        %v3308 = vadd.f32 %v3279, %v3298
        %v3309 = vadd.f32 %v3280, %v3300
        %v3310 = vadd.f32 %v3281, %v3302
        %3311 = vrot.lane.b32.xlu0 %v3107, 2
        %v3312 = vpop.permute.xlu0 %3311
        %3313 = vrot.lane.b32.xlu0 %v3108, 2
        %v3314 = vpop.permute.xlu0 %3313
        %3315 = vrot.lane.b32.xlu0 %v3109, 2
        %v3316 = vpop.permute.xlu0 %3315
        %3317 = vrot.lane.b32.xlu0 %v3110, 2
        %v3318 = vpop.permute.xlu0 %3317
        %3319 = vrot.lane.b32.xlu0 %v3111, 2
        %v3320 = vpop.permute.xlu0 %3319
        %v3321 = vsel %vm313, %v3312, 0.0
        %v3322 = vsel %vm313, %v3314, 0.0
        %v3323 = vsel %vm313, %v3316, 0.0
        %v3324 = vsel %vm313, %v3318, 0.0
        %v3325 = vsel %vm313, %v3320, 0.0
        %s3326 = sld [smem:[#allocation2 + $0x101]]
        %v3327 = vstv %s3326
        %v3328 = vmul.f32 %v3327, %v3321
        %v3329 = vmul.f32 %v3327, %v3322
        %v3330 = vmul.f32 %v3327, %v3323
        %v3331 = vmul.f32 %v3327, %v3324
        %v3332 = vadd.f32 %v3307, %v3328
        %v3333 = vadd.f32 %v3308, %v3329
        %v3334 = vadd.f32 %v3309, %v3330
        %v3335 = vadd.f32 %v3310, %v3331
        %s3336 = sld [smem:[#allocation2 + $0x108]]
        %v3337 = vstv %s3336
        %v3338 = vmul.f32 %v3337, %v3321
        %v3339 = vmul.f32 %v3337, %v3322
        %v3340 = vmul.f32 %v3337, %v3323
        %v3341 = vmul.f32 %v3337, %v3324
        %v3342 = vmul.f32 %v3337, %v3325
        %v3348 = vrot.slane %v3338, 1
        %v3349 = vrot.slane %v3339, 1
        %v3350 = vsel %vm373, %v3348, %v3349
        %v3351 = vrot.slane %v3340, 1
        %v3352 = vsel %vm373, %v3349, %v3351
        %v3353 = vrot.slane %v3341, 1
        %v3354 = vsel %vm373, %v3351, %v3353
        %v3355 = vrot.slane %v3342, 1
        %v3356 = vsel %vm373, %v3353, %v3355
        %v3361 = vadd.f32 %v3332, %v3350
        %v3362 = vadd.f32 %v3333, %v3352
        %v3363 = vadd.f32 %v3334, %v3354
        %v3364 = vadd.f32 %v3335, %v3356
        %s3365 = sld [smem:[#allocation2 + $0x10f]]
        %v3366 = vstv %s3365
        %v3367 = vmul.f32 %v3366, %v3321
        %v3368 = vmul.f32 %v3366, %v3322
        %v3369 = vmul.f32 %v3366, %v3323
        %v3370 = vmul.f32 %v3366, %v3324
        %v3371 = vmul.f32 %v3366, %v3325
        %v3377 = vrot.slane %v3367, 2
        %v3378 = vrot.slane %v3368, 2
        %v3379 = vsel %vm403, %v3377, %v3378
        %v3380 = vrot.slane %v3369, 2
        %v3381 = vsel %vm403, %v3378, %v3380
        %v3382 = vrot.slane %v3370, 2
        %v3383 = vsel %vm403, %v3380, %v3382
        %v3384 = vrot.slane %v3371, 2
        %v3385 = vsel %vm403, %v3382, %v3384
        %v3390 = vadd.f32 %v3361, %v3379
        %v3391 = vadd.f32 %v3362, %v3381
        %v3392 = vadd.f32 %v3363, %v3383
        %v3393 = vadd.f32 %v3364, %v3385
        %s3394 = sld [smem:[#allocation2 + $0x116]]
        %v3395 = vstv %s3394
        %v3396 = vmul.f32 %v3395, %v3321
        %v3397 = vmul.f32 %v3395, %v3322
        %v3398 = vmul.f32 %v3395, %v3323
        %v3399 = vmul.f32 %v3395, %v3324
        %v3400 = vmul.f32 %v3395, %v3325
        %v3406 = vrot.slane %v3396, 3
        %v3407 = vrot.slane %v3397, 3
        %v3408 = vsel %vm433, %v3406, %v3407
        %v3409 = vrot.slane %v3398, 3
        %v3410 = vsel %vm433, %v3407, %v3409
        %v3411 = vrot.slane %v3399, 3
        %v3412 = vsel %vm433, %v3409, %v3411
        %v3413 = vrot.slane %v3400, 3
        %v3414 = vsel %vm433, %v3411, %v3413
        %v3419 = vadd.f32 %v3390, %v3408
        %v3420 = vadd.f32 %v3391, %v3410
        %v3421 = vadd.f32 %v3392, %v3412
        %v3422 = vadd.f32 %v3393, %v3414
        %s3423 = sld [smem:[#allocation2 + $0x11d]]
        %v3424 = vstv %s3423
        %v3425 = vmul.f32 %v3424, %v3321
        %v3426 = vmul.f32 %v3424, %v3322
        %v3427 = vmul.f32 %v3424, %v3323
        %v3428 = vmul.f32 %v3424, %v3324
        %v3429 = vmul.f32 %v3424, %v3325
        %v3435 = vrot.slane %v3425, 4
        %v3436 = vrot.slane %v3426, 4
        %v3437 = vsel %vm463, %v3435, %v3436
        %v3438 = vrot.slane %v3427, 4
        %v3439 = vsel %vm463, %v3436, %v3438
        %v3440 = vrot.slane %v3428, 4
        %v3441 = vsel %vm463, %v3438, %v3440
        %v3442 = vrot.slane %v3429, 4
        %v3443 = vsel %vm463, %v3440, %v3442
        %v3448 = vadd.f32 %v3419, %v3437
        %v3449 = vadd.f32 %v3420, %v3439
        %v3450 = vadd.f32 %v3421, %v3441
        %v3451 = vadd.f32 %v3422, %v3443
        %s3452 = sld [smem:[#allocation2 + $0x124]]
        %v3453 = vstv %s3452
        %v3454 = vmul.f32 %v3453, %v3321
        %v3455 = vmul.f32 %v3453, %v3322
        %v3456 = vmul.f32 %v3453, %v3323
        %v3457 = vmul.f32 %v3453, %v3324
        %v3458 = vmul.f32 %v3453, %v3325
        %v3464 = vrot.slane %v3454, 5
        %v3465 = vrot.slane %v3455, 5
        %v3466 = vsel %vm493, %v3464, %v3465
        %v3467 = vrot.slane %v3456, 5
        %v3468 = vsel %vm493, %v3465, %v3467
        %v3469 = vrot.slane %v3457, 5
        %v3470 = vsel %vm493, %v3467, %v3469
        %v3471 = vrot.slane %v3458, 5
        %v3472 = vsel %vm493, %v3469, %v3471
        %v3477 = vadd.f32 %v3448, %v3466
        %v3478 = vadd.f32 %v3449, %v3468
        %v3479 = vadd.f32 %v3450, %v3470
        %v3480 = vadd.f32 %v3451, %v3472
        %s3481 = sld [smem:[#allocation2 + $0x12b]]
        %v3482 = vstv %s3481
        %v3483 = vmul.f32 %v3482, %v3321
        %v3484 = vmul.f32 %v3482, %v3322
        %v3485 = vmul.f32 %v3482, %v3323
        %v3486 = vmul.f32 %v3482, %v3324
        %v3487 = vmul.f32 %v3482, %v3325
        %v3493 = vrot.slane %v3483, 6
        %v3494 = vrot.slane %v3484, 6
        %v3495 = vsel %vm523, %v3493, %v3494
        %v3496 = vrot.slane %v3485, 6
        %v3497 = vsel %vm523, %v3494, %v3496
        %v3498 = vrot.slane %v3486, 6
        %v3499 = vsel %vm523, %v3496, %v3498
        %v3500 = vrot.slane %v3487, 6
        %v3501 = vsel %vm523, %v3498, %v3500
        %v3506 = vadd.f32 %v3477, %v3495
        %v3507 = vadd.f32 %v3478, %v3497
        %v3508 = vadd.f32 %v3479, %v3499
        %v3509 = vadd.f32 %v3480, %v3501
        %3510 = vrot.lane.b32.xlu0 %v3107, 1
        %v3511 = vpop.permute.xlu0 %3510
        %3512 = vrot.lane.b32.xlu0 %v3108, 1
        %v3513 = vpop.permute.xlu0 %3512
        %3514 = vrot.lane.b32.xlu0 %v3109, 1
        %v3515 = vpop.permute.xlu0 %3514
        %3516 = vrot.lane.b32.xlu0 %v3110, 1
        %v3517 = vpop.permute.xlu0 %3516
        %3518 = vrot.lane.b32.xlu0 %v3111, 1
        %v3519 = vpop.permute.xlu0 %3518
        %v3520 = vsel %vm317, %v3511, 0.0
        %v3521 = vsel %vm317, %v3513, 0.0
        %v3522 = vsel %vm317, %v3515, 0.0
        %v3523 = vsel %vm317, %v3517, 0.0
        %v3524 = vsel %vm317, %v3519, 0.0
        %s3525 = sld [smem:[#allocation2 + $0x102]]
        %v3526 = vstv %s3525
        %v3527 = vmul.f32 %v3526, %v3520
        %v3528 = vmul.f32 %v3526, %v3521
        %v3529 = vmul.f32 %v3526, %v3522
        %v3530 = vmul.f32 %v3526, %v3523
        %v3531 = vadd.f32 %v3506, %v3527
        %v3532 = vadd.f32 %v3507, %v3528
        %v3533 = vadd.f32 %v3508, %v3529
        %v3534 = vadd.f32 %v3509, %v3530
        %s3535 = sld [smem:[#allocation2 + $0x109]]
        %v3536 = vstv %s3535
        %v3537 = vmul.f32 %v3536, %v3520
        %v3538 = vmul.f32 %v3536, %v3521
        %v3539 = vmul.f32 %v3536, %v3522
        %v3540 = vmul.f32 %v3536, %v3523
        %v3541 = vmul.f32 %v3536, %v3524
        %v3547 = vrot.slane %v3537, 1
        %v3548 = vrot.slane %v3538, 1
        %v3549 = vsel %vm373, %v3547, %v3548
        %v3550 = vrot.slane %v3539, 1
        %v3551 = vsel %vm373, %v3548, %v3550
        %v3552 = vrot.slane %v3540, 1
        %v3553 = vsel %vm373, %v3550, %v3552
        %v3554 = vrot.slane %v3541, 1
        %v3555 = vsel %vm373, %v3552, %v3554
        %v3560 = vadd.f32 %v3531, %v3549
        %v3561 = vadd.f32 %v3532, %v3551
        %v3562 = vadd.f32 %v3533, %v3553
        %v3563 = vadd.f32 %v3534, %v3555
        %s3564 = sld [smem:[#allocation2 + $0x110]]
        %v3565 = vstv %s3564
        %v3566 = vmul.f32 %v3565, %v3520
        %v3567 = vmul.f32 %v3565, %v3521
        %v3568 = vmul.f32 %v3565, %v3522
        %v3569 = vmul.f32 %v3565, %v3523
        %v3570 = vmul.f32 %v3565, %v3524
        %v3576 = vrot.slane %v3566, 2
        %v3577 = vrot.slane %v3567, 2
        %v3578 = vsel %vm403, %v3576, %v3577
        %v3579 = vrot.slane %v3568, 2
        %v3580 = vsel %vm403, %v3577, %v3579
        %v3581 = vrot.slane %v3569, 2
        %v3582 = vsel %vm403, %v3579, %v3581
        %v3583 = vrot.slane %v3570, 2
        %v3584 = vsel %vm403, %v3581, %v3583
        %v3589 = vadd.f32 %v3560, %v3578
        %v3590 = vadd.f32 %v3561, %v3580
        %v3591 = vadd.f32 %v3562, %v3582
        %v3592 = vadd.f32 %v3563, %v3584
        %s3593 = sld [smem:[#allocation2 + $0x117]]
        %v3594 = vstv %s3593
        %v3595 = vmul.f32 %v3594, %v3520
        %v3596 = vmul.f32 %v3594, %v3521
        %v3597 = vmul.f32 %v3594, %v3522
        %v3598 = vmul.f32 %v3594, %v3523
        %v3599 = vmul.f32 %v3594, %v3524
        %v3605 = vrot.slane %v3595, 3
        %v3606 = vrot.slane %v3596, 3
        %v3607 = vsel %vm433, %v3605, %v3606
        %v3608 = vrot.slane %v3597, 3
        %v3609 = vsel %vm433, %v3606, %v3608
        %v3610 = vrot.slane %v3598, 3
        %v3611 = vsel %vm433, %v3608, %v3610
        %v3612 = vrot.slane %v3599, 3
        %v3613 = vsel %vm433, %v3610, %v3612
        %v3618 = vadd.f32 %v3589, %v3607
        %v3619 = vadd.f32 %v3590, %v3609
        %v3620 = vadd.f32 %v3591, %v3611
        %v3621 = vadd.f32 %v3592, %v3613
        %s3622 = sld [smem:[#allocation2 + $0x11e]]
        %v3623 = vstv %s3622
        %v3624 = vmul.f32 %v3623, %v3520
        %v3625 = vmul.f32 %v3623, %v3521
        %v3626 = vmul.f32 %v3623, %v3522
        %v3627 = vmul.f32 %v3623, %v3523
        %v3628 = vmul.f32 %v3623, %v3524
        %v3634 = vrot.slane %v3624, 4
        %v3635 = vrot.slane %v3625, 4
        %v3636 = vsel %vm463, %v3634, %v3635
        %v3637 = vrot.slane %v3626, 4
        %v3638 = vsel %vm463, %v3635, %v3637
        %v3639 = vrot.slane %v3627, 4
        %v3640 = vsel %vm463, %v3637, %v3639
        %v3641 = vrot.slane %v3628, 4
        %v3642 = vsel %vm463, %v3639, %v3641
        %v3647 = vadd.f32 %v3618, %v3636
        %v3648 = vadd.f32 %v3619, %v3638
        %v3649 = vadd.f32 %v3620, %v3640
        %v3650 = vadd.f32 %v3621, %v3642
        %s3651 = sld [smem:[#allocation2 + $0x125]]
        %v3652 = vstv %s3651
        %v3653 = vmul.f32 %v3652, %v3520
        %v3654 = vmul.f32 %v3652, %v3521
        %v3655 = vmul.f32 %v3652, %v3522
        %v3656 = vmul.f32 %v3652, %v3523
        %v3657 = vmul.f32 %v3652, %v3524
        %v3663 = vrot.slane %v3653, 5
        %v3664 = vrot.slane %v3654, 5
        %v3665 = vsel %vm493, %v3663, %v3664
        %v3666 = vrot.slane %v3655, 5
        %v3667 = vsel %vm493, %v3664, %v3666
        %v3668 = vrot.slane %v3656, 5
        %v3669 = vsel %vm493, %v3666, %v3668
        %v3670 = vrot.slane %v3657, 5
        %v3671 = vsel %vm493, %v3668, %v3670
        %v3676 = vadd.f32 %v3647, %v3665
        %v3677 = vadd.f32 %v3648, %v3667
        %v3678 = vadd.f32 %v3649, %v3669
        %v3679 = vadd.f32 %v3650, %v3671
        %s3680 = sld [smem:[#allocation2 + $0x12c]]
        %v3681 = vstv %s3680
        %v3682 = vmul.f32 %v3681, %v3520
        %v3683 = vmul.f32 %v3681, %v3521
        %v3684 = vmul.f32 %v3681, %v3522
        %v3685 = vmul.f32 %v3681, %v3523
        %v3686 = vmul.f32 %v3681, %v3524
        %v3692 = vrot.slane %v3682, 6
        %v3693 = vrot.slane %v3683, 6
        %v3694 = vsel %vm523, %v3692, %v3693
        %v3695 = vrot.slane %v3684, 6
        %v3696 = vsel %vm523, %v3693, %v3695
        %v3697 = vrot.slane %v3685, 6
        %v3698 = vsel %vm523, %v3695, %v3697
        %v3699 = vrot.slane %v3686, 6
        %v3700 = vsel %vm523, %v3697, %v3699
        %v3705 = vadd.f32 %v3676, %v3694
        %v3706 = vadd.f32 %v3677, %v3696
        %v3707 = vadd.f32 %v3678, %v3698
        %v3708 = vadd.f32 %v3679, %v3700
        %s3709 = sld [smem:[#allocation2 + $0x103]]
        %v3710 = vstv %s3709
        %v3711 = vmul.f32 %v3710, %v3107
        %v3712 = vmul.f32 %v3710, %v3108
        %v3713 = vmul.f32 %v3710, %v3109
        %v3714 = vmul.f32 %v3710, %v3110
        %v3715 = vadd.f32 %v3705, %v3711
        %v3716 = vadd.f32 %v3706, %v3712
        %v3717 = vadd.f32 %v3707, %v3713
        %v3718 = vadd.f32 %v3708, %v3714
        %s3719 = sld [smem:[#allocation2 + $0x10a]]
        %v3720 = vstv %s3719
        %v3721 = vmul.f32 %v3720, %v3107
        %v3722 = vmul.f32 %v3720, %v3108
        %v3723 = vmul.f32 %v3720, %v3109
        %v3724 = vmul.f32 %v3720, %v3110
        %v3725 = vmul.f32 %v3720, %v3111
        %v3731 = vrot.slane %v3721, 1
        %v3732 = vrot.slane %v3722, 1
        %v3733 = vsel %vm373, %v3731, %v3732
        %v3734 = vrot.slane %v3723, 1
        %v3735 = vsel %vm373, %v3732, %v3734
        %v3736 = vrot.slane %v3724, 1
        %v3737 = vsel %vm373, %v3734, %v3736
        %v3738 = vrot.slane %v3725, 1
        %v3739 = vsel %vm373, %v3736, %v3738
        %v3744 = vadd.f32 %v3715, %v3733
        %v3745 = vadd.f32 %v3716, %v3735
        %v3746 = vadd.f32 %v3717, %v3737
        %v3747 = vadd.f32 %v3718, %v3739
        %s3748 = sld [smem:[#allocation2 + $0x111]]
        %v3749 = vstv %s3748
        %v3750 = vmul.f32 %v3749, %v3107
        %v3751 = vmul.f32 %v3749, %v3108
        %v3752 = vmul.f32 %v3749, %v3109
        %v3753 = vmul.f32 %v3749, %v3110
        %v3754 = vmul.f32 %v3749, %v3111
        %v3760 = vrot.slane %v3750, 2
        %v3761 = vrot.slane %v3751, 2
        %v3762 = vsel %vm403, %v3760, %v3761
        %v3763 = vrot.slane %v3752, 2
        %v3764 = vsel %vm403, %v3761, %v3763
        %v3765 = vrot.slane %v3753, 2
        %v3766 = vsel %vm403, %v3763, %v3765
        %v3767 = vrot.slane %v3754, 2
        %v3768 = vsel %vm403, %v3765, %v3767
        %v3773 = vadd.f32 %v3744, %v3762
        %v3774 = vadd.f32 %v3745, %v3764
        %v3775 = vadd.f32 %v3746, %v3766
        %v3776 = vadd.f32 %v3747, %v3768
        %s3777 = sld [smem:[#allocation2 + $0x118]]
        %v3778 = vstv %s3777
        %v3779 = vmul.f32 %v3778, %v3107
        %v3780 = vmul.f32 %v3778, %v3108
        %v3781 = vmul.f32 %v3778, %v3109
        %v3782 = vmul.f32 %v3778, %v3110
        %v3783 = vmul.f32 %v3778, %v3111
        %v3789 = vrot.slane %v3779, 3
        %v3790 = vrot.slane %v3780, 3
        %v3791 = vsel %vm433, %v3789, %v3790
        %v3792 = vrot.slane %v3781, 3
        %v3793 = vsel %vm433, %v3790, %v3792
        %v3794 = vrot.slane %v3782, 3
        %v3795 = vsel %vm433, %v3792, %v3794
        %v3796 = vrot.slane %v3783, 3
        %v3797 = vsel %vm433, %v3794, %v3796
        %v3802 = vadd.f32 %v3773, %v3791
        %v3803 = vadd.f32 %v3774, %v3793
        %v3804 = vadd.f32 %v3775, %v3795
        %v3805 = vadd.f32 %v3776, %v3797
        %s3806 = sld [smem:[#allocation2 + $0x11f]]
        %v3807 = vstv %s3806
        %v3808 = vmul.f32 %v3807, %v3107
        %v3809 = vmul.f32 %v3807, %v3108
        %v3810 = vmul.f32 %v3807, %v3109
        %v3811 = vmul.f32 %v3807, %v3110
        %v3812 = vmul.f32 %v3807, %v3111
        %v3818 = vrot.slane %v3808, 4
        %v3819 = vrot.slane %v3809, 4
        %v3820 = vsel %vm463, %v3818, %v3819
        %v3821 = vrot.slane %v3810, 4
        %v3822 = vsel %vm463, %v3819, %v3821
        %v3823 = vrot.slane %v3811, 4
        %v3824 = vsel %vm463, %v3821, %v3823
        %v3825 = vrot.slane %v3812, 4
        %v3826 = vsel %vm463, %v3823, %v3825
        %v3831 = vadd.f32 %v3802, %v3820
        %v3832 = vadd.f32 %v3803, %v3822
        %v3833 = vadd.f32 %v3804, %v3824
        %v3834 = vadd.f32 %v3805, %v3826
        %s3835 = sld [smem:[#allocation2 + $0x126]]
        %v3836 = vstv %s3835
        %v3837 = vmul.f32 %v3836, %v3107
        %v3838 = vmul.f32 %v3836, %v3108
        %v3839 = vmul.f32 %v3836, %v3109
        %v3840 = vmul.f32 %v3836, %v3110
        %v3841 = vmul.f32 %v3836, %v3111
        %v3847 = vrot.slane %v3837, 5
        %v3848 = vrot.slane %v3838, 5
        %v3849 = vsel %vm493, %v3847, %v3848
        %v3850 = vrot.slane %v3839, 5
        %v3851 = vsel %vm493, %v3848, %v3850
        %v3852 = vrot.slane %v3840, 5
        %v3853 = vsel %vm493, %v3850, %v3852
        %v3854 = vrot.slane %v3841, 5
        %v3855 = vsel %vm493, %v3852, %v3854
        %v3860 = vadd.f32 %v3831, %v3849
        %v3861 = vadd.f32 %v3832, %v3851
        %v3862 = vadd.f32 %v3833, %v3853
        %v3863 = vadd.f32 %v3834, %v3855
        %s3864 = sld [smem:[#allocation2 + $0x12d]]
        %v3865 = vstv %s3864
        %v3866 = vmul.f32 %v3865, %v3107
        %v3867 = vmul.f32 %v3865, %v3108
        %v3868 = vmul.f32 %v3865, %v3109
        %v3869 = vmul.f32 %v3865, %v3110
        %v3870 = vmul.f32 %v3865, %v3111
        %v3876 = vrot.slane %v3866, 6
        %v3877 = vrot.slane %v3867, 6
        %v3878 = vsel %vm523, %v3876, %v3877
        %v3879 = vrot.slane %v3868, 6
        %v3880 = vsel %vm523, %v3877, %v3879
        %v3881 = vrot.slane %v3869, 6
        %v3882 = vsel %vm523, %v3879, %v3881
        %v3883 = vrot.slane %v3870, 6
        %v3884 = vsel %vm523, %v3881, %v3883
        %v3889 = vadd.f32 %v3860, %v3878
        %v3890 = vadd.f32 %v3861, %v3880
        %v3891 = vadd.f32 %v3862, %v3882
        %v3892 = vadd.f32 %v3863, %v3884
        %3893 = vrot.lane.b32.xlu0 %v3107, 127
        %v3894 = vpop.permute.xlu0 %3893
        %3895 = vrot.lane.b32.xlu0 %v3108, 127
        %v3896 = vpop.permute.xlu0 %3895
        %3897 = vrot.lane.b32.xlu0 %v3109, 127
        %v3898 = vpop.permute.xlu0 %3897
        %3899 = vrot.lane.b32.xlu0 %v3110, 127
        %v3900 = vpop.permute.xlu0 %3899
        %3901 = vrot.lane.b32.xlu0 %v3111, 127
        %v3902 = vpop.permute.xlu0 %3901
        %v3903 = vsel %vm321, %v3894, 0.0
        %v3904 = vsel %vm321, %v3896, 0.0
        %v3905 = vsel %vm321, %v3898, 0.0
        %v3906 = vsel %vm321, %v3900, 0.0
        %v3907 = vsel %vm321, %v3902, 0.0
        %s3908 = sld [smem:[#allocation2 + $0x104]]
        %v3909 = vstv %s3908
        %v3910 = vmul.f32 %v3909, %v3903
        %v3911 = vmul.f32 %v3909, %v3904
        %v3912 = vmul.f32 %v3909, %v3905
        %v3913 = vmul.f32 %v3909, %v3906
        %v3914 = vadd.f32 %v3889, %v3910
        %v3915 = vadd.f32 %v3890, %v3911
        %v3916 = vadd.f32 %v3891, %v3912
        %v3917 = vadd.f32 %v3892, %v3913
        %s3918 = sld [smem:[#allocation2 + $0x10b]]
        %v3919 = vstv %s3918
        %v3920 = vmul.f32 %v3919, %v3903
        %v3921 = vmul.f32 %v3919, %v3904
        %v3922 = vmul.f32 %v3919, %v3905
        %v3923 = vmul.f32 %v3919, %v3906
        %v3924 = vmul.f32 %v3919, %v3907
        %v3930 = vrot.slane %v3920, 1
        %v3931 = vrot.slane %v3921, 1
        %v3932 = vsel %vm373, %v3930, %v3931
        %v3933 = vrot.slane %v3922, 1
        %v3934 = vsel %vm373, %v3931, %v3933
        %v3935 = vrot.slane %v3923, 1
        %v3936 = vsel %vm373, %v3933, %v3935
        %v3937 = vrot.slane %v3924, 1
        %v3938 = vsel %vm373, %v3935, %v3937
        %v3943 = vadd.f32 %v3914, %v3932
        %v3944 = vadd.f32 %v3915, %v3934
        %v3945 = vadd.f32 %v3916, %v3936
        %v3946 = vadd.f32 %v3917, %v3938
        %s3947 = sld [smem:[#allocation2 + $0x112]]
        %v3948 = vstv %s3947
        %v3949 = vmul.f32 %v3948, %v3903
        %v3950 = vmul.f32 %v3948, %v3904
        %v3951 = vmul.f32 %v3948, %v3905
        %v3952 = vmul.f32 %v3948, %v3906
        %v3953 = vmul.f32 %v3948, %v3907
        %v3959 = vrot.slane %v3949, 2
        %v3960 = vrot.slane %v3950, 2
        %v3961 = vsel %vm403, %v3959, %v3960
        %v3962 = vrot.slane %v3951, 2
        %v3963 = vsel %vm403, %v3960, %v3962
        %v3964 = vrot.slane %v3952, 2
        %v3965 = vsel %vm403, %v3962, %v3964
        %v3966 = vrot.slane %v3953, 2
        %v3967 = vsel %vm403, %v3964, %v3966
        %v3972 = vadd.f32 %v3943, %v3961
        %v3973 = vadd.f32 %v3944, %v3963
        %v3974 = vadd.f32 %v3945, %v3965
        %v3975 = vadd.f32 %v3946, %v3967
        %s3976 = sld [smem:[#allocation2 + $0x119]]
        %v3977 = vstv %s3976
        %v3978 = vmul.f32 %v3977, %v3903
        %v3979 = vmul.f32 %v3977, %v3904
        %v3980 = vmul.f32 %v3977, %v3905
        %v3981 = vmul.f32 %v3977, %v3906
        %v3982 = vmul.f32 %v3977, %v3907
        %v3988 = vrot.slane %v3978, 3
        %v3989 = vrot.slane %v3979, 3
        %v3990 = vsel %vm433, %v3988, %v3989
        %v3991 = vrot.slane %v3980, 3
        %v3992 = vsel %vm433, %v3989, %v3991
        %v3993 = vrot.slane %v3981, 3
        %v3994 = vsel %vm433, %v3991, %v3993
        %v3995 = vrot.slane %v3982, 3
        %v3996 = vsel %vm433, %v3993, %v3995
        %v4001 = vadd.f32 %v3972, %v3990
        %v4002 = vadd.f32 %v3973, %v3992
        %v4003 = vadd.f32 %v3974, %v3994
        %v4004 = vadd.f32 %v3975, %v3996
        %s4005 = sld [smem:[#allocation2 + $0x120]]
        %v4006 = vstv %s4005
        %v4007 = vmul.f32 %v4006, %v3903
        %v4008 = vmul.f32 %v4006, %v3904
        %v4009 = vmul.f32 %v4006, %v3905
        %v4010 = vmul.f32 %v4006, %v3906
        %v4011 = vmul.f32 %v4006, %v3907
        %v4017 = vrot.slane %v4007, 4
        %v4018 = vrot.slane %v4008, 4
        %v4019 = vsel %vm463, %v4017, %v4018
        %v4020 = vrot.slane %v4009, 4
        %v4021 = vsel %vm463, %v4018, %v4020
        %v4022 = vrot.slane %v4010, 4
        %v4023 = vsel %vm463, %v4020, %v4022
        %v4024 = vrot.slane %v4011, 4
        %v4025 = vsel %vm463, %v4022, %v4024
        %v4030 = vadd.f32 %v4001, %v4019
        %v4031 = vadd.f32 %v4002, %v4021
        %v4032 = vadd.f32 %v4003, %v4023
        %v4033 = vadd.f32 %v4004, %v4025
        %s4034 = sld [smem:[#allocation2 + $0x127]]
        %v4035 = vstv %s4034
        %v4036 = vmul.f32 %v4035, %v3903
        %v4037 = vmul.f32 %v4035, %v3904
        %v4038 = vmul.f32 %v4035, %v3905
        %v4039 = vmul.f32 %v4035, %v3906
        %v4040 = vmul.f32 %v4035, %v3907
        %v4046 = vrot.slane %v4036, 5
        %v4047 = vrot.slane %v4037, 5
        %v4048 = vsel %vm493, %v4046, %v4047
        %v4049 = vrot.slane %v4038, 5
        %v4050 = vsel %vm493, %v4047, %v4049
        %v4051 = vrot.slane %v4039, 5
        %v4052 = vsel %vm493, %v4049, %v4051
        %v4053 = vrot.slane %v4040, 5
        %v4054 = vsel %vm493, %v4051, %v4053
        %v4059 = vadd.f32 %v4030, %v4048
        %v4060 = vadd.f32 %v4031, %v4050
        %v4061 = vadd.f32 %v4032, %v4052
        %v4062 = vadd.f32 %v4033, %v4054
        %s4063 = sld [smem:[#allocation2 + $0x12e]]
        %v4064 = vstv %s4063
        %v4065 = vmul.f32 %v4064, %v3903
        %v4066 = vmul.f32 %v4064, %v3904
        %v4067 = vmul.f32 %v4064, %v3905
        %v4068 = vmul.f32 %v4064, %v3906
        %v4069 = vmul.f32 %v4064, %v3907
        %v4075 = vrot.slane %v4065, 6
        %v4076 = vrot.slane %v4066, 6
        %v4077 = vsel %vm523, %v4075, %v4076
        %v4078 = vrot.slane %v4067, 6
        %v4079 = vsel %vm523, %v4076, %v4078
        %v4080 = vrot.slane %v4068, 6
        %v4081 = vsel %vm523, %v4078, %v4080
        %v4082 = vrot.slane %v4069, 6
        %v4083 = vsel %vm523, %v4080, %v4082
        %v4088 = vadd.f32 %v4059, %v4077
        %v4089 = vadd.f32 %v4060, %v4079
        %v4090 = vadd.f32 %v4061, %v4081
        %v4091 = vadd.f32 %v4062, %v4083
        %4092 = vrot.lane.b32.xlu0 %v3107, 126
        %v4093 = vpop.permute.xlu0 %4092
        %4094 = vrot.lane.b32.xlu0 %v3108, 126
        %v4095 = vpop.permute.xlu0 %4094
        %4096 = vrot.lane.b32.xlu0 %v3109, 126
        %v4097 = vpop.permute.xlu0 %4096
        %4098 = vrot.lane.b32.xlu0 %v3110, 126
        %v4099 = vpop.permute.xlu0 %4098
        %4100 = vrot.lane.b32.xlu0 %v3111, 126
        %v4101 = vpop.permute.xlu0 %4100
        %v4102 = vsel %vm325, %v4093, 0.0
        %v4103 = vsel %vm325, %v4095, 0.0
        %v4104 = vsel %vm325, %v4097, 0.0
        %v4105 = vsel %vm325, %v4099, 0.0
        %v4106 = vsel %vm325, %v4101, 0.0
        %s4107 = sld [smem:[#allocation2 + $0x105]]
        %v4108 = vstv %s4107
        %v4109 = vmul.f32 %v4108, %v4102
        %v4110 = vmul.f32 %v4108, %v4103
        %v4111 = vmul.f32 %v4108, %v4104
        %v4112 = vmul.f32 %v4108, %v4105
        %v4113 = vadd.f32 %v4088, %v4109
        %v4114 = vadd.f32 %v4089, %v4110
        %v4115 = vadd.f32 %v4090, %v4111
        %v4116 = vadd.f32 %v4091, %v4112
        %s4117 = sld [smem:[#allocation2 + $0x10c]]
        %v4118 = vstv %s4117
        %v4119 = vmul.f32 %v4118, %v4102
        %v4120 = vmul.f32 %v4118, %v4103
        %v4121 = vmul.f32 %v4118, %v4104
        %v4122 = vmul.f32 %v4118, %v4105
        %v4123 = vmul.f32 %v4118, %v4106
        %v4129 = vrot.slane %v4119, 1
        %v4130 = vrot.slane %v4120, 1
        %v4131 = vsel %vm373, %v4129, %v4130
        %v4132 = vrot.slane %v4121, 1
        %v4133 = vsel %vm373, %v4130, %v4132
        %v4134 = vrot.slane %v4122, 1
        %v4135 = vsel %vm373, %v4132, %v4134
        %v4136 = vrot.slane %v4123, 1
        %v4137 = vsel %vm373, %v4134, %v4136
        %v4142 = vadd.f32 %v4113, %v4131
        %v4143 = vadd.f32 %v4114, %v4133
        %v4144 = vadd.f32 %v4115, %v4135
        %v4145 = vadd.f32 %v4116, %v4137
        %s4146 = sld [smem:[#allocation2 + $0x113]]
        %v4147 = vstv %s4146
        %v4148 = vmul.f32 %v4147, %v4102
        %v4149 = vmul.f32 %v4147, %v4103
        %v4150 = vmul.f32 %v4147, %v4104
        %v4151 = vmul.f32 %v4147, %v4105
        %v4152 = vmul.f32 %v4147, %v4106
        %v4158 = vrot.slane %v4148, 2
        %v4159 = vrot.slane %v4149, 2
        %v4160 = vsel %vm403, %v4158, %v4159
        %v4161 = vrot.slane %v4150, 2
        %v4162 = vsel %vm403, %v4159, %v4161
        %v4163 = vrot.slane %v4151, 2
        %v4164 = vsel %vm403, %v4161, %v4163
        %v4165 = vrot.slane %v4152, 2
        %v4166 = vsel %vm403, %v4163, %v4165
        %v4171 = vadd.f32 %v4142, %v4160
        %v4172 = vadd.f32 %v4143, %v4162
        %v4173 = vadd.f32 %v4144, %v4164
        %v4174 = vadd.f32 %v4145, %v4166
        %s4175 = sld [smem:[#allocation2 + $0x11a]]
        %v4176 = vstv %s4175
        %v4177 = vmul.f32 %v4176, %v4102
        %v4178 = vmul.f32 %v4176, %v4103
        %v4179 = vmul.f32 %v4176, %v4104
        %v4180 = vmul.f32 %v4176, %v4105
        %v4181 = vmul.f32 %v4176, %v4106
        %v4187 = vrot.slane %v4177, 3
        %v4188 = vrot.slane %v4178, 3
        %v4189 = vsel %vm433, %v4187, %v4188
        %v4190 = vrot.slane %v4179, 3
        %v4191 = vsel %vm433, %v4188, %v4190
        %v4192 = vrot.slane %v4180, 3
        %v4193 = vsel %vm433, %v4190, %v4192
        %v4194 = vrot.slane %v4181, 3
        %v4195 = vsel %vm433, %v4192, %v4194
        %v4200 = vadd.f32 %v4171, %v4189
        %v4201 = vadd.f32 %v4172, %v4191
        %v4202 = vadd.f32 %v4173, %v4193
        %v4203 = vadd.f32 %v4174, %v4195
        %s4204 = sld [smem:[#allocation2 + $0x121]]
        %v4205 = vstv %s4204
        %v4206 = vmul.f32 %v4205, %v4102
        %v4207 = vmul.f32 %v4205, %v4103
        %v4208 = vmul.f32 %v4205, %v4104
        %v4209 = vmul.f32 %v4205, %v4105
        %v4210 = vmul.f32 %v4205, %v4106
        %v4216 = vrot.slane %v4206, 4
        %v4217 = vrot.slane %v4207, 4
        %v4218 = vsel %vm463, %v4216, %v4217
        %v4219 = vrot.slane %v4208, 4
        %v4220 = vsel %vm463, %v4217, %v4219
        %v4221 = vrot.slane %v4209, 4
        %v4222 = vsel %vm463, %v4219, %v4221
        %v4223 = vrot.slane %v4210, 4
        %v4224 = vsel %vm463, %v4221, %v4223
        %v4229 = vadd.f32 %v4200, %v4218
        %v4230 = vadd.f32 %v4201, %v4220
        %v4231 = vadd.f32 %v4202, %v4222
        %v4232 = vadd.f32 %v4203, %v4224
        %s4233 = sld [smem:[#allocation2 + $0x128]]
        %v4234 = vstv %s4233
        %v4235 = vmul.f32 %v4234, %v4102
        %v4236 = vmul.f32 %v4234, %v4103
        %v4237 = vmul.f32 %v4234, %v4104
        %v4238 = vmul.f32 %v4234, %v4105
        %v4239 = vmul.f32 %v4234, %v4106
        %v4245 = vrot.slane %v4235, 5
        %v4246 = vrot.slane %v4236, 5
        %v4247 = vsel %vm493, %v4245, %v4246
        %v4248 = vrot.slane %v4237, 5
        %v4249 = vsel %vm493, %v4246, %v4248
        %v4250 = vrot.slane %v4238, 5
        %v4251 = vsel %vm493, %v4248, %v4250
        %v4252 = vrot.slane %v4239, 5
        %v4253 = vsel %vm493, %v4250, %v4252
        %v4258 = vadd.f32 %v4229, %v4247
        %v4259 = vadd.f32 %v4230, %v4249
        %v4260 = vadd.f32 %v4231, %v4251
        %v4261 = vadd.f32 %v4232, %v4253
        %s4262 = sld [smem:[#allocation2 + $0x12f]]
        %v4263 = vstv %s4262
        %v4264 = vmul.f32 %v4263, %v4102
        %v4265 = vmul.f32 %v4263, %v4103
        %v4266 = vmul.f32 %v4263, %v4104
        %v4267 = vmul.f32 %v4263, %v4105
        %v4268 = vmul.f32 %v4263, %v4106
        %v4274 = vrot.slane %v4264, 6
        %v4275 = vrot.slane %v4265, 6
        %v4276 = vsel %vm523, %v4274, %v4275
        %v4277 = vrot.slane %v4266, 6
        %v4278 = vsel %vm523, %v4275, %v4277
        %v4279 = vrot.slane %v4267, 6
        %v4280 = vsel %vm523, %v4277, %v4279
        %v4281 = vrot.slane %v4268, 6
        %v4282 = vsel %vm523, %v4279, %v4281
        %v4287 = vadd.f32 %v4258, %v4276
        %v4288 = vadd.f32 %v4259, %v4278
        %v4289 = vadd.f32 %v4260, %v4280
        %v4290 = vadd.f32 %v4261, %v4282
        %4291 = vrot.lane.b32.xlu0 %v3107, 125
        %v4292 = vpop.permute.xlu0 %4291
        %4293 = vrot.lane.b32.xlu0 %v3108, 125
        %v4294 = vpop.permute.xlu0 %4293
        %4295 = vrot.lane.b32.xlu0 %v3109, 125
        %v4296 = vpop.permute.xlu0 %4295
        %4297 = vrot.lane.b32.xlu0 %v3110, 125
        %v4298 = vpop.permute.xlu0 %4297
        %4299 = vrot.lane.b32.xlu0 %v3111, 125
        %v4300 = vpop.permute.xlu0 %4299
        %v4301 = vsel %vm329, %v4292, 0.0
        %v4302 = vsel %vm329, %v4294, 0.0
        %v4303 = vsel %vm329, %v4296, 0.0
        %v4304 = vsel %vm329, %v4298, 0.0
        %v4305 = vsel %vm329, %v4300, 0.0
        %s4306 = sld [smem:[#allocation2 + $0x106]]
        %v4307 = vstv %s4306
        %v4308 = vmul.f32 %v4307, %v4301
        %v4309 = vmul.f32 %v4307, %v4302
        %v4310 = vmul.f32 %v4307, %v4303
        %v4311 = vmul.f32 %v4307, %v4304
        %v4312 = vadd.f32 %v4287, %v4308
        %v4313 = vadd.f32 %v4288, %v4309
        %v4314 = vadd.f32 %v4289, %v4310
        %v4315 = vadd.f32 %v4290, %v4311
        %s4316 = sld [smem:[#allocation2 + $0x10d]]
        %v4317 = vstv %s4316
        %v4318 = vmul.f32 %v4317, %v4301
        %v4319 = vmul.f32 %v4317, %v4302
        %v4320 = vmul.f32 %v4317, %v4303
        %v4321 = vmul.f32 %v4317, %v4304
        %v4322 = vmul.f32 %v4317, %v4305
        %v4328 = vrot.slane %v4318, 1
        %v4329 = vrot.slane %v4319, 1
        %v4330 = vsel %vm373, %v4328, %v4329
        %v4331 = vrot.slane %v4320, 1
        %v4332 = vsel %vm373, %v4329, %v4331
        %v4333 = vrot.slane %v4321, 1
        %v4334 = vsel %vm373, %v4331, %v4333
        %v4335 = vrot.slane %v4322, 1
        %v4336 = vsel %vm373, %v4333, %v4335
        %v4341 = vadd.f32 %v4312, %v4330
        %v4342 = vadd.f32 %v4313, %v4332
        %v4343 = vadd.f32 %v4314, %v4334
        %v4344 = vadd.f32 %v4315, %v4336
        %s4345 = sld [smem:[#allocation2 + $0x114]]
        %v4346 = vstv %s4345
        %v4347 = vmul.f32 %v4346, %v4301
        %v4348 = vmul.f32 %v4346, %v4302
        %v4349 = vmul.f32 %v4346, %v4303
        %v4350 = vmul.f32 %v4346, %v4304
        %v4351 = vmul.f32 %v4346, %v4305
        %v4357 = vrot.slane %v4347, 2
        %v4358 = vrot.slane %v4348, 2
        %v4359 = vsel %vm403, %v4357, %v4358
        %v4360 = vrot.slane %v4349, 2
        %v4361 = vsel %vm403, %v4358, %v4360
        %v4362 = vrot.slane %v4350, 2
        %v4363 = vsel %vm403, %v4360, %v4362
        %v4364 = vrot.slane %v4351, 2
        %v4365 = vsel %vm403, %v4362, %v4364
        %v4370 = vadd.f32 %v4341, %v4359
        %v4371 = vadd.f32 %v4342, %v4361
        %v4372 = vadd.f32 %v4343, %v4363
        %v4373 = vadd.f32 %v4344, %v4365
        %s4374 = sld [smem:[#allocation2 + $0x11b]]
        %v4375 = vstv %s4374
        %v4376 = vmul.f32 %v4375, %v4301
        %v4377 = vmul.f32 %v4375, %v4302
        %v4378 = vmul.f32 %v4375, %v4303
        %v4379 = vmul.f32 %v4375, %v4304
        %v4380 = vmul.f32 %v4375, %v4305
        %v4386 = vrot.slane %v4376, 3
        %v4387 = vrot.slane %v4377, 3
        %v4388 = vsel %vm433, %v4386, %v4387
        %v4389 = vrot.slane %v4378, 3
        %v4390 = vsel %vm433, %v4387, %v4389
        %v4391 = vrot.slane %v4379, 3
        %v4392 = vsel %vm433, %v4389, %v4391
        %v4393 = vrot.slane %v4380, 3
        %v4394 = vsel %vm433, %v4391, %v4393
        %v4399 = vadd.f32 %v4370, %v4388
        %v4400 = vadd.f32 %v4371, %v4390
        %v4401 = vadd.f32 %v4372, %v4392
        %v4402 = vadd.f32 %v4373, %v4394
        %s4403 = sld [smem:[#allocation2 + $0x122]]
        %v4404 = vstv %s4403
        %v4405 = vmul.f32 %v4404, %v4301
        %v4406 = vmul.f32 %v4404, %v4302
        %v4407 = vmul.f32 %v4404, %v4303
        %v4408 = vmul.f32 %v4404, %v4304
        %v4409 = vmul.f32 %v4404, %v4305
        %v4415 = vrot.slane %v4405, 4
        %v4416 = vrot.slane %v4406, 4
        %v4417 = vsel %vm463, %v4415, %v4416
        %v4418 = vrot.slane %v4407, 4
        %v4419 = vsel %vm463, %v4416, %v4418
        %v4420 = vrot.slane %v4408, 4
        %v4421 = vsel %vm463, %v4418, %v4420
        %v4422 = vrot.slane %v4409, 4
        %v4423 = vsel %vm463, %v4420, %v4422
        %v4428 = vadd.f32 %v4399, %v4417
        %v4429 = vadd.f32 %v4400, %v4419
        %v4430 = vadd.f32 %v4401, %v4421
        %v4431 = vadd.f32 %v4402, %v4423
        %s4432 = sld [smem:[#allocation2 + $0x129]]
        %v4433 = vstv %s4432
        %v4434 = vmul.f32 %v4433, %v4301
        %v4435 = vmul.f32 %v4433, %v4302
        %v4436 = vmul.f32 %v4433, %v4303
        %v4437 = vmul.f32 %v4433, %v4304
        %v4438 = vmul.f32 %v4433, %v4305
        %v4444 = vrot.slane %v4434, 5
        %v4445 = vrot.slane %v4435, 5
        %v4446 = vsel %vm493, %v4444, %v4445
        %v4447 = vrot.slane %v4436, 5
        %v4448 = vsel %vm493, %v4445, %v4447
        %v4449 = vrot.slane %v4437, 5
        %v4450 = vsel %vm493, %v4447, %v4449
        %v4451 = vrot.slane %v4438, 5
        %v4452 = vsel %vm493, %v4449, %v4451
        %v4457 = vadd.f32 %v4428, %v4446
        %v4458 = vadd.f32 %v4429, %v4448
        %v4459 = vadd.f32 %v4430, %v4450
        %v4460 = vadd.f32 %v4431, %v4452
        %s4461 = sld [smem:[#allocation2 + $0x130]]
        %v4462 = vstv %s4461
        %v4463 = vmul.f32 %v4462, %v4301
        %v4464 = vmul.f32 %v4462, %v4302
        %v4465 = vmul.f32 %v4462, %v4303
        %v4466 = vmul.f32 %v4462, %v4304
        %v4467 = vmul.f32 %v4462, %v4305
        %v4473 = vrot.slane %v4463, 6
        %v4474 = vrot.slane %v4464, 6
        %v4475 = vsel %vm523, %v4473, %v4474
        %v4476 = vrot.slane %v4465, 6
        %v4477 = vsel %vm523, %v4474, %v4476
        %v4478 = vrot.slane %v4466, 6
        %v4479 = vsel %vm523, %v4476, %v4478
        %v4480 = vrot.slane %v4467, 6
        %v4481 = vsel %vm523, %v4478, %v4480
        %v4486 = vadd.f32 %v4457, %v4475
        %v4487 = vadd.f32 %v4458, %v4477
        %v4488 = vadd.f32 %v4459, %v4479
        %v4489 = vadd.f32 %v4460, %v4481
        %s4490 = sadd.s32 %s291, 216
        %s4491 = scalar_lea.vmem %s5, %s4490
        %v4492 = vld [vmem:[%s4491] sm:$0xff]
        %v4493 = vld [vmem:[%s4491 + $0x8] sm:$0xff]
        %v4494 = vld [vmem:[%s4491 + $0x10] sm:$0xff]
        %v4495 = vld [vmem:[%s4491 + $0x18] sm:$0xff]
        %v4496 = vld [vmem:[%s4491 + $0x20] sm:$0xff]
        %4497 = vrot.lane.b32.xlu0 %v4492, 3
        %v4498 = vpop.permute.xlu0 %4497
        %4499 = vrot.lane.b32.xlu0 %v4493, 3
        %v4500 = vpop.permute.xlu0 %4499
        %4501 = vrot.lane.b32.xlu0 %v4494, 3
        %v4502 = vpop.permute.xlu0 %4501
        %4503 = vrot.lane.b32.xlu0 %v4495, 3
        %v4504 = vpop.permute.xlu0 %4503
        %4505 = vrot.lane.b32.xlu0 %v4496, 3
        %v4506 = vpop.permute.xlu0 %4505
        %v4507 = vsel %vm309, %v4498, 0.0
        %v4508 = vsel %vm309, %v4500, 0.0
        %v4509 = vsel %vm309, %v4502, 0.0
        %v4510 = vsel %vm309, %v4504, 0.0
        %v4511 = vsel %vm309, %v4506, 0.0
        %s4512 = sld [smem:[#allocation2 + $0x180]]
        %v4513 = vstv %s4512
        %v4514 = vmul.f32 %v4513, %v4507
        %v4515 = vmul.f32 %v4513, %v4508
        %v4516 = vmul.f32 %v4513, %v4509
        %v4517 = vmul.f32 %v4513, %v4510
        %v4518 = vadd.f32 %v4514, 0.0
        %v4519 = vadd.f32 %v4515, 0.0
        %v4520 = vadd.f32 %v4516, 0.0
        %v4521 = vadd.f32 %v4517, 0.0
        %s4522 = sld [smem:[#allocation2 + $0x187]]
        %v4523 = vstv %s4522
        %v4524 = vmul.f32 %v4523, %v4507
        %v4525 = vmul.f32 %v4523, %v4508
        %v4526 = vmul.f32 %v4523, %v4509
        %v4527 = vmul.f32 %v4523, %v4510
        %v4528 = vmul.f32 %v4523, %v4511
        %v4534 = vrot.slane %v4524, 1
        %v4535 = vrot.slane %v4525, 1
        %v4536 = vsel %vm373, %v4534, %v4535
        %v4537 = vrot.slane %v4526, 1
        %v4538 = vsel %vm373, %v4535, %v4537
        %v4539 = vrot.slane %v4527, 1
        %v4540 = vsel %vm373, %v4537, %v4539
        %v4541 = vrot.slane %v4528, 1
        %v4542 = vsel %vm373, %v4539, %v4541
        %v4547 = vadd.f32 %v4518, %v4536
        %v4548 = vadd.f32 %v4519, %v4538
        %v4549 = vadd.f32 %v4520, %v4540
        %v4550 = vadd.f32 %v4521, %v4542
        %s4551 = sld [smem:[#allocation2 + $0x18e]]
        %v4552 = vstv %s4551
        %v4553 = vmul.f32 %v4552, %v4507
        %v4554 = vmul.f32 %v4552, %v4508
        %v4555 = vmul.f32 %v4552, %v4509
        %v4556 = vmul.f32 %v4552, %v4510
        %v4557 = vmul.f32 %v4552, %v4511
        %v4563 = vrot.slane %v4553, 2
        %v4564 = vrot.slane %v4554, 2
        %v4565 = vsel %vm403, %v4563, %v4564
        %v4566 = vrot.slane %v4555, 2
        %v4567 = vsel %vm403, %v4564, %v4566
        %v4568 = vrot.slane %v4556, 2
        %v4569 = vsel %vm403, %v4566, %v4568
        %v4570 = vrot.slane %v4557, 2
        %v4571 = vsel %vm403, %v4568, %v4570
        %v4576 = vadd.f32 %v4547, %v4565
        %v4577 = vadd.f32 %v4548, %v4567
        %v4578 = vadd.f32 %v4549, %v4569
        %v4579 = vadd.f32 %v4550, %v4571
        %s4580 = sld [smem:[#allocation2 + $0x195]]
        %v4581 = vstv %s4580
        %v4582 = vmul.f32 %v4581, %v4507
        %v4583 = vmul.f32 %v4581, %v4508
        %v4584 = vmul.f32 %v4581, %v4509
        %v4585 = vmul.f32 %v4581, %v4510
        %v4586 = vmul.f32 %v4581, %v4511
        %v4592 = vrot.slane %v4582, 3
        %v4593 = vrot.slane %v4583, 3
        %v4594 = vsel %vm433, %v4592, %v4593
        %v4595 = vrot.slane %v4584, 3
        %v4596 = vsel %vm433, %v4593, %v4595
        %v4597 = vrot.slane %v4585, 3
        %v4598 = vsel %vm433, %v4595, %v4597
        %v4599 = vrot.slane %v4586, 3
        %v4600 = vsel %vm433, %v4597, %v4599
        %v4605 = vadd.f32 %v4576, %v4594
        %v4606 = vadd.f32 %v4577, %v4596
        %v4607 = vadd.f32 %v4578, %v4598
        %v4608 = vadd.f32 %v4579, %v4600
        %s4609 = sld [smem:[#allocation2 + $0x19c]]
        %v4610 = vstv %s4609
        %v4611 = vmul.f32 %v4610, %v4507
        %v4612 = vmul.f32 %v4610, %v4508
        %v4613 = vmul.f32 %v4610, %v4509
        %v4614 = vmul.f32 %v4610, %v4510
        %v4615 = vmul.f32 %v4610, %v4511
        %v4621 = vrot.slane %v4611, 4
        %v4622 = vrot.slane %v4612, 4
        %v4623 = vsel %vm463, %v4621, %v4622
        %v4624 = vrot.slane %v4613, 4
        %v4625 = vsel %vm463, %v4622, %v4624
        %v4626 = vrot.slane %v4614, 4
        %v4627 = vsel %vm463, %v4624, %v4626
        %v4628 = vrot.slane %v4615, 4
        %v4629 = vsel %vm463, %v4626, %v4628
        %v4634 = vadd.f32 %v4605, %v4623
        %v4635 = vadd.f32 %v4606, %v4625
        %v4636 = vadd.f32 %v4607, %v4627
        %v4637 = vadd.f32 %v4608, %v4629
        %s4638 = sld [smem:[#allocation2 + $0x1a3]]
        %v4639 = vstv %s4638
        %v4640 = vmul.f32 %v4639, %v4507
        %v4641 = vmul.f32 %v4639, %v4508
        %v4642 = vmul.f32 %v4639, %v4509
        %v4643 = vmul.f32 %v4639, %v4510
        %v4644 = vmul.f32 %v4639, %v4511
        %v4650 = vrot.slane %v4640, 5
        %v4651 = vrot.slane %v4641, 5
        %v4652 = vsel %vm493, %v4650, %v4651
        %v4653 = vrot.slane %v4642, 5
        %v4654 = vsel %vm493, %v4651, %v4653
        %v4655 = vrot.slane %v4643, 5
        %v4656 = vsel %vm493, %v4653, %v4655
        %v4657 = vrot.slane %v4644, 5
        %v4658 = vsel %vm493, %v4655, %v4657
        %v4663 = vadd.f32 %v4634, %v4652
        %v4664 = vadd.f32 %v4635, %v4654
        %v4665 = vadd.f32 %v4636, %v4656
        %v4666 = vadd.f32 %v4637, %v4658
        %s4667 = sld [smem:[#allocation2 + $0x1aa]]
        %v4668 = vstv %s4667
        %v4669 = vmul.f32 %v4668, %v4507
        %v4670 = vmul.f32 %v4668, %v4508
        %v4671 = vmul.f32 %v4668, %v4509
        %v4672 = vmul.f32 %v4668, %v4510
        %v4673 = vmul.f32 %v4668, %v4511
        %v4679 = vrot.slane %v4669, 6
        %v4680 = vrot.slane %v4670, 6
        %v4681 = vsel %vm523, %v4679, %v4680
        %v4682 = vrot.slane %v4671, 6
        %v4683 = vsel %vm523, %v4680, %v4682
        %v4684 = vrot.slane %v4672, 6
        %v4685 = vsel %vm523, %v4682, %v4684
        %v4686 = vrot.slane %v4673, 6
        %v4687 = vsel %vm523, %v4684, %v4686
        %v4692 = vadd.f32 %v4663, %v4681
        %v4693 = vadd.f32 %v4664, %v4683
        %v4694 = vadd.f32 %v4665, %v4685
        %v4695 = vadd.f32 %v4666, %v4687
        %4696 = vrot.lane.b32.xlu0 %v4492, 2
        %v4697 = vpop.permute.xlu0 %4696
        %4698 = vrot.lane.b32.xlu0 %v4493, 2
        %v4699 = vpop.permute.xlu0 %4698
        %4700 = vrot.lane.b32.xlu0 %v4494, 2
        %v4701 = vpop.permute.xlu0 %4700
        %4702 = vrot.lane.b32.xlu0 %v4495, 2
        %v4703 = vpop.permute.xlu0 %4702
        %4704 = vrot.lane.b32.xlu0 %v4496, 2
        %v4705 = vpop.permute.xlu0 %4704
        %v4706 = vsel %vm313, %v4697, 0.0
        %v4707 = vsel %vm313, %v4699, 0.0
        %v4708 = vsel %vm313, %v4701, 0.0
        %v4709 = vsel %vm313, %v4703, 0.0
        %v4710 = vsel %vm313, %v4705, 0.0
        %s4711 = sld [smem:[#allocation2 + $0x181]]
        %v4712 = vstv %s4711
        %v4713 = vmul.f32 %v4712, %v4706
        %v4714 = vmul.f32 %v4712, %v4707
        %v4715 = vmul.f32 %v4712, %v4708
        %v4716 = vmul.f32 %v4712, %v4709
        %v4717 = vadd.f32 %v4692, %v4713
        %v4718 = vadd.f32 %v4693, %v4714
        %v4719 = vadd.f32 %v4694, %v4715
        %v4720 = vadd.f32 %v4695, %v4716
        %s4721 = sld [smem:[#allocation2 + $0x188]]
        %v4722 = vstv %s4721
        %v4723 = vmul.f32 %v4722, %v4706
        %v4724 = vmul.f32 %v4722, %v4707
        %v4725 = vmul.f32 %v4722, %v4708
        %v4726 = vmul.f32 %v4722, %v4709
        %v4727 = vmul.f32 %v4722, %v4710
        %v4733 = vrot.slane %v4723, 1
        %v4734 = vrot.slane %v4724, 1
        %v4735 = vsel %vm373, %v4733, %v4734
        %v4736 = vrot.slane %v4725, 1
        %v4737 = vsel %vm373, %v4734, %v4736
        %v4738 = vrot.slane %v4726, 1
        %v4739 = vsel %vm373, %v4736, %v4738
        %v4740 = vrot.slane %v4727, 1
        %v4741 = vsel %vm373, %v4738, %v4740
        %v4746 = vadd.f32 %v4717, %v4735
        %v4747 = vadd.f32 %v4718, %v4737
        %v4748 = vadd.f32 %v4719, %v4739
        %v4749 = vadd.f32 %v4720, %v4741
        %s4750 = sld [smem:[#allocation2 + $0x18f]]
        %v4751 = vstv %s4750
        %v4752 = vmul.f32 %v4751, %v4706
        %v4753 = vmul.f32 %v4751, %v4707
        %v4754 = vmul.f32 %v4751, %v4708
        %v4755 = vmul.f32 %v4751, %v4709
        %v4756 = vmul.f32 %v4751, %v4710
        %v4762 = vrot.slane %v4752, 2
        %v4763 = vrot.slane %v4753, 2
        %v4764 = vsel %vm403, %v4762, %v4763
        %v4765 = vrot.slane %v4754, 2
        %v4766 = vsel %vm403, %v4763, %v4765
        %v4767 = vrot.slane %v4755, 2
        %v4768 = vsel %vm403, %v4765, %v4767
        %v4769 = vrot.slane %v4756, 2
        %v4770 = vsel %vm403, %v4767, %v4769
        %v4775 = vadd.f32 %v4746, %v4764
        %v4776 = vadd.f32 %v4747, %v4766
        %v4777 = vadd.f32 %v4748, %v4768
        %v4778 = vadd.f32 %v4749, %v4770
        %s4779 = sld [smem:[#allocation2 + $0x196]]
        %v4780 = vstv %s4779
        %v4781 = vmul.f32 %v4780, %v4706
        %v4782 = vmul.f32 %v4780, %v4707
        %v4783 = vmul.f32 %v4780, %v4708
        %v4784 = vmul.f32 %v4780, %v4709
        %v4785 = vmul.f32 %v4780, %v4710
        %v4791 = vrot.slane %v4781, 3
        %v4792 = vrot.slane %v4782, 3
        %v4793 = vsel %vm433, %v4791, %v4792
        %v4794 = vrot.slane %v4783, 3
        %v4795 = vsel %vm433, %v4792, %v4794
        %v4796 = vrot.slane %v4784, 3
        %v4797 = vsel %vm433, %v4794, %v4796
        %v4798 = vrot.slane %v4785, 3
        %v4799 = vsel %vm433, %v4796, %v4798
        %v4804 = vadd.f32 %v4775, %v4793
        %v4805 = vadd.f32 %v4776, %v4795
        %v4806 = vadd.f32 %v4777, %v4797
        %v4807 = vadd.f32 %v4778, %v4799
        %s4808 = sld [smem:[#allocation2 + $0x19d]]
        %v4809 = vstv %s4808
        %v4810 = vmul.f32 %v4809, %v4706
        %v4811 = vmul.f32 %v4809, %v4707
        %v4812 = vmul.f32 %v4809, %v4708
        %v4813 = vmul.f32 %v4809, %v4709
        %v4814 = vmul.f32 %v4809, %v4710
        %v4820 = vrot.slane %v4810, 4
        %v4821 = vrot.slane %v4811, 4
        %v4822 = vsel %vm463, %v4820, %v4821
        %v4823 = vrot.slane %v4812, 4
        %v4824 = vsel %vm463, %v4821, %v4823
        %v4825 = vrot.slane %v4813, 4
        %v4826 = vsel %vm463, %v4823, %v4825
        %v4827 = vrot.slane %v4814, 4
        %v4828 = vsel %vm463, %v4825, %v4827
        %v4833 = vadd.f32 %v4804, %v4822
        %v4834 = vadd.f32 %v4805, %v4824
        %v4835 = vadd.f32 %v4806, %v4826
        %v4836 = vadd.f32 %v4807, %v4828
        %s4837 = sld [smem:[#allocation2 + $0x1a4]]
        %v4838 = vstv %s4837
        %v4839 = vmul.f32 %v4838, %v4706
        %v4840 = vmul.f32 %v4838, %v4707
        %v4841 = vmul.f32 %v4838, %v4708
        %v4842 = vmul.f32 %v4838, %v4709
        %v4843 = vmul.f32 %v4838, %v4710
        %v4849 = vrot.slane %v4839, 5
        %v4850 = vrot.slane %v4840, 5
        %v4851 = vsel %vm493, %v4849, %v4850
        %v4852 = vrot.slane %v4841, 5
        %v4853 = vsel %vm493, %v4850, %v4852
        %v4854 = vrot.slane %v4842, 5
        %v4855 = vsel %vm493, %v4852, %v4854
        %v4856 = vrot.slane %v4843, 5
        %v4857 = vsel %vm493, %v4854, %v4856
        %v4862 = vadd.f32 %v4833, %v4851
        %v4863 = vadd.f32 %v4834, %v4853
        %v4864 = vadd.f32 %v4835, %v4855
        %v4865 = vadd.f32 %v4836, %v4857
        %s4866 = sld [smem:[#allocation2 + $0x1ab]]
        %v4867 = vstv %s4866
        %v4868 = vmul.f32 %v4867, %v4706
        %v4869 = vmul.f32 %v4867, %v4707
        %v4870 = vmul.f32 %v4867, %v4708
        %v4871 = vmul.f32 %v4867, %v4709
        %v4872 = vmul.f32 %v4867, %v4710
        %v4878 = vrot.slane %v4868, 6
        %v4879 = vrot.slane %v4869, 6
        %v4880 = vsel %vm523, %v4878, %v4879
        %v4881 = vrot.slane %v4870, 6
        %v4882 = vsel %vm523, %v4879, %v4881
        %v4883 = vrot.slane %v4871, 6
        %v4884 = vsel %vm523, %v4881, %v4883
        %v4885 = vrot.slane %v4872, 6
        %v4886 = vsel %vm523, %v4883, %v4885
        %v4891 = vadd.f32 %v4862, %v4880
        %v4892 = vadd.f32 %v4863, %v4882
        %v4893 = vadd.f32 %v4864, %v4884
        %v4894 = vadd.f32 %v4865, %v4886
        %4895 = vrot.lane.b32.xlu0 %v4492, 1
        %v4896 = vpop.permute.xlu0 %4895
        %4897 = vrot.lane.b32.xlu0 %v4493, 1
        %v4898 = vpop.permute.xlu0 %4897
        %4899 = vrot.lane.b32.xlu0 %v4494, 1
        %v4900 = vpop.permute.xlu0 %4899
        %4901 = vrot.lane.b32.xlu0 %v4495, 1
        %v4902 = vpop.permute.xlu0 %4901
        %4903 = vrot.lane.b32.xlu0 %v4496, 1
        %v4904 = vpop.permute.xlu0 %4903
        %v4905 = vsel %vm317, %v4896, 0.0
        %v4906 = vsel %vm317, %v4898, 0.0
        %v4907 = vsel %vm317, %v4900, 0.0
        %v4908 = vsel %vm317, %v4902, 0.0
        %v4909 = vsel %vm317, %v4904, 0.0
        %s4910 = sld [smem:[#allocation2 + $0x182]]
        %v4911 = vstv %s4910
        %v4912 = vmul.f32 %v4911, %v4905
        %v4913 = vmul.f32 %v4911, %v4906
        %v4914 = vmul.f32 %v4911, %v4907
        %v4915 = vmul.f32 %v4911, %v4908
        %v4916 = vadd.f32 %v4891, %v4912
        %v4917 = vadd.f32 %v4892, %v4913
        %v4918 = vadd.f32 %v4893, %v4914
        %v4919 = vadd.f32 %v4894, %v4915
        %s4920 = sld [smem:[#allocation2 + $0x189]]
        %v4921 = vstv %s4920
        %v4922 = vmul.f32 %v4921, %v4905
        %v4923 = vmul.f32 %v4921, %v4906
        %v4924 = vmul.f32 %v4921, %v4907
        %v4925 = vmul.f32 %v4921, %v4908
        %v4926 = vmul.f32 %v4921, %v4909
        %v4932 = vrot.slane %v4922, 1
        %v4933 = vrot.slane %v4923, 1
        %v4934 = vsel %vm373, %v4932, %v4933
        %v4935 = vrot.slane %v4924, 1
        %v4936 = vsel %vm373, %v4933, %v4935
        %v4937 = vrot.slane %v4925, 1
        %v4938 = vsel %vm373, %v4935, %v4937
        %v4939 = vrot.slane %v4926, 1
        %v4940 = vsel %vm373, %v4937, %v4939
        %v4945 = vadd.f32 %v4916, %v4934
        %v4946 = vadd.f32 %v4917, %v4936
        %v4947 = vadd.f32 %v4918, %v4938
        %v4948 = vadd.f32 %v4919, %v4940
        %s4949 = sld [smem:[#allocation2 + $0x190]]
        %v4950 = vstv %s4949
        %v4951 = vmul.f32 %v4950, %v4905
        %v4952 = vmul.f32 %v4950, %v4906
        %v4953 = vmul.f32 %v4950, %v4907
        %v4954 = vmul.f32 %v4950, %v4908
        %v4955 = vmul.f32 %v4950, %v4909
        %v4961 = vrot.slane %v4951, 2
        %v4962 = vrot.slane %v4952, 2
        %v4963 = vsel %vm403, %v4961, %v4962
        %v4964 = vrot.slane %v4953, 2
        %v4965 = vsel %vm403, %v4962, %v4964
        %v4966 = vrot.slane %v4954, 2
        %v4967 = vsel %vm403, %v4964, %v4966
        %v4968 = vrot.slane %v4955, 2
        %v4969 = vsel %vm403, %v4966, %v4968
        %v4974 = vadd.f32 %v4945, %v4963
        %v4975 = vadd.f32 %v4946, %v4965
        %v4976 = vadd.f32 %v4947, %v4967
        %v4977 = vadd.f32 %v4948, %v4969
        %s4978 = sld [smem:[#allocation2 + $0x197]]
        %v4979 = vstv %s4978
        %v4980 = vmul.f32 %v4979, %v4905
        %v4981 = vmul.f32 %v4979, %v4906
        %v4982 = vmul.f32 %v4979, %v4907
        %v4983 = vmul.f32 %v4979, %v4908
        %v4984 = vmul.f32 %v4979, %v4909
        %v4990 = vrot.slane %v4980, 3
        %v4991 = vrot.slane %v4981, 3
        %v4992 = vsel %vm433, %v4990, %v4991
        %v4993 = vrot.slane %v4982, 3
        %v4994 = vsel %vm433, %v4991, %v4993
        %v4995 = vrot.slane %v4983, 3
        %v4996 = vsel %vm433, %v4993, %v4995
        %v4997 = vrot.slane %v4984, 3
        %v4998 = vsel %vm433, %v4995, %v4997
        %v5003 = vadd.f32 %v4974, %v4992
        %v5004 = vadd.f32 %v4975, %v4994
        %v5005 = vadd.f32 %v4976, %v4996
        %v5006 = vadd.f32 %v4977, %v4998
        %s5007 = sld [smem:[#allocation2 + $0x19e]]
        %v5008 = vstv %s5007
        %v5009 = vmul.f32 %v5008, %v4905
        %v5010 = vmul.f32 %v5008, %v4906
        %v5011 = vmul.f32 %v5008, %v4907
        %v5012 = vmul.f32 %v5008, %v4908
        %v5013 = vmul.f32 %v5008, %v4909
        %v5019 = vrot.slane %v5009, 4
        %v5020 = vrot.slane %v5010, 4
        %v5021 = vsel %vm463, %v5019, %v5020
        %v5022 = vrot.slane %v5011, 4
        %v5023 = vsel %vm463, %v5020, %v5022
        %v5024 = vrot.slane %v5012, 4
        %v5025 = vsel %vm463, %v5022, %v5024
        %v5026 = vrot.slane %v5013, 4
        %v5027 = vsel %vm463, %v5024, %v5026
        %v5032 = vadd.f32 %v5003, %v5021
        %v5033 = vadd.f32 %v5004, %v5023
        %v5034 = vadd.f32 %v5005, %v5025
        %v5035 = vadd.f32 %v5006, %v5027
        %s5036 = sld [smem:[#allocation2 + $0x1a5]]
        %v5037 = vstv %s5036
        %v5038 = vmul.f32 %v5037, %v4905
        %v5039 = vmul.f32 %v5037, %v4906
        %v5040 = vmul.f32 %v5037, %v4907
        %v5041 = vmul.f32 %v5037, %v4908
        %v5042 = vmul.f32 %v5037, %v4909
        %v5048 = vrot.slane %v5038, 5
        %v5049 = vrot.slane %v5039, 5
        %v5050 = vsel %vm493, %v5048, %v5049
        %v5051 = vrot.slane %v5040, 5
        %v5052 = vsel %vm493, %v5049, %v5051
        %v5053 = vrot.slane %v5041, 5
        %v5054 = vsel %vm493, %v5051, %v5053
        %v5055 = vrot.slane %v5042, 5
        %v5056 = vsel %vm493, %v5053, %v5055
        %v5061 = vadd.f32 %v5032, %v5050
        %v5062 = vadd.f32 %v5033, %v5052
        %v5063 = vadd.f32 %v5034, %v5054
        %v5064 = vadd.f32 %v5035, %v5056
        %s5065 = sld [smem:[#allocation2 + $0x1ac]]
        %v5066 = vstv %s5065
        %v5067 = vmul.f32 %v5066, %v4905
        %v5068 = vmul.f32 %v5066, %v4906
        %v5069 = vmul.f32 %v5066, %v4907
        %v5070 = vmul.f32 %v5066, %v4908
        %v5071 = vmul.f32 %v5066, %v4909
        %v5077 = vrot.slane %v5067, 6
        %v5078 = vrot.slane %v5068, 6
        %v5079 = vsel %vm523, %v5077, %v5078
        %v5080 = vrot.slane %v5069, 6
        %v5081 = vsel %vm523, %v5078, %v5080
        %v5082 = vrot.slane %v5070, 6
        %v5083 = vsel %vm523, %v5080, %v5082
        %v5084 = vrot.slane %v5071, 6
        %v5085 = vsel %vm523, %v5082, %v5084
        %v5090 = vadd.f32 %v5061, %v5079
        %v5091 = vadd.f32 %v5062, %v5081
        %v5092 = vadd.f32 %v5063, %v5083
        %v5093 = vadd.f32 %v5064, %v5085
        %s5094 = sld [smem:[#allocation2 + $0x183]]
        %v5095 = vstv %s5094
        %v5096 = vmul.f32 %v5095, %v4492
        %v5097 = vmul.f32 %v5095, %v4493
        %v5098 = vmul.f32 %v5095, %v4494
        %v5099 = vmul.f32 %v5095, %v4495
        %v5100 = vadd.f32 %v5090, %v5096
        %v5101 = vadd.f32 %v5091, %v5097
        %v5102 = vadd.f32 %v5092, %v5098
        %v5103 = vadd.f32 %v5093, %v5099
        %s5104 = sld [smem:[#allocation2 + $0x18a]]
        %v5105 = vstv %s5104
        %v5106 = vmul.f32 %v5105, %v4492
        %v5107 = vmul.f32 %v5105, %v4493
        %v5108 = vmul.f32 %v5105, %v4494
        %v5109 = vmul.f32 %v5105, %v4495
        %v5110 = vmul.f32 %v5105, %v4496
        %v5116 = vrot.slane %v5106, 1
        %v5117 = vrot.slane %v5107, 1
        %v5118 = vsel %vm373, %v5116, %v5117
        %v5119 = vrot.slane %v5108, 1
        %v5120 = vsel %vm373, %v5117, %v5119
        %v5121 = vrot.slane %v5109, 1
        %v5122 = vsel %vm373, %v5119, %v5121
        %v5123 = vrot.slane %v5110, 1
        %v5124 = vsel %vm373, %v5121, %v5123
        %v5129 = vadd.f32 %v5100, %v5118
        %v5130 = vadd.f32 %v5101, %v5120
        %v5131 = vadd.f32 %v5102, %v5122
        %v5132 = vadd.f32 %v5103, %v5124
        %s5133 = sld [smem:[#allocation2 + $0x191]]
        %v5134 = vstv %s5133
        %v5135 = vmul.f32 %v5134, %v4492
        %v5136 = vmul.f32 %v5134, %v4493
        %v5137 = vmul.f32 %v5134, %v4494
        %v5138 = vmul.f32 %v5134, %v4495
        %v5139 = vmul.f32 %v5134, %v4496
        %v5145 = vrot.slane %v5135, 2
        %v5146 = vrot.slane %v5136, 2
        %v5147 = vsel %vm403, %v5145, %v5146
        %v5148 = vrot.slane %v5137, 2
        %v5149 = vsel %vm403, %v5146, %v5148
        %v5150 = vrot.slane %v5138, 2
        %v5151 = vsel %vm403, %v5148, %v5150
        %v5152 = vrot.slane %v5139, 2
        %v5153 = vsel %vm403, %v5150, %v5152
        %v5158 = vadd.f32 %v5129, %v5147
        %v5159 = vadd.f32 %v5130, %v5149
        %v5160 = vadd.f32 %v5131, %v5151
        %v5161 = vadd.f32 %v5132, %v5153
        %s5162 = sld [smem:[#allocation2 + $0x198]]
        %v5163 = vstv %s5162
        %v5164 = vmul.f32 %v5163, %v4492
        %v5165 = vmul.f32 %v5163, %v4493
        %v5166 = vmul.f32 %v5163, %v4494
        %v5167 = vmul.f32 %v5163, %v4495
        %v5168 = vmul.f32 %v5163, %v4496
        %v5174 = vrot.slane %v5164, 3
        %v5175 = vrot.slane %v5165, 3
        %v5176 = vsel %vm433, %v5174, %v5175
        %v5177 = vrot.slane %v5166, 3
        %v5178 = vsel %vm433, %v5175, %v5177
        %v5179 = vrot.slane %v5167, 3
        %v5180 = vsel %vm433, %v5177, %v5179
        %v5181 = vrot.slane %v5168, 3
        %v5182 = vsel %vm433, %v5179, %v5181
        %v5187 = vadd.f32 %v5158, %v5176
        %v5188 = vadd.f32 %v5159, %v5178
        %v5189 = vadd.f32 %v5160, %v5180
        %v5190 = vadd.f32 %v5161, %v5182
        %s5191 = sld [smem:[#allocation2 + $0x19f]]
        %v5192 = vstv %s5191
        %v5193 = vmul.f32 %v5192, %v4492
        %v5194 = vmul.f32 %v5192, %v4493
        %v5195 = vmul.f32 %v5192, %v4494
        %v5196 = vmul.f32 %v5192, %v4495
        %v5197 = vmul.f32 %v5192, %v4496
        %v5203 = vrot.slane %v5193, 4
        %v5204 = vrot.slane %v5194, 4
        %v5205 = vsel %vm463, %v5203, %v5204
        %v5206 = vrot.slane %v5195, 4
        %v5207 = vsel %vm463, %v5204, %v5206
        %v5208 = vrot.slane %v5196, 4
        %v5209 = vsel %vm463, %v5206, %v5208
        %v5210 = vrot.slane %v5197, 4
        %v5211 = vsel %vm463, %v5208, %v5210
        %v5216 = vadd.f32 %v5187, %v5205
        %v5217 = vadd.f32 %v5188, %v5207
        %v5218 = vadd.f32 %v5189, %v5209
        %v5219 = vadd.f32 %v5190, %v5211
        %s5220 = sld [smem:[#allocation2 + $0x1a6]]
        %v5221 = vstv %s5220
        %v5222 = vmul.f32 %v5221, %v4492
        %v5223 = vmul.f32 %v5221, %v4493
        %v5224 = vmul.f32 %v5221, %v4494
        %v5225 = vmul.f32 %v5221, %v4495
        %v5226 = vmul.f32 %v5221, %v4496
        %v5232 = vrot.slane %v5222, 5
        %v5233 = vrot.slane %v5223, 5
        %v5234 = vsel %vm493, %v5232, %v5233
        %v5235 = vrot.slane %v5224, 5
        %v5236 = vsel %vm493, %v5233, %v5235
        %v5237 = vrot.slane %v5225, 5
        %v5238 = vsel %vm493, %v5235, %v5237
        %v5239 = vrot.slane %v5226, 5
        %v5240 = vsel %vm493, %v5237, %v5239
        %v5245 = vadd.f32 %v5216, %v5234
        %v5246 = vadd.f32 %v5217, %v5236
        %v5247 = vadd.f32 %v5218, %v5238
        %v5248 = vadd.f32 %v5219, %v5240
        %s5249 = sld [smem:[#allocation2 + $0x1ad]]
        %v5250 = vstv %s5249
        %v5251 = vmul.f32 %v5250, %v4492
        %v5252 = vmul.f32 %v5250, %v4493
        %v5253 = vmul.f32 %v5250, %v4494
        %v5254 = vmul.f32 %v5250, %v4495
        %v5255 = vmul.f32 %v5250, %v4496
        %v5261 = vrot.slane %v5251, 6
        %v5262 = vrot.slane %v5252, 6
        %v5263 = vsel %vm523, %v5261, %v5262
        %v5264 = vrot.slane %v5253, 6
        %v5265 = vsel %vm523, %v5262, %v5264
        %v5266 = vrot.slane %v5254, 6
        %v5267 = vsel %vm523, %v5264, %v5266
        %v5268 = vrot.slane %v5255, 6
        %v5269 = vsel %vm523, %v5266, %v5268
        %v5274 = vadd.f32 %v5245, %v5263
        %v5275 = vadd.f32 %v5246, %v5265
        %v5276 = vadd.f32 %v5247, %v5267
        %v5277 = vadd.f32 %v5248, %v5269
        %5278 = vrot.lane.b32.xlu0 %v4492, 127
        %v5279 = vpop.permute.xlu0 %5278
        %5280 = vrot.lane.b32.xlu0 %v4493, 127
        %v5281 = vpop.permute.xlu0 %5280
        %5282 = vrot.lane.b32.xlu0 %v4494, 127
        %v5283 = vpop.permute.xlu0 %5282
        %5284 = vrot.lane.b32.xlu0 %v4495, 127
        %v5285 = vpop.permute.xlu0 %5284
        %5286 = vrot.lane.b32.xlu0 %v4496, 127
        %v5287 = vpop.permute.xlu0 %5286
        %v5288 = vsel %vm321, %v5279, 0.0
        %v5289 = vsel %vm321, %v5281, 0.0
        %v5290 = vsel %vm321, %v5283, 0.0
        %v5291 = vsel %vm321, %v5285, 0.0
        %v5292 = vsel %vm321, %v5287, 0.0
        %s5293 = sld [smem:[#allocation2 + $0x184]]
        %v5294 = vstv %s5293
        %v5295 = vmul.f32 %v5294, %v5288
        %v5296 = vmul.f32 %v5294, %v5289
        %v5297 = vmul.f32 %v5294, %v5290
        %v5298 = vmul.f32 %v5294, %v5291
        %v5299 = vadd.f32 %v5274, %v5295
        %v5300 = vadd.f32 %v5275, %v5296
        %v5301 = vadd.f32 %v5276, %v5297
        %v5302 = vadd.f32 %v5277, %v5298
        %s5303 = sld [smem:[#allocation2 + $0x18b]]
        %v5304 = vstv %s5303
        %v5305 = vmul.f32 %v5304, %v5288
        %v5306 = vmul.f32 %v5304, %v5289
        %v5307 = vmul.f32 %v5304, %v5290
        %v5308 = vmul.f32 %v5304, %v5291
        %v5309 = vmul.f32 %v5304, %v5292
        %v5315 = vrot.slane %v5305, 1
        %v5316 = vrot.slane %v5306, 1
        %v5317 = vsel %vm373, %v5315, %v5316
        %v5318 = vrot.slane %v5307, 1
        %v5319 = vsel %vm373, %v5316, %v5318
        %v5320 = vrot.slane %v5308, 1
        %v5321 = vsel %vm373, %v5318, %v5320
        %v5322 = vrot.slane %v5309, 1
        %v5323 = vsel %vm373, %v5320, %v5322
        %v5328 = vadd.f32 %v5299, %v5317
        %v5329 = vadd.f32 %v5300, %v5319
        %v5330 = vadd.f32 %v5301, %v5321
        %v5331 = vadd.f32 %v5302, %v5323
        %s5332 = sld [smem:[#allocation2 + $0x192]]
        %v5333 = vstv %s5332
        %v5334 = vmul.f32 %v5333, %v5288
        %v5335 = vmul.f32 %v5333, %v5289
        %v5336 = vmul.f32 %v5333, %v5290
        %v5337 = vmul.f32 %v5333, %v5291
        %v5338 = vmul.f32 %v5333, %v5292
        %v5344 = vrot.slane %v5334, 2
        %v5345 = vrot.slane %v5335, 2
        %v5346 = vsel %vm403, %v5344, %v5345
        %v5347 = vrot.slane %v5336, 2
        %v5348 = vsel %vm403, %v5345, %v5347
        %v5349 = vrot.slane %v5337, 2
        %v5350 = vsel %vm403, %v5347, %v5349
        %v5351 = vrot.slane %v5338, 2
        %v5352 = vsel %vm403, %v5349, %v5351
        %v5357 = vadd.f32 %v5328, %v5346
        %v5358 = vadd.f32 %v5329, %v5348
        %v5359 = vadd.f32 %v5330, %v5350
        %v5360 = vadd.f32 %v5331, %v5352
        %s5361 = sld [smem:[#allocation2 + $0x199]]
        %v5362 = vstv %s5361
        %v5363 = vmul.f32 %v5362, %v5288
        %v5364 = vmul.f32 %v5362, %v5289
        %v5365 = vmul.f32 %v5362, %v5290
        %v5366 = vmul.f32 %v5362, %v5291
        %v5367 = vmul.f32 %v5362, %v5292
        %v5373 = vrot.slane %v5363, 3
        %v5374 = vrot.slane %v5364, 3
        %v5375 = vsel %vm433, %v5373, %v5374
        %v5376 = vrot.slane %v5365, 3
        %v5377 = vsel %vm433, %v5374, %v5376
        %v5378 = vrot.slane %v5366, 3
        %v5379 = vsel %vm433, %v5376, %v5378
        %v5380 = vrot.slane %v5367, 3
        %v5381 = vsel %vm433, %v5378, %v5380
        %v5386 = vadd.f32 %v5357, %v5375
        %v5387 = vadd.f32 %v5358, %v5377
        %v5388 = vadd.f32 %v5359, %v5379
        %v5389 = vadd.f32 %v5360, %v5381
        %s5390 = sld [smem:[#allocation2 + $0x1a0]]
        %v5391 = vstv %s5390
        %v5392 = vmul.f32 %v5391, %v5288
        %v5393 = vmul.f32 %v5391, %v5289
        %v5394 = vmul.f32 %v5391, %v5290
        %v5395 = vmul.f32 %v5391, %v5291
        %v5396 = vmul.f32 %v5391, %v5292
        %v5402 = vrot.slane %v5392, 4
        %v5403 = vrot.slane %v5393, 4
        %v5404 = vsel %vm463, %v5402, %v5403
        %v5405 = vrot.slane %v5394, 4
        %v5406 = vsel %vm463, %v5403, %v5405
        %v5407 = vrot.slane %v5395, 4
        %v5408 = vsel %vm463, %v5405, %v5407
        %v5409 = vrot.slane %v5396, 4
        %v5410 = vsel %vm463, %v5407, %v5409
        %v5415 = vadd.f32 %v5386, %v5404
        %v5416 = vadd.f32 %v5387, %v5406
        %v5417 = vadd.f32 %v5388, %v5408
        %v5418 = vadd.f32 %v5389, %v5410
        %s5419 = sld [smem:[#allocation2 + $0x1a7]]
        %v5420 = vstv %s5419
        %v5421 = vmul.f32 %v5420, %v5288
        %v5422 = vmul.f32 %v5420, %v5289
        %v5423 = vmul.f32 %v5420, %v5290
        %v5424 = vmul.f32 %v5420, %v5291
        %v5425 = vmul.f32 %v5420, %v5292
        %v5431 = vrot.slane %v5421, 5
        %v5432 = vrot.slane %v5422, 5
        %v5433 = vsel %vm493, %v5431, %v5432
        %v5434 = vrot.slane %v5423, 5
        %v5435 = vsel %vm493, %v5432, %v5434
        %v5436 = vrot.slane %v5424, 5
        %v5437 = vsel %vm493, %v5434, %v5436
        %v5438 = vrot.slane %v5425, 5
        %v5439 = vsel %vm493, %v5436, %v5438
        %v5444 = vadd.f32 %v5415, %v5433
        %v5445 = vadd.f32 %v5416, %v5435
        %v5446 = vadd.f32 %v5417, %v5437
        %v5447 = vadd.f32 %v5418, %v5439
        %s5448 = sld [smem:[#allocation2 + $0x1ae]]
        %v5449 = vstv %s5448
        %v5450 = vmul.f32 %v5449, %v5288
        %v5451 = vmul.f32 %v5449, %v5289
        %v5452 = vmul.f32 %v5449, %v5290
        %v5453 = vmul.f32 %v5449, %v5291
        %v5454 = vmul.f32 %v5449, %v5292
        %v5460 = vrot.slane %v5450, 6
        %v5461 = vrot.slane %v5451, 6
        %v5462 = vsel %vm523, %v5460, %v5461
        %v5463 = vrot.slane %v5452, 6
        %v5464 = vsel %vm523, %v5461, %v5463
        %v5465 = vrot.slane %v5453, 6
        %v5466 = vsel %vm523, %v5463, %v5465
        %v5467 = vrot.slane %v5454, 6
        %v5468 = vsel %vm523, %v5465, %v5467
        %v5473 = vadd.f32 %v5444, %v5462
        %v5474 = vadd.f32 %v5445, %v5464
        %v5475 = vadd.f32 %v5446, %v5466
        %v5476 = vadd.f32 %v5447, %v5468
        %5477 = vrot.lane.b32.xlu0 %v4492, 126
        %v5478 = vpop.permute.xlu0 %5477
        %5479 = vrot.lane.b32.xlu0 %v4493, 126
        %v5480 = vpop.permute.xlu0 %5479
        %5481 = vrot.lane.b32.xlu0 %v4494, 126
        %v5482 = vpop.permute.xlu0 %5481
        %5483 = vrot.lane.b32.xlu0 %v4495, 126
        %v5484 = vpop.permute.xlu0 %5483
        %5485 = vrot.lane.b32.xlu0 %v4496, 126
        %v5486 = vpop.permute.xlu0 %5485
        %v5487 = vsel %vm325, %v5478, 0.0
        %v5488 = vsel %vm325, %v5480, 0.0
        %v5489 = vsel %vm325, %v5482, 0.0
        %v5490 = vsel %vm325, %v5484, 0.0
        %v5491 = vsel %vm325, %v5486, 0.0
        %s5492 = sld [smem:[#allocation2 + $0x185]]
        %v5493 = vstv %s5492
        %v5494 = vmul.f32 %v5493, %v5487
        %v5495 = vmul.f32 %v5493, %v5488
        %v5496 = vmul.f32 %v5493, %v5489
        %v5497 = vmul.f32 %v5493, %v5490
        %v5498 = vadd.f32 %v5473, %v5494
        %v5499 = vadd.f32 %v5474, %v5495
        %v5500 = vadd.f32 %v5475, %v5496
        %v5501 = vadd.f32 %v5476, %v5497
        %s5502 = sld [smem:[#allocation2 + $0x18c]]
        %v5503 = vstv %s5502
        %v5504 = vmul.f32 %v5503, %v5487
        %v5505 = vmul.f32 %v5503, %v5488
        %v5506 = vmul.f32 %v5503, %v5489
        %v5507 = vmul.f32 %v5503, %v5490
        %v5508 = vmul.f32 %v5503, %v5491
        %v5514 = vrot.slane %v5504, 1
        %v5515 = vrot.slane %v5505, 1
        %v5516 = vsel %vm373, %v5514, %v5515
        %v5517 = vrot.slane %v5506, 1
        %v5518 = vsel %vm373, %v5515, %v5517
        %v5519 = vrot.slane %v5507, 1
        %v5520 = vsel %vm373, %v5517, %v5519
        %v5521 = vrot.slane %v5508, 1
        %v5522 = vsel %vm373, %v5519, %v5521
        %v5527 = vadd.f32 %v5498, %v5516
        %v5528 = vadd.f32 %v5499, %v5518
        %v5529 = vadd.f32 %v5500, %v5520
        %v5530 = vadd.f32 %v5501, %v5522
        %s5531 = sld [smem:[#allocation2 + $0x193]]
        %v5532 = vstv %s5531
        %v5533 = vmul.f32 %v5532, %v5487
        %v5534 = vmul.f32 %v5532, %v5488
        %v5535 = vmul.f32 %v5532, %v5489
        %v5536 = vmul.f32 %v5532, %v5490
        %v5537 = vmul.f32 %v5532, %v5491
        %v5543 = vrot.slane %v5533, 2
        %v5544 = vrot.slane %v5534, 2
        %v5545 = vsel %vm403, %v5543, %v5544
        %v5546 = vrot.slane %v5535, 2
        %v5547 = vsel %vm403, %v5544, %v5546
        %v5548 = vrot.slane %v5536, 2
        %v5549 = vsel %vm403, %v5546, %v5548
        %v5550 = vrot.slane %v5537, 2
        %v5551 = vsel %vm403, %v5548, %v5550
        %v5556 = vadd.f32 %v5527, %v5545
        %v5557 = vadd.f32 %v5528, %v5547
        %v5558 = vadd.f32 %v5529, %v5549
        %v5559 = vadd.f32 %v5530, %v5551
        %s5560 = sld [smem:[#allocation2 + $0x19a]]
        %v5561 = vstv %s5560
        %v5562 = vmul.f32 %v5561, %v5487
        %v5563 = vmul.f32 %v5561, %v5488
        %v5564 = vmul.f32 %v5561, %v5489
        %v5565 = vmul.f32 %v5561, %v5490
        %v5566 = vmul.f32 %v5561, %v5491
        %v5572 = vrot.slane %v5562, 3
        %v5573 = vrot.slane %v5563, 3
        %v5574 = vsel %vm433, %v5572, %v5573
        %v5575 = vrot.slane %v5564, 3
        %v5576 = vsel %vm433, %v5573, %v5575
        %v5577 = vrot.slane %v5565, 3
        %v5578 = vsel %vm433, %v5575, %v5577
        %v5579 = vrot.slane %v5566, 3
        %v5580 = vsel %vm433, %v5577, %v5579
        %v5585 = vadd.f32 %v5556, %v5574
        %v5586 = vadd.f32 %v5557, %v5576
        %v5587 = vadd.f32 %v5558, %v5578
        %v5588 = vadd.f32 %v5559, %v5580
        %s5589 = sld [smem:[#allocation2 + $0x1a1]]
        %v5590 = vstv %s5589
        %v5591 = vmul.f32 %v5590, %v5487
        %v5592 = vmul.f32 %v5590, %v5488
        %v5593 = vmul.f32 %v5590, %v5489
        %v5594 = vmul.f32 %v5590, %v5490
        %v5595 = vmul.f32 %v5590, %v5491
        %v5601 = vrot.slane %v5591, 4
        %v5602 = vrot.slane %v5592, 4
        %v5603 = vsel %vm463, %v5601, %v5602
        %v5604 = vrot.slane %v5593, 4
        %v5605 = vsel %vm463, %v5602, %v5604
        %v5606 = vrot.slane %v5594, 4
        %v5607 = vsel %vm463, %v5604, %v5606
        %v5608 = vrot.slane %v5595, 4
        %v5609 = vsel %vm463, %v5606, %v5608
        %v5614 = vadd.f32 %v5585, %v5603
        %v5615 = vadd.f32 %v5586, %v5605
        %v5616 = vadd.f32 %v5587, %v5607
        %v5617 = vadd.f32 %v5588, %v5609
        %s5618 = sld [smem:[#allocation2 + $0x1a8]]
        %v5619 = vstv %s5618
        %v5620 = vmul.f32 %v5619, %v5487
        %v5621 = vmul.f32 %v5619, %v5488
        %v5622 = vmul.f32 %v5619, %v5489
        %v5623 = vmul.f32 %v5619, %v5490
        %v5624 = vmul.f32 %v5619, %v5491
        %v5630 = vrot.slane %v5620, 5
        %v5631 = vrot.slane %v5621, 5
        %v5632 = vsel %vm493, %v5630, %v5631
        %v5633 = vrot.slane %v5622, 5
        %v5634 = vsel %vm493, %v5631, %v5633
        %v5635 = vrot.slane %v5623, 5
        %v5636 = vsel %vm493, %v5633, %v5635
        %v5637 = vrot.slane %v5624, 5
        %v5638 = vsel %vm493, %v5635, %v5637
        %v5643 = vadd.f32 %v5614, %v5632
        %v5644 = vadd.f32 %v5615, %v5634
        %v5645 = vadd.f32 %v5616, %v5636
        %v5646 = vadd.f32 %v5617, %v5638
        %s5647 = sld [smem:[#allocation2 + $0x1af]]
        %v5648 = vstv %s5647
        %v5649 = vmul.f32 %v5648, %v5487
        %v5650 = vmul.f32 %v5648, %v5488
        %v5651 = vmul.f32 %v5648, %v5489
        %v5652 = vmul.f32 %v5648, %v5490
        %v5653 = vmul.f32 %v5648, %v5491
        %v5659 = vrot.slane %v5649, 6
        %v5660 = vrot.slane %v5650, 6
        %v5661 = vsel %vm523, %v5659, %v5660
        %v5662 = vrot.slane %v5651, 6
        %v5663 = vsel %vm523, %v5660, %v5662
        %v5664 = vrot.slane %v5652, 6
        %v5665 = vsel %vm523, %v5662, %v5664
        %v5666 = vrot.slane %v5653, 6
        %v5667 = vsel %vm523, %v5664, %v5666
        %v5672 = vadd.f32 %v5643, %v5661
        %v5673 = vadd.f32 %v5644, %v5663
        %v5674 = vadd.f32 %v5645, %v5665
        %v5675 = vadd.f32 %v5646, %v5667
        %5676 = vrot.lane.b32.xlu0 %v4492, 125
        %v5677 = vpop.permute.xlu0 %5676
        %5678 = vrot.lane.b32.xlu0 %v4493, 125
        %v5679 = vpop.permute.xlu0 %5678
        %5680 = vrot.lane.b32.xlu0 %v4494, 125
        %v5681 = vpop.permute.xlu0 %5680
        %5682 = vrot.lane.b32.xlu0 %v4495, 125
        %v5683 = vpop.permute.xlu0 %5682
        %5684 = vrot.lane.b32.xlu0 %v4496, 125
        %v5685 = vpop.permute.xlu0 %5684
        %v5686 = vsel %vm329, %v5677, 0.0
        %v5687 = vsel %vm329, %v5679, 0.0
        %v5688 = vsel %vm329, %v5681, 0.0
        %v5689 = vsel %vm329, %v5683, 0.0
        %v5690 = vsel %vm329, %v5685, 0.0
        %s5691 = sld [smem:[#allocation2 + $0x186]]
        %v5692 = vstv %s5691
        %v5693 = vmul.f32 %v5692, %v5686
        %v5694 = vmul.f32 %v5692, %v5687
        %v5695 = vmul.f32 %v5692, %v5688
        %v5696 = vmul.f32 %v5692, %v5689
        %v5697 = vadd.f32 %v5672, %v5693
        %v5698 = vadd.f32 %v5673, %v5694
        %v5699 = vadd.f32 %v5674, %v5695
        %v5700 = vadd.f32 %v5675, %v5696
        %s5701 = sld [smem:[#allocation2 + $0x18d]]
        %v5702 = vstv %s5701
        %v5703 = vmul.f32 %v5702, %v5686
        %v5704 = vmul.f32 %v5702, %v5687
        %v5705 = vmul.f32 %v5702, %v5688
        %v5706 = vmul.f32 %v5702, %v5689
        %v5707 = vmul.f32 %v5702, %v5690
        %v5713 = vrot.slane %v5703, 1
        %v5714 = vrot.slane %v5704, 1
        %v5715 = vsel %vm373, %v5713, %v5714
        %v5716 = vrot.slane %v5705, 1
        %v5717 = vsel %vm373, %v5714, %v5716
        %v5718 = vrot.slane %v5706, 1
        %v5719 = vsel %vm373, %v5716, %v5718
        %v5720 = vrot.slane %v5707, 1
        %v5721 = vsel %vm373, %v5718, %v5720
        %v5726 = vadd.f32 %v5697, %v5715
        %v5727 = vadd.f32 %v5698, %v5717
        %v5728 = vadd.f32 %v5699, %v5719
        %v5729 = vadd.f32 %v5700, %v5721
        %s5730 = sld [smem:[#allocation2 + $0x194]]
        %v5731 = vstv %s5730
        %v5732 = vmul.f32 %v5731, %v5686
        %v5733 = vmul.f32 %v5731, %v5687
        %v5734 = vmul.f32 %v5731, %v5688
        %v5735 = vmul.f32 %v5731, %v5689
        %v5736 = vmul.f32 %v5731, %v5690
        %v5742 = vrot.slane %v5732, 2
        %v5743 = vrot.slane %v5733, 2
        %v5744 = vsel %vm403, %v5742, %v5743
        %v5745 = vrot.slane %v5734, 2
        %v5746 = vsel %vm403, %v5743, %v5745
        %v5747 = vrot.slane %v5735, 2
        %v5748 = vsel %vm403, %v5745, %v5747
        %v5749 = vrot.slane %v5736, 2
        %v5750 = vsel %vm403, %v5747, %v5749
        %v5755 = vadd.f32 %v5726, %v5744
        %v5756 = vadd.f32 %v5727, %v5746
        %v5757 = vadd.f32 %v5728, %v5748
        %v5758 = vadd.f32 %v5729, %v5750
        %s5759 = sld [smem:[#allocation2 + $0x19b]]
        %v5760 = vstv %s5759
        %v5761 = vmul.f32 %v5760, %v5686
        %v5762 = vmul.f32 %v5760, %v5687
        %v5763 = vmul.f32 %v5760, %v5688
        %v5764 = vmul.f32 %v5760, %v5689
        %v5765 = vmul.f32 %v5760, %v5690
        %v5771 = vrot.slane %v5761, 3
        %v5772 = vrot.slane %v5762, 3
        %v5773 = vsel %vm433, %v5771, %v5772
        %v5774 = vrot.slane %v5763, 3
        %v5775 = vsel %vm433, %v5772, %v5774
        %v5776 = vrot.slane %v5764, 3
        %v5777 = vsel %vm433, %v5774, %v5776
        %v5778 = vrot.slane %v5765, 3
        %v5779 = vsel %vm433, %v5776, %v5778
        %v5784 = vadd.f32 %v5755, %v5773
        %v5785 = vadd.f32 %v5756, %v5775
        %v5786 = vadd.f32 %v5757, %v5777
        %v5787 = vadd.f32 %v5758, %v5779
        %s5788 = sld [smem:[#allocation2 + $0x1a2]]
        %v5789 = vstv %s5788
        %v5790 = vmul.f32 %v5789, %v5686
        %v5791 = vmul.f32 %v5789, %v5687
        %v5792 = vmul.f32 %v5789, %v5688
        %v5793 = vmul.f32 %v5789, %v5689
        %v5794 = vmul.f32 %v5789, %v5690
        %v5800 = vrot.slane %v5790, 4
        %v5801 = vrot.slane %v5791, 4
        %v5802 = vsel %vm463, %v5800, %v5801
        %v5803 = vrot.slane %v5792, 4
        %v5804 = vsel %vm463, %v5801, %v5803
        %v5805 = vrot.slane %v5793, 4
        %v5806 = vsel %vm463, %v5803, %v5805
        %v5807 = vrot.slane %v5794, 4
        %v5808 = vsel %vm463, %v5805, %v5807
        %v5813 = vadd.f32 %v5784, %v5802
        %v5814 = vadd.f32 %v5785, %v5804
        %v5815 = vadd.f32 %v5786, %v5806
        %v5816 = vadd.f32 %v5787, %v5808
        %s5817 = sld [smem:[#allocation2 + $0x1a9]]
        %v5818 = vstv %s5817
        %v5819 = vmul.f32 %v5818, %v5686
        %v5820 = vmul.f32 %v5818, %v5687
        %v5821 = vmul.f32 %v5818, %v5688
        %v5822 = vmul.f32 %v5818, %v5689
        %v5823 = vmul.f32 %v5818, %v5690
        %v5829 = vrot.slane %v5819, 5
        %v5830 = vrot.slane %v5820, 5
        %v5831 = vsel %vm493, %v5829, %v5830
        %v5832 = vrot.slane %v5821, 5
        %v5833 = vsel %vm493, %v5830, %v5832
        %v5834 = vrot.slane %v5822, 5
        %v5835 = vsel %vm493, %v5832, %v5834
        %v5836 = vrot.slane %v5823, 5
        %v5837 = vsel %vm493, %v5834, %v5836
        %v5842 = vadd.f32 %v5813, %v5831
        %v5843 = vadd.f32 %v5814, %v5833
        %v5844 = vadd.f32 %v5815, %v5835
        %v5845 = vadd.f32 %v5816, %v5837
        %s5846 = sld [smem:[#allocation2 + $0x1b0]]
        %v5847 = vstv %s5846
        %v5848 = vmul.f32 %v5847, %v5686
        %v5849 = vmul.f32 %v5847, %v5687
        %v5850 = vmul.f32 %v5847, %v5688
        %v5851 = vmul.f32 %v5847, %v5689
        %v5852 = vmul.f32 %v5847, %v5690
        %v5858 = vrot.slane %v5848, 6
        %v5859 = vrot.slane %v5849, 6
        %v5860 = vsel %vm523, %v5858, %v5859
        %v5861 = vrot.slane %v5850, 6
        %v5862 = vsel %vm523, %v5859, %v5861
        %v5863 = vrot.slane %v5851, 6
        %v5864 = vsel %vm523, %v5861, %v5863
        %v5865 = vrot.slane %v5852, 6
        %v5866 = vsel %vm523, %v5863, %v5865
        %v5871 = vadd.f32 %v5842, %v5860
        %v5872 = vadd.f32 %v5843, %v5862
        %v5873 = vadd.f32 %v5844, %v5864
        %v5874 = vadd.f32 %v5845, %v5866
        %v5875 = vadd.f32 %v1716, %v3101
        %v5876 = vadd.f32 %v1717, %v3102
        %v5877 = vadd.f32 %v1718, %v3103
        %v5878 = vadd.f32 %v1719, %v3104
        %v5879 = vadd.f32 %v5875, %v4486
        %v5880 = vadd.f32 %v5876, %v4487
        %v5881 = vadd.f32 %v5877, %v4488
        %v5882 = vadd.f32 %v5878, %v4489
        %v5883 = vadd.f32 %v5879, %v5871
        %v5884 = vadd.f32 %v5880, %v5872
        %v5885 = vadd.f32 %v5881, %v5873
        %v5886 = vadd.f32 %v5882, %v5874
        %v5887 = vmul.f32 %v5883, 0.25
        %v5888 = vmul.f32 %v5884, 0.25
        %v5889 = vmul.f32 %v5885, 0.25
        %v5890 = vmul.f32 %v5886, 0.25
        %v5891 = vsub.f32 %v1716, %v5887
        %v5892 = vsub.f32 %v1717, %v5888
        %v5893 = vsub.f32 %v1718, %v5889
        %v5894 = vsub.f32 %v1719, %v5890
        %v5895 = vmul.f32 %v5891, %v5891
        %v5896 = vmul.f32 %v5892, %v5892
        %v5897 = vmul.f32 %v5893, %v5893
        %v5898 = vmul.f32 %v5894, %v5894
        %v5899 = vsub.f32 %v3101, %v5887
        %v5900 = vsub.f32 %v3102, %v5888
        %v5901 = vsub.f32 %v3103, %v5889
        %v5902 = vsub.f32 %v3104, %v5890
        %v5903 = vmul.f32 %v5899, %v5899
        %v5904 = vmul.f32 %v5900, %v5900
        %v5905 = vmul.f32 %v5901, %v5901
        %v5906 = vmul.f32 %v5902, %v5902
        %v5907 = vadd.f32 %v5895, %v5903
        %v5908 = vadd.f32 %v5896, %v5904
        %v5909 = vadd.f32 %v5897, %v5905
        %v5910 = vadd.f32 %v5898, %v5906
        %v5911 = vsub.f32 %v4486, %v5887
        %v5912 = vsub.f32 %v4487, %v5888
        %v5913 = vsub.f32 %v4488, %v5889
        %v5914 = vsub.f32 %v4489, %v5890
        %v5915 = vmul.f32 %v5911, %v5911
        %v5916 = vmul.f32 %v5912, %v5912
        %v5917 = vmul.f32 %v5913, %v5913
        %v5918 = vmul.f32 %v5914, %v5914
        %v5919 = vadd.f32 %v5907, %v5915
        %v5920 = vadd.f32 %v5908, %v5916
        %v5921 = vadd.f32 %v5909, %v5917
        %v5922 = vadd.f32 %v5910, %v5918
        %v5923 = vsub.f32 %v5871, %v5887
        %v5924 = vsub.f32 %v5872, %v5888
        %v5925 = vsub.f32 %v5873, %v5889
        %v5926 = vsub.f32 %v5874, %v5890
        %v5927 = vmul.f32 %v5923, %v5923
        %v5928 = vmul.f32 %v5924, %v5924
        %v5929 = vmul.f32 %v5925, %v5925
        %v5930 = vmul.f32 %v5926, %v5926
        %v5931 = vadd.f32 %v5919, %v5927
        %v5932 = vadd.f32 %v5920, %v5928
        %v5933 = vadd.f32 %v5921, %v5929
        %v5934 = vadd.f32 %v5922, %v5930
        %v5935 = vmul.f32 %v5931, 0.25
        %v5936 = vmul.f32 %v5932, 0.25
        %v5937 = vmul.f32 %v5933, 0.25
        %v5938 = vmul.f32 %v5934, 0.25
        %v5939 = vadd.f32 %v5935, 1e-06
        %v5940 = vadd.f32 %v5936, 1e-06
        %v5941 = vadd.f32 %v5937, 1e-06
        %v5942 = vadd.f32 %v5938, 1e-06
        %v5943 = vrsqrt.pop %v5939
        %v5944 = vrsqrt.pop %v5940
        %v5945 = vrsqrt.pop %v5941
        %v5946 = vrsqrt.pop %v5942
        %v5947 = vmul.f32 %v5891, %v5943
        %v5948 = vmul.f32 %v5892, %v5944
        %v5949 = vmul.f32 %v5893, %v5945
        %v5950 = vmul.f32 %v5894, %v5946
        %s5951 = sld [smem:[#allocation4]]
        %v5952 = vstv %s5951
        %v5953 = vmul.f32 %v5947, %v5952
        %v5954 = vmul.f32 %v5948, %v5952
        %v5955 = vmul.f32 %v5949, %v5952
        %v5956 = vmul.f32 %v5950, %v5952
        %s5957 = sld [smem:[#allocation6]]
        %v5958 = vstv %s5957
        %v5959 = vadd.f32 %v5953, %v5958
        %v5960 = vadd.f32 %v5954, %v5958
        %v5961 = vadd.f32 %v5955, %v5958
        %v5962 = vadd.f32 %v5956, %v5958
        %v5963 = vmul.f32 %v5899, %v5943
        %v5964 = vmul.f32 %v5900, %v5944
        %v5965 = vmul.f32 %v5901, %v5945
        %v5966 = vmul.f32 %v5902, %v5946
        %s5967 = sld [smem:[#allocation4 + $0x1]]
        %v5968 = vstv %s5967
        %v5969 = vmul.f32 %v5963, %v5968
        %v5970 = vmul.f32 %v5964, %v5968
        %v5971 = vmul.f32 %v5965, %v5968
        %v5972 = vmul.f32 %v5966, %v5968
        %s5973 = sld [smem:[#allocation6 + $0x1]]
        %v5974 = vstv %s5973
        %v5975 = vadd.f32 %v5969, %v5974
        %v5976 = vadd.f32 %v5970, %v5974
        %v5977 = vadd.f32 %v5971, %v5974
        %v5978 = vadd.f32 %v5972, %v5974
        %v5979 = vmul.f32 %v5911, %v5943
        %v5980 = vmul.f32 %v5912, %v5944
        %v5981 = vmul.f32 %v5913, %v5945
        %v5982 = vmul.f32 %v5914, %v5946
        %s5983 = sld [smem:[#allocation4 + $0x2]]
        %v5984 = vstv %s5983
        %v5985 = vmul.f32 %v5979, %v5984
        %v5986 = vmul.f32 %v5980, %v5984
        %v5987 = vmul.f32 %v5981, %v5984
        %v5988 = vmul.f32 %v5982, %v5984
        %s5989 = sld [smem:[#allocation6 + $0x2]]
        %v5990 = vstv %s5989
        %v5991 = vadd.f32 %v5985, %v5990
        %v5992 = vadd.f32 %v5986, %v5990
        %v5993 = vadd.f32 %v5987, %v5990
        %v5994 = vadd.f32 %v5988, %v5990
        %v5995 = vmul.f32 %v5923, %v5943
        %v5996 = vmul.f32 %v5924, %v5944
        %v5997 = vmul.f32 %v5925, %v5945
        %v5998 = vmul.f32 %v5926, %v5946
        %s5999 = sld [smem:[#allocation4 + $0x3]]
        %v6000 = vstv %s5999
        %v6001 = vmul.f32 %v5995, %v6000
        %v6002 = vmul.f32 %v5996, %v6000
        %v6003 = vmul.f32 %v5997, %v6000
        %v6004 = vmul.f32 %v5998, %v6000
        %s6005 = sld [smem:[#allocation6 + $0x3]]
        %v6006 = vstv %s6005
        %v6007 = vadd.f32 %v6001, %v6006
        %v6008 = vadd.f32 %v6002, %v6006
        %v6009 = vadd.f32 %v6003, %v6006
        %v6010 = vadd.f32 %v6004, %v6006
        %s6011 = sld [smem:[#allocation7]]
        %v6012 = vstv %s6011
        %v6013 = vmul.f32 %v6012, %v5959
        %v6014 = vmul.f32 %v6012, %v5960
        %v6015 = vmul.f32 %v6012, %v5961
        %v6016 = vmul.f32 %v6012, %v5962
        %s6017 = sld [smem:[#allocation7 + $0x1]]
        %v6018 = vstv %s6017
        %v6019 = vmul.f32 %v6018, %v5975
        %v6020 = vmul.f32 %v6018, %v5976
        %v6021 = vmul.f32 %v6018, %v5977
        %v6022 = vmul.f32 %v6018, %v5978
        %v6023 = vadd.f32 %v6013, %v6019
        %v6024 = vadd.f32 %v6014, %v6020
        %v6025 = vadd.f32 %v6015, %v6021
        %v6026 = vadd.f32 %v6016, %v6022
        %s6027 = sld [smem:[#allocation7 + $0x2]]
        %v6028 = vstv %s6027
        %v6029 = vmul.f32 %v6028, %v5991
        %v6030 = vmul.f32 %v6028, %v5992
        %v6031 = vmul.f32 %v6028, %v5993
        %v6032 = vmul.f32 %v6028, %v5994
        %v6033 = vadd.f32 %v6023, %v6029
        %v6034 = vadd.f32 %v6024, %v6030
        %v6035 = vadd.f32 %v6025, %v6031
        %v6036 = vadd.f32 %v6026, %v6032
        %s6037 = sld [smem:[#allocation7 + $0x3]]
        %v6038 = vstv %s6037
        %v6039 = vmul.f32 %v6038, %v6007
        %v6040 = vmul.f32 %v6038, %v6008
        %v6041 = vmul.f32 %v6038, %v6009
        %v6042 = vmul.f32 %v6038, %v6010
        %v6043 = vadd.f32 %v6033, %v6039
        %v6044 = vadd.f32 %v6034, %v6040
        %v6045 = vadd.f32 %v6035, %v6041
        %v6046 = vadd.f32 %v6036, %v6042
        %v6047 = vmul.f32 %v6043, 0.5
        %v6048 = vmul.f32 %v6044, 0.5
        %v6049 = vmul.f32 %v6045, 0.5
        %v6050 = vmul.f32 %v6046, 0.5
        %v6051 = vmul.f32 %v6043, 0.70710677
        %v6052 = vmul.f32 %v6044, 0.70710677
        %v6053 = vmul.f32 %v6045, 0.70710677
        %v6054 = vmul.f32 %v6046, 0.70710677
        %v6055 = verf.f32.pop %v6051
        %v6056 = verf.f32.pop %v6052
        %v6057 = verf.f32.pop %v6053
        %v6058 = verf.f32.pop %v6054
        %v6059 = vadd.f32 %v6055, 1.0
        %v6060 = vadd.f32 %v6056, 1.0
        %v6061 = vadd.f32 %v6057, 1.0
        %v6062 = vadd.f32 %v6058, 1.0
        %v6063 = vmul.f32 %v6047, %v6059
        %v6064 = vmul.f32 %v6048, %v6060
        %v6065 = vmul.f32 %v6049, %v6061
        %v6066 = vmul.f32 %v6050, %v6062
        %s6067 = sld [smem:[#allocation9]]
        %v6068 = vstv %s6067
        %v6069 = vmul.f32 %v6068, %v6063
        %v6070 = vmul.f32 %v6068, %v6064
        %v6071 = vmul.f32 %v6068, %v6065
        %v6072 = vmul.f32 %v6068, %v6066
        %v6073 = vadd.f32 %v6069, 0.0
        %v6074 = vadd.f32 %v6070, 0.0
        %v6075 = vadd.f32 %v6071, 0.0
        %v6076 = vadd.f32 %v6072, 0.0
        %s6077 = sld [smem:[#allocation9 + $0x80]]
        %v6078 = vstv %s6077
        %v6079 = vmul.f32 %v6078, %v6063
        %v6080 = vmul.f32 %v6078, %v6064
        %v6081 = vmul.f32 %v6078, %v6065
        %v6082 = vmul.f32 %v6078, %v6066
        %v6083 = vadd.f32 %v6079, 0.0
        %v6084 = vadd.f32 %v6080, 0.0
        %v6085 = vadd.f32 %v6081, 0.0
        %v6086 = vadd.f32 %v6082, 0.0
        %s6087 = sld [smem:[#allocation9 + $0x100]]
        %v6088 = vstv %s6087
        %v6089 = vmul.f32 %v6088, %v6063
        %v6090 = vmul.f32 %v6088, %v6064
        %v6091 = vmul.f32 %v6088, %v6065
        %v6092 = vmul.f32 %v6088, %v6066
        %v6093 = vadd.f32 %v6089, 0.0
        %v6094 = vadd.f32 %v6090, 0.0
        %v6095 = vadd.f32 %v6091, 0.0
        %v6096 = vadd.f32 %v6092, 0.0
        %s6097 = sld [smem:[#allocation9 + $0x180]]
        %v6098 = vstv %s6097
        %v6099 = vmul.f32 %v6098, %v6063
        %v6100 = vmul.f32 %v6098, %v6064
        %v6101 = vmul.f32 %v6098, %v6065
        %v6102 = vmul.f32 %v6098, %v6066
        %v6103 = vadd.f32 %v6099, 0.0
        %v6104 = vadd.f32 %v6100, 0.0
        %v6105 = vadd.f32 %v6101, 0.0
        %v6106 = vadd.f32 %v6102, 0.0
        %s6107 = sld [smem:[#allocation7 + $0x80]]
        %v6108 = vstv %s6107
        %v6109 = vmul.f32 %v6108, %v5959
        %v6110 = vmul.f32 %v6108, %v5960
        %v6111 = vmul.f32 %v6108, %v5961
        %v6112 = vmul.f32 %v6108, %v5962
        %s6113 = sld [smem:[#allocation7 + $0x81]]
        %v6114 = vstv %s6113
        %v6115 = vmul.f32 %v6114, %v5975
        %v6116 = vmul.f32 %v6114, %v5976
        %v6117 = vmul.f32 %v6114, %v5977
        %v6118 = vmul.f32 %v6114, %v5978
        %v6119 = vadd.f32 %v6109, %v6115
        %v6120 = vadd.f32 %v6110, %v6116
        %v6121 = vadd.f32 %v6111, %v6117
        %v6122 = vadd.f32 %v6112, %v6118
        %s6123 = sld [smem:[#allocation7 + $0x82]]
        %v6124 = vstv %s6123
        %v6125 = vmul.f32 %v6124, %v5991
        %v6126 = vmul.f32 %v6124, %v5992
        %v6127 = vmul.f32 %v6124, %v5993
        %v6128 = vmul.f32 %v6124, %v5994
        %v6129 = vadd.f32 %v6119, %v6125
        %v6130 = vadd.f32 %v6120, %v6126
        %v6131 = vadd.f32 %v6121, %v6127
        %v6132 = vadd.f32 %v6122, %v6128
        %s6133 = sld [smem:[#allocation7 + $0x83]]
        %v6134 = vstv %s6133
        %v6135 = vmul.f32 %v6134, %v6007
        %v6136 = vmul.f32 %v6134, %v6008
        %v6137 = vmul.f32 %v6134, %v6009
        %v6138 = vmul.f32 %v6134, %v6010
        %v6139 = vadd.f32 %v6129, %v6135
        %v6140 = vadd.f32 %v6130, %v6136
        %v6141 = vadd.f32 %v6131, %v6137
        %v6142 = vadd.f32 %v6132, %v6138
        %v6143 = vmul.f32 %v6139, 0.5
        %v6144 = vmul.f32 %v6140, 0.5
        %v6145 = vmul.f32 %v6141, 0.5
        %v6146 = vmul.f32 %v6142, 0.5
        %v6147 = vmul.f32 %v6139, 0.70710677
        %v6148 = vmul.f32 %v6140, 0.70710677
        %v6149 = vmul.f32 %v6141, 0.70710677
        %v6150 = vmul.f32 %v6142, 0.70710677
        %v6151 = verf.f32.pop %v6147
        %v6152 = verf.f32.pop %v6148
        %v6153 = verf.f32.pop %v6149
        %v6154 = verf.f32.pop %v6150
        %v6155 = vadd.f32 %v6151, 1.0
        %v6156 = vadd.f32 %v6152, 1.0
        %v6157 = vadd.f32 %v6153, 1.0
        %v6158 = vadd.f32 %v6154, 1.0
        %v6159 = vmul.f32 %v6143, %v6155
        %v6160 = vmul.f32 %v6144, %v6156
        %v6161 = vmul.f32 %v6145, %v6157
        %v6162 = vmul.f32 %v6146, %v6158
        %s6163 = sld [smem:[#allocation9 + $0x1]]
        %v6164 = vstv %s6163
        %v6165 = vmul.f32 %v6164, %v6159
        %v6166 = vmul.f32 %v6164, %v6160
        %v6167 = vmul.f32 %v6164, %v6161
        %v6168 = vmul.f32 %v6164, %v6162
        %v6169 = vadd.f32 %v6073, %v6165
        %v6170 = vadd.f32 %v6074, %v6166
        %v6171 = vadd.f32 %v6075, %v6167
        %v6172 = vadd.f32 %v6076, %v6168
        %s6173 = sld [smem:[#allocation9 + $0x81]]
        %v6174 = vstv %s6173
        %v6175 = vmul.f32 %v6174, %v6159
        %v6176 = vmul.f32 %v6174, %v6160
        %v6177 = vmul.f32 %v6174, %v6161
        %v6178 = vmul.f32 %v6174, %v6162
        %v6179 = vadd.f32 %v6083, %v6175
        %v6180 = vadd.f32 %v6084, %v6176
        %v6181 = vadd.f32 %v6085, %v6177
        %v6182 = vadd.f32 %v6086, %v6178
        %s6183 = sld [smem:[#allocation9 + $0x101]]
        %v6184 = vstv %s6183
        %v6185 = vmul.f32 %v6184, %v6159
        %v6186 = vmul.f32 %v6184, %v6160
        %v6187 = vmul.f32 %v6184, %v6161
        %v6188 = vmul.f32 %v6184, %v6162
        %v6189 = vadd.f32 %v6093, %v6185
        %v6190 = vadd.f32 %v6094, %v6186
        %v6191 = vadd.f32 %v6095, %v6187
        %v6192 = vadd.f32 %v6096, %v6188
        %s6193 = sld [smem:[#allocation9 + $0x181]]
        %v6194 = vstv %s6193
        %v6195 = vmul.f32 %v6194, %v6159
        %v6196 = vmul.f32 %v6194, %v6160
        %v6197 = vmul.f32 %v6194, %v6161
        %v6198 = vmul.f32 %v6194, %v6162
        %v6199 = vadd.f32 %v6103, %v6195
        %v6200 = vadd.f32 %v6104, %v6196
        %v6201 = vadd.f32 %v6105, %v6197
        %v6202 = vadd.f32 %v6106, %v6198
        %s6203 = sld [smem:[#allocation7 + $0x100]]
        %v6204 = vstv %s6203
        %v6205 = vmul.f32 %v6204, %v5959
        %v6206 = vmul.f32 %v6204, %v5960
        %v6207 = vmul.f32 %v6204, %v5961
        %v6208 = vmul.f32 %v6204, %v5962
        %s6209 = sld [smem:[#allocation7 + $0x101]]
        %v6210 = vstv %s6209
        %v6211 = vmul.f32 %v6210, %v5975
        %v6212 = vmul.f32 %v6210, %v5976
        %v6213 = vmul.f32 %v6210, %v5977
        %v6214 = vmul.f32 %v6210, %v5978
        %v6215 = vadd.f32 %v6205, %v6211
        %v6216 = vadd.f32 %v6206, %v6212
        %v6217 = vadd.f32 %v6207, %v6213
        %v6218 = vadd.f32 %v6208, %v6214
        %s6219 = sld [smem:[#allocation7 + $0x102]]
        %v6220 = vstv %s6219
        %v6221 = vmul.f32 %v6220, %v5991
        %v6222 = vmul.f32 %v6220, %v5992
        %v6223 = vmul.f32 %v6220, %v5993
        %v6224 = vmul.f32 %v6220, %v5994
        %v6225 = vadd.f32 %v6215, %v6221
        %v6226 = vadd.f32 %v6216, %v6222
        %v6227 = vadd.f32 %v6217, %v6223
        %v6228 = vadd.f32 %v6218, %v6224
        %s6229 = sld [smem:[#allocation7 + $0x103]]
        %v6230 = vstv %s6229
        %v6231 = vmul.f32 %v6230, %v6007
        %v6232 = vmul.f32 %v6230, %v6008
        %v6233 = vmul.f32 %v6230, %v6009
        %v6234 = vmul.f32 %v6230, %v6010
        %v6235 = vadd.f32 %v6225, %v6231
        %v6236 = vadd.f32 %v6226, %v6232
        %v6237 = vadd.f32 %v6227, %v6233
        %v6238 = vadd.f32 %v6228, %v6234
        %v6239 = vmul.f32 %v6235, 0.5
        %v6240 = vmul.f32 %v6236, 0.5
        %v6241 = vmul.f32 %v6237, 0.5
        %v6242 = vmul.f32 %v6238, 0.5
        %v6243 = vmul.f32 %v6235, 0.70710677
        %v6244 = vmul.f32 %v6236, 0.70710677
        %v6245 = vmul.f32 %v6237, 0.70710677
        %v6246 = vmul.f32 %v6238, 0.70710677
        %v6247 = verf.f32.pop %v6243
        %v6248 = verf.f32.pop %v6244
        %v6249 = verf.f32.pop %v6245
        %v6250 = verf.f32.pop %v6246
        %v6251 = vadd.f32 %v6247, 1.0
        %v6252 = vadd.f32 %v6248, 1.0
        %v6253 = vadd.f32 %v6249, 1.0
        %v6254 = vadd.f32 %v6250, 1.0
        %v6255 = vmul.f32 %v6239, %v6251
        %v6256 = vmul.f32 %v6240, %v6252
        %v6257 = vmul.f32 %v6241, %v6253
        %v6258 = vmul.f32 %v6242, %v6254
        %s6259 = sld [smem:[#allocation9 + $0x2]]
        %v6260 = vstv %s6259
        %v6261 = vmul.f32 %v6260, %v6255
        %v6262 = vmul.f32 %v6260, %v6256
        %v6263 = vmul.f32 %v6260, %v6257
        %v6264 = vmul.f32 %v6260, %v6258
        %v6265 = vadd.f32 %v6169, %v6261
        %v6266 = vadd.f32 %v6170, %v6262
        %v6267 = vadd.f32 %v6171, %v6263
        %v6268 = vadd.f32 %v6172, %v6264
        %s6269 = sld [smem:[#allocation9 + $0x82]]
        %v6270 = vstv %s6269
        %v6271 = vmul.f32 %v6270, %v6255
        %v6272 = vmul.f32 %v6270, %v6256
        %v6273 = vmul.f32 %v6270, %v6257
        %v6274 = vmul.f32 %v6270, %v6258
        %v6275 = vadd.f32 %v6179, %v6271
        %v6276 = vadd.f32 %v6180, %v6272
        %v6277 = vadd.f32 %v6181, %v6273
        %v6278 = vadd.f32 %v6182, %v6274
        %s6279 = sld [smem:[#allocation9 + $0x102]]
        %v6280 = vstv %s6279
        %v6281 = vmul.f32 %v6280, %v6255
        %v6282 = vmul.f32 %v6280, %v6256
        %v6283 = vmul.f32 %v6280, %v6257
        %v6284 = vmul.f32 %v6280, %v6258
        %v6285 = vadd.f32 %v6189, %v6281
        %v6286 = vadd.f32 %v6190, %v6282
        %v6287 = vadd.f32 %v6191, %v6283
        %v6288 = vadd.f32 %v6192, %v6284
        %s6289 = sld [smem:[#allocation9 + $0x182]]
        %v6290 = vstv %s6289
        %v6291 = vmul.f32 %v6290, %v6255
        %v6292 = vmul.f32 %v6290, %v6256
        %v6293 = vmul.f32 %v6290, %v6257
        %v6294 = vmul.f32 %v6290, %v6258
        %v6295 = vadd.f32 %v6199, %v6291
        %v6296 = vadd.f32 %v6200, %v6292
        %v6297 = vadd.f32 %v6201, %v6293
        %v6298 = vadd.f32 %v6202, %v6294
        %s6299 = sld [smem:[#allocation7 + $0x180]]
        %v6300 = vstv %s6299
        %v6301 = vmul.f32 %v6300, %v5959
        %v6302 = vmul.f32 %v6300, %v5960
        %v6303 = vmul.f32 %v6300, %v5961
        %v6304 = vmul.f32 %v6300, %v5962
        %s6305 = sld [smem:[#allocation7 + $0x181]]
        %v6306 = vstv %s6305
        %v6307 = vmul.f32 %v6306, %v5975
        %v6308 = vmul.f32 %v6306, %v5976
        %v6309 = vmul.f32 %v6306, %v5977
        %v6310 = vmul.f32 %v6306, %v5978
        %v6311 = vadd.f32 %v6301, %v6307
        %v6312 = vadd.f32 %v6302, %v6308
        %v6313 = vadd.f32 %v6303, %v6309
        %v6314 = vadd.f32 %v6304, %v6310
        %s6315 = sld [smem:[#allocation7 + $0x182]]
        %v6316 = vstv %s6315
        %v6317 = vmul.f32 %v6316, %v5991
        %v6318 = vmul.f32 %v6316, %v5992
        %v6319 = vmul.f32 %v6316, %v5993
        %v6320 = vmul.f32 %v6316, %v5994
        %v6321 = vadd.f32 %v6311, %v6317
        %v6322 = vadd.f32 %v6312, %v6318
        %v6323 = vadd.f32 %v6313, %v6319
        %v6324 = vadd.f32 %v6314, %v6320
        %s6325 = sld [smem:[#allocation7 + $0x183]]
        %v6326 = vstv %s6325
        %v6327 = vmul.f32 %v6326, %v6007
        %v6328 = vmul.f32 %v6326, %v6008
        %v6329 = vmul.f32 %v6326, %v6009
        %v6330 = vmul.f32 %v6326, %v6010
        %v6331 = vadd.f32 %v6321, %v6327
        %v6332 = vadd.f32 %v6322, %v6328
        %v6333 = vadd.f32 %v6323, %v6329
        %v6334 = vadd.f32 %v6324, %v6330
        %v6335 = vmul.f32 %v6331, 0.5
        %v6336 = vmul.f32 %v6332, 0.5
        %v6337 = vmul.f32 %v6333, 0.5
        %v6338 = vmul.f32 %v6334, 0.5
        %v6339 = vmul.f32 %v6331, 0.70710677
        %v6340 = vmul.f32 %v6332, 0.70710677
        %v6341 = vmul.f32 %v6333, 0.70710677
        %v6342 = vmul.f32 %v6334, 0.70710677
        %v6343 = verf.f32.pop %v6339
        %v6344 = verf.f32.pop %v6340
        %v6345 = verf.f32.pop %v6341
        %v6346 = verf.f32.pop %v6342
        %v6347 = vadd.f32 %v6343, 1.0
        %v6348 = vadd.f32 %v6344, 1.0
        %v6349 = vadd.f32 %v6345, 1.0
        %v6350 = vadd.f32 %v6346, 1.0
        %v6351 = vmul.f32 %v6335, %v6347
        %v6352 = vmul.f32 %v6336, %v6348
        %v6353 = vmul.f32 %v6337, %v6349
        %v6354 = vmul.f32 %v6338, %v6350
        %s6355 = sld [smem:[#allocation9 + $0x3]]
        %v6356 = vstv %s6355
        %v6357 = vmul.f32 %v6356, %v6351
        %v6358 = vmul.f32 %v6356, %v6352
        %v6359 = vmul.f32 %v6356, %v6353
        %v6360 = vmul.f32 %v6356, %v6354
        %v6361 = vadd.f32 %v6265, %v6357
        %v6362 = vadd.f32 %v6266, %v6358
        %v6363 = vadd.f32 %v6267, %v6359
        %v6364 = vadd.f32 %v6268, %v6360
        %s6365 = sld [smem:[#allocation9 + $0x83]]
        %v6366 = vstv %s6365
        %v6367 = vmul.f32 %v6366, %v6351
        %v6368 = vmul.f32 %v6366, %v6352
        %v6369 = vmul.f32 %v6366, %v6353
        %v6370 = vmul.f32 %v6366, %v6354
        %v6371 = vadd.f32 %v6275, %v6367
        %v6372 = vadd.f32 %v6276, %v6368
        %v6373 = vadd.f32 %v6277, %v6369
        %v6374 = vadd.f32 %v6278, %v6370
        %s6375 = sld [smem:[#allocation9 + $0x103]]
        %v6376 = vstv %s6375
        %v6377 = vmul.f32 %v6376, %v6351
        %v6378 = vmul.f32 %v6376, %v6352
        %v6379 = vmul.f32 %v6376, %v6353
        %v6380 = vmul.f32 %v6376, %v6354
        %v6381 = vadd.f32 %v6285, %v6377
        %v6382 = vadd.f32 %v6286, %v6378
        %v6383 = vadd.f32 %v6287, %v6379
        %v6384 = vadd.f32 %v6288, %v6380
        %s6385 = sld [smem:[#allocation9 + $0x183]]
        %v6386 = vstv %s6385
        %v6387 = vmul.f32 %v6386, %v6351
        %v6388 = vmul.f32 %v6386, %v6352
        %v6389 = vmul.f32 %v6386, %v6353
        %v6390 = vmul.f32 %v6386, %v6354
        %v6391 = vadd.f32 %v6295, %v6387
        %v6392 = vadd.f32 %v6296, %v6388
        %v6393 = vadd.f32 %v6297, %v6389
        %v6394 = vadd.f32 %v6298, %v6390
        %s6395 = sld [smem:[#allocation7 + $0x200]]
        %v6396 = vstv %s6395
        %v6397 = vmul.f32 %v6396, %v5959
        %v6398 = vmul.f32 %v6396, %v5960
        %v6399 = vmul.f32 %v6396, %v5961
        %v6400 = vmul.f32 %v6396, %v5962
        %s6401 = sld [smem:[#allocation7 + $0x201]]
        %v6402 = vstv %s6401
        %v6403 = vmul.f32 %v6402, %v5975
        %v6404 = vmul.f32 %v6402, %v5976
        %v6405 = vmul.f32 %v6402, %v5977
        %v6406 = vmul.f32 %v6402, %v5978
        %v6407 = vadd.f32 %v6397, %v6403
        %v6408 = vadd.f32 %v6398, %v6404
        %v6409 = vadd.f32 %v6399, %v6405
        %v6410 = vadd.f32 %v6400, %v6406
        %s6411 = sld [smem:[#allocation7 + $0x202]]
        %v6412 = vstv %s6411
        %v6413 = vmul.f32 %v6412, %v5991
        %v6414 = vmul.f32 %v6412, %v5992
        %v6415 = vmul.f32 %v6412, %v5993
        %v6416 = vmul.f32 %v6412, %v5994
        %v6417 = vadd.f32 %v6407, %v6413
        %v6418 = vadd.f32 %v6408, %v6414
        %v6419 = vadd.f32 %v6409, %v6415
        %v6420 = vadd.f32 %v6410, %v6416
        %s6421 = sld [smem:[#allocation7 + $0x203]]
        %v6422 = vstv %s6421
        %v6423 = vmul.f32 %v6422, %v6007
        %v6424 = vmul.f32 %v6422, %v6008
        %v6425 = vmul.f32 %v6422, %v6009
        %v6426 = vmul.f32 %v6422, %v6010
        %v6427 = vadd.f32 %v6417, %v6423
        %v6428 = vadd.f32 %v6418, %v6424
        %v6429 = vadd.f32 %v6419, %v6425
        %v6430 = vadd.f32 %v6420, %v6426
        %v6431 = vmul.f32 %v6427, 0.5
        %v6432 = vmul.f32 %v6428, 0.5
        %v6433 = vmul.f32 %v6429, 0.5
        %v6434 = vmul.f32 %v6430, 0.5
        %v6435 = vmul.f32 %v6427, 0.70710677
        %v6436 = vmul.f32 %v6428, 0.70710677
        %v6437 = vmul.f32 %v6429, 0.70710677
        %v6438 = vmul.f32 %v6430, 0.70710677
        %v6439 = verf.f32.pop %v6435
        %v6440 = verf.f32.pop %v6436
        %v6441 = verf.f32.pop %v6437
        %v6442 = verf.f32.pop %v6438
        %v6443 = vadd.f32 %v6439, 1.0
        %v6444 = vadd.f32 %v6440, 1.0
        %v6445 = vadd.f32 %v6441, 1.0
        %v6446 = vadd.f32 %v6442, 1.0
        %v6447 = vmul.f32 %v6431, %v6443
        %v6448 = vmul.f32 %v6432, %v6444
        %v6449 = vmul.f32 %v6433, %v6445
        %v6450 = vmul.f32 %v6434, %v6446
        %s6451 = sld [smem:[#allocation9 + $0x4]]
        %v6452 = vstv %s6451
        %v6453 = vmul.f32 %v6452, %v6447
        %v6454 = vmul.f32 %v6452, %v6448
        %v6455 = vmul.f32 %v6452, %v6449
        %v6456 = vmul.f32 %v6452, %v6450
        %v6457 = vadd.f32 %v6361, %v6453
        %v6458 = vadd.f32 %v6362, %v6454
        %v6459 = vadd.f32 %v6363, %v6455
        %v6460 = vadd.f32 %v6364, %v6456
        %s6461 = sld [smem:[#allocation9 + $0x84]]
        %v6462 = vstv %s6461
        %v6463 = vmul.f32 %v6462, %v6447
        %v6464 = vmul.f32 %v6462, %v6448
        %v6465 = vmul.f32 %v6462, %v6449
        %v6466 = vmul.f32 %v6462, %v6450
        %v6467 = vadd.f32 %v6371, %v6463
        %v6468 = vadd.f32 %v6372, %v6464
        %v6469 = vadd.f32 %v6373, %v6465
        %v6470 = vadd.f32 %v6374, %v6466
        %s6471 = sld [smem:[#allocation9 + $0x104]]
        %v6472 = vstv %s6471
        %v6473 = vmul.f32 %v6472, %v6447
        %v6474 = vmul.f32 %v6472, %v6448
        %v6475 = vmul.f32 %v6472, %v6449
        %v6476 = vmul.f32 %v6472, %v6450
        %v6477 = vadd.f32 %v6381, %v6473
        %v6478 = vadd.f32 %v6382, %v6474
        %v6479 = vadd.f32 %v6383, %v6475
        %v6480 = vadd.f32 %v6384, %v6476
        %s6481 = sld [smem:[#allocation9 + $0x184]]
        %v6482 = vstv %s6481
        %v6483 = vmul.f32 %v6482, %v6447
        %v6484 = vmul.f32 %v6482, %v6448
        %v6485 = vmul.f32 %v6482, %v6449
        %v6486 = vmul.f32 %v6482, %v6450
        %v6487 = vadd.f32 %v6391, %v6483
        %v6488 = vadd.f32 %v6392, %v6484
        %v6489 = vadd.f32 %v6393, %v6485
        %v6490 = vadd.f32 %v6394, %v6486
        %s6491 = sld [smem:[#allocation7 + $0x280]]
        %v6492 = vstv %s6491
        %v6493 = vmul.f32 %v6492, %v5959
        %v6494 = vmul.f32 %v6492, %v5960
        %v6495 = vmul.f32 %v6492, %v5961
        %v6496 = vmul.f32 %v6492, %v5962
        %s6497 = sld [smem:[#allocation7 + $0x281]]
        %v6498 = vstv %s6497
        %v6499 = vmul.f32 %v6498, %v5975
        %v6500 = vmul.f32 %v6498, %v5976
        %v6501 = vmul.f32 %v6498, %v5977
        %v6502 = vmul.f32 %v6498, %v5978
        %v6503 = vadd.f32 %v6493, %v6499
        %v6504 = vadd.f32 %v6494, %v6500
        %v6505 = vadd.f32 %v6495, %v6501
        %v6506 = vadd.f32 %v6496, %v6502
        %s6507 = sld [smem:[#allocation7 + $0x282]]
        %v6508 = vstv %s6507
        %v6509 = vmul.f32 %v6508, %v5991
        %v6510 = vmul.f32 %v6508, %v5992
        %v6511 = vmul.f32 %v6508, %v5993
        %v6512 = vmul.f32 %v6508, %v5994
        %v6513 = vadd.f32 %v6503, %v6509
        %v6514 = vadd.f32 %v6504, %v6510
        %v6515 = vadd.f32 %v6505, %v6511
        %v6516 = vadd.f32 %v6506, %v6512
        %s6517 = sld [smem:[#allocation7 + $0x283]]
        %v6518 = vstv %s6517
        %v6519 = vmul.f32 %v6518, %v6007
        %v6520 = vmul.f32 %v6518, %v6008
        %v6521 = vmul.f32 %v6518, %v6009
        %v6522 = vmul.f32 %v6518, %v6010
        %v6523 = vadd.f32 %v6513, %v6519
        %v6524 = vadd.f32 %v6514, %v6520
        %v6525 = vadd.f32 %v6515, %v6521
        %v6526 = vadd.f32 %v6516, %v6522
        %v6527 = vmul.f32 %v6523, 0.5
        %v6528 = vmul.f32 %v6524, 0.5
        %v6529 = vmul.f32 %v6525, 0.5
        %v6530 = vmul.f32 %v6526, 0.5
        %v6531 = vmul.f32 %v6523, 0.70710677
        %v6532 = vmul.f32 %v6524, 0.70710677
        %v6533 = vmul.f32 %v6525, 0.70710677
        %v6534 = vmul.f32 %v6526, 0.70710677
        %v6535 = verf.f32.pop %v6531
        %v6536 = verf.f32.pop %v6532
        %v6537 = verf.f32.pop %v6533
        %v6538 = verf.f32.pop %v6534
        %v6539 = vadd.f32 %v6535, 1.0
        %v6540 = vadd.f32 %v6536, 1.0
        %v6541 = vadd.f32 %v6537, 1.0
        %v6542 = vadd.f32 %v6538, 1.0
        %v6543 = vmul.f32 %v6527, %v6539
        %v6544 = vmul.f32 %v6528, %v6540
        %v6545 = vmul.f32 %v6529, %v6541
        %v6546 = vmul.f32 %v6530, %v6542
        %s6547 = sld [smem:[#allocation9 + $0x5]]
        %v6548 = vstv %s6547
        %v6549 = vmul.f32 %v6548, %v6543
        %v6550 = vmul.f32 %v6548, %v6544
        %v6551 = vmul.f32 %v6548, %v6545
        %v6552 = vmul.f32 %v6548, %v6546
        %v6553 = vadd.f32 %v6457, %v6549
        %v6554 = vadd.f32 %v6458, %v6550
        %v6555 = vadd.f32 %v6459, %v6551
        %v6556 = vadd.f32 %v6460, %v6552
        %s6557 = sld [smem:[#allocation9 + $0x85]]
        %v6558 = vstv %s6557
        %v6559 = vmul.f32 %v6558, %v6543
        %v6560 = vmul.f32 %v6558, %v6544
        %v6561 = vmul.f32 %v6558, %v6545
        %v6562 = vmul.f32 %v6558, %v6546
        %v6563 = vadd.f32 %v6467, %v6559
        %v6564 = vadd.f32 %v6468, %v6560
        %v6565 = vadd.f32 %v6469, %v6561
        %v6566 = vadd.f32 %v6470, %v6562
        %s6567 = sld [smem:[#allocation9 + $0x105]]
        %v6568 = vstv %s6567
        %v6569 = vmul.f32 %v6568, %v6543
        %v6570 = vmul.f32 %v6568, %v6544
        %v6571 = vmul.f32 %v6568, %v6545
        %v6572 = vmul.f32 %v6568, %v6546
        %v6573 = vadd.f32 %v6477, %v6569
        %v6574 = vadd.f32 %v6478, %v6570
        %v6575 = vadd.f32 %v6479, %v6571
        %v6576 = vadd.f32 %v6480, %v6572
        %s6577 = sld [smem:[#allocation9 + $0x185]]
        %v6578 = vstv %s6577
        %v6579 = vmul.f32 %v6578, %v6543
        %v6580 = vmul.f32 %v6578, %v6544
        %v6581 = vmul.f32 %v6578, %v6545
        %v6582 = vmul.f32 %v6578, %v6546
        %v6583 = vadd.f32 %v6487, %v6579
        %v6584 = vadd.f32 %v6488, %v6580
        %v6585 = vadd.f32 %v6489, %v6581
        %v6586 = vadd.f32 %v6490, %v6582
        %s6587 = sld [smem:[#allocation7 + $0x300]]
        %v6588 = vstv %s6587
        %v6589 = vmul.f32 %v6588, %v5959
        %v6590 = vmul.f32 %v6588, %v5960
        %v6591 = vmul.f32 %v6588, %v5961
        %v6592 = vmul.f32 %v6588, %v5962
        %s6593 = sld [smem:[#allocation7 + $0x301]]
        %v6594 = vstv %s6593
        %v6595 = vmul.f32 %v6594, %v5975
        %v6596 = vmul.f32 %v6594, %v5976
        %v6597 = vmul.f32 %v6594, %v5977
        %v6598 = vmul.f32 %v6594, %v5978
        %v6599 = vadd.f32 %v6589, %v6595
        %v6600 = vadd.f32 %v6590, %v6596
        %v6601 = vadd.f32 %v6591, %v6597
        %v6602 = vadd.f32 %v6592, %v6598
        %s6603 = sld [smem:[#allocation7 + $0x302]]
        %v6604 = vstv %s6603
        %v6605 = vmul.f32 %v6604, %v5991
        %v6606 = vmul.f32 %v6604, %v5992
        %v6607 = vmul.f32 %v6604, %v5993
        %v6608 = vmul.f32 %v6604, %v5994
        %v6609 = vadd.f32 %v6599, %v6605
        %v6610 = vadd.f32 %v6600, %v6606
        %v6611 = vadd.f32 %v6601, %v6607
        %v6612 = vadd.f32 %v6602, %v6608
        %s6613 = sld [smem:[#allocation7 + $0x303]]
        %v6614 = vstv %s6613
        %v6615 = vmul.f32 %v6614, %v6007
        %v6616 = vmul.f32 %v6614, %v6008
        %v6617 = vmul.f32 %v6614, %v6009
        %v6618 = vmul.f32 %v6614, %v6010
        %v6619 = vadd.f32 %v6609, %v6615
        %v6620 = vadd.f32 %v6610, %v6616
        %v6621 = vadd.f32 %v6611, %v6617
        %v6622 = vadd.f32 %v6612, %v6618
        %v6623 = vmul.f32 %v6619, 0.5
        %v6624 = vmul.f32 %v6620, 0.5
        %v6625 = vmul.f32 %v6621, 0.5
        %v6626 = vmul.f32 %v6622, 0.5
        %v6627 = vmul.f32 %v6619, 0.70710677
        %v6628 = vmul.f32 %v6620, 0.70710677
        %v6629 = vmul.f32 %v6621, 0.70710677
        %v6630 = vmul.f32 %v6622, 0.70710677
        %v6631 = verf.f32.pop %v6627
        %v6632 = verf.f32.pop %v6628
        %v6633 = verf.f32.pop %v6629
        %v6634 = verf.f32.pop %v6630
        %v6635 = vadd.f32 %v6631, 1.0
        %v6636 = vadd.f32 %v6632, 1.0
        %v6637 = vadd.f32 %v6633, 1.0
        %v6638 = vadd.f32 %v6634, 1.0
        %v6639 = vmul.f32 %v6623, %v6635
        %v6640 = vmul.f32 %v6624, %v6636
        %v6641 = vmul.f32 %v6625, %v6637
        %v6642 = vmul.f32 %v6626, %v6638
        %s6643 = sld [smem:[#allocation9 + $0x6]]
        %v6644 = vstv %s6643
        %v6645 = vmul.f32 %v6644, %v6639
        %v6646 = vmul.f32 %v6644, %v6640
        %v6647 = vmul.f32 %v6644, %v6641
        %v6648 = vmul.f32 %v6644, %v6642
        %v6649 = vadd.f32 %v6553, %v6645
        %v6650 = vadd.f32 %v6554, %v6646
        %v6651 = vadd.f32 %v6555, %v6647
        %v6652 = vadd.f32 %v6556, %v6648
        %s6653 = sld [smem:[#allocation9 + $0x86]]
        %v6654 = vstv %s6653
        %v6655 = vmul.f32 %v6654, %v6639
        %v6656 = vmul.f32 %v6654, %v6640
        %v6657 = vmul.f32 %v6654, %v6641
        %v6658 = vmul.f32 %v6654, %v6642
        %v6659 = vadd.f32 %v6563, %v6655
        %v6660 = vadd.f32 %v6564, %v6656
        %v6661 = vadd.f32 %v6565, %v6657
        %v6662 = vadd.f32 %v6566, %v6658
        %s6663 = sld [smem:[#allocation9 + $0x106]]
        %v6664 = vstv %s6663
        %v6665 = vmul.f32 %v6664, %v6639
        %v6666 = vmul.f32 %v6664, %v6640
        %v6667 = vmul.f32 %v6664, %v6641
        %v6668 = vmul.f32 %v6664, %v6642
        %v6669 = vadd.f32 %v6573, %v6665
        %v6670 = vadd.f32 %v6574, %v6666
        %v6671 = vadd.f32 %v6575, %v6667
        %v6672 = vadd.f32 %v6576, %v6668
        %s6673 = sld [smem:[#allocation9 + $0x186]]
        %v6674 = vstv %s6673
        %v6675 = vmul.f32 %v6674, %v6639
        %v6676 = vmul.f32 %v6674, %v6640
        %v6677 = vmul.f32 %v6674, %v6641
        %v6678 = vmul.f32 %v6674, %v6642
        %v6679 = vadd.f32 %v6583, %v6675
        %v6680 = vadd.f32 %v6584, %v6676
        %v6681 = vadd.f32 %v6585, %v6677
        %v6682 = vadd.f32 %v6586, %v6678
        %s6683 = sld [smem:[#allocation7 + $0x380]]
        %v6684 = vstv %s6683
        %v6685 = vmul.f32 %v6684, %v5959
        %v6686 = vmul.f32 %v6684, %v5960
        %v6687 = vmul.f32 %v6684, %v5961
        %v6688 = vmul.f32 %v6684, %v5962
        %s6689 = sld [smem:[#allocation7 + $0x381]]
        %v6690 = vstv %s6689
        %v6691 = vmul.f32 %v6690, %v5975
        %v6692 = vmul.f32 %v6690, %v5976
        %v6693 = vmul.f32 %v6690, %v5977
        %v6694 = vmul.f32 %v6690, %v5978
        %v6695 = vadd.f32 %v6685, %v6691
        %v6696 = vadd.f32 %v6686, %v6692
        %v6697 = vadd.f32 %v6687, %v6693
        %v6698 = vadd.f32 %v6688, %v6694
        %s6699 = sld [smem:[#allocation7 + $0x382]]
        %v6700 = vstv %s6699
        %v6701 = vmul.f32 %v6700, %v5991
        %v6702 = vmul.f32 %v6700, %v5992
        %v6703 = vmul.f32 %v6700, %v5993
        %v6704 = vmul.f32 %v6700, %v5994
        %v6705 = vadd.f32 %v6695, %v6701
        %v6706 = vadd.f32 %v6696, %v6702
        %v6707 = vadd.f32 %v6697, %v6703
        %v6708 = vadd.f32 %v6698, %v6704
        %s6709 = sld [smem:[#allocation7 + $0x383]]
        %v6710 = vstv %s6709
        %v6711 = vmul.f32 %v6710, %v6007
        %v6712 = vmul.f32 %v6710, %v6008
        %v6713 = vmul.f32 %v6710, %v6009
        %v6714 = vmul.f32 %v6710, %v6010
        %v6715 = vadd.f32 %v6705, %v6711
        %v6716 = vadd.f32 %v6706, %v6712
        %v6717 = vadd.f32 %v6707, %v6713
        %v6718 = vadd.f32 %v6708, %v6714
        %v6719 = vmul.f32 %v6715, 0.5
        %v6720 = vmul.f32 %v6716, 0.5
        %v6721 = vmul.f32 %v6717, 0.5
        %v6722 = vmul.f32 %v6718, 0.5
        %v6723 = vmul.f32 %v6715, 0.70710677
        %v6724 = vmul.f32 %v6716, 0.70710677
        %v6725 = vmul.f32 %v6717, 0.70710677
        %v6726 = vmul.f32 %v6718, 0.70710677
        %v6727 = verf.f32.pop %v6723
        %v6728 = verf.f32.pop %v6724
        %v6729 = verf.f32.pop %v6725
        %v6730 = verf.f32.pop %v6726
        %v6731 = vadd.f32 %v6727, 1.0
        %v6732 = vadd.f32 %v6728, 1.0
        %v6733 = vadd.f32 %v6729, 1.0
        %v6734 = vadd.f32 %v6730, 1.0
        %v6735 = vmul.f32 %v6719, %v6731
        %v6736 = vmul.f32 %v6720, %v6732
        %v6737 = vmul.f32 %v6721, %v6733
        %v6738 = vmul.f32 %v6722, %v6734
        %s6739 = sld [smem:[#allocation9 + $0x7]]
        %v6740 = vstv %s6739
        %v6741 = vmul.f32 %v6740, %v6735
        %v6742 = vmul.f32 %v6740, %v6736
        %v6743 = vmul.f32 %v6740, %v6737
        %v6744 = vmul.f32 %v6740, %v6738
        %v6745 = vadd.f32 %v6649, %v6741
        %v6746 = vadd.f32 %v6650, %v6742
        %v6747 = vadd.f32 %v6651, %v6743
        %v6748 = vadd.f32 %v6652, %v6744
        %s6749 = sld [smem:[#allocation9 + $0x87]]
        %v6750 = vstv %s6749
        %v6751 = vmul.f32 %v6750, %v6735
        %v6752 = vmul.f32 %v6750, %v6736
        %v6753 = vmul.f32 %v6750, %v6737
        %v6754 = vmul.f32 %v6750, %v6738
        %v6755 = vadd.f32 %v6659, %v6751
        %v6756 = vadd.f32 %v6660, %v6752
        %v6757 = vadd.f32 %v6661, %v6753
        %v6758 = vadd.f32 %v6662, %v6754
        %s6759 = sld [smem:[#allocation9 + $0x107]]
        %v6760 = vstv %s6759
        %v6761 = vmul.f32 %v6760, %v6735
        %v6762 = vmul.f32 %v6760, %v6736
        %v6763 = vmul.f32 %v6760, %v6737
        %v6764 = vmul.f32 %v6760, %v6738
        %v6765 = vadd.f32 %v6669, %v6761
        %v6766 = vadd.f32 %v6670, %v6762
        %v6767 = vadd.f32 %v6671, %v6763
        %v6768 = vadd.f32 %v6672, %v6764
        %s6769 = sld [smem:[#allocation9 + $0x187]]
        %v6770 = vstv %s6769
        %v6771 = vmul.f32 %v6770, %v6735
        %v6772 = vmul.f32 %v6770, %v6736
        %v6773 = vmul.f32 %v6770, %v6737
        %v6774 = vmul.f32 %v6770, %v6738
        %v6775 = vadd.f32 %v6679, %v6771
        %v6776 = vadd.f32 %v6680, %v6772
        %v6777 = vadd.f32 %v6681, %v6773
        %v6778 = vadd.f32 %v6682, %v6774
        %6779 = vst [vmem:[%s289] sm:$0xff] %v6745
        %6780 = vst [vmem:[%s289 + $0x8] sm:$0xff] %v6746
        %6781 = vst [vmem:[%s289 + $0x10] sm:$0xff] %v6747
        %6782 = vst [vmem:[%s289 + $0x18] sm:$0xff] %v6748
        %s6783 = scalar_lea.vmem %s289, 32 [#allocation10]
        %6784 = vst [vmem:[%s6783] sm:$0xff] %v6755
        %6785 = vst [vmem:[%s6783 + $0x8] sm:$0xff] %v6756
        %6786 = vst [vmem:[%s6783 + $0x10] sm:$0xff] %v6757
        %6787 = vst [vmem:[%s6783 + $0x18] sm:$0xff] %v6758
        %s6788 = scalar_lea.vmem %s289, 64 [#allocation10]
        %6789 = vst [vmem:[%s6788] sm:$0xff] %v6765
        %6790 = vst [vmem:[%s6788 + $0x8] sm:$0xff] %v6766
        %6791 = vst [vmem:[%s6788 + $0x10] sm:$0xff] %v6767
        %6792 = vst [vmem:[%s6788 + $0x18] sm:$0xff] %v6768
        %s6793 = scalar_lea.vmem %s289, 96 [#allocation10]
        %6794 = vst [vmem:[%s6793] sm:$0xff] %v6775
        %6795 = vst [vmem:[%s6793 + $0x8] sm:$0xff] %v6776
        %6796 = vst [vmem:[%s6793 + $0x10] sm:$0xff] %v6777
        %6797 = vst [vmem:[%s6793 + $0x18] sm:$0xff] %v6778
        %s6798 = sand.u32 %s154, 1
        %s6799 = sand.u32 %s154, 1
        %s6800 = smul.addr %s6799, 128
        %s6801 = scalar_lea.vmem [#allocation10], %s6800
        // Predicated region
        $region65: #{depthwise_conv_module.1} parent=43 // pred_check
          %p6802 = pneg %p164
        $region66: #{depthwise_conv_module.1} parent=43 // pred_check_branch
          %6804 = sbr.rel (%p6802) target = $region68
        $region67: #{depthwise_conv_module.1} parent=43 // pred_region
          %s6805 = smul.u32 4, %s20
          %s6806 = smul.addr %s6805, 8
          %s6807 = scalar_lea.vmem %s6, %s6806
          // Predicated region
          $region69: #{depthwise_conv_module.1} parent=67 // pred_check
            _
          $region70: #{depthwise_conv_module.1} parent=67 // pred_check_branch
            %6809 = sbr.rel (0) target = $region72
          $region71: #{depthwise_conv_module.1} parent=67 // pred_region
            // Predicated region
            $region73: #{depthwise_conv_module.1} parent=71 // pred_check
              _
            $region74: #{depthwise_conv_module.1} parent=71 // pred_check_branch
              %6811 = sbr.rel (0) target = $region76
            $region75: #{depthwise_conv_module.1} parent=71 // pred_region
              // Predicated region
              $region88: #{depthwise_conv_module.1} parent=75 // pred_check
                _
              $region89: #{depthwise_conv_module.1} parent=75 // pred_check_branch
                %6856 = sbr.rel (0) target = $region91
              $region90: #{depthwise_conv_module.1} parent=75 // pred_region
                loop: start=0, step=1, limit=1
                $region92: #{depthwise_conv_module.1} parent=90 // loop_pre_header
                  _
                $region93: #{depthwise_conv_module.1} parent=90 // loop_header
                  %s6858 = sphi 0, %s6862
                  %p6859 = scmp.ge.s32.totalorder %s6858, 1
                  %s6863 = sphi %s6801, %s6801
                  %s6864 = sphi %s6807, %s6807
                $region94: #{depthwise_conv_module.1} parent=90 // loop_header_branch
                  %6861 = sbr.rel (%p6859) target = $region98
                $region95: #{depthwise_conv_module.1} parent=90 // loop_body
                  %v6865 = vld [vmem:[%s6863] sm:$0xff]
                  %6866 = vst [vmem:[%s6864] sm:$0xff] %v6865
                  %v6867 = vld [vmem:[%s6863 + $0x8] sm:$0xff]
                  %6868 = vst [vmem:[%s6864 + $0x8] sm:$0xff] %v6867
                  %v6869 = vld [vmem:[%s6863 + $0x10] sm:$0xff]
                  %6870 = vst [vmem:[%s6864 + $0x10] sm:$0xff] %v6869
                  %v6871 = vld [vmem:[%s6863 + $0x18] sm:$0xff]
                  %6872 = vst [vmem:[%s6864 + $0x18] sm:$0xff] %v6871
                  %v6873 = vld [vmem:[%s6863 + $0x20] sm:$0xff]
                  %6874 = vst [vmem:[%s6864 + $0x40] sm:$0xff] %v6873
                  %v6875 = vld [vmem:[%s6863 + $0x28] sm:$0xff]
                  %6876 = vst [vmem:[%s6864 + $0x48] sm:$0xff] %v6875
                  %v6877 = vld [vmem:[%s6863 + $0x30] sm:$0xff]
                  %6878 = vst [vmem:[%s6864 + $0x50] sm:$0xff] %v6877
                  %v6879 = vld [vmem:[%s6863 + $0x38] sm:$0xff]
                  %6880 = vst [vmem:[%s6864 + $0x58] sm:$0xff] %v6879
                  %v6881 = vld [vmem:[%s6863 + $0x40] sm:$0xff]
                  %6882 = vst [vmem:[%s6864 + $0x80] sm:$0xff] %v6881
                  %v6883 = vld [vmem:[%s6863 + $0x48] sm:$0xff]
                  %6884 = vst [vmem:[%s6864 + $0x88] sm:$0xff] %v6883
                  %v6885 = vld [vmem:[%s6863 + $0x50] sm:$0xff]
                  %6886 = vst [vmem:[%s6864 + $0x90] sm:$0xff] %v6885
                  %v6887 = vld [vmem:[%s6863 + $0x58] sm:$0xff]
                  %6888 = vst [vmem:[%s6864 + $0x98] sm:$0xff] %v6887
                  %v6889 = vld [vmem:[%s6863 + $0x60] sm:$0xff]
                  %6890 = vst [vmem:[%s6864 + $0xc0] sm:$0xff] %v6889
                  %v6891 = vld [vmem:[%s6863 + $0x68] sm:$0xff]
                  %6892 = vst [vmem:[%s6864 + $0xc8] sm:$0xff] %v6891
                  %v6893 = vld [vmem:[%s6863 + $0x70] sm:$0xff]
                  %6894 = vst [vmem:[%s6864 + $0xd0] sm:$0xff] %v6893
                  %v6895 = vld [vmem:[%s6863 + $0x78] sm:$0xff]
                  %6896 = vst [vmem:[%s6864 + $0xd8] sm:$0xff] %v6895
                $region96: #{depthwise_conv_module.1} parent=90 // loop_footer
                  %s6862 = sadd.s32 1, %s6858
                $region97: #{depthwise_conv_module.1} parent=90 // loop_footer_branch
                  %6857 = sbr.rel target = $region93
                $region98: #{depthwise_conv_module.1} parent=90 // loop_exit
                  _
              $region91: #{depthwise_conv_module.1} parent=75 // pred_fallthru
                _
              // Predicated region
              $region99: #{depthwise_conv_module.1} parent=75 // pred_check
                _
              $region100: #{depthwise_conv_module.1} parent=75 // pred_check_branch
                %6898 = sbr.rel target = $region102
              $region101: #{depthwise_conv_module.1} parent=75 // pred_region
                _
              $region102: #{depthwise_conv_module.1} parent=75 // pred_fallthru
                _
            $region76: #{depthwise_conv_module.1} parent=71 // pred_fallthru
              _
            // Predicated region
            $region77: #{depthwise_conv_module.1} parent=71 // pred_check
              _
            $region78: #{depthwise_conv_module.1} parent=71 // pred_check_branch
              %6813 = sbr.rel target = $region80
            $region79: #{depthwise_conv_module.1} parent=71 // pred_region
              loop: start=0, step=1, limit=1
              $region81: #{depthwise_conv_module.1} parent=79 // loop_pre_header
                _
              $region82: #{depthwise_conv_module.1} parent=79 // loop_header
                %s6816 = sphi 0, %s6820
                %p6817 = scmp.ge.s32.totalorder %s6816, 1
                %s6821 = sphi %s6801, %s6801
                %s6822 = sphi %s6807, %s6807
              $region83: #{depthwise_conv_module.1} parent=79 // loop_header_branch
                %6819 = sbr.rel (%p6817) target = $region87
              $region84: #{depthwise_conv_module.1} parent=79 // loop_body
                %v6823 = vld [vmem:[%s6821] sm:$0xff]
                %6824 = vst [vmem:[%s6822] sm:$0xff] %v6823
                %v6825 = vld [vmem:[%s6821 + $0x8] sm:$0xff]
                %6826 = vst [vmem:[%s6822 + $0x8] sm:$0xff] %v6825
                %v6827 = vld [vmem:[%s6821 + $0x10] sm:$0xff]
                %6828 = vst [vmem:[%s6822 + $0x10] sm:$0xff] %v6827
                %v6829 = vld [vmem:[%s6821 + $0x18] sm:$0xff]
                %6830 = vst [vmem:[%s6822 + $0x18] sm:$0xff] %v6829
                %v6831 = vld [vmem:[%s6821 + $0x20] sm:$0xff]
                %6832 = vst [vmem:[%s6822 + $0x40] sm:$0xff] %v6831
                %v6833 = vld [vmem:[%s6821 + $0x28] sm:$0xff]
                %6834 = vst [vmem:[%s6822 + $0x48] sm:$0xff] %v6833
                %v6835 = vld [vmem:[%s6821 + $0x30] sm:$0xff]
                %6836 = vst [vmem:[%s6822 + $0x50] sm:$0xff] %v6835
                %v6837 = vld [vmem:[%s6821 + $0x38] sm:$0xff]
                %6838 = vst [vmem:[%s6822 + $0x58] sm:$0xff] %v6837
                %v6839 = vld [vmem:[%s6821 + $0x40] sm:$0xff]
                %6840 = vst [vmem:[%s6822 + $0x80] sm:$0xff] %v6839
                %v6841 = vld [vmem:[%s6821 + $0x48] sm:$0xff]
                %6842 = vst [vmem:[%s6822 + $0x88] sm:$0xff] %v6841
                %v6843 = vld [vmem:[%s6821 + $0x50] sm:$0xff]
                %6844 = vst [vmem:[%s6822 + $0x90] sm:$0xff] %v6843
                %v6845 = vld [vmem:[%s6821 + $0x58] sm:$0xff]
                %6846 = vst [vmem:[%s6822 + $0x98] sm:$0xff] %v6845
                %v6847 = vld [vmem:[%s6821 + $0x60] sm:$0xff]
                %6848 = vst [vmem:[%s6822 + $0xc0] sm:$0xff] %v6847
                %v6849 = vld [vmem:[%s6821 + $0x68] sm:$0xff]
                %6850 = vst [vmem:[%s6822 + $0xc8] sm:$0xff] %v6849
                %v6851 = vld [vmem:[%s6821 + $0x70] sm:$0xff]
                %6852 = vst [vmem:[%s6822 + $0xd0] sm:$0xff] %v6851
                %v6853 = vld [vmem:[%s6821 + $0x78] sm:$0xff]
                %6854 = vst [vmem:[%s6822 + $0xd8] sm:$0xff] %v6853
              $region85: #{depthwise_conv_module.1} parent=79 // loop_footer
                %s6820 = sadd.s32 1, %s6816
              $region86: #{depthwise_conv_module.1} parent=79 // loop_footer_branch
                %6815 = sbr.rel target = $region82
              $region87: #{depthwise_conv_module.1} parent=79 // loop_exit
                _
            $region80: #{depthwise_conv_module.1} parent=71 // pred_fallthru
              _
          $region72: #{depthwise_conv_module.1} parent=67 // pred_fallthru
            _
          %6899 = vnop
        $region68: #{depthwise_conv_module.1} parent=43 // pred_fallthru
          _
      $region44: #{depthwise_conv_module.1} parent=5 // pred_fallthru
        _
      %p6900 = scmp.le.s32.totalorder 2, %s15
      // Predicated region
      $region103: #{depthwise_conv_module.1} parent=5 // pred_check
        %p6901 = pneg %p6900
      $region104: #{depthwise_conv_module.1} parent=5 // pred_check_branch
        %6903 = sbr.rel (%p6901) target = $region106
      $region105: #{depthwise_conv_module.1} parent=5 // pred_region
        %s6904 = ssub.s32 %s15, 2
        // Predicated region
        $region107: #{depthwise_conv_module.1} parent=105 // pred_check
          %p6905 = pneg %p170
        $region108: #{depthwise_conv_module.1} parent=105 // pred_check_branch
          %6907 = sbr.rel (%p6905) target = $region110
        $region109: #{depthwise_conv_module.1} parent=105 // pred_region
          %s6908 = sand.u32 %s155, 1
          %s6909 = sand.u32 %s155, 1
          %s6910 = smul.addr %s6909, 128
          %s6911 = scalar_lea.vmem [#allocation10], %s6910
        $region110: #{depthwise_conv_module.1} parent=105 // pred_fallthru
          _
      $region106: #{depthwise_conv_module.1} parent=5 // pred_fallthru
        _
    $region6: #{depthwise_conv_module.1} parent=1 // loop_footer
      %s19 = sadd.s32 1, %s15
    $region7: #{depthwise_conv_module.1} parent=1 // loop_footer_branch
      %14 = sbr.rel target = $region3
    $region8: #{depthwise_conv_module.1} parent=1 // loop_exit
      _
    %6912 = vsyncpa [#allocation3], 1
    %s6913 = scalar_lea.sflag [#allocation3], 1
    %6914 = vsyncpa %s6913, 1
    %6915 = vsyncpa [#allocation5], 1
    %6916 = vsyncpa [#allocation8], 1

</llo_original>
